<compile_context>
chip_gen: v7x
topology: tpu7x:2x2x1
jax: 0.10.0
libtpu: 0.0.40
codegen_flags: <defaults>
</compile_context>

<pallas_src>
import jax
import jax.numpy as jnp
from jax import lax
from jax.experimental import pallas as pl
from jax.experimental.pallas import tpu as pltpu
import numpy as np

EPS = 1e-5  # PyTorch InstanceNorm2d default eps (affine=False, no running stats)


def _down_block_kernel(x_ref, w1_ref, w2_ref, pool_ref, skip_ref, xpad, ypad):
    # x_ref   : (1, H, W, Cin)         one batch element, NHWC, unpadded
    # w1_ref  : (9*Cin, Cout)          conv1 taps stacked along the contraction dim
    # w2_ref  : (9*Cout, Cout)         conv2 taps stacked along the contraction dim
    # pool_ref: (1, Cout, Hp*Wp)       C-major, lane-dense
    # skip_ref: (1, Cout, H*W)         C-major, lane-dense
    # xpad    : (H+2, W+2, Cin)  VMEM  halo scratch for conv1
    # ypad    : (H+2, W+2, Cout) VMEM  halo scratch for conv2
    H, W, Cin = x_ref.shape[1], x_ref.shape[2], x_ref.shape[3]
    Cout = skip_ref.shape[1]
    Hp, Wp = H // 2, W // 2
    inv_hw = 1.0 / float(H * W)

    # Zero only the 1-pixel halo border; the interiors are fully overwritten below.
    # Per-step (cheap: perimeter only) so it is correct under megacore sharding,
    # where each core holds its own scratch and never sees program_id(0) == 0.
    xpad[0:1, :, :] = jnp.zeros((1, W + 2, Cin), jnp.float32)
    xpad[H + 1:H + 2, :, :] = jnp.zeros((1, W + 2, Cin), jnp.float32)
    xpad[:, 0:1, :] = jnp.zeros((H + 2, 1, Cin), jnp.float32)
    xpad[:, W + 1:W + 2, :] = jnp.zeros((H + 2, 1, Cin), jnp.float32)
    ypad[0:1, :, :] = jnp.zeros((1, W + 2, Cout), jnp.float32)
    ypad[H + 1:H + 2, :, :] = jnp.zeros((1, W + 2, Cout), jnp.float32)
    ypad[:, 0:1, :] = jnp.zeros((H + 2, 1, Cout), jnp.float32)
    ypad[:, W + 1:W + 2, :] = jnp.zeros((H + 2, 1, Cout), jnp.float32)

    # ---- conv1: 3x3, stride 1, pad 1 (9 tap-matmuls on the MXU; no bias — it is
    #      exactly cancelled by the mean subtraction of the InstanceNorm below) ----
    xpad[1:H + 1, 1:W + 1, :] = x_ref[0]
    xp = xpad[...]
    w1 = w1_ref[...]
    acc = jnp.zeros((H * W, Cout), jnp.float32)
    for ky in range(3):
        for kx in range(3):
            tap = ky * 3 + kx
            patch = xp[ky:ky + H, kx:kx + W, :].reshape(H * W, Cin)
            acc += jnp.dot(patch, w1[tap * Cin:(tap + 1) * Cin, :],
                           preferred_element_type=jnp.float32)

    # ---- InstanceNorm2d (per-sample, per-channel, biased var) + ReLU ----
    m1 = jnp.sum(acc, axis=0, keepdims=True) * inv_hw
    m2 = jnp.sum(acc * acc, axis=0, keepdims=True) * inv_hw
    var1 = jnp.maximum(m2 - m1 * m1, 0.0)
    y = jnp.maximum((acc - m1) * lax.rsqrt(var1 + EPS), 0.0)

    # ---- conv2 (again bias-free) ----
    ypad[1:H + 1, 1:W + 1, :] = y.reshape(H, W, Cout)
    yp = ypad[...]
    w2 = w2_ref[...]
    acc2 = jnp.zeros((H * W, Cout), jnp.float32)
    for ky in range(3):
        for kx in range(3):
            tap = ky * 3 + kx
            patch = yp[ky:ky + H, kx:kx + W, :].reshape(H * W, Cout)
            acc2 += jnp.dot(patch, w2[tap * Cout:(tap + 1) * Cout, :],
                            preferred_element_type=jnp.float32)

    # ---- InstanceNorm2d + ReLU ----
    n1 = jnp.sum(acc2, axis=0, keepdims=True) * inv_hw
    n2 = jnp.sum(acc2 * acc2, axis=0, keepdims=True) * inv_hw
    var2 = jnp.maximum(n2 - n1 * n1, 0.0)
    z = jnp.maximum((acc2 - n1) * lax.rsqrt(var2 + EPS), 0.0)   # (H*W, Cout)

    # ---- lane-dense, C-major skip output: (Cout, H*W) ----
    skip_ref[0] = jnp.transpose(z).astype(skip_ref.dtype)

    # ---- MaxPool2d(kernel=2, stride=2), then C-major pooled output ----
    pooled = jnp.max(z.reshape(Hp, 2, Wp, 2, Cout), axis=(1, 3))       # (Hp, Wp, Cout)
    pool_ref[0] = jnp.transpose(pooled.reshape(Hp * Wp, Cout)).astype(pool_ref.dtype)


def down_block(x_nchw, w1, b1, w2, b2):
    """DownBlock forward. Returns (out, skip_out) in NCHW, like the torch module.

    b1/b2 are accepted for interface parity but not used: the conv bias is a
    per-channel constant that the following non-affine InstanceNorm cancels exactly.
    """
    del b1, b2
    N, Cin, H, W = x_nchw.shape
    Cout = w1.shape[-1]
    assert H % 2 == 0 and W % 2 == 0
    Hp, Wp = H // 2, W // 2

    x = jnp.transpose(x_nchw, (0, 2, 3, 1)).astype(jnp.float32)       # NHWC, unpadded
    # Weights as 2-D slabs: one (8,128)-padded tile instead of nine tiny padded tiles.
    w1_2d = w1.astype(jnp.float32).reshape(9 * Cin, Cout)
    w2_2d = w2.astype(jnp.float32).reshape(9 * Cout, Cout)

    pooled, skip = pl.pallas_call(
        _down_block_kernel,
        out_shape=(
            jax.ShapeDtypeStruct((N, Cout, Hp * Wp), jnp.float32),
            jax.ShapeDtypeStruct((N, Cout, H * W), jnp.float32),
        ),
        grid_spec=pltpu.PrefetchScalarGridSpec(
            num_scalar_prefetch=0,
            grid=(N,),
            in_specs=[
                pl.BlockSpec((1, H, W, Cin), lambda n: (n, 0, 0, 0)),
                pl.BlockSpec((9 * Cin, Cout), lambda n: (0, 0)),
                pl.BlockSpec((9 * Cout, Cout), lambda n: (0, 0)),
            ],
            out_specs=[
                pl.BlockSpec((1, Cout, Hp * Wp), lambda n: (n, 0, 0)),
                pl.BlockSpec((1, Cout, H * W), lambda n: (n, 0, 0)),
            ],
            scratch_shapes=[
                pltpu.VMEM((H + 2, W + 2, Cin), jnp.float32),
                pltpu.VMEM((H + 2, W + 2, Cout), jnp.float32),
            ],
        ),
        compiler_params=pltpu.CompilerParams(
            dimension_semantics=("parallel",)),   # batch is independent -> 2 TCs on v7x
    )(x, w1_2d, w2_2d)

    # Kernel outputs are already NC(H*W); only a (free) reshape is needed for NCHW.
    out = pooled.reshape(N, Cout, Hp, Wp)
    skip_out = skip.reshape(N, Cout, H, W)
    return out, skip_out


def _ref_forward(x_nchw, w1, b1, w2, b2):
    """Pure-JAX reference (matches torch semantics, biases included) for validation."""
    x = jnp.transpose(x_nchw, (0, 2, 3, 1)).astype(jnp.float32)

    def conv(x, w, b):
        y = lax.conv_general_dilated(
            x, w, window_strides=(1, 1), padding=((1, 1), (1, 1)),
            dimension_numbers=('NHWC', 'HWIO', 'NHWC'))
        return y + b.reshape(1, 1, 1, -1)

    def inorm_relu(y):
        mean = jnp.mean(y, axis=(1, 2), keepdims=True)
        var = jnp.mean((y - mean) ** 2, axis=(1, 2), keepdims=True)
        return jnp.maximum((y - mean) / jnp.sqrt(var + EPS), 0.0)

    y = inorm_relu(conv(x, w1, b1))
    y = inorm_relu(conv(y, w2, b2))
    N, H, W, C = y.shape
    pooled = jnp.max(y.reshape(N, H // 2, 2, W // 2, 2, C), axis=(2, 4))
    return jnp.transpose(pooled, (0, 3, 1, 2)), jnp.transpose(y, (0, 3, 1, 2))


if __name__ == "__main__":
    # Small deterministic configuration: batch=2, in_channel=4, out_channel=8, spatial=16
    N, Cin, Cout, H, W = 2, 4, 8, 16, 16

    key = jax.random.PRNGKey(0)
    kx, kw1, kb1, kw2, kb2 = jax.random.split(key, 5)

    x = jax.random.normal(kx, (N, Cin, H, W), dtype=jnp.float32)
    # Conv weights in HWIO layout (equivalent to torch OIHW transposed).
    w1 = 0.1 * jax.random.normal(kw1, (3, 3, Cin, Cout), dtype=jnp.float32)
    b1 = 0.1 * jax.random.normal(kb1, (Cout,), dtype=jnp.float32)
    w2 = 0.1 * jax.random.normal(kw2, (3, 3, Cout, Cout), dtype=jnp.float32)
    b2 = 0.1 * jax.random.normal(kb2, (Cout,), dtype=jnp.float32)

    out, skip_out = down_block(x, w1, b1, w2, b2)
    jax.block_until_ready((out, skip_out))

    ref_out, ref_skip = _ref_forward(x, w1, b1, w2, b2)
    np.testing.assert_allclose(np.asarray(out), np.asarray(ref_out),
                               rtol=1e-4, atol=1e-4)
    np.testing.assert_allclose(np.asarray(skip_out), np.asarray(ref_skip),
                               rtol=1e-4, atol=1e-4)

    assert out.shape == (N, Cout, H // 2, W // 2)
    assert skip_out.shape == (N, Cout, H, W)
    print("KERNEL_OK")
</pallas_src>

<mosaic_0001>
module attributes {stable_mosaic.version = 11 : i64} {
  func.func @_down_block_kernel(%arg0: i32, %arg1: memref<1x16x16x4xf32, #tpu.memory_space<vmem>>, %arg2: memref<36x8xf32, #tpu.memory_space<vmem>>, %arg3: memref<72x8xf32, #tpu.memory_space<vmem>>, %arg4: memref<1x8x64xf32, #tpu.memory_space<vmem>>, %arg5: memref<1x8x256xf32, #tpu.memory_space<vmem>>, %arg6: memref<18x18x4xf32, #tpu.memory_space<vmem>>, %arg7: memref<18x18x8xf32, #tpu.memory_space<vmem>>) attributes {dimension_semantics = [#tpu.dimension_semantics<parallel>], iteration_bounds = array<i64: 2>, scalar_prefetch = 0 : i64, scratch_operands = 2 : i64, tpu.core_type = #tpu.core_type<tc>, window_params = [{transform_indices = @transform_0, window_bounds = array<i64: 1, 16, 16, 4>}, {pipeline_mode = #tpu.pipeline_mode<synchronous>, transform_indices = @transform_1, window_bounds = array<i64: 36, 8>}, {pipeline_mode = #tpu.pipeline_mode<synchronous>, transform_indices = @transform_2, window_bounds = array<i64: 72, 8>}, {transform_indices = @transform_3, window_bounds = array<i64: 1, 8, 64>}, {transform_indices = @transform_4, window_bounds = array<i64: 1, 8, 256>}]} {
    %cst = arith.constant 0.000000e+00 : f32
    %0 = vector.broadcast %cst : f32 to vector<1x18x4xf32>
    %c0 = arith.constant 0 : index
    %c0_0 = arith.constant 0 : index
    %c0_1 = arith.constant 0 : index
    %1 = vector.load %arg6[%c0, %c0_0, %c0_1] : memref<18x18x4xf32, #tpu.memory_space<vmem>>, vector<1x18x4xf32>
    tpu.vector_store %arg6[%c0, %c0_0, %c0_1], %0 {strides = array<i32>} : memref<18x18x4xf32, #tpu.memory_space<vmem>>, vector<1x18x4xf32>,
    %cst_2 = arith.constant 0.000000e+00 : f32
    %2 = vector.broadcast %cst_2 : f32 to vector<1x18x4xf32>
    %c17 = arith.constant 17 : index
    %c0_3 = arith.constant 0 : index
    %c0_4 = arith.constant 0 : index
    %3 = vector.load %arg6[%c17, %c0_3, %c0_4] : memref<18x18x4xf32, #tpu.memory_space<vmem>>, vector<1x18x4xf32>
    tpu.vector_store %arg6[%c17, %c0_3, %c0_4], %2 {strides = array<i32>} : memref<18x18x4xf32, #tpu.memory_space<vmem>>, vector<1x18x4xf32>,
    %cst_5 = arith.constant 0.000000e+00 : f32
    %4 = vector.broadcast %cst_5 : f32 to vector<18x1x4xf32>
    %c0_6 = arith.constant 0 : index
    %c0_7 = arith.constant 0 : index
    %c0_8 = arith.constant 0 : index
    %5 = vector.load %arg6[%c0_6, %c0_7, %c0_8] : memref<18x18x4xf32, #tpu.memory_space<vmem>>, vector<18x1x4xf32>
    tpu.vector_store %arg6[%c0_6, %c0_7, %c0_8], %4 {strides = array<i32>} : memref<18x18x4xf32, #tpu.memory_space<vmem>>, vector<18x1x4xf32>,
    %cst_9 = arith.constant 0.000000e+00 : f32
    %6 = vector.broadcast %cst_9 : f32 to vector<18x1x4xf32>
    %c0_10 = arith.constant 0 : index
    %c17_11 = arith.constant 17 : index
    %c0_12 = arith.constant 0 : index
    %7 = vector.load %arg6[%c0_10, %c17_11, %c0_12] : memref<18x18x4xf32, #tpu.memory_space<vmem>>, vector<18x1x4xf32>
    tpu.vector_store %arg6[%c0_10, %c17_11, %c0_12], %6 {strides = array<i32>} : memref<18x18x4xf32, #tpu.memory_space<vmem>>, vector<18x1x4xf32>,
    %cst_13 = arith.constant 0.000000e+00 : f32
    %8 = vector.broadcast %cst_13 : f32 to vector<1x18x8xf32>
    %c0_14 = arith.constant 0 : index
    %c0_15 = arith.constant 0 : index
    %c0_16 = arith.constant 0 : index
    %9 = vector.load %arg7[%c0_14, %c0_15, %c0_16] : memref<18x18x8xf32, #tpu.memory_space<vmem>>, vector<1x18x8xf32>
    tpu.vector_store %arg7[%c0_14, %c0_15, %c0_16], %8 {strides = array<i32>} : memref<18x18x8xf32, #tpu.memory_space<vmem>>, vector<1x18x8xf32>,
    %cst_17 = arith.constant 0.000000e+00 : f32
    %10 = vector.broadcast %cst_17 : f32 to vector<1x18x8xf32>
    %c17_18 = arith.constant 17 : index
    %c0_19 = arith.constant 0 : index
    %c0_20 = arith.constant 0 : index
    %11 = vector.load %arg7[%c17_18, %c0_19, %c0_20] : memref<18x18x8xf32, #tpu.memory_space<vmem>>, vector<1x18x8xf32>
    tpu.vector_store %arg7[%c17_18, %c0_19, %c0_20], %10 {strides = array<i32>} : memref<18x18x8xf32, #tpu.memory_space<vmem>>, vector<1x18x8xf32>,
    %cst_21 = arith.constant 0.000000e+00 : f32
    %12 = vector.broadcast %cst_21 : f32 to vector<18x1x8xf32>
    %c0_22 = arith.constant 0 : index
    %c0_23 = arith.constant 0 : index
    %c0_24 = arith.constant 0 : index
    %13 = vector.load %arg7[%c0_22, %c0_23, %c0_24] : memref<18x18x8xf32, #tpu.memory_space<vmem>>, vector<18x1x8xf32>
    tpu.vector_store %arg7[%c0_22, %c0_23, %c0_24], %12 {strides = array<i32>} : memref<18x18x8xf32, #tpu.memory_space<vmem>>, vector<18x1x8xf32>,
    %cst_25 = arith.constant 0.000000e+00 : f32
    %14 = vector.broadcast %cst_25 : f32 to vector<18x1x8xf32>
    %c0_26 = arith.constant 0 : index
    %c17_27 = arith.constant 17 : index
    %c0_28 = arith.constant 0 : index
    %15 = vector.load %arg7[%c0_26, %c17_27, %c0_28] : memref<18x18x8xf32, #tpu.memory_space<vmem>>, vector<18x1x8xf32>
    tpu.vector_store %arg7[%c0_26, %c17_27, %c0_28], %14 {strides = array<i32>} : memref<18x18x8xf32, #tpu.memory_space<vmem>>, vector<18x1x8xf32>,
    %c0_29 = arith.constant 0 : index
    %c0_30 = arith.constant 0 : index
    %c0_31 = arith.constant 0 : index
    %c0_32 = arith.constant 0 : index
    %16 = vector.load %arg1[%c0_29, %c0_30, %c0_31, %c0_32] : memref<1x16x16x4xf32, #tpu.memory_space<vmem>>, vector<1x16x16x4xf32>
    %17 = vector.shape_cast %16 : vector<1x16x16x4xf32> to vector<16x16x4xf32>
    %c1 = arith.constant 1 : index
    %c1_33 = arith.constant 1 : index
    %c0_34 = arith.constant 0 : index
    %18 = vector.load %arg6[%c1, %c1_33, %c0_34] : memref<18x18x4xf32, #tpu.memory_space<vmem>>, vector<16x16x4xf32>
    tpu.vector_store %arg6[%c1, %c1_33, %c0_34], %17 {strides = array<i32>} : memref<18x18x4xf32, #tpu.memory_space<vmem>>, vector<16x16x4xf32>,
    %c0_35 = arith.constant 0 : index
    %c0_36 = arith.constant 0 : index
    %c0_37 = arith.constant 0 : index
    %19 = vector.load %arg6[%c0_35, %c0_36, %c0_37] : memref<18x18x4xf32, #tpu.memory_space<vmem>>, vector<18x18x4xf32>
    %c0_38 = arith.constant 0 : index
    %c0_39 = arith.constant 0 : index
    %20 = vector.load %arg2[%c0_38, %c0_39] : memref<36x8xf32, #tpu.memory_space<vmem>>, vector<36x8xf32>
    %cst_40 = arith.constant 0.000000e+00 : f32
    %21 = vector.broadcast %cst_40 : f32 to vector<256x8xf32>
    %22 = vector.extract_strided_slice %19 {offsets = [0, 0, 0], sizes = [16, 16, 4], strides = [1, 1, 1]} : vector<18x18x4xf32> to vector<16x16x4xf32>
    %23 = vector.shape_cast %22 : vector<16x16x4xf32> to vector<256x4xf32>
    %24 = vector.extract_strided_slice %20 {offsets = [0, 0], sizes = [4, 8], strides = [1, 1]} : vector<36x8xf32> to vector<4x8xf32>
    %cst_41 = arith.constant dense<0.000000e+00> : vector<256x8xf32>
    %25 = tpu.matmul %23, %24, %cst_41 {dimension_numbers = #tpu.dot_dimension_numbers<[1], [0], [0], [1], [0, 0, 1, 1], [], []>} : vector<256x4xf32>, vector<4x8xf32>, vector<256x8xf32> -> vector<256x8xf32>
    %26 = arith.addf %21, %25 : vector<256x8xf32>
    %27 = vector.extract_strided_slice %19 {offsets = [0, 1, 0], sizes = [16, 16, 4], strides = [1, 1, 1]} : vector<18x18x4xf32> to vector<16x16x4xf32>
    %28 = vector.shape_cast %27 : vector<16x16x4xf32> to vector<256x4xf32>
    %29 = vector.extract_strided_slice %20 {offsets = [4, 0], sizes = [4, 8], strides = [1, 1]} : vector<36x8xf32> to vector<4x8xf32>
    %cst_42 = arith.constant dense<0.000000e+00> : vector<256x8xf32>
    %30 = tpu.matmul %28, %29, %cst_42 {dimension_numbers = #tpu.dot_dimension_numbers<[1], [0], [0], [1], [0, 0, 1, 1], [], []>} : vector<256x4xf32>, vector<4x8xf32>, vector<256x8xf32> -> vector<256x8xf32>
    %31 = arith.addf %26, %30 : vector<256x8xf32>
    %32 = vector.extract_strided_slice %19 {offsets = [0, 2, 0], sizes = [16, 16, 4], strides = [1, 1, 1]} : vector<18x18x4xf32> to vector<16x16x4xf32>
    %33 = vector.shape_cast %32 : vector<16x16x4xf32> to vector<256x4xf32>
    %34 = vector.extract_strided_slice %20 {offsets = [8, 0], sizes = [4, 8], strides = [1, 1]} : vector<36x8xf32> to vector<4x8xf32>
    %cst_43 = arith.constant dense<0.000000e+00> : vector<256x8xf32>
    %35 = tpu.matmul %33, %34, %cst_43 {dimension_numbers = #tpu.dot_dimension_numbers<[1], [0], [0], [1], [0, 0, 1, 1], [], []>} : vector<256x4xf32>, vector<4x8xf32>, vector<256x8xf32> -> vector<256x8xf32>
    %36 = arith.addf %31, %35 : vector<256x8xf32>
    %37 = vector.extract_strided_slice %19 {offsets = [1, 0, 0], sizes = [16, 16, 4], strides = [1, 1, 1]} : vector<18x18x4xf32> to vector<16x16x4xf32>
    %38 = vector.shape_cast %37 : vector<16x16x4xf32> to vector<256x4xf32>
    %39 = vector.extract_strided_slice %20 {offsets = [12, 0], sizes = [4, 8], strides = [1, 1]} : vector<36x8xf32> to vector<4x8xf32>
    %cst_44 = arith.constant dense<0.000000e+00> : vector<256x8xf32>
    %40 = tpu.matmul %38, %39, %cst_44 {dimension_numbers = #tpu.dot_dimension_numbers<[1], [0], [0], [1], [0, 0, 1, 1], [], []>} : vector<256x4xf32>, vector<4x8xf32>, vector<256x8xf32> -> vector<256x8xf32>
    %41 = arith.addf %36, %40 : vector<256x8xf32>
    %42 = vector.extract_strided_slice %19 {offsets = [1, 1, 0], sizes = [16, 16, 4], strides = [1, 1, 1]} : vector<18x18x4xf32> to vector<16x16x4xf32>
    %43 = vector.shape_cast %42 : vector<16x16x4xf32> to vector<256x4xf32>
    %44 = vector.extract_strided_slice %20 {offsets = [16, 0], sizes = [4, 8], strides = [1, 1]} : vector<36x8xf32> to vector<4x8xf32>
    %cst_45 = arith.constant dense<0.000000e+00> : vector<256x8xf32>
    %45 = tpu.matmul %43, %44, %cst_45 {dimension_numbers = #tpu.dot_dimension_numbers<[1], [0], [0], [1], [0, 0, 1, 1], [], []>} : vector<256x4xf32>, vector<4x8xf32>, vector<256x8xf32> -> vector<256x8xf32>
    %46 = arith.addf %41, %45 : vector<256x8xf32>
    %47 = vector.extract_strided_slice %19 {offsets = [1, 2, 0], sizes = [16, 16, 4], strides = [1, 1, 1]} : vector<18x18x4xf32> to vector<16x16x4xf32>
    %48 = vector.shape_cast %47 : vector<16x16x4xf32> to vector<256x4xf32>
    %49 = vector.extract_strided_slice %20 {offsets = [20, 0], sizes = [4, 8], strides = [1, 1]} : vector<36x8xf32> to vector<4x8xf32>
    %cst_46 = arith.constant dense<0.000000e+00> : vector<256x8xf32>
    %50 = tpu.matmul %48, %49, %cst_46 {dimension_numbers = #tpu.dot_dimension_numbers<[1], [0], [0], [1], [0, 0, 1, 1], [], []>} : vector<256x4xf32>, vector<4x8xf32>, vector<256x8xf32> -> vector<256x8xf32>
    %51 = arith.addf %46, %50 : vector<256x8xf32>
    %52 = vector.extract_strided_slice %19 {offsets = [2, 0, 0], sizes = [16, 16, 4], strides = [1, 1, 1]} : vector<18x18x4xf32> to vector<16x16x4xf32>
    %53 = vector.shape_cast %52 : vector<16x16x4xf32> to vector<256x4xf32>
    %54 = vector.extract_strided_slice %20 {offsets = [24, 0], sizes = [4, 8], strides = [1, 1]} : vector<36x8xf32> to vector<4x8xf32>
    %cst_47 = arith.constant dense<0.000000e+00> : vector<256x8xf32>
    %55 = tpu.matmul %53, %54, %cst_47 {dimension_numbers = #tpu.dot_dimension_numbers<[1], [0], [0], [1], [0, 0, 1, 1], [], []>} : vector<256x4xf32>, vector<4x8xf32>, vector<256x8xf32> -> vector<256x8xf32>
    %56 = arith.addf %51, %55 : vector<256x8xf32>
    %57 = vector.extract_strided_slice %19 {offsets = [2, 1, 0], sizes = [16, 16, 4], strides = [1, 1, 1]} : vector<18x18x4xf32> to vector<16x16x4xf32>
    %58 = vector.shape_cast %57 : vector<16x16x4xf32> to vector<256x4xf32>
    %59 = vector.extract_strided_slice %20 {offsets = [28, 0], sizes = [4, 8], strides = [1, 1]} : vector<36x8xf32> to vector<4x8xf32>
    %cst_48 = arith.constant dense<0.000000e+00> : vector<256x8xf32>
    %60 = tpu.matmul %58, %59, %cst_48 {dimension_numbers = #tpu.dot_dimension_numbers<[1], [0], [0], [1], [0, 0, 1, 1], [], []>} : vector<256x4xf32>, vector<4x8xf32>, vector<256x8xf32> -> vector<256x8xf32>
    %61 = arith.addf %56, %60 : vector<256x8xf32>
    %62 = vector.extract_strided_slice %19 {offsets = [2, 2, 0], sizes = [16, 16, 4], strides = [1, 1, 1]} : vector<18x18x4xf32> to vector<16x16x4xf32>
    %63 = vector.shape_cast %62 : vector<16x16x4xf32> to vector<256x4xf32>
    %64 = vector.extract_strided_slice %20 {offsets = [32, 0], sizes = [4, 8], strides = [1, 1]} : vector<36x8xf32> to vector<4x8xf32>
    %cst_49 = arith.constant dense<0.000000e+00> : vector<256x8xf32>
    %65 = tpu.matmul %63, %64, %cst_49 {dimension_numbers = #tpu.dot_dimension_numbers<[1], [0], [0], [1], [0, 0, 1, 1], [], []>} : vector<256x4xf32>, vector<4x8xf32>, vector<256x8xf32> -> vector<256x8xf32>
    %66 = arith.addf %61, %65 : vector<256x8xf32>
    %cst_50 = arith.constant dense<0.000000e+00> : vector<8xf32>
    %67 = vector.multi_reduction <add>, %66, %cst_50 [0] : vector<256x8xf32> to vector<8xf32>
    %68 = vector.shape_cast %67 : vector<8xf32> to vector<1x8xf32>
    %cst_51 = arith.constant 3.906250e-03 : f32
    %69 = vector.broadcast %cst_51 : f32 to vector<1x8xf32>
    %70 = arith.mulf %68, %69 : vector<1x8xf32>
    %71 = arith.mulf %66, %66 : vector<256x8xf32>
    %cst_52 = arith.constant dense<0.000000e+00> : vector<8xf32>
    %72 = vector.multi_reduction <add>, %71, %cst_52 [0] : vector<256x8xf32> to vector<8xf32>
    %73 = vector.shape_cast %72 : vector<8xf32> to vector<1x8xf32>
    %cst_53 = arith.constant 3.906250e-03 : f32
    %74 = vector.broadcast %cst_53 : f32 to vector<1x8xf32>
    %75 = arith.mulf %73, %74 : vector<1x8xf32>
    %76 = arith.mulf %70, %70 : vector<1x8xf32>
    %77 = arith.subf %75, %76 : vector<1x8xf32>
    %cst_54 = arith.constant 0.000000e+00 : f32
    %78 = vector.broadcast %cst_54 : f32 to vector<1x8xf32>
    %79 = arith.maximumf %77, %78 : vector<1x8xf32>
    %80 = vector.broadcast %70 : vector<1x8xf32> to vector<256x8xf32>
    %81 = arith.subf %66, %80 : vector<256x8xf32>
    %cst_55 = arith.constant 9.99999974E-6 : f32
    %82 = vector.broadcast %cst_55 : f32 to vector<1x8xf32>
    %83 = arith.addf %79, %82 : vector<1x8xf32>
    %84 = math.rsqrt %83 : vector<1x8xf32>
    %85 = vector.broadcast %84 : vector<1x8xf32> to vector<256x8xf32>
    %86 = arith.mulf %81, %85 : vector<256x8xf32>
    %cst_56 = arith.constant 0.000000e+00 : f32
    %87 = vector.broadcast %cst_56 : f32 to vector<256x8xf32>
    %88 = arith.maximumf %86, %87 : vector<256x8xf32>
    %89 = vector.shape_cast %88 : vector<256x8xf32> to vector<16x16x8xf32>
    %c1_57 = arith.constant 1 : index
    %c1_58 = arith.constant 1 : index
    %c0_59 = arith.constant 0 : index
    %90 = vector.load %arg7[%c1_57, %c1_58, %c0_59] : memref<18x18x8xf32, #tpu.memory_space<vmem>>, vector<16x16x8xf32>
    tpu.vector_store %arg7[%c1_57, %c1_58, %c0_59], %89 {strides = array<i32>} : memref<18x18x8xf32, #tpu.memory_space<vmem>>, vector<16x16x8xf32>,
    %c0_60 = arith.constant 0 : index
    %c0_61 = arith.constant 0 : index
    %c0_62 = arith.constant 0 : index
    %91 = vector.load %arg7[%c0_60, %c0_61, %c0_62] : memref<18x18x8xf32, #tpu.memory_space<vmem>>, vector<18x18x8xf32>
    %c0_63 = arith.constant 0 : index
    %c0_64 = arith.constant 0 : index
    %92 = vector.load %arg3[%c0_63, %c0_64] : memref<72x8xf32, #tpu.memory_space<vmem>>, vector<72x8xf32>
    %cst_65 = arith.constant 0.000000e+00 : f32
    %93 = vector.broadcast %cst_65 : f32 to vector<256x8xf32>
    %94 = vector.extract_strided_slice %91 {offsets = [0, 0, 0], sizes = [16, 16, 8], strides = [1, 1, 1]} : vector<18x18x8xf32> to vector<16x16x8xf32>
    %95 = vector.shape_cast %94 : vector<16x16x8xf32> to vector<256x8xf32>
    %96 = vector.extract_strided_slice %92 {offsets = [0, 0], sizes = [8, 8], strides = [1, 1]} : vector<72x8xf32> to vector<8x8xf32>
    %cst_66 = arith.constant dense<0.000000e+00> : vector<256x8xf32>
    %97 = tpu.matmul %95, %96, %cst_66 {dimension_numbers = #tpu.dot_dimension_numbers<[1], [0], [0], [1], [0, 0, 1, 1], [], []>} : vector<256x8xf32>, vector<8x8xf32>, vector<256x8xf32> -> vector<256x8xf32>
    %98 = arith.addf %93, %97 : vector<256x8xf32>
    %99 = vector.extract_strided_slice %91 {offsets = [0, 1, 0], sizes = [16, 16, 8], strides = [1, 1, 1]} : vector<18x18x8xf32> to vector<16x16x8xf32>
    %100 = vector.shape_cast %99 : vector<16x16x8xf32> to vector<256x8xf32>
    %101 = vector.extract_strided_slice %92 {offsets = [8, 0], sizes = [8, 8], strides = [1, 1]} : vector<72x8xf32> to vector<8x8xf32>
    %cst_67 = arith.constant dense<0.000000e+00> : vector<256x8xf32>
    %102 = tpu.matmul %100, %101, %cst_67 {dimension_numbers = #tpu.dot_dimension_numbers<[1], [0], [0], [1], [0, 0, 1, 1], [], []>} : vector<256x8xf32>, vector<8x8xf32>, vector<256x8xf32> -> vector<256x8xf32>
    %103 = arith.addf %98, %102 : vector<256x8xf32>
    %104 = vector.extract_strided_slice %91 {offsets = [0, 2, 0], sizes = [16, 16, 8], strides = [1, 1, 1]} : vector<18x18x8xf32> to vector<16x16x8xf32>
    %105 = vector.shape_cast %104 : vector<16x16x8xf32> to vector<256x8xf32>
    %106 = vector.extract_strided_slice %92 {offsets = [16, 0], sizes = [8, 8], strides = [1, 1]} : vector<72x8xf32> to vector<8x8xf32>
    %cst_68 = arith.constant dense<0.000000e+00> : vector<256x8xf32>
    %107 = tpu.matmul %105, %106, %cst_68 {dimension_numbers = #tpu.dot_dimension_numbers<[1], [0], [0], [1], [0, 0, 1, 1], [], []>} : vector<256x8xf32>, vector<8x8xf32>, vector<256x8xf32> -> vector<256x8xf32>
    %108 = arith.addf %103, %107 : vector<256x8xf32>
    %109 = vector.extract_strided_slice %91 {offsets = [1, 0, 0], sizes = [16, 16, 8], strides = [1, 1, 1]} : vector<18x18x8xf32> to vector<16x16x8xf32>
    %110 = vector.shape_cast %109 : vector<16x16x8xf32> to vector<256x8xf32>
    %111 = vector.extract_strided_slice %92 {offsets = [24, 0], sizes = [8, 8], strides = [1, 1]} : vector<72x8xf32> to vector<8x8xf32>
    %cst_69 = arith.constant dense<0.000000e+00> : vector<256x8xf32>
    %112 = tpu.matmul %110, %111, %cst_69 {dimension_numbers = #tpu.dot_dimension_numbers<[1], [0], [0], [1], [0, 0, 1, 1], [], []>} : vector<256x8xf32>, vector<8x8xf32>, vector<256x8xf32> -> vector<256x8xf32>
    %113 = arith.addf %108, %112 : vector<256x8xf32>
    %114 = vector.extract_strided_slice %91 {offsets = [1, 1, 0], sizes = [16, 16, 8], strides = [1, 1, 1]} : vector<18x18x8xf32> to vector<16x16x8xf32>
    %115 = vector.shape_cast %114 : vector<16x16x8xf32> to vector<256x8xf32>
    %116 = vector.extract_strided_slice %92 {offsets = [32, 0], sizes = [8, 8], strides = [1, 1]} : vector<72x8xf32> to vector<8x8xf32>
    %cst_70 = arith.constant dense<0.000000e+00> : vector<256x8xf32>
    %117 = tpu.matmul %115, %116, %cst_70 {dimension_numbers = #tpu.dot_dimension_numbers<[1], [0], [0], [1], [0, 0, 1, 1], [], []>} : vector<256x8xf32>, vector<8x8xf32>, vector<256x8xf32> -> vector<256x8xf32>
    %118 = arith.addf %113, %117 : vector<256x8xf32>
    %119 = vector.extract_strided_slice %91 {offsets = [1, 2, 0], sizes = [16, 16, 8], strides = [1, 1, 1]} : vector<18x18x8xf32> to vector<16x16x8xf32>
    %120 = vector.shape_cast %119 : vector<16x16x8xf32> to vector<256x8xf32>
    %121 = vector.extract_strided_slice %92 {offsets = [40, 0], sizes = [8, 8], strides = [1, 1]} : vector<72x8xf32> to vector<8x8xf32>
    %cst_71 = arith.constant dense<0.000000e+00> : vector<256x8xf32>
    %122 = tpu.matmul %120, %121, %cst_71 {dimension_numbers = #tpu.dot_dimension_numbers<[1], [0], [0], [1], [0, 0, 1, 1], [], []>} : vector<256x8xf32>, vector<8x8xf32>, vector<256x8xf32> -> vector<256x8xf32>
    %123 = arith.addf %118, %122 : vector<256x8xf32>
    %124 = vector.extract_strided_slice %91 {offsets = [2, 0, 0], sizes = [16, 16, 8], strides = [1, 1, 1]} : vector<18x18x8xf32> to vector<16x16x8xf32>
    %125 = vector.shape_cast %124 : vector<16x16x8xf32> to vector<256x8xf32>
    %126 = vector.extract_strided_slice %92 {offsets = [48, 0], sizes = [8, 8], strides = [1, 1]} : vector<72x8xf32> to vector<8x8xf32>
    %cst_72 = arith.constant dense<0.000000e+00> : vector<256x8xf32>
    %127 = tpu.matmul %125, %126, %cst_72 {dimension_numbers = #tpu.dot_dimension_numbers<[1], [0], [0], [1], [0, 0, 1, 1], [], []>} : vector<256x8xf32>, vector<8x8xf32>, vector<256x8xf32> -> vector<256x8xf32>
    %128 = arith.addf %123, %127 : vector<256x8xf32>
    %129 = vector.extract_strided_slice %91 {offsets = [2, 1, 0], sizes = [16, 16, 8], strides = [1, 1, 1]} : vector<18x18x8xf32> to vector<16x16x8xf32>
    %130 = vector.shape_cast %129 : vector<16x16x8xf32> to vector<256x8xf32>
    %131 = vector.extract_strided_slice %92 {offsets = [56, 0], sizes = [8, 8], strides = [1, 1]} : vector<72x8xf32> to vector<8x8xf32>
    %cst_73 = arith.constant dense<0.000000e+00> : vector<256x8xf32>
    %132 = tpu.matmul %130, %131, %cst_73 {dimension_numbers = #tpu.dot_dimension_numbers<[1], [0], [0], [1], [0, 0, 1, 1], [], []>} : vector<256x8xf32>, vector<8x8xf32>, vector<256x8xf32> -> vector<256x8xf32>
    %133 = arith.addf %128, %132 : vector<256x8xf32>
    %134 = vector.extract_strided_slice %91 {offsets = [2, 2, 0], sizes = [16, 16, 8], strides = [1, 1, 1]} : vector<18x18x8xf32> to vector<16x16x8xf32>
    %135 = vector.shape_cast %134 : vector<16x16x8xf32> to vector<256x8xf32>
    %136 = vector.extract_strided_slice %92 {offsets = [64, 0], sizes = [8, 8], strides = [1, 1]} : vector<72x8xf32> to vector<8x8xf32>
    %cst_74 = arith.constant dense<0.000000e+00> : vector<256x8xf32>
    %137 = tpu.matmul %135, %136, %cst_74 {dimension_numbers = #tpu.dot_dimension_numbers<[1], [0], [0], [1], [0, 0, 1, 1], [], []>} : vector<256x8xf32>, vector<8x8xf32>, vector<256x8xf32> -> vector<256x8xf32>
    %138 = arith.addf %133, %137 : vector<256x8xf32>
    %cst_75 = arith.constant dense<0.000000e+00> : vector<8xf32>
    %139 = vector.multi_reduction <add>, %138, %cst_75 [0] : vector<256x8xf32> to vector<8xf32>
    %140 = vector.shape_cast %139 : vector<8xf32> to vector<1x8xf32>
    %cst_76 = arith.constant 3.906250e-03 : f32
    %141 = vector.broadcast %cst_76 : f32 to vector<1x8xf32>
    %142 = arith.mulf %140, %141 : vector<1x8xf32>
    %143 = arith.mulf %138, %138 : vector<256x8xf32>
    %cst_77 = arith.constant dense<0.000000e+00> : vector<8xf32>
    %144 = vector.multi_reduction <add>, %143, %cst_77 [0] : vector<256x8xf32> to vector<8xf32>
    %145 = vector.shape_cast %144 : vector<8xf32> to vector<1x8xf32>
    %cst_78 = arith.constant 3.906250e-03 : f32
    %146 = vector.broadcast %cst_78 : f32 to vector<1x8xf32>
    %147 = arith.mulf %145, %146 : vector<1x8xf32>
    %148 = arith.mulf %142, %142 : vector<1x8xf32>
    %149 = arith.subf %147, %148 : vector<1x8xf32>
    %cst_79 = arith.constant 0.000000e+00 : f32
    %150 = vector.broadcast %cst_79 : f32 to vector<1x8xf32>
    %151 = arith.maximumf %149, %150 : vector<1x8xf32>
    %152 = vector.broadcast %142 : vector<1x8xf32> to vector<256x8xf32>
    %153 = arith.subf %138, %152 : vector<256x8xf32>
    %cst_80 = arith.constant 9.99999974E-6 : f32
    %154 = vector.broadcast %cst_80 : f32 to vector<1x8xf32>
    %155 = arith.addf %151, %154 : vector<1x8xf32>
    %156 = math.rsqrt %155 : vector<1x8xf32>
    %157 = vector.broadcast %156 : vector<1x8xf32> to vector<256x8xf32>
    %158 = arith.mulf %153, %157 : vector<256x8xf32>
    %cst_81 = arith.constant 0.000000e+00 : f32
    %159 = vector.broadcast %cst_81 : f32 to vector<256x8xf32>
    %160 = arith.maximumf %158, %159 : vector<256x8xf32>
    %161 = tpu.transpose %160, [1, 0] : vector<256x8xf32> -> vector<8x256xf32>
    %c0_82 = arith.constant 0 : index
    %c0_83 = arith.constant 0 : index
    %c0_84 = arith.constant 0 : index
    %162 = vector.load %arg5[%c0_82, %c0_83, %c0_84] : memref<1x8x256xf32, #tpu.memory_space<vmem>>, vector<1x8x256xf32>
    %163 = vector.shape_cast %162 : vector<1x8x256xf32> to vector<8x256xf32>
    %164 = vector.shape_cast %161 : vector<8x256xf32> to vector<1x8x256xf32>
    tpu.vector_store %arg5[%c0_82, %c0_83, %c0_84], %164 {strides = array<i32>} : memref<1x8x256xf32, #tpu.memory_space<vmem>>, vector<1x8x256xf32>,
    %165 = vector.shape_cast %160 : vector<256x8xf32> to vector<8x2x8x2x8xf32>
    %cst_85 = arith.constant dense<0xFF800000> : vector<8x8x8xf32>
    %166 = vector.multi_reduction <maximumf>, %165, %cst_85 [1, 3] : vector<8x2x8x2x8xf32> to vector<8x8x8xf32>
    %167 = vector.shape_cast %166 : vector<8x8x8xf32> to vector<64x8xf32>
    %168 = tpu.transpose %167, [1, 0] : vector<64x8xf32> -> vector<8x64xf32>
    %c0_86 = arith.constant 0 : index
    %c0_87 = arith.constant 0 : index
    %c0_88 = arith.constant 0 : index
    %169 = vector.load %arg4[%c0_86, %c0_87, %c0_88] : memref<1x8x64xf32, #tpu.memory_space<vmem>>, vector<1x8x64xf32>
    %170 = vector.shape_cast %169 : vector<1x8x64xf32> to vector<8x64xf32>
    %171 = vector.shape_cast %168 : vector<8x64xf32> to vector<1x8x64xf32>
    tpu.vector_store %arg4[%c0_86, %c0_87, %c0_88], %171 {strides = array<i32>} : memref<1x8x64xf32, #tpu.memory_space<vmem>>, vector<1x8x64xf32>,
    return
  }
  func.func @transform_0(%arg0: i32) -> (i32, i32, i32, i32) {
    %c0_i32 = arith.constant 0 : i32
    %c0_i32_0 = arith.constant 0 : i32
    %c0_i32_1 = arith.constant 0 : i32
    %c0_i32_2 = arith.constant 0 : i32
    return %arg0, %c0_i32, %c0_i32_0, %c0_i32_1 : i32, i32, i32, i32
  }
  func.func @transform_1(%arg0: i32) -> (i32, i32) {
    %c0_i32 = arith.constant 0 : i32
    %c0_i32_0 = arith.constant 0 : i32
    %c0_i32_1 = arith.constant 0 : i32
    return %c0_i32, %c0_i32_0 : i32, i32
  }
  func.func @transform_2(%arg0: i32) -> (i32, i32) {
    %c0_i32 = arith.constant 0 : i32
    %c0_i32_0 = arith.constant 0 : i32
    %c0_i32_1 = arith.constant 0 : i32
    return %c0_i32, %c0_i32_0 : i32, i32
  }
  func.func @transform_3(%arg0: i32) -> (i32, i32, i32) {
    %c0_i32 = arith.constant 0 : i32
    %c0_i32_0 = arith.constant 0 : i32
    %c0_i32_1 = arith.constant 0 : i32
    return %arg0, %c0_i32, %c0_i32_0 : i32, i32, i32
  }
  func.func @transform_4(%arg0: i32) -> (i32, i32, i32) {
    %c0_i32 = arith.constant 0 : i32
    %c0_i32_0 = arith.constant 0 : i32
    %c0_i32_1 = arith.constant 0 : i32
    return %arg0, %c0_i32, %c0_i32_0 : i32, i32, i32
  }
}

</mosaic_0001>

<llo_original>
// kernel: tpu_custom_call.1
$region0: #{tpu_custom_call.1}
  #allocation0 [shape = 'u32[]', space=smem, size = 0x4, offset = 0x4, fixed_abs, tag = 'smem constant byte address 0x4 - core index']
  #allocation1 [shape = 'u32[144,128]{1,0:T(1,128)}', space=vmem, size = 0x12000, scoped, tag = 'internal scratch']
  #allocation2 [shape = 'f32[18,18,4]{2,1,0:T(8,128)}', space=vmem, size = 0x36000, scoped, tag = 'scratch operand']
  #allocation3 [shape = 'f32[18,18,8]{2,1,0:T(8,128)}', space=vmem, size = 0x36000, scoped, tag = 'scratch operand']
  %s0 = inlined_call_operand.vmem [shape: f32[2,16,16,4], index: 0, kind: input, shape index: {}]
  %s1 = inlined_call_operand.vmem [shape: f32[36,8], index: 1, kind: input, shape index: {}]
  %s2 = inlined_call_operand.vmem [shape: f32[72,8], index: 2, kind: input, shape index: {}]
  %s3 = inlined_call_operand.hbm [shape: f32[2,8,64], index: 3, kind: output, shape index: {0}]
  %s4 = inlined_call_operand.hbm [shape: f32[2,8,256], index: 4, kind: output, shape index: {1}]
  %5 = xla_tuple %s3, %s4
  %s6 = sld [smem:[#allocation0]]
  $region53: #{tpu_custom_call.1} parent=0
    _
  %s8 = ssub.s32 1, %s6
  %s9 = scalar_select 0, %s8, %s6
  $region1: #{tpu_custom_call.1} parent=0
    #allocation4 [shape = 'u8[8192]{0}', space=vmem, size = 0x2000, scoped, tag = 'output window, operand 0']
    #allocation5 [shape = 's32[2]{0}', space=sflag, size = 0x8, scoped, tag = 'scoped memory for tpu_custom_call.1']
    #allocation6 [shape = 'u8[16384]{0}', space=vmem, size = 0x4000, scoped, tag = 'output window, operand 1']
    #allocation7 [shape = 's32[2]{0}', space=sflag, size = 0x8, scoped, tag = 'scoped memory for tpu_custom_call.1']
    %10 = vsyncpa [#allocation5], 0
    %s11 = scalar_lea.sflag [#allocation5], 1
    %12 = vsyncpa %s11, 0
    %13 = vsyncpa [#allocation7], 0
    %s14 = scalar_lea.sflag [#allocation7], 1
    %15 = vsyncpa %s14, 0
    loop: start=0, step=1, limit=4
    $region2: #{tpu_custom_call.1} parent=1 // loop_pre_header
      _
    $region3: #{tpu_custom_call.1} parent=1 // loop_header
      %s17 = sphi 0, %s21
      %p18 = scmp.ge.s32.totalorder %s17, 4
      %s27 = sphi 0, %s29
      %s30 = sphi 0, %s27
      %s31 = sphi 0, %s30
      %s47 = sphi 0, %s31
      %s51 = sphi 0, %s51
      %s53 = sphi 0, %s51
      %s54 = sphi 0, %s53
      %s68 = sphi 0, %s54
      %s72 = sphi 0, %s72
      %s74 = sphi 0, %s72
      %s75 = sphi 0, %s74
      %s89 = sphi 0, %s75
      %s95 = sphi 0, %s97
      %s98 = sphi 0, %s95
      %s99 = sphi 0, %s98
      %s115 = sphi 0, %s99
      %s121 = sphi 0, %s123
      %s124 = sphi 0, %s121
      %s125 = sphi 0, %s124
      %s141 = sphi 0, %s125
    $region4: #{tpu_custom_call.1} parent=1 // loop_header_branch
      %20 = sbr.rel (%p18) target = $region8
    $region5: #{tpu_custom_call.1} parent=1 // loop_body
      %s22 = ssub.s32 %s17, 1
      %s23 = ssub.s32 %s17, 2
      %s24 = sadd.s32 %s17, 1
      %s25 = ssub.s32 %s17, %s24
      %p26 = scmp.eq.s32.totalorder %s25, 0
      %s28 = sadd.s32 %s27, 1
      %s29 = scalar_select %p26, %s27, %s28
      %p32 = pneg %p26
      %p33 = scmp.eq.s32.totalorder %s17, 1
      %p34 = por %p32, %p33
      %p35 = scmp.ne.s32.totalorder %s27, %s30
      %p36 = scmp.eq.s32.totalorder %s17, 0
      %p37 = por %p35, %p36
      %p38 = scmp.ne.s32.totalorder %s27, %s30
      %p39 = scmp.eq.s32.totalorder %s22, 1
      %p40 = por %p38, %p39
      %p41 = scmp.ne.s32.totalorder %s30, %s31
      %p42 = scmp.eq.s32.totalorder %s22, 0
      %p43 = por %p41, %p42
      %p44 = scmp.ne.s32.totalorder %s30, %s31
      %p45 = scmp.eq.s32.totalorder %s23, 1
      %p46 = por %p44, %p45
      %p48 = scmp.ne.s32.totalorder %s31, %s47
      %p49 = scmp.eq.s32.totalorder %s23, 0
      %p50 = por %p48, %p49
      %s52 = sadd.s32 %s51, 1
      %p55 = scmp.eq.s32.totalorder %s17, 1
      %p56 = scmp.ne.s32.totalorder %s51, %s53
      %p57 = scmp.eq.s32.totalorder %s17, 0
      %p58 = por %p56, %p57
      %p59 = scmp.ne.s32.totalorder %s51, %s53
      %p60 = scmp.eq.s32.totalorder %s22, 1
      %p61 = por %p59, %p60
      %p62 = scmp.ne.s32.totalorder %s53, %s54
      %p63 = scmp.eq.s32.totalorder %s22, 0
      %p64 = por %p62, %p63
      %p65 = scmp.ne.s32.totalorder %s53, %s54
      %p66 = scmp.eq.s32.totalorder %s23, 1
      %p67 = por %p65, %p66
      %p69 = scmp.ne.s32.totalorder %s54, %s68
      %p70 = scmp.eq.s32.totalorder %s23, 0
      %p71 = por %p69, %p70
      %s73 = sadd.s32 %s72, 1
      %p76 = scmp.eq.s32.totalorder %s17, 1
      %p77 = scmp.ne.s32.totalorder %s72, %s74
      %p78 = scmp.eq.s32.totalorder %s17, 0
      %p79 = por %p77, %p78
      %p80 = scmp.ne.s32.totalorder %s72, %s74
      %p81 = scmp.eq.s32.totalorder %s22, 1
      %p82 = por %p80, %p81
      %p83 = scmp.ne.s32.totalorder %s74, %s75
      %p84 = scmp.eq.s32.totalorder %s22, 0
      %p85 = por %p83, %p84
      %p86 = scmp.ne.s32.totalorder %s74, %s75
      %p87 = scmp.eq.s32.totalorder %s23, 1
      %p88 = por %p86, %p87
      %p90 = scmp.ne.s32.totalorder %s75, %s89
      %p91 = scmp.eq.s32.totalorder %s23, 0
      %p92 = por %p90, %p91
      %s93 = ssub.s32 %s17, %s24
      %p94 = scmp.eq.s32.totalorder %s93, 0
      %s96 = sadd.s32 %s95, 1
      %s97 = scalar_select %p94, %s95, %s96
      %p100 = pneg %p94
      %p101 = scmp.eq.s32.totalorder %s17, 1
      %p102 = por %p100, %p101
      %p103 = scmp.ne.s32.totalorder %s95, %s98
      %p104 = scmp.eq.s32.totalorder %s17, 0
      %p105 = por %p103, %p104
      %p106 = scmp.ne.s32.totalorder %s95, %s98
      %p107 = scmp.eq.s32.totalorder %s22, 1
      %p108 = por %p106, %p107
      %p109 = scmp.ne.s32.totalorder %s98, %s99
      %p110 = scmp.eq.s32.totalorder %s22, 0
      %p111 = por %p109, %p110
      %p112 = scmp.ne.s32.totalorder %s98, %s99
      %p113 = scmp.eq.s32.totalorder %s23, 1
      %p114 = por %p112, %p113
      %p116 = scmp.ne.s32.totalorder %s99, %s115
      %p117 = scmp.eq.s32.totalorder %s23, 0
      %p118 = por %p116, %p117
      %s119 = ssub.s32 %s17, %s24
      %p120 = scmp.eq.s32.totalorder %s119, 0
      %s122 = sadd.s32 %s121, 1
      %s123 = scalar_select %p120, %s121, %s122
      %p126 = pneg %p120
      %p127 = scmp.eq.s32.totalorder %s17, 1
      %p128 = por %p126, %p127
      %p129 = scmp.ne.s32.totalorder %s121, %s124
      %p130 = scmp.eq.s32.totalorder %s17, 0
      %p131 = por %p129, %p130
      %p132 = scmp.ne.s32.totalorder %s121, %s124
      %p133 = scmp.eq.s32.totalorder %s22, 1
      %p134 = por %p132, %p133
      %p135 = scmp.ne.s32.totalorder %s124, %s125
      %p136 = scmp.eq.s32.totalorder %s22, 0
      %p137 = por %p135, %p136
      %p138 = scmp.ne.s32.totalorder %s124, %s125
      %p139 = scmp.eq.s32.totalorder %s23, 1
      %p140 = por %p138, %p139
      %p142 = scmp.ne.s32.totalorder %s125, %s141
      %p143 = scmp.eq.s32.totalorder %s23, 0
      %p144 = por %p142, %p143
      %p145 = scmp.le.s32.totalorder 1, %s17
      %p146 = scmp.lt.s32.totalorder %s17, 3
      %p147 = pnand %p145, %p146
      %p148 = pneg %p147
      // Predicated region
      $region9: #{tpu_custom_call.1} parent=5 // pred_check
        _
      $region10: #{tpu_custom_call.1} parent=5 // pred_check_branch
        %150 = sbr.rel (%p147) target = $region12
      $region11: #{tpu_custom_call.1} parent=5 // pred_region
        %s151 = ssub.s32 %s17, 1
        // Predicated region
        $region13: #{tpu_custom_call.1} parent=11 // pred_check
          %p152 = pneg %p64
        $region14: #{tpu_custom_call.1} parent=11 // pred_check_branch
          %154 = sbr.rel (%p152) target = $region16
        $region15: #{tpu_custom_call.1} parent=11 // pred_region
          _
        $region16: #{tpu_custom_call.1} parent=11 // pred_fallthru
          _
        // Predicated region
        $region17: #{tpu_custom_call.1} parent=11 // pred_check
          %p155 = pneg %p85
        $region18: #{tpu_custom_call.1} parent=11 // pred_check_branch
          %157 = sbr.rel (%p155) target = $region20
        $region19: #{tpu_custom_call.1} parent=11 // pred_region
          _
        $region20: #{tpu_custom_call.1} parent=11 // pred_fallthru
          _
      $region12: #{tpu_custom_call.1} parent=5 // pred_fallthru
        _
      %p158 = scmp.lt.s32.totalorder %s17, 2
      // Predicated region
      $region21: #{tpu_custom_call.1} parent=5 // pred_check
        %p159 = pneg %p158
      $region22: #{tpu_custom_call.1} parent=5 // pred_check_branch
        %161 = sbr.rel (%p159) target = $region24
      $region23: #{tpu_custom_call.1} parent=5 // pred_region
        // Predicated region
        $region25: #{tpu_custom_call.1} parent=23 // pred_check
          %p162 = pneg %p37
        $region26: #{tpu_custom_call.1} parent=23 // pred_check_branch
          %164 = sbr.rel (%p162) target = $region28
        $region27: #{tpu_custom_call.1} parent=23 // pred_region
          %p165 = scmp.lt.s32.totalorder %s17, 1
          %s166 = scalar_select %p165, %s17, 1
          %s167 = smul.addr %s166, 32
          %s168 = smul.addr %s167, 8
          %s169 = scalar_lea.vmem %s0, %s168
        $region28: #{tpu_custom_call.1} parent=23 // pred_fallthru
          _
      $region24: #{tpu_custom_call.1} parent=5 // pred_fallthru
        _
      %p170 = scmp.le.s32.totalorder 1, %s17
      %p171 = scmp.lt.s32.totalorder %s17, 3
      %p172 = pnand %p170, %p171
      %p173 = pneg %p172
      // Predicated region
      $region29: #{tpu_custom_call.1} parent=5 // pred_check
        _
      $region30: #{tpu_custom_call.1} parent=5 // pred_check_branch
        %175 = sbr.rel (%p172) target = $region32
      $region31: #{tpu_custom_call.1} parent=5 // pred_region
        %s176 = ssub.s32 %s17, 1
        %p177 = scmp.lt.s32.totalorder %s22, 1
        %s178 = scalar_select %p177, %s22, 1
        %s179 = smul.addr %s178, 32
        %s180 = smul.addr %s179, 8
        %s181 = scalar_lea.vmem %s0, %s180
        %p182 = pneg %p43
        %p183 = pneg %p40
        %p184 = pneg %p64
        %p185 = pneg %p61
        %p186 = pneg %p85
        %p187 = pneg %p82
        %p188 = pneg %p111
        %p189 = pneg %p108
        %s190 = sand.u32 %s98, 1
        %s191 = scalar_lea.sflag [#allocation5], %s190
        %s192 = sand.u32 %s98, 1
        %s193 = smul.addr %s192, 8
        %s194 = scalar_lea.vmem [#allocation4], %s193
        %p195 = pneg %p137
        %p196 = pneg %p134
        %s197 = sand.u32 %s124, 1
        %s198 = scalar_lea.sflag [#allocation7], %s197
        %s199 = sand.u32 %s124, 1
        %s200 = smul.addr %s199, 16
        %s201 = scalar_lea.vmem [#allocation6], %s200
        %p202 = scmp.lt.s32.totalorder %s22, 1
        %s203 = scalar_select %p202, %s22, 1
        %s204 = smul.addr %s203, 32
        %s205 = smul.addr %s204, 8
        %s206 = scalar_lea.vmem %s0, %s205
        %vm207 = vcmask 31744
        %208 = vst.msk [vmem:[#allocation2] sm:$0xff] %vm207, 0.0
        %209 = vst.msk [vmem:[#allocation2 + $0x8] sm:$0xff] %vm207, 0.0
        %vm210 = vcmask 25600
        %211 = vst.msk [vmem:[#allocation2 + $0x10] sm:$0x3] %vm210, 0.0
        %s212 = scalar_lea.vmem [#allocation2], 408
        %213 = vst.msk [vmem:[%s212] sm:$0xff] %vm207, 0.0
        %214 = vst.msk [vmem:[%s212 + $0x8] sm:$0xff] %vm207, 0.0
        %215 = vst.msk [vmem:[%s212 + $0x10] sm:$0x3] %vm210, 0.0
        %vm216 = vcmask 24576
        %217 = vst.msk [vmem:[#allocation2] sm:$0x1] %vm216, 0.0
        %218 = vst.msk [vmem:[#allocation2 + $0x18] sm:$0x1] %vm216, 0.0
        %219 = vst.msk [vmem:[#allocation2 + $0x30] sm:$0x1] %vm216, 0.0
        %220 = vst.msk [vmem:[#allocation2 + $0x48] sm:$0x1] %vm216, 0.0
        %221 = vst.msk [vmem:[#allocation2 + $0x60] sm:$0x1] %vm216, 0.0
        %222 = vst.msk [vmem:[#allocation2 + $0x78] sm:$0x1] %vm216, 0.0
        %223 = vst.msk [vmem:[#allocation2 + $0x90] sm:$0x1] %vm216, 0.0
        %224 = vst.msk [vmem:[#allocation2 + $0xa8] sm:$0x1] %vm216, 0.0
        %225 = vst.msk [vmem:[#allocation2 + $0xc0] sm:$0x1] %vm216, 0.0
        %226 = vst.msk [vmem:[#allocation2 + $0xd8] sm:$0x1] %vm216, 0.0
        %227 = vst.msk [vmem:[#allocation2 + $0xf0] sm:$0x1] %vm216, 0.0
        %228 = vst.msk [vmem:[#allocation2 + $0x108] sm:$0x1] %vm216, 0.0
        %229 = vst.msk [vmem:[#allocation2 + $0x120] sm:$0x1] %vm216, 0.0
        %230 = vst.msk [vmem:[#allocation2 + $0x138] sm:$0x1] %vm216, 0.0
        %231 = vst.msk [vmem:[#allocation2 + $0x150] sm:$0x1] %vm216, 0.0
        %232 = vst.msk [vmem:[#allocation2 + $0x168] sm:$0x1] %vm216, 0.0
        %233 = vst.msk [vmem:[#allocation2 + $0x180] sm:$0x1] %vm216, 0.0
        %234 = vst.msk [vmem:[#allocation2 + $0x198] sm:$0x1] %vm216, 0.0
        %235 = vst.msk [vmem:[#allocation2 + $0x11] sm:$0x1] %vm216, 0.0
        %236 = vst.msk [vmem:[#allocation2 + $0x29] sm:$0x1] %vm216, 0.0
        %237 = vst.msk [vmem:[#allocation2 + $0x41] sm:$0x1] %vm216, 0.0
        %238 = vst.msk [vmem:[#allocation2 + $0x59] sm:$0x1] %vm216, 0.0
        %239 = vst.msk [vmem:[#allocation2 + $0x71] sm:$0x1] %vm216, 0.0
        %240 = vst.msk [vmem:[#allocation2 + $0x89] sm:$0x1] %vm216, 0.0
        %241 = vst.msk [vmem:[#allocation2 + $0xa1] sm:$0x1] %vm216, 0.0
        %242 = vst.msk [vmem:[#allocation2 + $0xb9] sm:$0x1] %vm216, 0.0
        %243 = vst.msk [vmem:[#allocation2 + $0xd1] sm:$0x1] %vm216, 0.0
        %244 = vst.msk [vmem:[#allocation2 + $0xe9] sm:$0x1] %vm216, 0.0
        %245 = vst.msk [vmem:[#allocation2 + $0x101] sm:$0x1] %vm216, 0.0
        %246 = vst.msk [vmem:[#allocation2 + $0x119] sm:$0x1] %vm216, 0.0
        %247 = vst.msk [vmem:[#allocation2 + $0x131] sm:$0x1] %vm216, 0.0
        %248 = vst.msk [vmem:[#allocation2 + $0x149] sm:$0x1] %vm216, 0.0
        %249 = vst.msk [vmem:[#allocation2 + $0x161] sm:$0x1] %vm216, 0.0
        %250 = vst.msk [vmem:[#allocation2 + $0x179] sm:$0x1] %vm216, 0.0
        %251 = vst.msk [vmem:[#allocation2 + $0x191] sm:$0x1] %vm216, 0.0
        %252 = vst.msk [vmem:[#allocation2 + $0x1a9] sm:$0x1] %vm216, 0.0
        %vm253 = vcmask 64512
        %254 = vst.msk [vmem:[#allocation3] sm:$0xff] %vm253, 0.0
        %255 = vst.msk [vmem:[#allocation3 + $0x8] sm:$0xff] %vm253, 0.0
        %vm256 = vcmask 58368
        %257 = vst.msk [vmem:[#allocation3 + $0x10] sm:$0x3] %vm256, 0.0
        %s258 = scalar_lea.vmem [#allocation3], 408
        %259 = vst.msk [vmem:[%s258] sm:$0xff] %vm253, 0.0
        %260 = vst.msk [vmem:[%s258 + $0x8] sm:$0xff] %vm253, 0.0
        %261 = vst.msk [vmem:[%s258 + $0x10] sm:$0x3] %vm256, 0.0
        %vm262 = vcmask 57344
        %263 = vst.msk [vmem:[#allocation3] sm:$0x1] %vm262, 0.0
        %264 = vst.msk [vmem:[#allocation3 + $0x18] sm:$0x1] %vm262, 0.0
        %265 = vst.msk [vmem:[#allocation3 + $0x30] sm:$0x1] %vm262, 0.0
        %266 = vst.msk [vmem:[#allocation3 + $0x48] sm:$0x1] %vm262, 0.0
        %267 = vst.msk [vmem:[#allocation3 + $0x60] sm:$0x1] %vm262, 0.0
        %268 = vst.msk [vmem:[#allocation3 + $0x78] sm:$0x1] %vm262, 0.0
        %269 = vst.msk [vmem:[#allocation3 + $0x90] sm:$0x1] %vm262, 0.0
        %270 = vst.msk [vmem:[#allocation3 + $0xa8] sm:$0x1] %vm262, 0.0
        %271 = vst.msk [vmem:[#allocation3 + $0xc0] sm:$0x1] %vm262, 0.0
        %272 = vst.msk [vmem:[#allocation3 + $0xd8] sm:$0x1] %vm262, 0.0
        %273 = vst.msk [vmem:[#allocation3 + $0xf0] sm:$0x1] %vm262, 0.0
        %274 = vst.msk [vmem:[#allocation3 + $0x108] sm:$0x1] %vm262, 0.0
        %275 = vst.msk [vmem:[#allocation3 + $0x120] sm:$0x1] %vm262, 0.0
        %276 = vst.msk [vmem:[#allocation3 + $0x138] sm:$0x1] %vm262, 0.0
        %277 = vst.msk [vmem:[#allocation3 + $0x150] sm:$0x1] %vm262, 0.0
        %278 = vst.msk [vmem:[#allocation3 + $0x168] sm:$0x1] %vm262, 0.0
        %279 = vst.msk [vmem:[#allocation3 + $0x180] sm:$0x1] %vm262, 0.0
        %280 = vst.msk [vmem:[#allocation3 + $0x198] sm:$0x1] %vm262, 0.0
        %281 = vst.msk [vmem:[#allocation3 + $0x11] sm:$0x1] %vm262, 0.0
        %282 = vst.msk [vmem:[#allocation3 + $0x29] sm:$0x1] %vm262, 0.0
        %283 = vst.msk [vmem:[#allocation3 + $0x41] sm:$0x1] %vm262, 0.0
        %284 = vst.msk [vmem:[#allocation3 + $0x59] sm:$0x1] %vm262, 0.0
        %285 = vst.msk [vmem:[#allocation3 + $0x71] sm:$0x1] %vm262, 0.0
        %286 = vst.msk [vmem:[#allocation3 + $0x89] sm:$0x1] %vm262, 0.0
        %287 = vst.msk [vmem:[#allocation3 + $0xa1] sm:$0x1] %vm262, 0.0
        %288 = vst.msk [vmem:[#allocation3 + $0xb9] sm:$0x1] %vm262, 0.0
        %289 = vst.msk [vmem:[#allocation3 + $0xd1] sm:$0x1] %vm262, 0.0
        %290 = vst.msk [vmem:[#allocation3 + $0xe9] sm:$0x1] %vm262, 0.0
        %291 = vst.msk [vmem:[#allocation3 + $0x101] sm:$0x1] %vm262, 0.0
        %292 = vst.msk [vmem:[#allocation3 + $0x119] sm:$0x1] %vm262, 0.0
        %293 = vst.msk [vmem:[#allocation3 + $0x131] sm:$0x1] %vm262, 0.0
        %294 = vst.msk [vmem:[#allocation3 + $0x149] sm:$0x1] %vm262, 0.0
        %295 = vst.msk [vmem:[#allocation3 + $0x161] sm:$0x1] %vm262, 0.0
        %296 = vst.msk [vmem:[#allocation3 + $0x179] sm:$0x1] %vm262, 0.0
        %297 = vst.msk [vmem:[#allocation3 + $0x191] sm:$0x1] %vm262, 0.0
        %298 = vst.msk [vmem:[#allocation3 + $0x1a9] sm:$0x1] %vm262, 0.0
        %v299 = vld [vmem:[%s206] sm:$0xff]
        %v300 = vld [vmem:[%s206 + $0x8] sm:$0xff]
        %v301 = vld [vmem:[%s206 + $0x10] sm:$0xff]
        %v302 = vld [vmem:[%s206 + $0x18] sm:$0xff]
        %v303 = vld [vmem:[%s206 + $0x20] sm:$0xff]
        %v304 = vld [vmem:[%s206 + $0x28] sm:$0xff]
        %v305 = vld [vmem:[%s206 + $0x30] sm:$0xff]
        %v306 = vld [vmem:[%s206 + $0x38] sm:$0xff]
        %v307 = vld [vmem:[%s206 + $0x40] sm:$0xff]
        %v308 = vld [vmem:[%s206 + $0x48] sm:$0xff]
        %v309 = vld [vmem:[%s206 + $0x50] sm:$0xff]
        %v310 = vld [vmem:[%s206 + $0x58] sm:$0xff]
        %v311 = vld [vmem:[%s206 + $0x60] sm:$0xff]
        %v312 = vld [vmem:[%s206 + $0x68] sm:$0xff]
        %v313 = vld [vmem:[%s206 + $0x70] sm:$0xff]
        %v314 = vld [vmem:[%s206 + $0x78] sm:$0xff]
        %v315 = vld [vmem:[%s206 + $0x80] sm:$0xff]
        %v316 = vld [vmem:[%s206 + $0x88] sm:$0xff]
        %v317 = vld [vmem:[%s206 + $0x90] sm:$0xff]
        %v318 = vld [vmem:[%s206 + $0x98] sm:$0xff]
        %v319 = vld [vmem:[%s206 + $0xa0] sm:$0xff]
        %v320 = vld [vmem:[%s206 + $0xa8] sm:$0xff]
        %v321 = vld [vmem:[%s206 + $0xb0] sm:$0xff]
        %v322 = vld [vmem:[%s206 + $0xb8] sm:$0xff]
        %v323 = vld [vmem:[%s206 + $0xc0] sm:$0xff]
        %v324 = vld [vmem:[%s206 + $0xc8] sm:$0xff]
        %v325 = vld [vmem:[%s206 + $0xd0] sm:$0xff]
        %v326 = vld [vmem:[%s206 + $0xd8] sm:$0xff]
        %v327 = vld [vmem:[%s206 + $0xe0] sm:$0xff]
        %v328 = vld [vmem:[%s206 + $0xe8] sm:$0xff]
        %v329 = vld [vmem:[%s206 + $0xf0] sm:$0xff]
        %v330 = vld [vmem:[%s206 + $0xf8] sm:$0xff]
        %s331 = scalar_lea.vmem [#allocation2], 24
        %332 = vst.msk [vmem:[%s331 + $0x1] sm:$0xff] %vm207, %v299
        %333 = vst.msk [vmem:[%s331 + $0x9] sm:$0xff] %vm207, %v300
        %334 = vst.msk [vmem:[%s331 + $0x19] sm:$0xff] %vm207, %v301
        %335 = vst.msk [vmem:[%s331 + $0x21] sm:$0xff] %vm207, %v302
        %336 = vst.msk [vmem:[%s331 + $0x31] sm:$0xff] %vm207, %v303
        %337 = vst.msk [vmem:[%s331 + $0x39] sm:$0xff] %vm207, %v304
        %338 = vst.msk [vmem:[%s331 + $0x49] sm:$0xff] %vm207, %v305
        %339 = vst.msk [vmem:[%s331 + $0x51] sm:$0xff] %vm207, %v306
        %340 = vst.msk [vmem:[%s331 + $0x61] sm:$0xff] %vm207, %v307
        %341 = vst.msk [vmem:[%s331 + $0x69] sm:$0xff] %vm207, %v308
        %342 = vst.msk [vmem:[%s331 + $0x79] sm:$0xff] %vm207, %v309
        %343 = vst.msk [vmem:[%s331 + $0x81] sm:$0xff] %vm207, %v310
        %344 = vst.msk [vmem:[%s331 + $0x91] sm:$0xff] %vm207, %v311
        %345 = vst.msk [vmem:[%s331 + $0x99] sm:$0xff] %vm207, %v312
        %346 = vst.msk [vmem:[%s331 + $0xa9] sm:$0xff] %vm207, %v313
        %347 = vst.msk [vmem:[%s331 + $0xb1] sm:$0xff] %vm207, %v314
        %348 = vst.msk [vmem:[%s331 + $0xc1] sm:$0xff] %vm207, %v315
        %349 = vst.msk [vmem:[%s331 + $0xc9] sm:$0xff] %vm207, %v316
        %350 = vst.msk [vmem:[%s331 + $0xd9] sm:$0xff] %vm207, %v317
        %351 = vst.msk [vmem:[%s331 + $0xe1] sm:$0xff] %vm207, %v318
        %352 = vst.msk [vmem:[%s331 + $0xf1] sm:$0xff] %vm207, %v319
        %353 = vst.msk [vmem:[%s331 + $0xf9] sm:$0xff] %vm207, %v320
        %354 = vst.msk [vmem:[%s331 + $0x109] sm:$0xff] %vm207, %v321
        %355 = vst.msk [vmem:[%s331 + $0x111] sm:$0xff] %vm207, %v322
        %356 = vst.msk [vmem:[%s331 + $0x121] sm:$0xff] %vm207, %v323
        %357 = vst.msk [vmem:[%s331 + $0x129] sm:$0xff] %vm207, %v324
        %358 = vst.msk [vmem:[%s331 + $0x139] sm:$0xff] %vm207, %v325
        %359 = vst.msk [vmem:[%s331 + $0x141] sm:$0xff] %vm207, %v326
        %360 = vst.msk [vmem:[%s331 + $0x151] sm:$0xff] %vm207, %v327
        %361 = vst.msk [vmem:[%s331 + $0x159] sm:$0xff] %vm207, %v328
        %362 = vst.msk [vmem:[%s331 + $0x169] sm:$0xff] %vm207, %v329
        %363 = vst.msk [vmem:[%s331 + $0x171] sm:$0xff] %vm207, %v330
        %v364 = vld [vmem:[#allocation2] sm:$0xff]
        %v365 = vld [vmem:[#allocation2 + $0x8] sm:$0xff]
        %v366 = vld [vmem:[#allocation2 + $0x10] sm:$0x3]
        %v367 = vld [vmem:[#allocation2 + $0x18] sm:$0xff]
        %v368 = vld [vmem:[#allocation2 + $0x20] sm:$0xff]
        %v369 = vld [vmem:[#allocation2 + $0x28] sm:$0x3]
        %v370 = vld [vmem:[#allocation2 + $0x30] sm:$0xff]
        %v371 = vld [vmem:[#allocation2 + $0x38] sm:$0xff]
        %v372 = vld [vmem:[#allocation2 + $0x40] sm:$0x3]
        %v373 = vld [vmem:[#allocation2 + $0x48] sm:$0xff]
        %v374 = vld [vmem:[#allocation2 + $0x50] sm:$0xff]
        %v375 = vld [vmem:[#allocation2 + $0x58] sm:$0x3]
        %v376 = vld [vmem:[#allocation2 + $0x60] sm:$0xff]
        %v377 = vld [vmem:[#allocation2 + $0x68] sm:$0xff]
        %v378 = vld [vmem:[#allocation2 + $0x70] sm:$0x3]
        %v379 = vld [vmem:[#allocation2 + $0x78] sm:$0xff]
        %v380 = vld [vmem:[#allocation2 + $0x80] sm:$0xff]
        %v381 = vld [vmem:[#allocation2 + $0x88] sm:$0x3]
        %v382 = vld [vmem:[#allocation2 + $0x90] sm:$0xff]
        %v383 = vld [vmem:[#allocation2 + $0x98] sm:$0xff]
        %v384 = vld [vmem:[#allocation2 + $0xa0] sm:$0x3]
        %v385 = vld [vmem:[#allocation2 + $0xa8] sm:$0xff]
        %v386 = vld [vmem:[#allocation2 + $0xb0] sm:$0xff]
        %v387 = vld [vmem:[#allocation2 + $0xb8] sm:$0x3]
        %v388 = vld [vmem:[#allocation2 + $0xc0] sm:$0xff]
        %v389 = vld [vmem:[#allocation2 + $0xc8] sm:$0xff]
        %v390 = vld [vmem:[#allocation2 + $0xd0] sm:$0x3]
        %v391 = vld [vmem:[#allocation2 + $0xd8] sm:$0xff]
        %v392 = vld [vmem:[#allocation2 + $0xe0] sm:$0xff]
        %v393 = vld [vmem:[#allocation2 + $0xe8] sm:$0x3]
        %v394 = vld [vmem:[#allocation2 + $0xf0] sm:$0xff]
        %v395 = vld [vmem:[#allocation2 + $0xf8] sm:$0xff]
        %v396 = vld [vmem:[#allocation2 + $0x100] sm:$0x3]
        %v397 = vld [vmem:[#allocation2 + $0x108] sm:$0xff]
        %v398 = vld [vmem:[#allocation2 + $0x110] sm:$0xff]
        %v399 = vld [vmem:[#allocation2 + $0x118] sm:$0x3]
        %v400 = vld [vmem:[#allocation2 + $0x120] sm:$0xff]
        %v401 = vld [vmem:[#allocation2 + $0x128] sm:$0xff]
        %v402 = vld [vmem:[#allocation2 + $0x130] sm:$0x3]
        %v403 = vld [vmem:[#allocation2 + $0x138] sm:$0xff]
        %v404 = vld [vmem:[#allocation2 + $0x140] sm:$0xff]
        %v405 = vld [vmem:[#allocation2 + $0x148] sm:$0x3]
        %v406 = vld [vmem:[#allocation2 + $0x150] sm:$0xff]
        %v407 = vld [vmem:[#allocation2 + $0x158] sm:$0xff]
        %v408 = vld [vmem:[#allocation2 + $0x160] sm:$0x3]
        %v409 = vld [vmem:[#allocation2 + $0x168] sm:$0xff]
        %v410 = vld [vmem:[#allocation2 + $0x170] sm:$0xff]
        %v411 = vld [vmem:[#allocation2 + $0x178] sm:$0x3]
        %v412 = vld [vmem:[#allocation2 + $0x180] sm:$0xff]
        %v413 = vld [vmem:[#allocation2 + $0x188] sm:$0xff]
        %v414 = vld [vmem:[#allocation2 + $0x190] sm:$0x3]
        %v415 = vld [vmem:[#allocation2 + $0x198] sm:$0xff]
        %v416 = vld [vmem:[#allocation2 + $0x1a0] sm:$0xff]
        %v417 = vld [vmem:[#allocation2 + $0x1a8] sm:$0x3]
        %v418 = vld [vmem:[%s1] sm:$0xff]
        %v419 = vld [vmem:[%s1 + $0x8] sm:$0xff]
        %v420 = vld [vmem:[%s1 + $0x10] sm:$0xff]
        %v421 = vld [vmem:[%s1 + $0x18] sm:$0xff]
        %v422 = vld [vmem:[%s1 + $0x20] sm:$0xf]
        %vm471 = vcmask 1046528
        %v472 = vrot.slane %v364, 1
        %v473 = vrot.slane %v365, 1
        %v474 = vsel %vm471, %v472, %v473
        %v475 = vrot.slane %v366, 1
        %v476 = vsel %vm471, %v473, %v475
        %v477 = vrot.slane %v367, 1
        %v478 = vrot.slane %v368, 1
        %v479 = vsel %vm471, %v477, %v478
        %v480 = vrot.slane %v369, 1
        %v481 = vsel %vm471, %v478, %v480
        %v482 = vrot.slane %v370, 1
        %v483 = vrot.slane %v371, 1
        %v484 = vsel %vm471, %v482, %v483
        %v485 = vrot.slane %v372, 1
        %v486 = vsel %vm471, %v483, %v485
        %v487 = vrot.slane %v373, 1
        %v488 = vrot.slane %v374, 1
        %v489 = vsel %vm471, %v487, %v488
        %v490 = vrot.slane %v375, 1
        %v491 = vsel %vm471, %v488, %v490
        %v492 = vrot.slane %v376, 1
        %v493 = vrot.slane %v377, 1
        %v494 = vsel %vm471, %v492, %v493
        %v495 = vrot.slane %v378, 1
        %v496 = vsel %vm471, %v493, %v495
        %v497 = vrot.slane %v379, 1
        %v498 = vrot.slane %v380, 1
        %v499 = vsel %vm471, %v497, %v498
        %v500 = vrot.slane %v381, 1
        %v501 = vsel %vm471, %v498, %v500
        %v502 = vrot.slane %v382, 1
        %v503 = vrot.slane %v383, 1
        %v504 = vsel %vm471, %v502, %v503
        %v505 = vrot.slane %v384, 1
        %v506 = vsel %vm471, %v503, %v505
        %v507 = vrot.slane %v385, 1
        %v508 = vrot.slane %v386, 1
        %v509 = vsel %vm471, %v507, %v508
        %v510 = vrot.slane %v387, 1
        %v511 = vsel %vm471, %v508, %v510
        %v512 = vrot.slane %v388, 1
        %v513 = vrot.slane %v389, 1
        %v514 = vsel %vm471, %v512, %v513
        %v515 = vrot.slane %v390, 1
        %v516 = vsel %vm471, %v513, %v515
        %v517 = vrot.slane %v391, 1
        %v518 = vrot.slane %v392, 1
        %v519 = vsel %vm471, %v517, %v518
        %v520 = vrot.slane %v393, 1
        %v521 = vsel %vm471, %v518, %v520
        %v522 = vrot.slane %v394, 1
        %v523 = vrot.slane %v395, 1
        %v524 = vsel %vm471, %v522, %v523
        %v525 = vrot.slane %v396, 1
        %v526 = vsel %vm471, %v523, %v525
        %v527 = vrot.slane %v397, 1
        %v528 = vrot.slane %v398, 1
        %v529 = vsel %vm471, %v527, %v528
        %v530 = vrot.slane %v399, 1
        %v531 = vsel %vm471, %v528, %v530
        %v532 = vrot.slane %v400, 1
        %v533 = vrot.slane %v401, 1
        %v534 = vsel %vm471, %v532, %v533
        %v535 = vrot.slane %v402, 1
        %v536 = vsel %vm471, %v533, %v535
        %v537 = vrot.slane %v403, 1
        %v538 = vrot.slane %v404, 1
        %v539 = vsel %vm471, %v537, %v538
        %v540 = vrot.slane %v405, 1
        %v541 = vsel %vm471, %v538, %v540
        %v542 = vrot.slane %v406, 1
        %v543 = vrot.slane %v407, 1
        %v544 = vsel %vm471, %v542, %v543
        %v545 = vrot.slane %v408, 1
        %v546 = vsel %vm471, %v543, %v545
        %v547 = vrot.slane %v409, 1
        %v548 = vrot.slane %v410, 1
        %v549 = vsel %vm471, %v547, %v548
        %v550 = vrot.slane %v411, 1
        %v551 = vsel %vm471, %v548, %v550
        %v553 = vrot.slane %v418, 4
        %v554 = vsel %vm207, %v474, 0
        %v556 = vsel %vm207, %v476, 0
        %v558 = vsel %vm207, %v479, 0
        %v560 = vsel %vm207, %v481, 0
        %v562 = vsel %vm207, %v484, 0
        %v564 = vsel %vm207, %v486, 0
        %v566 = vsel %vm207, %v489, 0
        %v568 = vsel %vm207, %v491, 0
        %v570 = vsel %vm207, %v494, 0
        %v572 = vsel %vm207, %v496, 0
        %v574 = vsel %vm207, %v499, 0
        %v576 = vsel %vm207, %v501, 0
        %v578 = vsel %vm207, %v504, 0
        %v580 = vsel %vm207, %v506, 0
        %v582 = vsel %vm207, %v509, 0
        %v584 = vsel %vm207, %v511, 0
        %v586 = vsel %vm207, %v514, 0
        %v588 = vsel %vm207, %v516, 0
        %v590 = vsel %vm207, %v519, 0
        %v592 = vsel %vm207, %v521, 0
        %v594 = vsel %vm207, %v524, 0
        %v596 = vsel %vm207, %v526, 0
        %v598 = vsel %vm207, %v529, 0
        %v600 = vsel %vm207, %v531, 0
        %v602 = vsel %vm207, %v534, 0
        %v604 = vsel %vm207, %v536, 0
        %v606 = vsel %vm207, %v539, 0
        %v608 = vsel %vm207, %v541, 0
        %v610 = vsel %vm207, %v544, 0
        %v612 = vsel %vm207, %v546, 0
        %v614 = vsel %vm207, %v549, 0
        %v616 = vsel %vm207, %v551, 0
        %vm618 = vcmask 1043456
        %v619 = vsel %vm618, %v553, 0
        %621 = vmatprep.subr.mxu0 0.0
        %622 = vmatpush1.msra.mxu0 %v619
        %623 = vmatprep.subr.mxu0 0.0
        %624 = vmatpush1.msra.mxu0 0.0
        %625 = vmatprep.subr.mxu0 0.0
        %626 = vmatpush1.msra.mxu0 0.0
        %627 = vmatprep.subr.mxu0 0.0
        %628 = vmatpush1.msra.mxu0 0.0
        %629 = vmatprep.subr.mxu0 0.0
        %630 = vmatpush1.msra.mxu0 0.0
        %631 = vmatprep.subr.mxu0 0.0
        %632 = vmatpush1.msra.mxu0 0.0
        %633 = vmatprep.subr.mxu0 0.0
        %634 = vmatpush1.msra.mxu0 0.0
        %635 = vmatprep.subr.mxu0 0.0
        %636 = vmatpush1.msra.mxu0 0.0
        %637 = vmatprep.subr.mxu0 0.0
        %638 = vmatpush1.msra.mxu0 0.0
        %639 = vmatprep.subr.mxu0 0.0
        %640 = vmatpush1.msra.mxu0 0.0
        %641 = vmatprep.subr.mxu0 0.0
        %642 = vmatpush1.msra.mxu0 0.0
        %643 = vmatprep.subr.mxu0 0.0
        %644 = vmatpush1.msra.mxu0 0.0
        %645 = vmatprep.subr.mxu0 0.0
        %646 = vmatpush1.msra.mxu0 0.0
        %647 = vmatprep.subr.mxu0 0.0
        %648 = vmatpush1.msra.mxu0 0.0
        %649 = vmatprep.subr.mxu0 0.0
        %650 = vmatpush1.msra.mxu0 0.0
        %651 = vmatprep.subr.mxu0 0.0
        %652 = vmatpush1.msra.mxu0 0.0
        %653 = vmatprep.subr.mxu0 0.0
        %654 = vmatpush1.msra.mxu0 0.0
        %655 = vmatprep.subr.mxu0 0.0
        %656 = vmatpush1.msra.mxu0 0.0
        %657 = vmatprep.subr.mxu0 0.0
        %658 = vmatpush1.msra.mxu0 0.0
        %659 = vmatprep.subr.mxu0 0.0
        %660 = vmatpush1.msra.mxu0 0.0
        %661 = vmatprep.subr.mxu0 0.0
        %662 = vmatpush1.msra.mxu0 0.0
        %663 = vmatprep.subr.mxu0 0.0
        %664 = vmatpush1.msra.mxu0 0.0
        %665 = vmatprep.subr.mxu0 0.0
        %666 = vmatpush1.msra.mxu0 0.0
        %667 = vmatprep.subr.mxu0 0.0
        %668 = vmatpush1.msra.mxu0 0.0
        %669 = vmatprep.subr.mxu0 0.0
        %670 = vmatpush1.msra.mxu0 0.0
        %671 = vmatprep.subr.mxu0 0.0
        %672 = vmatpush1.msra.mxu0 0.0
        %673 = vmatprep.subr.mxu0 0.0
        %674 = vmatpush1.msra.mxu0 0.0
        %675 = vmatprep.subr.mxu0 0.0
        %676 = vmatpush1.msra.mxu0 0.0
        %677 = vmatprep.subr.mxu0 0.0
        %678 = vmatpush1.msra.mxu0 0.0
        %679 = vmatprep.subr.mxu0 0.0
        %680 = vmatpush1.msra.mxu0 0.0
        %681 = vmatprep.subr.mxu0 0.0
        %682 = vmatpush1.msra.mxu0 0.0
        %683 = vmatprep.subr.mxu0 0.0
        %684 = vmatpush1.msra.mxu0 0.0
        %685 = vmatprep.mubr.f32.mxu0 0.0
        %686 = vmatmul.mubr.f32.gmra.mrb[0].mxu0 %v554
        %v687 = vpop.f32.mrb[0].mxu0
        %v688 = vadd.f32 0.0, %v687
        %v689 = vpop.f32.mrb[0].mxu0
        %690 = vmatprep.mubr.f32.mxu0 0.0
        %691 = vmatmul.mubr.f32.gmra.mrb[0].mxu0 %v556
        %v692 = vpop.f32.mrb[0].mxu0
        %v693 = vadd.f32 0.0, %v692
        %v694 = vpop.f32.mrb[0].mxu0
        %695 = vmatprep.mubr.f32.mxu0 0.0
        %696 = vmatmul.mubr.f32.gmra.mrb[0].mxu0 %v558
        %v697 = vpop.f32.mrb[0].mxu0
        %v698 = vadd.f32 0.0, %v697
        %v699 = vpop.f32.mrb[0].mxu0
        %700 = vmatprep.mubr.f32.mxu0 0.0
        %701 = vmatmul.mubr.f32.gmra.mrb[0].mxu0 %v560
        %v702 = vpop.f32.mrb[0].mxu0
        %v703 = vadd.f32 0.0, %v702
        %v704 = vpop.f32.mrb[0].mxu0
        %705 = vmatprep.mubr.f32.mxu0 0.0
        %706 = vmatmul.mubr.f32.gmra.mrb[0].mxu0 %v562
        %v707 = vpop.f32.mrb[0].mxu0
        %v708 = vadd.f32 0.0, %v707
        %v709 = vpop.f32.mrb[0].mxu0
        %710 = vmatprep.mubr.f32.mxu0 0.0
        %711 = vmatmul.mubr.f32.gmra.mrb[0].mxu0 %v564
        %v712 = vpop.f32.mrb[0].mxu0
        %v713 = vadd.f32 0.0, %v712
        %v714 = vpop.f32.mrb[0].mxu0
        %715 = vmatprep.mubr.f32.mxu0 0.0
        %716 = vmatmul.mubr.f32.gmra.mrb[0].mxu0 %v566
        %v717 = vpop.f32.mrb[0].mxu0
        %v718 = vadd.f32 0.0, %v717
        %v719 = vpop.f32.mrb[0].mxu0
        %720 = vmatprep.mubr.f32.mxu0 0.0
        %721 = vmatmul.mubr.f32.gmra.mrb[0].mxu0 %v568
        %v722 = vpop.f32.mrb[0].mxu0
        %v723 = vadd.f32 0.0, %v722
        %v724 = vpop.f32.mrb[0].mxu0
        %725 = vmatprep.mubr.f32.mxu0 0.0
        %726 = vmatmul.mubr.f32.gmra.mrb[0].mxu0 %v570
        %v727 = vpop.f32.mrb[0].mxu0
        %v728 = vadd.f32 0.0, %v727
        %v729 = vpop.f32.mrb[0].mxu0
        %730 = vmatprep.mubr.f32.mxu0 0.0
        %731 = vmatmul.mubr.f32.gmra.mrb[0].mxu0 %v572
        %v732 = vpop.f32.mrb[0].mxu0
        %v733 = vadd.f32 0.0, %v732
        %v734 = vpop.f32.mrb[0].mxu0
        %735 = vmatprep.mubr.f32.mxu0 0.0
        %736 = vmatmul.mubr.f32.gmra.mrb[0].mxu0 %v574
        %v737 = vpop.f32.mrb[0].mxu0
        %v738 = vadd.f32 0.0, %v737
        %v739 = vpop.f32.mrb[0].mxu0
        %740 = vmatprep.mubr.f32.mxu0 0.0
        %741 = vmatmul.mubr.f32.gmra.mrb[0].mxu0 %v576
        %v742 = vpop.f32.mrb[0].mxu0
        %v743 = vadd.f32 0.0, %v742
        %v744 = vpop.f32.mrb[0].mxu0
        %745 = vmatprep.mubr.f32.mxu0 0.0
        %746 = vmatmul.mubr.f32.gmra.mrb[0].mxu0 %v578
        %v747 = vpop.f32.mrb[0].mxu0
        %v748 = vadd.f32 0.0, %v747
        %v749 = vpop.f32.mrb[0].mxu0
        %750 = vmatprep.mubr.f32.mxu0 0.0
        %751 = vmatmul.mubr.f32.gmra.mrb[0].mxu0 %v580
        %v752 = vpop.f32.mrb[0].mxu0
        %v753 = vadd.f32 0.0, %v752
        %v754 = vpop.f32.mrb[0].mxu0
        %755 = vmatprep.mubr.f32.mxu0 0.0
        %756 = vmatmul.mubr.f32.gmra.mrb[0].mxu0 %v582
        %v757 = vpop.f32.mrb[0].mxu0
        %v758 = vadd.f32 0.0, %v757
        %v759 = vpop.f32.mrb[0].mxu0
        %760 = vmatprep.mubr.f32.mxu0 0.0
        %761 = vmatmul.mubr.f32.gmra.mrb[0].mxu0 %v584
        %v762 = vpop.f32.mrb[0].mxu0
        %v763 = vadd.f32 0.0, %v762
        %v764 = vpop.f32.mrb[0].mxu0
        %765 = vmatprep.mubr.f32.mxu0 0.0
        %766 = vmatmul.mubr.f32.gmra.mrb[0].mxu0 %v586
        %v767 = vpop.f32.mrb[0].mxu0
        %v768 = vadd.f32 0.0, %v767
        %v769 = vpop.f32.mrb[0].mxu0
        %770 = vmatprep.mubr.f32.mxu0 0.0
        %771 = vmatmul.mubr.f32.gmra.mrb[0].mxu0 %v588
        %v772 = vpop.f32.mrb[0].mxu0
        %v773 = vadd.f32 0.0, %v772
        %v774 = vpop.f32.mrb[0].mxu0
        %775 = vmatprep.mubr.f32.mxu0 0.0
        %776 = vmatmul.mubr.f32.gmra.mrb[0].mxu0 %v590
        %v777 = vpop.f32.mrb[0].mxu0
        %v778 = vadd.f32 0.0, %v777
        %v779 = vpop.f32.mrb[0].mxu0
        %780 = vmatprep.mubr.f32.mxu0 0.0
        %781 = vmatmul.mubr.f32.gmra.mrb[0].mxu0 %v592
        %v782 = vpop.f32.mrb[0].mxu0
        %v783 = vadd.f32 0.0, %v782
        %v784 = vpop.f32.mrb[0].mxu0
        %785 = vmatprep.mubr.f32.mxu0 0.0
        %786 = vmatmul.mubr.f32.gmra.mrb[0].mxu0 %v594
        %v787 = vpop.f32.mrb[0].mxu0
        %v788 = vadd.f32 0.0, %v787
        %v789 = vpop.f32.mrb[0].mxu0
        %790 = vmatprep.mubr.f32.mxu0 0.0
        %791 = vmatmul.mubr.f32.gmra.mrb[0].mxu0 %v596
        %v792 = vpop.f32.mrb[0].mxu0
        %v793 = vadd.f32 0.0, %v792
        %v794 = vpop.f32.mrb[0].mxu0
        %795 = vmatprep.mubr.f32.mxu0 0.0
        %796 = vmatmul.mubr.f32.gmra.mrb[0].mxu0 %v598
        %v797 = vpop.f32.mrb[0].mxu0
        %v798 = vadd.f32 0.0, %v797
        %v799 = vpop.f32.mrb[0].mxu0
        %800 = vmatprep.mubr.f32.mxu0 0.0
        %801 = vmatmul.mubr.f32.gmra.mrb[0].mxu0 %v600
        %v802 = vpop.f32.mrb[0].mxu0
        %v803 = vadd.f32 0.0, %v802
        %v804 = vpop.f32.mrb[0].mxu0
        %805 = vmatprep.mubr.f32.mxu0 0.0
        %806 = vmatmul.mubr.f32.gmra.mrb[0].mxu0 %v602
        %v807 = vpop.f32.mrb[0].mxu0
        %v808 = vadd.f32 0.0, %v807
        %v809 = vpop.f32.mrb[0].mxu0
        %810 = vmatprep.mubr.f32.mxu0 0.0
        %811 = vmatmul.mubr.f32.gmra.mrb[0].mxu0 %v604
        %v812 = vpop.f32.mrb[0].mxu0
        %v813 = vadd.f32 0.0, %v812
        %v814 = vpop.f32.mrb[0].mxu0
        %815 = vmatprep.mubr.f32.mxu0 0.0
        %816 = vmatmul.mubr.f32.gmra.mrb[0].mxu0 %v606
        %v817 = vpop.f32.mrb[0].mxu0
        %v818 = vadd.f32 0.0, %v817
        %v819 = vpop.f32.mrb[0].mxu0
        %820 = vmatprep.mubr.f32.mxu0 0.0
        %821 = vmatmul.mubr.f32.gmra.mrb[0].mxu0 %v608
        %v822 = vpop.f32.mrb[0].mxu0
        %v823 = vadd.f32 0.0, %v822
        %v824 = vpop.f32.mrb[0].mxu0
        %825 = vmatprep.mubr.f32.mxu0 0.0
        %826 = vmatmul.mubr.f32.gmra.mrb[0].mxu0 %v610
        %v827 = vpop.f32.mrb[0].mxu0
        %v828 = vadd.f32 0.0, %v827
        %v829 = vpop.f32.mrb[0].mxu0
        %830 = vmatprep.mubr.f32.mxu0 0.0
        %831 = vmatmul.mubr.f32.gmra.mrb[0].mxu0 %v612
        %v832 = vpop.f32.mrb[0].mxu0
        %v833 = vadd.f32 0.0, %v832
        %v834 = vpop.f32.mrb[0].mxu0
        %835 = vmatprep.mubr.f32.mxu0 0.0
        %836 = vmatmul.mubr.f32.gmra.mrb[0].mxu0 %v614
        %v837 = vpop.f32.mrb[0].mxu0
        %v838 = vadd.f32 0.0, %v837
        %v839 = vpop.f32.mrb[0].mxu0
        %840 = vmatprep.mubr.f32.mxu0 0.0
        %841 = vmatmul.mubr.f32.gmra.mrb[0].mxu0 %v616
        %v842 = vpop.f32.mrb[0].mxu0
        %v843 = vadd.f32 0.0, %v842
        %v844 = vpop.f32.mrb[0].mxu0
        %845 = vdwg.mxu0
        %v846 = vsel %vm207, %v364, 0
        %v848 = vsel %vm207, %v365, 0
        %v850 = vsel %vm207, %v367, 0
        %v852 = vsel %vm207, %v368, 0
        %v854 = vsel %vm207, %v370, 0
        %v856 = vsel %vm207, %v371, 0
        %v858 = vsel %vm207, %v373, 0
        %v860 = vsel %vm207, %v374, 0
        %v862 = vsel %vm207, %v376, 0
        %v864 = vsel %vm207, %v377, 0
        %v866 = vsel %vm207, %v379, 0
        %v868 = vsel %vm207, %v380, 0
        %v870 = vsel %vm207, %v382, 0
        %v872 = vsel %vm207, %v383, 0
        %v874 = vsel %vm207, %v385, 0
        %v876 = vsel %vm207, %v386, 0
        %v878 = vsel %vm207, %v388, 0
        %v880 = vsel %vm207, %v389, 0
        %v882 = vsel %vm207, %v391, 0
        %v884 = vsel %vm207, %v392, 0
        %v886 = vsel %vm207, %v394, 0
        %v888 = vsel %vm207, %v395, 0
        %v890 = vsel %vm207, %v397, 0
        %v892 = vsel %vm207, %v398, 0
        %v894 = vsel %vm207, %v400, 0
        %v896 = vsel %vm207, %v401, 0
        %v898 = vsel %vm207, %v403, 0
        %v900 = vsel %vm207, %v404, 0
        %v902 = vsel %vm207, %v406, 0
        %v904 = vsel %vm207, %v407, 0
        %v906 = vsel %vm207, %v409, 0
        %v908 = vsel %vm207, %v410, 0
        %v910 = vsel %vm618, %v418, 0
        %912 = vmatprep.subr.mxu0 0.0
        %913 = vmatpush1.msra.mxu0 %v910
        %914 = vmatprep.subr.mxu0 0.0
        %915 = vmatpush1.msra.mxu0 0.0
        %916 = vmatprep.subr.mxu0 0.0
        %917 = vmatpush1.msra.mxu0 0.0
        %918 = vmatprep.subr.mxu0 0.0
        %919 = vmatpush1.msra.mxu0 0.0
        %920 = vmatprep.subr.mxu0 0.0
        %921 = vmatpush1.msra.mxu0 0.0
        %922 = vmatprep.subr.mxu0 0.0
        %923 = vmatpush1.msra.mxu0 0.0
        %924 = vmatprep.subr.mxu0 0.0
        %925 = vmatpush1.msra.mxu0 0.0
        %926 = vmatprep.subr.mxu0 0.0
        %927 = vmatpush1.msra.mxu0 0.0
        %928 = vmatprep.subr.mxu0 0.0
        %929 = vmatpush1.msra.mxu0 0.0
        %930 = vmatprep.subr.mxu0 0.0
        %931 = vmatpush1.msra.mxu0 0.0
        %932 = vmatprep.subr.mxu0 0.0
        %933 = vmatpush1.msra.mxu0 0.0
        %934 = vmatprep.subr.mxu0 0.0
        %935 = vmatpush1.msra.mxu0 0.0
        %936 = vmatprep.subr.mxu0 0.0
        %937 = vmatpush1.msra.mxu0 0.0
        %938 = vmatprep.subr.mxu0 0.0
        %939 = vmatpush1.msra.mxu0 0.0
        %940 = vmatprep.subr.mxu0 0.0
        %941 = vmatpush1.msra.mxu0 0.0
        %942 = vmatprep.subr.mxu0 0.0
        %943 = vmatpush1.msra.mxu0 0.0
        %944 = vmatprep.subr.mxu0 0.0
        %945 = vmatpush1.msra.mxu0 0.0
        %946 = vmatprep.subr.mxu0 0.0
        %947 = vmatpush1.msra.mxu0 0.0
        %948 = vmatprep.subr.mxu0 0.0
        %949 = vmatpush1.msra.mxu0 0.0
        %950 = vmatprep.subr.mxu0 0.0
        %951 = vmatpush1.msra.mxu0 0.0
        %952 = vmatprep.subr.mxu0 0.0
        %953 = vmatpush1.msra.mxu0 0.0
        %954 = vmatprep.subr.mxu0 0.0
        %955 = vmatpush1.msra.mxu0 0.0
        %956 = vmatprep.subr.mxu0 0.0
        %957 = vmatpush1.msra.mxu0 0.0
        %958 = vmatprep.subr.mxu0 0.0
        %959 = vmatpush1.msra.mxu0 0.0
        %960 = vmatprep.subr.mxu0 0.0
        %961 = vmatpush1.msra.mxu0 0.0
        %962 = vmatprep.subr.mxu0 0.0
        %963 = vmatpush1.msra.mxu0 0.0
        %964 = vmatprep.subr.mxu0 0.0
        %965 = vmatpush1.msra.mxu0 0.0
        %966 = vmatprep.subr.mxu0 0.0
        %967 = vmatpush1.msra.mxu0 0.0
        %968 = vmatprep.subr.mxu0 0.0
        %969 = vmatpush1.msra.mxu0 0.0
        %970 = vmatprep.subr.mxu0 0.0
        %971 = vmatpush1.msra.mxu0 0.0
        %972 = vmatprep.subr.mxu0 0.0
        %973 = vmatpush1.msra.mxu0 0.0
        %974 = vmatprep.subr.mxu0 0.0
        %975 = vmatpush1.msra.mxu0 0.0
        %976 = vmatprep.mubr.f32.mxu0 0.0
        %977 = vmatmul.mubr.f32.gmra.mrb[0].mxu0 %v846
        %v978 = vpop.f32.mrb[0].mxu0
        %v979 = vadd.f32 %v688, %v978
        %v980 = vpop.f32.mrb[0].mxu0
        %981 = vmatprep.mubr.f32.mxu0 0.0
        %982 = vmatmul.mubr.f32.gmra.mrb[0].mxu0 %v848
        %v983 = vpop.f32.mrb[0].mxu0
        %v984 = vadd.f32 %v693, %v983
        %v985 = vpop.f32.mrb[0].mxu0
        %986 = vmatprep.mubr.f32.mxu0 0.0
        %987 = vmatmul.mubr.f32.gmra.mrb[0].mxu0 %v850
        %v988 = vpop.f32.mrb[0].mxu0
        %v989 = vadd.f32 %v698, %v988
        %v990 = vpop.f32.mrb[0].mxu0
        %991 = vmatprep.mubr.f32.mxu0 0.0
        %992 = vmatmul.mubr.f32.gmra.mrb[0].mxu0 %v852
        %v993 = vpop.f32.mrb[0].mxu0
        %v994 = vadd.f32 %v703, %v993
        %v995 = vpop.f32.mrb[0].mxu0
        %996 = vmatprep.mubr.f32.mxu0 0.0
        %997 = vmatmul.mubr.f32.gmra.mrb[0].mxu0 %v854
        %v998 = vpop.f32.mrb[0].mxu0
        %v999 = vadd.f32 %v708, %v998
        %v1000 = vpop.f32.mrb[0].mxu0
        %1001 = vmatprep.mubr.f32.mxu0 0.0
        %1002 = vmatmul.mubr.f32.gmra.mrb[0].mxu0 %v856
        %v1003 = vpop.f32.mrb[0].mxu0
        %v1004 = vadd.f32 %v713, %v1003
        %v1005 = vpop.f32.mrb[0].mxu0
        %1006 = vmatprep.mubr.f32.mxu0 0.0
        %1007 = vmatmul.mubr.f32.gmra.mrb[0].mxu0 %v858
        %v1008 = vpop.f32.mrb[0].mxu0
        %v1009 = vadd.f32 %v718, %v1008
        %v1010 = vpop.f32.mrb[0].mxu0
        %1011 = vmatprep.mubr.f32.mxu0 0.0
        %1012 = vmatmul.mubr.f32.gmra.mrb[0].mxu0 %v860
        %v1013 = vpop.f32.mrb[0].mxu0
        %v1014 = vadd.f32 %v723, %v1013
        %v1015 = vpop.f32.mrb[0].mxu0
        %1016 = vmatprep.mubr.f32.mxu0 0.0
        %1017 = vmatmul.mubr.f32.gmra.mrb[0].mxu0 %v862
        %v1018 = vpop.f32.mrb[0].mxu0
        %v1019 = vadd.f32 %v728, %v1018
        %v1020 = vpop.f32.mrb[0].mxu0
        %1021 = vmatprep.mubr.f32.mxu0 0.0
        %1022 = vmatmul.mubr.f32.gmra.mrb[0].mxu0 %v864
        %v1023 = vpop.f32.mrb[0].mxu0
        %v1024 = vadd.f32 %v733, %v1023
        %v1025 = vpop.f32.mrb[0].mxu0
        %1026 = vmatprep.mubr.f32.mxu0 0.0
        %1027 = vmatmul.mubr.f32.gmra.mrb[0].mxu0 %v866
        %v1028 = vpop.f32.mrb[0].mxu0
        %v1029 = vadd.f32 %v738, %v1028
        %v1030 = vpop.f32.mrb[0].mxu0
        %1031 = vmatprep.mubr.f32.mxu0 0.0
        %1032 = vmatmul.mubr.f32.gmra.mrb[0].mxu0 %v868
        %v1033 = vpop.f32.mrb[0].mxu0
        %v1034 = vadd.f32 %v743, %v1033
        %v1035 = vpop.f32.mrb[0].mxu0
        %1036 = vmatprep.mubr.f32.mxu0 0.0
        %1037 = vmatmul.mubr.f32.gmra.mrb[0].mxu0 %v870
        %v1038 = vpop.f32.mrb[0].mxu0
        %v1039 = vadd.f32 %v748, %v1038
        %v1040 = vpop.f32.mrb[0].mxu0
        %1041 = vmatprep.mubr.f32.mxu0 0.0
        %1042 = vmatmul.mubr.f32.gmra.mrb[0].mxu0 %v872
        %v1043 = vpop.f32.mrb[0].mxu0
        %v1044 = vadd.f32 %v753, %v1043
        %v1045 = vpop.f32.mrb[0].mxu0
        %1046 = vmatprep.mubr.f32.mxu0 0.0
        %1047 = vmatmul.mubr.f32.gmra.mrb[0].mxu0 %v874
        %v1048 = vpop.f32.mrb[0].mxu0
        %v1049 = vadd.f32 %v758, %v1048
        %v1050 = vpop.f32.mrb[0].mxu0
        %1051 = vmatprep.mubr.f32.mxu0 0.0
        %1052 = vmatmul.mubr.f32.gmra.mrb[0].mxu0 %v876
        %v1053 = vpop.f32.mrb[0].mxu0
        %v1054 = vadd.f32 %v763, %v1053
        %v1055 = vpop.f32.mrb[0].mxu0
        %1056 = vmatprep.mubr.f32.mxu0 0.0
        %1057 = vmatmul.mubr.f32.gmra.mrb[0].mxu0 %v878
        %v1058 = vpop.f32.mrb[0].mxu0
        %v1059 = vadd.f32 %v768, %v1058
        %v1060 = vpop.f32.mrb[0].mxu0
        %1061 = vmatprep.mubr.f32.mxu0 0.0
        %1062 = vmatmul.mubr.f32.gmra.mrb[0].mxu0 %v880
        %v1063 = vpop.f32.mrb[0].mxu0
        %v1064 = vadd.f32 %v773, %v1063
        %v1065 = vpop.f32.mrb[0].mxu0
        %1066 = vmatprep.mubr.f32.mxu0 0.0
        %1067 = vmatmul.mubr.f32.gmra.mrb[0].mxu0 %v882
        %v1068 = vpop.f32.mrb[0].mxu0
        %v1069 = vadd.f32 %v778, %v1068
        %v1070 = vpop.f32.mrb[0].mxu0
        %1071 = vmatprep.mubr.f32.mxu0 0.0
        %1072 = vmatmul.mubr.f32.gmra.mrb[0].mxu0 %v884
        %v1073 = vpop.f32.mrb[0].mxu0
        %v1074 = vadd.f32 %v783, %v1073
        %v1075 = vpop.f32.mrb[0].mxu0
        %1076 = vmatprep.mubr.f32.mxu0 0.0
        %1077 = vmatmul.mubr.f32.gmra.mrb[0].mxu0 %v886
        %v1078 = vpop.f32.mrb[0].mxu0
        %v1079 = vadd.f32 %v788, %v1078
        %v1080 = vpop.f32.mrb[0].mxu0
        %1081 = vmatprep.mubr.f32.mxu0 0.0
        %1082 = vmatmul.mubr.f32.gmra.mrb[0].mxu0 %v888
        %v1083 = vpop.f32.mrb[0].mxu0
        %v1084 = vadd.f32 %v793, %v1083
        %v1085 = vpop.f32.mrb[0].mxu0
        %1086 = vmatprep.mubr.f32.mxu0 0.0
        %1087 = vmatmul.mubr.f32.gmra.mrb[0].mxu0 %v890
        %v1088 = vpop.f32.mrb[0].mxu0
        %v1089 = vadd.f32 %v798, %v1088
        %v1090 = vpop.f32.mrb[0].mxu0
        %1091 = vmatprep.mubr.f32.mxu0 0.0
        %1092 = vmatmul.mubr.f32.gmra.mrb[0].mxu0 %v892
        %v1093 = vpop.f32.mrb[0].mxu0
        %v1094 = vadd.f32 %v803, %v1093
        %v1095 = vpop.f32.mrb[0].mxu0
        %1096 = vmatprep.mubr.f32.mxu0 0.0
        %1097 = vmatmul.mubr.f32.gmra.mrb[0].mxu0 %v894
        %v1098 = vpop.f32.mrb[0].mxu0
        %v1099 = vadd.f32 %v808, %v1098
        %v1100 = vpop.f32.mrb[0].mxu0
        %1101 = vmatprep.mubr.f32.mxu0 0.0
        %1102 = vmatmul.mubr.f32.gmra.mrb[0].mxu0 %v896
        %v1103 = vpop.f32.mrb[0].mxu0
        %v1104 = vadd.f32 %v813, %v1103
        %v1105 = vpop.f32.mrb[0].mxu0
        %1106 = vmatprep.mubr.f32.mxu0 0.0
        %1107 = vmatmul.mubr.f32.gmra.mrb[0].mxu0 %v898
        %v1108 = vpop.f32.mrb[0].mxu0
        %v1109 = vadd.f32 %v818, %v1108
        %v1110 = vpop.f32.mrb[0].mxu0
        %1111 = vmatprep.mubr.f32.mxu0 0.0
        %1112 = vmatmul.mubr.f32.gmra.mrb[0].mxu0 %v900
        %v1113 = vpop.f32.mrb[0].mxu0
        %v1114 = vadd.f32 %v823, %v1113
        %v1115 = vpop.f32.mrb[0].mxu0
        %1116 = vmatprep.mubr.f32.mxu0 0.0
        %1117 = vmatmul.mubr.f32.gmra.mrb[0].mxu0 %v902
        %v1118 = vpop.f32.mrb[0].mxu0
        %v1119 = vadd.f32 %v828, %v1118
        %v1120 = vpop.f32.mrb[0].mxu0
        %1121 = vmatprep.mubr.f32.mxu0 0.0
        %1122 = vmatmul.mubr.f32.gmra.mrb[0].mxu0 %v904
        %v1123 = vpop.f32.mrb[0].mxu0
        %v1124 = vadd.f32 %v833, %v1123
        %v1125 = vpop.f32.mrb[0].mxu0
        %1126 = vmatprep.mubr.f32.mxu0 0.0
        %1127 = vmatmul.mubr.f32.gmra.mrb[0].mxu0 %v906
        %v1128 = vpop.f32.mrb[0].mxu0
        %v1129 = vadd.f32 %v838, %v1128
        %v1130 = vpop.f32.mrb[0].mxu0
        %1131 = vmatprep.mubr.f32.mxu0 0.0
        %1132 = vmatmul.mubr.f32.gmra.mrb[0].mxu0 %v908
        %v1133 = vpop.f32.mrb[0].mxu0
        %v1134 = vadd.f32 %v843, %v1133
        %v1135 = vpop.f32.mrb[0].mxu0
        %1136 = vdwg.mxu0
        %vm1137 = vcmask 1045504
        %v1138 = vrot.slane %v364, 2
        %v1139 = vrot.slane %v365, 2
        %v1140 = vsel %vm1137, %v1138, %v1139
        %v1141 = vrot.slane %v366, 2
        %v1142 = vsel %vm1137, %v1139, %v1141
        %v1143 = vrot.slane %v367, 2
        %v1144 = vrot.slane %v368, 2
        %v1145 = vsel %vm1137, %v1143, %v1144
        %v1146 = vrot.slane %v369, 2
        %v1147 = vsel %vm1137, %v1144, %v1146
        %v1148 = vrot.slane %v370, 2
        %v1149 = vrot.slane %v371, 2
        %v1150 = vsel %vm1137, %v1148, %v1149
        %v1151 = vrot.slane %v372, 2
        %v1152 = vsel %vm1137, %v1149, %v1151
        %v1153 = vrot.slane %v373, 2
        %v1154 = vrot.slane %v374, 2
        %v1155 = vsel %vm1137, %v1153, %v1154
        %v1156 = vrot.slane %v375, 2
        %v1157 = vsel %vm1137, %v1154, %v1156
        %v1158 = vrot.slane %v376, 2
        %v1159 = vrot.slane %v377, 2
        %v1160 = vsel %vm1137, %v1158, %v1159
        %v1161 = vrot.slane %v378, 2
        %v1162 = vsel %vm1137, %v1159, %v1161
        %v1163 = vrot.slane %v379, 2
        %v1164 = vrot.slane %v380, 2
        %v1165 = vsel %vm1137, %v1163, %v1164
        %v1166 = vrot.slane %v381, 2
        %v1167 = vsel %vm1137, %v1164, %v1166
        %v1168 = vrot.slane %v382, 2
        %v1169 = vrot.slane %v383, 2
        %v1170 = vsel %vm1137, %v1168, %v1169
        %v1171 = vrot.slane %v384, 2
        %v1172 = vsel %vm1137, %v1169, %v1171
        %v1173 = vrot.slane %v385, 2
        %v1174 = vrot.slane %v386, 2
        %v1175 = vsel %vm1137, %v1173, %v1174
        %v1176 = vrot.slane %v387, 2
        %v1177 = vsel %vm1137, %v1174, %v1176
        %v1178 = vrot.slane %v388, 2
        %v1179 = vrot.slane %v389, 2
        %v1180 = vsel %vm1137, %v1178, %v1179
        %v1181 = vrot.slane %v390, 2
        %v1182 = vsel %vm1137, %v1179, %v1181
        %v1183 = vrot.slane %v391, 2
        %v1184 = vrot.slane %v392, 2
        %v1185 = vsel %vm1137, %v1183, %v1184
        %v1186 = vrot.slane %v393, 2
        %v1187 = vsel %vm1137, %v1184, %v1186
        %v1188 = vrot.slane %v394, 2
        %v1189 = vrot.slane %v395, 2
        %v1190 = vsel %vm1137, %v1188, %v1189
        %v1191 = vrot.slane %v396, 2
        %v1192 = vsel %vm1137, %v1189, %v1191
        %v1193 = vrot.slane %v397, 2
        %v1194 = vrot.slane %v398, 2
        %v1195 = vsel %vm1137, %v1193, %v1194
        %v1196 = vrot.slane %v399, 2
        %v1197 = vsel %vm1137, %v1194, %v1196
        %v1198 = vrot.slane %v400, 2
        %v1199 = vrot.slane %v401, 2
        %v1200 = vsel %vm1137, %v1198, %v1199
        %v1201 = vrot.slane %v402, 2
        %v1202 = vsel %vm1137, %v1199, %v1201
        %v1203 = vrot.slane %v403, 2
        %v1204 = vrot.slane %v404, 2
        %v1205 = vsel %vm1137, %v1203, %v1204
        %v1206 = vrot.slane %v405, 2
        %v1207 = vsel %vm1137, %v1204, %v1206
        %v1208 = vrot.slane %v406, 2
        %v1209 = vrot.slane %v407, 2
        %v1210 = vsel %vm1137, %v1208, %v1209
        %v1211 = vrot.slane %v408, 2
        %v1212 = vsel %vm1137, %v1209, %v1211
        %v1213 = vrot.slane %v409, 2
        %v1214 = vrot.slane %v410, 2
        %v1215 = vsel %vm1137, %v1213, %v1214
        %v1216 = vrot.slane %v411, 2
        %v1217 = vsel %vm1137, %v1214, %v1216
        %v1218 = vsel %vm207, %v1140, 0
        %v1220 = vsel %vm207, %v1142, 0
        %v1222 = vsel %vm207, %v1145, 0
        %v1224 = vsel %vm207, %v1147, 0
        %v1226 = vsel %vm207, %v1150, 0
        %v1228 = vsel %vm207, %v1152, 0
        %v1230 = vsel %vm207, %v1155, 0
        %v1232 = vsel %vm207, %v1157, 0
        %v1234 = vsel %vm207, %v1160, 0
        %v1236 = vsel %vm207, %v1162, 0
        %v1238 = vsel %vm207, %v1165, 0
        %v1240 = vsel %vm207, %v1167, 0
        %v1242 = vsel %vm207, %v1170, 0
        %v1244 = vsel %vm207, %v1172, 0
        %v1246 = vsel %vm207, %v1175, 0
        %v1248 = vsel %vm207, %v1177, 0
        %v1250 = vsel %vm207, %v1180, 0
        %v1252 = vsel %vm207, %v1182, 0
        %v1254 = vsel %vm207, %v1185, 0
        %v1256 = vsel %vm207, %v1187, 0
        %v1258 = vsel %vm207, %v1190, 0
        %v1260 = vsel %vm207, %v1192, 0
        %v1262 = vsel %vm207, %v1195, 0
        %v1264 = vsel %vm207, %v1197, 0
        %v1266 = vsel %vm207, %v1200, 0
        %v1268 = vsel %vm207, %v1202, 0
        %v1270 = vsel %vm207, %v1205, 0
        %v1272 = vsel %vm207, %v1207, 0
        %v1274 = vsel %vm207, %v1210, 0
        %v1276 = vsel %vm207, %v1212, 0
        %v1278 = vsel %vm207, %v1215, 0
        %v1280 = vsel %vm207, %v1217, 0
        %v1283 = vsel %vm618, %v419, 0
        %1285 = vmatprep.subr.mxu0 0.0
        %1286 = vmatpush1.msra.mxu0 %v1283
        %1287 = vmatprep.subr.mxu0 0.0
        %1288 = vmatpush1.msra.mxu0 0.0
        %1289 = vmatprep.subr.mxu0 0.0
        %1290 = vmatpush1.msra.mxu0 0.0
        %1291 = vmatprep.subr.mxu0 0.0
        %1292 = vmatpush1.msra.mxu0 0.0
        %1293 = vmatprep.subr.mxu0 0.0
        %1294 = vmatpush1.msra.mxu0 0.0
        %1295 = vmatprep.subr.mxu0 0.0
        %1296 = vmatpush1.msra.mxu0 0.0
        %1297 = vmatprep.subr.mxu0 0.0
        %1298 = vmatpush1.msra.mxu0 0.0
        %1299 = vmatprep.subr.mxu0 0.0
        %1300 = vmatpush1.msra.mxu0 0.0
        %1301 = vmatprep.subr.mxu0 0.0
        %1302 = vmatpush1.msra.mxu0 0.0
        %1303 = vmatprep.subr.mxu0 0.0
        %1304 = vmatpush1.msra.mxu0 0.0
        %1305 = vmatprep.subr.mxu0 0.0
        %1306 = vmatpush1.msra.mxu0 0.0
        %1307 = vmatprep.subr.mxu0 0.0
        %1308 = vmatpush1.msra.mxu0 0.0
        %1309 = vmatprep.subr.mxu0 0.0
        %1310 = vmatpush1.msra.mxu0 0.0
        %1311 = vmatprep.subr.mxu0 0.0
        %1312 = vmatpush1.msra.mxu0 0.0
        %1313 = vmatprep.subr.mxu0 0.0
        %1314 = vmatpush1.msra.mxu0 0.0
        %1315 = vmatprep.subr.mxu0 0.0
        %1316 = vmatpush1.msra.mxu0 0.0
        %1317 = vmatprep.subr.mxu0 0.0
        %1318 = vmatpush1.msra.mxu0 0.0
        %1319 = vmatprep.subr.mxu0 0.0
        %1320 = vmatpush1.msra.mxu0 0.0
        %1321 = vmatprep.subr.mxu0 0.0
        %1322 = vmatpush1.msra.mxu0 0.0
        %1323 = vmatprep.subr.mxu0 0.0
        %1324 = vmatpush1.msra.mxu0 0.0
        %1325 = vmatprep.subr.mxu0 0.0
        %1326 = vmatpush1.msra.mxu0 0.0
        %1327 = vmatprep.subr.mxu0 0.0
        %1328 = vmatpush1.msra.mxu0 0.0
        %1329 = vmatprep.subr.mxu0 0.0
        %1330 = vmatpush1.msra.mxu0 0.0
        %1331 = vmatprep.subr.mxu0 0.0
        %1332 = vmatpush1.msra.mxu0 0.0
        %1333 = vmatprep.subr.mxu0 0.0
        %1334 = vmatpush1.msra.mxu0 0.0
        %1335 = vmatprep.subr.mxu0 0.0
        %1336 = vmatpush1.msra.mxu0 0.0
        %1337 = vmatprep.subr.mxu0 0.0
        %1338 = vmatpush1.msra.mxu0 0.0
        %1339 = vmatprep.subr.mxu0 0.0
        %1340 = vmatpush1.msra.mxu0 0.0
        %1341 = vmatprep.subr.mxu0 0.0
        %1342 = vmatpush1.msra.mxu0 0.0
        %1343 = vmatprep.subr.mxu0 0.0
        %1344 = vmatpush1.msra.mxu0 0.0
        %1345 = vmatprep.subr.mxu0 0.0
        %1346 = vmatpush1.msra.mxu0 0.0
        %1347 = vmatprep.subr.mxu0 0.0
        %1348 = vmatpush1.msra.mxu0 0.0
        %1349 = vmatprep.mubr.f32.mxu0 0.0
        %1350 = vmatmul.mubr.f32.gmra.mrb[0].mxu0 %v1218
        %v1351 = vpop.f32.mrb[0].mxu0
        %v1352 = vadd.f32 0.0, %v1351
        %v1353 = vpop.f32.mrb[0].mxu0
        %1354 = vmatprep.mubr.f32.mxu0 0.0
        %1355 = vmatmul.mubr.f32.gmra.mrb[0].mxu0 %v1220
        %v1356 = vpop.f32.mrb[0].mxu0
        %v1357 = vadd.f32 0.0, %v1356
        %v1358 = vpop.f32.mrb[0].mxu0
        %1359 = vmatprep.mubr.f32.mxu0 0.0
        %1360 = vmatmul.mubr.f32.gmra.mrb[0].mxu0 %v1222
        %v1361 = vpop.f32.mrb[0].mxu0
        %v1362 = vadd.f32 0.0, %v1361
        %v1363 = vpop.f32.mrb[0].mxu0
        %1364 = vmatprep.mubr.f32.mxu0 0.0
        %1365 = vmatmul.mubr.f32.gmra.mrb[0].mxu0 %v1224
        %v1366 = vpop.f32.mrb[0].mxu0
        %v1367 = vadd.f32 0.0, %v1366
        %v1368 = vpop.f32.mrb[0].mxu0
        %1369 = vmatprep.mubr.f32.mxu0 0.0
        %1370 = vmatmul.mubr.f32.gmra.mrb[0].mxu0 %v1226
        %v1371 = vpop.f32.mrb[0].mxu0
        %v1372 = vadd.f32 0.0, %v1371
        %v1373 = vpop.f32.mrb[0].mxu0
        %1374 = vmatprep.mubr.f32.mxu0 0.0
        %1375 = vmatmul.mubr.f32.gmra.mrb[0].mxu0 %v1228
        %v1376 = vpop.f32.mrb[0].mxu0
        %v1377 = vadd.f32 0.0, %v1376
        %v1378 = vpop.f32.mrb[0].mxu0
        %1379 = vmatprep.mubr.f32.mxu0 0.0
        %1380 = vmatmul.mubr.f32.gmra.mrb[0].mxu0 %v1230
        %v1381 = vpop.f32.mrb[0].mxu0
        %v1382 = vadd.f32 0.0, %v1381
        %v1383 = vpop.f32.mrb[0].mxu0
        %1384 = vmatprep.mubr.f32.mxu0 0.0
        %1385 = vmatmul.mubr.f32.gmra.mrb[0].mxu0 %v1232
        %v1386 = vpop.f32.mrb[0].mxu0
        %v1387 = vadd.f32 0.0, %v1386
        %v1388 = vpop.f32.mrb[0].mxu0
        %1389 = vmatprep.mubr.f32.mxu0 0.0
        %1390 = vmatmul.mubr.f32.gmra.mrb[0].mxu0 %v1234
        %v1391 = vpop.f32.mrb[0].mxu0
        %v1392 = vadd.f32 0.0, %v1391
        %v1393 = vpop.f32.mrb[0].mxu0
        %1394 = vmatprep.mubr.f32.mxu0 0.0
        %1395 = vmatmul.mubr.f32.gmra.mrb[0].mxu0 %v1236
        %v1396 = vpop.f32.mrb[0].mxu0
        %v1397 = vadd.f32 0.0, %v1396
        %v1398 = vpop.f32.mrb[0].mxu0
        %1399 = vmatprep.mubr.f32.mxu0 0.0
        %1400 = vmatmul.mubr.f32.gmra.mrb[0].mxu0 %v1238
        %v1401 = vpop.f32.mrb[0].mxu0
        %v1402 = vadd.f32 0.0, %v1401
        %v1403 = vpop.f32.mrb[0].mxu0
        %1404 = vmatprep.mubr.f32.mxu0 0.0
        %1405 = vmatmul.mubr.f32.gmra.mrb[0].mxu0 %v1240
        %v1406 = vpop.f32.mrb[0].mxu0
        %v1407 = vadd.f32 0.0, %v1406
        %v1408 = vpop.f32.mrb[0].mxu0
        %1409 = vmatprep.mubr.f32.mxu0 0.0
        %1410 = vmatmul.mubr.f32.gmra.mrb[0].mxu0 %v1242
        %v1411 = vpop.f32.mrb[0].mxu0
        %v1412 = vadd.f32 0.0, %v1411
        %v1413 = vpop.f32.mrb[0].mxu0
        %1414 = vmatprep.mubr.f32.mxu0 0.0
        %1415 = vmatmul.mubr.f32.gmra.mrb[0].mxu0 %v1244
        %v1416 = vpop.f32.mrb[0].mxu0
        %v1417 = vadd.f32 0.0, %v1416
        %v1418 = vpop.f32.mrb[0].mxu0
        %1419 = vmatprep.mubr.f32.mxu0 0.0
        %1420 = vmatmul.mubr.f32.gmra.mrb[0].mxu0 %v1246
        %v1421 = vpop.f32.mrb[0].mxu0
        %v1422 = vadd.f32 0.0, %v1421
        %v1423 = vpop.f32.mrb[0].mxu0
        %1424 = vmatprep.mubr.f32.mxu0 0.0
        %1425 = vmatmul.mubr.f32.gmra.mrb[0].mxu0 %v1248
        %v1426 = vpop.f32.mrb[0].mxu0
        %v1427 = vadd.f32 0.0, %v1426
        %v1428 = vpop.f32.mrb[0].mxu0
        %1429 = vmatprep.mubr.f32.mxu0 0.0
        %1430 = vmatmul.mubr.f32.gmra.mrb[0].mxu0 %v1250
        %v1431 = vpop.f32.mrb[0].mxu0
        %v1432 = vadd.f32 0.0, %v1431
        %v1433 = vpop.f32.mrb[0].mxu0
        %1434 = vmatprep.mubr.f32.mxu0 0.0
        %1435 = vmatmul.mubr.f32.gmra.mrb[0].mxu0 %v1252
        %v1436 = vpop.f32.mrb[0].mxu0
        %v1437 = vadd.f32 0.0, %v1436
        %v1438 = vpop.f32.mrb[0].mxu0
        %1439 = vmatprep.mubr.f32.mxu0 0.0
        %1440 = vmatmul.mubr.f32.gmra.mrb[0].mxu0 %v1254
        %v1441 = vpop.f32.mrb[0].mxu0
        %v1442 = vadd.f32 0.0, %v1441
        %v1443 = vpop.f32.mrb[0].mxu0
        %1444 = vmatprep.mubr.f32.mxu0 0.0
        %1445 = vmatmul.mubr.f32.gmra.mrb[0].mxu0 %v1256
        %v1446 = vpop.f32.mrb[0].mxu0
        %v1447 = vadd.f32 0.0, %v1446
        %v1448 = vpop.f32.mrb[0].mxu0
        %1449 = vmatprep.mubr.f32.mxu0 0.0
        %1450 = vmatmul.mubr.f32.gmra.mrb[0].mxu0 %v1258
        %v1451 = vpop.f32.mrb[0].mxu0
        %v1452 = vadd.f32 0.0, %v1451
        %v1453 = vpop.f32.mrb[0].mxu0
        %1454 = vmatprep.mubr.f32.mxu0 0.0
        %1455 = vmatmul.mubr.f32.gmra.mrb[0].mxu0 %v1260
        %v1456 = vpop.f32.mrb[0].mxu0
        %v1457 = vadd.f32 0.0, %v1456
        %v1458 = vpop.f32.mrb[0].mxu0
        %1459 = vmatprep.mubr.f32.mxu0 0.0
        %1460 = vmatmul.mubr.f32.gmra.mrb[0].mxu0 %v1262
        %v1461 = vpop.f32.mrb[0].mxu0
        %v1462 = vadd.f32 0.0, %v1461
        %v1463 = vpop.f32.mrb[0].mxu0
        %1464 = vmatprep.mubr.f32.mxu0 0.0
        %1465 = vmatmul.mubr.f32.gmra.mrb[0].mxu0 %v1264
        %v1466 = vpop.f32.mrb[0].mxu0
        %v1467 = vadd.f32 0.0, %v1466
        %v1468 = vpop.f32.mrb[0].mxu0
        %1469 = vmatprep.mubr.f32.mxu0 0.0
        %1470 = vmatmul.mubr.f32.gmra.mrb[0].mxu0 %v1266
        %v1471 = vpop.f32.mrb[0].mxu0
        %v1472 = vadd.f32 0.0, %v1471
        %v1473 = vpop.f32.mrb[0].mxu0
        %1474 = vmatprep.mubr.f32.mxu0 0.0
        %1475 = vmatmul.mubr.f32.gmra.mrb[0].mxu0 %v1268
        %v1476 = vpop.f32.mrb[0].mxu0
        %v1477 = vadd.f32 0.0, %v1476
        %v1478 = vpop.f32.mrb[0].mxu0
        %1479 = vmatprep.mubr.f32.mxu0 0.0
        %1480 = vmatmul.mubr.f32.gmra.mrb[0].mxu0 %v1270
        %v1481 = vpop.f32.mrb[0].mxu0
        %v1482 = vadd.f32 0.0, %v1481
        %v1483 = vpop.f32.mrb[0].mxu0
        %1484 = vmatprep.mubr.f32.mxu0 0.0
        %1485 = vmatmul.mubr.f32.gmra.mrb[0].mxu0 %v1272
        %v1486 = vpop.f32.mrb[0].mxu0
        %v1487 = vadd.f32 0.0, %v1486
        %v1488 = vpop.f32.mrb[0].mxu0
        %1489 = vmatprep.mubr.f32.mxu0 0.0
        %1490 = vmatmul.mubr.f32.gmra.mrb[0].mxu0 %v1274
        %v1491 = vpop.f32.mrb[0].mxu0
        %v1492 = vadd.f32 0.0, %v1491
        %v1493 = vpop.f32.mrb[0].mxu0
        %1494 = vmatprep.mubr.f32.mxu0 0.0
        %1495 = vmatmul.mubr.f32.gmra.mrb[0].mxu0 %v1276
        %v1496 = vpop.f32.mrb[0].mxu0
        %v1497 = vadd.f32 0.0, %v1496
        %v1498 = vpop.f32.mrb[0].mxu0
        %1499 = vmatprep.mubr.f32.mxu0 0.0
        %1500 = vmatmul.mubr.f32.gmra.mrb[0].mxu0 %v1278
        %v1501 = vpop.f32.mrb[0].mxu0
        %v1502 = vadd.f32 0.0, %v1501
        %v1503 = vpop.f32.mrb[0].mxu0
        %1504 = vmatprep.mubr.f32.mxu0 0.0
        %1505 = vmatmul.mubr.f32.gmra.mrb[0].mxu0 %v1280
        %v1506 = vpop.f32.mrb[0].mxu0
        %v1507 = vadd.f32 0.0, %v1506
        %v1508 = vpop.f32.mrb[0].mxu0
        %1509 = vdwg.mxu0
        %v1510 = vadd.f32 %v979, %v1352
        %v1511 = vadd.f32 %v984, %v1357
        %v1512 = vadd.f32 %v989, %v1362
        %v1513 = vadd.f32 %v994, %v1367
        %v1514 = vadd.f32 %v999, %v1372
        %v1515 = vadd.f32 %v1004, %v1377
        %v1516 = vadd.f32 %v1009, %v1382
        %v1517 = vadd.f32 %v1014, %v1387
        %v1518 = vadd.f32 %v1019, %v1392
        %v1519 = vadd.f32 %v1024, %v1397
        %v1520 = vadd.f32 %v1029, %v1402
        %v1521 = vadd.f32 %v1034, %v1407
        %v1522 = vadd.f32 %v1039, %v1412
        %v1523 = vadd.f32 %v1044, %v1417
        %v1524 = vadd.f32 %v1049, %v1422
        %v1525 = vadd.f32 %v1054, %v1427
        %v1526 = vadd.f32 %v1059, %v1432
        %v1527 = vadd.f32 %v1064, %v1437
        %v1528 = vadd.f32 %v1069, %v1442
        %v1529 = vadd.f32 %v1074, %v1447
        %v1530 = vadd.f32 %v1079, %v1452
        %v1531 = vadd.f32 %v1084, %v1457
        %v1532 = vadd.f32 %v1089, %v1462
        %v1533 = vadd.f32 %v1094, %v1467
        %v1534 = vadd.f32 %v1099, %v1472
        %v1535 = vadd.f32 %v1104, %v1477
        %v1536 = vadd.f32 %v1109, %v1482
        %v1537 = vadd.f32 %v1114, %v1487
        %v1538 = vadd.f32 %v1119, %v1492
        %v1539 = vadd.f32 %v1124, %v1497
        %v1540 = vadd.f32 %v1129, %v1502
        %v1541 = vadd.f32 %v1134, %v1507
        %v1542 = vrot.slane %v419, 4
        %v1544 = vsel %vm207, %v412, 0
        %v1547 = vsel %vm207, %v413, 0
        %v1549 = vsel %vm618, %v1542, 0
        %1551 = vmatprep.subr.mxu0 0.0
        %1552 = vmatpush1.msra.mxu0 %v1549
        %1553 = vmatprep.subr.mxu0 0.0
        %1554 = vmatpush1.msra.mxu0 0.0
        %1555 = vmatprep.subr.mxu0 0.0
        %1556 = vmatpush1.msra.mxu0 0.0
        %1557 = vmatprep.subr.mxu0 0.0
        %1558 = vmatpush1.msra.mxu0 0.0
        %1559 = vmatprep.subr.mxu0 0.0
        %1560 = vmatpush1.msra.mxu0 0.0
        %1561 = vmatprep.subr.mxu0 0.0
        %1562 = vmatpush1.msra.mxu0 0.0
        %1563 = vmatprep.subr.mxu0 0.0
        %1564 = vmatpush1.msra.mxu0 0.0
        %1565 = vmatprep.subr.mxu0 0.0
        %1566 = vmatpush1.msra.mxu0 0.0
        %1567 = vmatprep.subr.mxu0 0.0
        %1568 = vmatpush1.msra.mxu0 0.0
        %1569 = vmatprep.subr.mxu0 0.0
        %1570 = vmatpush1.msra.mxu0 0.0
        %1571 = vmatprep.subr.mxu0 0.0
        %1572 = vmatpush1.msra.mxu0 0.0
        %1573 = vmatprep.subr.mxu0 0.0
        %1574 = vmatpush1.msra.mxu0 0.0
        %1575 = vmatprep.subr.mxu0 0.0
        %1576 = vmatpush1.msra.mxu0 0.0
        %1577 = vmatprep.subr.mxu0 0.0
        %1578 = vmatpush1.msra.mxu0 0.0
        %1579 = vmatprep.subr.mxu0 0.0
        %1580 = vmatpush1.msra.mxu0 0.0
        %1581 = vmatprep.subr.mxu0 0.0
        %1582 = vmatpush1.msra.mxu0 0.0
        %1583 = vmatprep.subr.mxu0 0.0
        %1584 = vmatpush1.msra.mxu0 0.0
        %1585 = vmatprep.subr.mxu0 0.0
        %1586 = vmatpush1.msra.mxu0 0.0
        %1587 = vmatprep.subr.mxu0 0.0
        %1588 = vmatpush1.msra.mxu0 0.0
        %1589 = vmatprep.subr.mxu0 0.0
        %1590 = vmatpush1.msra.mxu0 0.0
        %1591 = vmatprep.subr.mxu0 0.0
        %1592 = vmatpush1.msra.mxu0 0.0
        %1593 = vmatprep.subr.mxu0 0.0
        %1594 = vmatpush1.msra.mxu0 0.0
        %1595 = vmatprep.subr.mxu0 0.0
        %1596 = vmatpush1.msra.mxu0 0.0
        %1597 = vmatprep.subr.mxu0 0.0
        %1598 = vmatpush1.msra.mxu0 0.0
        %1599 = vmatprep.subr.mxu0 0.0
        %1600 = vmatpush1.msra.mxu0 0.0
        %1601 = vmatprep.subr.mxu0 0.0
        %1602 = vmatpush1.msra.mxu0 0.0
        %1603 = vmatprep.subr.mxu0 0.0
        %1604 = vmatpush1.msra.mxu0 0.0
        %1605 = vmatprep.subr.mxu0 0.0
        %1606 = vmatpush1.msra.mxu0 0.0
        %1607 = vmatprep.subr.mxu0 0.0
        %1608 = vmatpush1.msra.mxu0 0.0
        %1609 = vmatprep.subr.mxu0 0.0
        %1610 = vmatpush1.msra.mxu0 0.0
        %1611 = vmatprep.subr.mxu0 0.0
        %1612 = vmatpush1.msra.mxu0 0.0
        %1613 = vmatprep.subr.mxu0 0.0
        %1614 = vmatpush1.msra.mxu0 0.0
        %1615 = vmatprep.mubr.f32.mxu0 0.0
        %1616 = vmatmul.mubr.f32.gmra.mrb[0].mxu0 %v850
        %v1617 = vpop.f32.mrb[0].mxu0
        %v1618 = vadd.f32 0.0, %v1617
        %v1619 = vpop.f32.mrb[0].mxu0
        %1620 = vmatprep.mubr.f32.mxu0 0.0
        %1621 = vmatmul.mubr.f32.gmra.mrb[0].mxu0 %v852
        %v1622 = vpop.f32.mrb[0].mxu0
        %v1623 = vadd.f32 0.0, %v1622
        %v1624 = vpop.f32.mrb[0].mxu0
        %1625 = vmatprep.mubr.f32.mxu0 0.0
        %1626 = vmatmul.mubr.f32.gmra.mrb[0].mxu0 %v854
        %v1627 = vpop.f32.mrb[0].mxu0
        %v1628 = vadd.f32 0.0, %v1627
        %v1629 = vpop.f32.mrb[0].mxu0
        %1630 = vmatprep.mubr.f32.mxu0 0.0
        %1631 = vmatmul.mubr.f32.gmra.mrb[0].mxu0 %v856
        %v1632 = vpop.f32.mrb[0].mxu0
        %v1633 = vadd.f32 0.0, %v1632
        %v1634 = vpop.f32.mrb[0].mxu0
        %1635 = vmatprep.mubr.f32.mxu0 0.0
        %1636 = vmatmul.mubr.f32.gmra.mrb[0].mxu0 %v858
        %v1637 = vpop.f32.mrb[0].mxu0
        %v1638 = vadd.f32 0.0, %v1637
        %v1639 = vpop.f32.mrb[0].mxu0
        %1640 = vmatprep.mubr.f32.mxu0 0.0
        %1641 = vmatmul.mubr.f32.gmra.mrb[0].mxu0 %v860
        %v1642 = vpop.f32.mrb[0].mxu0
        %v1643 = vadd.f32 0.0, %v1642
        %v1644 = vpop.f32.mrb[0].mxu0
        %1645 = vmatprep.mubr.f32.mxu0 0.0
        %1646 = vmatmul.mubr.f32.gmra.mrb[0].mxu0 %v862
        %v1647 = vpop.f32.mrb[0].mxu0
        %v1648 = vadd.f32 0.0, %v1647
        %v1649 = vpop.f32.mrb[0].mxu0
        %1650 = vmatprep.mubr.f32.mxu0 0.0
        %1651 = vmatmul.mubr.f32.gmra.mrb[0].mxu0 %v864
        %v1652 = vpop.f32.mrb[0].mxu0
        %v1653 = vadd.f32 0.0, %v1652
        %v1654 = vpop.f32.mrb[0].mxu0
        %1655 = vmatprep.mubr.f32.mxu0 0.0
        %1656 = vmatmul.mubr.f32.gmra.mrb[0].mxu0 %v866
        %v1657 = vpop.f32.mrb[0].mxu0
        %v1658 = vadd.f32 0.0, %v1657
        %v1659 = vpop.f32.mrb[0].mxu0
        %1660 = vmatprep.mubr.f32.mxu0 0.0
        %1661 = vmatmul.mubr.f32.gmra.mrb[0].mxu0 %v868
        %v1662 = vpop.f32.mrb[0].mxu0
        %v1663 = vadd.f32 0.0, %v1662
        %v1664 = vpop.f32.mrb[0].mxu0
        %1665 = vmatprep.mubr.f32.mxu0 0.0
        %1666 = vmatmul.mubr.f32.gmra.mrb[0].mxu0 %v870
        %v1667 = vpop.f32.mrb[0].mxu0
        %v1668 = vadd.f32 0.0, %v1667
        %v1669 = vpop.f32.mrb[0].mxu0
        %1670 = vmatprep.mubr.f32.mxu0 0.0
        %1671 = vmatmul.mubr.f32.gmra.mrb[0].mxu0 %v872
        %v1672 = vpop.f32.mrb[0].mxu0
        %v1673 = vadd.f32 0.0, %v1672
        %v1674 = vpop.f32.mrb[0].mxu0
        %1675 = vmatprep.mubr.f32.mxu0 0.0
        %1676 = vmatmul.mubr.f32.gmra.mrb[0].mxu0 %v874
        %v1677 = vpop.f32.mrb[0].mxu0
        %v1678 = vadd.f32 0.0, %v1677
        %v1679 = vpop.f32.mrb[0].mxu0
        %1680 = vmatprep.mubr.f32.mxu0 0.0
        %1681 = vmatmul.mubr.f32.gmra.mrb[0].mxu0 %v876
        %v1682 = vpop.f32.mrb[0].mxu0
        %v1683 = vadd.f32 0.0, %v1682
        %v1684 = vpop.f32.mrb[0].mxu0
        %1685 = vmatprep.mubr.f32.mxu0 0.0
        %1686 = vmatmul.mubr.f32.gmra.mrb[0].mxu0 %v878
        %v1687 = vpop.f32.mrb[0].mxu0
        %v1688 = vadd.f32 0.0, %v1687
        %v1689 = vpop.f32.mrb[0].mxu0
        %1690 = vmatprep.mubr.f32.mxu0 0.0
        %1691 = vmatmul.mubr.f32.gmra.mrb[0].mxu0 %v880
        %v1692 = vpop.f32.mrb[0].mxu0
        %v1693 = vadd.f32 0.0, %v1692
        %v1694 = vpop.f32.mrb[0].mxu0
        %1695 = vmatprep.mubr.f32.mxu0 0.0
        %1696 = vmatmul.mubr.f32.gmra.mrb[0].mxu0 %v882
        %v1697 = vpop.f32.mrb[0].mxu0
        %v1698 = vadd.f32 0.0, %v1697
        %v1699 = vpop.f32.mrb[0].mxu0
        %1700 = vmatprep.mubr.f32.mxu0 0.0
        %1701 = vmatmul.mubr.f32.gmra.mrb[0].mxu0 %v884
        %v1702 = vpop.f32.mrb[0].mxu0
        %v1703 = vadd.f32 0.0, %v1702
        %v1704 = vpop.f32.mrb[0].mxu0
        %1705 = vmatprep.mubr.f32.mxu0 0.0
        %1706 = vmatmul.mubr.f32.gmra.mrb[0].mxu0 %v886
        %v1707 = vpop.f32.mrb[0].mxu0
        %v1708 = vadd.f32 0.0, %v1707
        %v1709 = vpop.f32.mrb[0].mxu0
        %1710 = vmatprep.mubr.f32.mxu0 0.0
        %1711 = vmatmul.mubr.f32.gmra.mrb[0].mxu0 %v888
        %v1712 = vpop.f32.mrb[0].mxu0
        %v1713 = vadd.f32 0.0, %v1712
        %v1714 = vpop.f32.mrb[0].mxu0
        %1715 = vmatprep.mubr.f32.mxu0 0.0
        %1716 = vmatmul.mubr.f32.gmra.mrb[0].mxu0 %v890
        %v1717 = vpop.f32.mrb[0].mxu0
        %v1718 = vadd.f32 0.0, %v1717
        %v1719 = vpop.f32.mrb[0].mxu0
        %1720 = vmatprep.mubr.f32.mxu0 0.0
        %1721 = vmatmul.mubr.f32.gmra.mrb[0].mxu0 %v892
        %v1722 = vpop.f32.mrb[0].mxu0
        %v1723 = vadd.f32 0.0, %v1722
        %v1724 = vpop.f32.mrb[0].mxu0
        %1725 = vmatprep.mubr.f32.mxu0 0.0
        %1726 = vmatmul.mubr.f32.gmra.mrb[0].mxu0 %v894
        %v1727 = vpop.f32.mrb[0].mxu0
        %v1728 = vadd.f32 0.0, %v1727
        %v1729 = vpop.f32.mrb[0].mxu0
        %1730 = vmatprep.mubr.f32.mxu0 0.0
        %1731 = vmatmul.mubr.f32.gmra.mrb[0].mxu0 %v896
        %v1732 = vpop.f32.mrb[0].mxu0
        %v1733 = vadd.f32 0.0, %v1732
        %v1734 = vpop.f32.mrb[0].mxu0
        %1735 = vmatprep.mubr.f32.mxu0 0.0
        %1736 = vmatmul.mubr.f32.gmra.mrb[0].mxu0 %v898
        %v1737 = vpop.f32.mrb[0].mxu0
        %v1738 = vadd.f32 0.0, %v1737
        %v1739 = vpop.f32.mrb[0].mxu0
        %1740 = vmatprep.mubr.f32.mxu0 0.0
        %1741 = vmatmul.mubr.f32.gmra.mrb[0].mxu0 %v900
        %v1742 = vpop.f32.mrb[0].mxu0
        %v1743 = vadd.f32 0.0, %v1742
        %v1744 = vpop.f32.mrb[0].mxu0
        %1745 = vmatprep.mubr.f32.mxu0 0.0
        %1746 = vmatmul.mubr.f32.gmra.mrb[0].mxu0 %v902
        %v1747 = vpop.f32.mrb[0].mxu0
        %v1748 = vadd.f32 0.0, %v1747
        %v1749 = vpop.f32.mrb[0].mxu0
        %1750 = vmatprep.mubr.f32.mxu0 0.0
        %1751 = vmatmul.mubr.f32.gmra.mrb[0].mxu0 %v904
        %v1752 = vpop.f32.mrb[0].mxu0
        %v1753 = vadd.f32 0.0, %v1752
        %v1754 = vpop.f32.mrb[0].mxu0
        %1755 = vmatprep.mubr.f32.mxu0 0.0
        %1756 = vmatmul.mubr.f32.gmra.mrb[0].mxu0 %v906
        %v1757 = vpop.f32.mrb[0].mxu0
        %v1758 = vadd.f32 0.0, %v1757
        %v1759 = vpop.f32.mrb[0].mxu0
        %1760 = vmatprep.mubr.f32.mxu0 0.0
        %1761 = vmatmul.mubr.f32.gmra.mrb[0].mxu0 %v908
        %v1762 = vpop.f32.mrb[0].mxu0
        %v1763 = vadd.f32 0.0, %v1762
        %v1764 = vpop.f32.mrb[0].mxu0
        %1765 = vmatprep.mubr.f32.mxu0 0.0
        %1766 = vmatmul.mubr.f32.gmra.mrb[0].mxu0 %v1544
        %v1767 = vpop.f32.mrb[0].mxu0
        %v1768 = vadd.f32 0.0, %v1767
        %v1769 = vpop.f32.mrb[0].mxu0
        %1770 = vmatprep.mubr.f32.mxu0 0.0
        %1771 = vmatmul.mubr.f32.gmra.mrb[0].mxu0 %v1547
        %v1772 = vpop.f32.mrb[0].mxu0
        %v1773 = vadd.f32 0.0, %v1772
        %v1774 = vpop.f32.mrb[0].mxu0
        %1775 = vdwg.mxu0
        %v1776 = vadd.f32 %v1510, %v1618
        %v1777 = vadd.f32 %v1511, %v1623
        %v1778 = vadd.f32 %v1512, %v1628
        %v1779 = vadd.f32 %v1513, %v1633
        %v1780 = vadd.f32 %v1514, %v1638
        %v1781 = vadd.f32 %v1515, %v1643
        %v1782 = vadd.f32 %v1516, %v1648
        %v1783 = vadd.f32 %v1517, %v1653
        %v1784 = vadd.f32 %v1518, %v1658
        %v1785 = vadd.f32 %v1519, %v1663
        %v1786 = vadd.f32 %v1520, %v1668
        %v1787 = vadd.f32 %v1521, %v1673
        %v1788 = vadd.f32 %v1522, %v1678
        %v1789 = vadd.f32 %v1523, %v1683
        %v1790 = vadd.f32 %v1524, %v1688
        %v1791 = vadd.f32 %v1525, %v1693
        %v1792 = vadd.f32 %v1526, %v1698
        %v1793 = vadd.f32 %v1527, %v1703
        %v1794 = vadd.f32 %v1528, %v1708
        %v1795 = vadd.f32 %v1529, %v1713
        %v1796 = vadd.f32 %v1530, %v1718
        %v1797 = vadd.f32 %v1531, %v1723
        %v1798 = vadd.f32 %v1532, %v1728
        %v1799 = vadd.f32 %v1533, %v1733
        %v1800 = vadd.f32 %v1534, %v1738
        %v1801 = vadd.f32 %v1535, %v1743
        %v1802 = vadd.f32 %v1536, %v1748
        %v1803 = vadd.f32 %v1537, %v1753
        %v1804 = vadd.f32 %v1538, %v1758
        %v1805 = vadd.f32 %v1539, %v1763
        %v1806 = vadd.f32 %v1540, %v1768
        %v1807 = vadd.f32 %v1541, %v1773
        %v1809 = vrot.slane %v412, 1
        %v1810 = vrot.slane %v413, 1
        %v1811 = vsel %vm471, %v1809, %v1810
        %v1812 = vrot.slane %v414, 1
        %v1813 = vsel %vm471, %v1810, %v1812
        %v1814 = vsel %vm207, %v1811, 0
        %v1816 = vsel %vm207, %v1813, 0
        %v1819 = vsel %vm618, %v420, 0
        %1821 = vmatprep.subr.mxu0 0.0
        %1822 = vmatpush1.msra.mxu0 %v1819
        %1823 = vmatprep.subr.mxu0 0.0
        %1824 = vmatpush1.msra.mxu0 0.0
        %1825 = vmatprep.subr.mxu0 0.0
        %1826 = vmatpush1.msra.mxu0 0.0
        %1827 = vmatprep.subr.mxu0 0.0
        %1828 = vmatpush1.msra.mxu0 0.0
        %1829 = vmatprep.subr.mxu0 0.0
        %1830 = vmatpush1.msra.mxu0 0.0
        %1831 = vmatprep.subr.mxu0 0.0
        %1832 = vmatpush1.msra.mxu0 0.0
        %1833 = vmatprep.subr.mxu0 0.0
        %1834 = vmatpush1.msra.mxu0 0.0
        %1835 = vmatprep.subr.mxu0 0.0
        %1836 = vmatpush1.msra.mxu0 0.0
        %1837 = vmatprep.subr.mxu0 0.0
        %1838 = vmatpush1.msra.mxu0 0.0
        %1839 = vmatprep.subr.mxu0 0.0
        %1840 = vmatpush1.msra.mxu0 0.0
        %1841 = vmatprep.subr.mxu0 0.0
        %1842 = vmatpush1.msra.mxu0 0.0
        %1843 = vmatprep.subr.mxu0 0.0
        %1844 = vmatpush1.msra.mxu0 0.0
        %1845 = vmatprep.subr.mxu0 0.0
        %1846 = vmatpush1.msra.mxu0 0.0
        %1847 = vmatprep.subr.mxu0 0.0
        %1848 = vmatpush1.msra.mxu0 0.0
        %1849 = vmatprep.subr.mxu0 0.0
        %1850 = vmatpush1.msra.mxu0 0.0
        %1851 = vmatprep.subr.mxu0 0.0
        %1852 = vmatpush1.msra.mxu0 0.0
        %1853 = vmatprep.subr.mxu0 0.0
        %1854 = vmatpush1.msra.mxu0 0.0
        %1855 = vmatprep.subr.mxu0 0.0
        %1856 = vmatpush1.msra.mxu0 0.0
        %1857 = vmatprep.subr.mxu0 0.0
        %1858 = vmatpush1.msra.mxu0 0.0
        %1859 = vmatprep.subr.mxu0 0.0
        %1860 = vmatpush1.msra.mxu0 0.0
        %1861 = vmatprep.subr.mxu0 0.0
        %1862 = vmatpush1.msra.mxu0 0.0
        %1863 = vmatprep.subr.mxu0 0.0
        %1864 = vmatpush1.msra.mxu0 0.0
        %1865 = vmatprep.subr.mxu0 0.0
        %1866 = vmatpush1.msra.mxu0 0.0
        %1867 = vmatprep.subr.mxu0 0.0
        %1868 = vmatpush1.msra.mxu0 0.0
        %1869 = vmatprep.subr.mxu0 0.0
        %1870 = vmatpush1.msra.mxu0 0.0
        %1871 = vmatprep.subr.mxu0 0.0
        %1872 = vmatpush1.msra.mxu0 0.0
        %1873 = vmatprep.subr.mxu0 0.0
        %1874 = vmatpush1.msra.mxu0 0.0
        %1875 = vmatprep.subr.mxu0 0.0
        %1876 = vmatpush1.msra.mxu0 0.0
        %1877 = vmatprep.subr.mxu0 0.0
        %1878 = vmatpush1.msra.mxu0 0.0
        %1879 = vmatprep.subr.mxu0 0.0
        %1880 = vmatpush1.msra.mxu0 0.0
        %1881 = vmatprep.subr.mxu0 0.0
        %1882 = vmatpush1.msra.mxu0 0.0
        %1883 = vmatprep.subr.mxu0 0.0
        %1884 = vmatpush1.msra.mxu0 0.0
        %1885 = vmatprep.mubr.f32.mxu0 0.0
        %1886 = vmatmul.mubr.f32.gmra.mrb[0].mxu0 %v558
        %v1887 = vpop.f32.mrb[0].mxu0
        %v1888 = vadd.f32 0.0, %v1887
        %v1889 = vpop.f32.mrb[0].mxu0
        %1890 = vmatprep.mubr.f32.mxu0 0.0
        %1891 = vmatmul.mubr.f32.gmra.mrb[0].mxu0 %v560
        %v1892 = vpop.f32.mrb[0].mxu0
        %v1893 = vadd.f32 0.0, %v1892
        %v1894 = vpop.f32.mrb[0].mxu0
        %1895 = vmatprep.mubr.f32.mxu0 0.0
        %1896 = vmatmul.mubr.f32.gmra.mrb[0].mxu0 %v562
        %v1897 = vpop.f32.mrb[0].mxu0
        %v1898 = vadd.f32 0.0, %v1897
        %v1899 = vpop.f32.mrb[0].mxu0
        %1900 = vmatprep.mubr.f32.mxu0 0.0
        %1901 = vmatmul.mubr.f32.gmra.mrb[0].mxu0 %v564
        %v1902 = vpop.f32.mrb[0].mxu0
        %v1903 = vadd.f32 0.0, %v1902
        %v1904 = vpop.f32.mrb[0].mxu0
        %1905 = vmatprep.mubr.f32.mxu0 0.0
        %1906 = vmatmul.mubr.f32.gmra.mrb[0].mxu0 %v566
        %v1907 = vpop.f32.mrb[0].mxu0
        %v1908 = vadd.f32 0.0, %v1907
        %v1909 = vpop.f32.mrb[0].mxu0
        %1910 = vmatprep.mubr.f32.mxu0 0.0
        %1911 = vmatmul.mubr.f32.gmra.mrb[0].mxu0 %v568
        %v1912 = vpop.f32.mrb[0].mxu0
        %v1913 = vadd.f32 0.0, %v1912
        %v1914 = vpop.f32.mrb[0].mxu0
        %1915 = vmatprep.mubr.f32.mxu0 0.0
        %1916 = vmatmul.mubr.f32.gmra.mrb[0].mxu0 %v570
        %v1917 = vpop.f32.mrb[0].mxu0
        %v1918 = vadd.f32 0.0, %v1917
        %v1919 = vpop.f32.mrb[0].mxu0
        %1920 = vmatprep.mubr.f32.mxu0 0.0
        %1921 = vmatmul.mubr.f32.gmra.mrb[0].mxu0 %v572
        %v1922 = vpop.f32.mrb[0].mxu0
        %v1923 = vadd.f32 0.0, %v1922
        %v1924 = vpop.f32.mrb[0].mxu0
        %1925 = vmatprep.mubr.f32.mxu0 0.0
        %1926 = vmatmul.mubr.f32.gmra.mrb[0].mxu0 %v574
        %v1927 = vpop.f32.mrb[0].mxu0
        %v1928 = vadd.f32 0.0, %v1927
        %v1929 = vpop.f32.mrb[0].mxu0
        %1930 = vmatprep.mubr.f32.mxu0 0.0
        %1931 = vmatmul.mubr.f32.gmra.mrb[0].mxu0 %v576
        %v1932 = vpop.f32.mrb[0].mxu0
        %v1933 = vadd.f32 0.0, %v1932
        %v1934 = vpop.f32.mrb[0].mxu0
        %1935 = vmatprep.mubr.f32.mxu0 0.0
        %1936 = vmatmul.mubr.f32.gmra.mrb[0].mxu0 %v578
        %v1937 = vpop.f32.mrb[0].mxu0
        %v1938 = vadd.f32 0.0, %v1937
        %v1939 = vpop.f32.mrb[0].mxu0
        %1940 = vmatprep.mubr.f32.mxu0 0.0
        %1941 = vmatmul.mubr.f32.gmra.mrb[0].mxu0 %v580
        %v1942 = vpop.f32.mrb[0].mxu0
        %v1943 = vadd.f32 0.0, %v1942
        %v1944 = vpop.f32.mrb[0].mxu0
        %1945 = vmatprep.mubr.f32.mxu0 0.0
        %1946 = vmatmul.mubr.f32.gmra.mrb[0].mxu0 %v582
        %v1947 = vpop.f32.mrb[0].mxu0
        %v1948 = vadd.f32 0.0, %v1947
        %v1949 = vpop.f32.mrb[0].mxu0
        %1950 = vmatprep.mubr.f32.mxu0 0.0
        %1951 = vmatmul.mubr.f32.gmra.mrb[0].mxu0 %v584
        %v1952 = vpop.f32.mrb[0].mxu0
        %v1953 = vadd.f32 0.0, %v1952
        %v1954 = vpop.f32.mrb[0].mxu0
        %1955 = vmatprep.mubr.f32.mxu0 0.0
        %1956 = vmatmul.mubr.f32.gmra.mrb[0].mxu0 %v586
        %v1957 = vpop.f32.mrb[0].mxu0
        %v1958 = vadd.f32 0.0, %v1957
        %v1959 = vpop.f32.mrb[0].mxu0
        %1960 = vmatprep.mubr.f32.mxu0 0.0
        %1961 = vmatmul.mubr.f32.gmra.mrb[0].mxu0 %v588
        %v1962 = vpop.f32.mrb[0].mxu0
        %v1963 = vadd.f32 0.0, %v1962
        %v1964 = vpop.f32.mrb[0].mxu0
        %1965 = vmatprep.mubr.f32.mxu0 0.0
        %1966 = vmatmul.mubr.f32.gmra.mrb[0].mxu0 %v590
        %v1967 = vpop.f32.mrb[0].mxu0
        %v1968 = vadd.f32 0.0, %v1967
        %v1969 = vpop.f32.mrb[0].mxu0
        %1970 = vmatprep.mubr.f32.mxu0 0.0
        %1971 = vmatmul.mubr.f32.gmra.mrb[0].mxu0 %v592
        %v1972 = vpop.f32.mrb[0].mxu0
        %v1973 = vadd.f32 0.0, %v1972
        %v1974 = vpop.f32.mrb[0].mxu0
        %1975 = vmatprep.mubr.f32.mxu0 0.0
        %1976 = vmatmul.mubr.f32.gmra.mrb[0].mxu0 %v594
        %v1977 = vpop.f32.mrb[0].mxu0
        %v1978 = vadd.f32 0.0, %v1977
        %v1979 = vpop.f32.mrb[0].mxu0
        %1980 = vmatprep.mubr.f32.mxu0 0.0
        %1981 = vmatmul.mubr.f32.gmra.mrb[0].mxu0 %v596
        %v1982 = vpop.f32.mrb[0].mxu0
        %v1983 = vadd.f32 0.0, %v1982
        %v1984 = vpop.f32.mrb[0].mxu0
        %1985 = vmatprep.mubr.f32.mxu0 0.0
        %1986 = vmatmul.mubr.f32.gmra.mrb[0].mxu0 %v598
        %v1987 = vpop.f32.mrb[0].mxu0
        %v1988 = vadd.f32 0.0, %v1987
        %v1989 = vpop.f32.mrb[0].mxu0
        %1990 = vmatprep.mubr.f32.mxu0 0.0
        %1991 = vmatmul.mubr.f32.gmra.mrb[0].mxu0 %v600
        %v1992 = vpop.f32.mrb[0].mxu0
        %v1993 = vadd.f32 0.0, %v1992
        %v1994 = vpop.f32.mrb[0].mxu0
        %1995 = vmatprep.mubr.f32.mxu0 0.0
        %1996 = vmatmul.mubr.f32.gmra.mrb[0].mxu0 %v602
        %v1997 = vpop.f32.mrb[0].mxu0
        %v1998 = vadd.f32 0.0, %v1997
        %v1999 = vpop.f32.mrb[0].mxu0
        %2000 = vmatprep.mubr.f32.mxu0 0.0
        %2001 = vmatmul.mubr.f32.gmra.mrb[0].mxu0 %v604
        %v2002 = vpop.f32.mrb[0].mxu0
        %v2003 = vadd.f32 0.0, %v2002
        %v2004 = vpop.f32.mrb[0].mxu0
        %2005 = vmatprep.mubr.f32.mxu0 0.0
        %2006 = vmatmul.mubr.f32.gmra.mrb[0].mxu0 %v606
        %v2007 = vpop.f32.mrb[0].mxu0
        %v2008 = vadd.f32 0.0, %v2007
        %v2009 = vpop.f32.mrb[0].mxu0
        %2010 = vmatprep.mubr.f32.mxu0 0.0
        %2011 = vmatmul.mubr.f32.gmra.mrb[0].mxu0 %v608
        %v2012 = vpop.f32.mrb[0].mxu0
        %v2013 = vadd.f32 0.0, %v2012
        %v2014 = vpop.f32.mrb[0].mxu0
        %2015 = vmatprep.mubr.f32.mxu0 0.0
        %2016 = vmatmul.mubr.f32.gmra.mrb[0].mxu0 %v610
        %v2017 = vpop.f32.mrb[0].mxu0
        %v2018 = vadd.f32 0.0, %v2017
        %v2019 = vpop.f32.mrb[0].mxu0
        %2020 = vmatprep.mubr.f32.mxu0 0.0
        %2021 = vmatmul.mubr.f32.gmra.mrb[0].mxu0 %v612
        %v2022 = vpop.f32.mrb[0].mxu0
        %v2023 = vadd.f32 0.0, %v2022
        %v2024 = vpop.f32.mrb[0].mxu0
        %2025 = vmatprep.mubr.f32.mxu0 0.0
        %2026 = vmatmul.mubr.f32.gmra.mrb[0].mxu0 %v614
        %v2027 = vpop.f32.mrb[0].mxu0
        %v2028 = vadd.f32 0.0, %v2027
        %v2029 = vpop.f32.mrb[0].mxu0
        %2030 = vmatprep.mubr.f32.mxu0 0.0
        %2031 = vmatmul.mubr.f32.gmra.mrb[0].mxu0 %v616
        %v2032 = vpop.f32.mrb[0].mxu0
        %v2033 = vadd.f32 0.0, %v2032
        %v2034 = vpop.f32.mrb[0].mxu0
        %2035 = vmatprep.mubr.f32.mxu0 0.0
        %2036 = vmatmul.mubr.f32.gmra.mrb[0].mxu0 %v1814
        %v2037 = vpop.f32.mrb[0].mxu0
        %v2038 = vadd.f32 0.0, %v2037
        %v2039 = vpop.f32.mrb[0].mxu0
        %2040 = vmatprep.mubr.f32.mxu0 0.0
        %2041 = vmatmul.mubr.f32.gmra.mrb[0].mxu0 %v1816
        %v2042 = vpop.f32.mrb[0].mxu0
        %v2043 = vadd.f32 0.0, %v2042
        %v2044 = vpop.f32.mrb[0].mxu0
        %2045 = vdwg.mxu0
        %v2046 = vadd.f32 %v1776, %v1888
        %v2047 = vadd.f32 %v1777, %v1893
        %v2048 = vadd.f32 %v1778, %v1898
        %v2049 = vadd.f32 %v1779, %v1903
        %v2050 = vadd.f32 %v1780, %v1908
        %v2051 = vadd.f32 %v1781, %v1913
        %v2052 = vadd.f32 %v1782, %v1918
        %v2053 = vadd.f32 %v1783, %v1923
        %v2054 = vadd.f32 %v1784, %v1928
        %v2055 = vadd.f32 %v1785, %v1933
        %v2056 = vadd.f32 %v1786, %v1938
        %v2057 = vadd.f32 %v1787, %v1943
        %v2058 = vadd.f32 %v1788, %v1948
        %v2059 = vadd.f32 %v1789, %v1953
        %v2060 = vadd.f32 %v1790, %v1958
        %v2061 = vadd.f32 %v1791, %v1963
        %v2062 = vadd.f32 %v1792, %v1968
        %v2063 = vadd.f32 %v1793, %v1973
        %v2064 = vadd.f32 %v1794, %v1978
        %v2065 = vadd.f32 %v1795, %v1983
        %v2066 = vadd.f32 %v1796, %v1988
        %v2067 = vadd.f32 %v1797, %v1993
        %v2068 = vadd.f32 %v1798, %v1998
        %v2069 = vadd.f32 %v1799, %v2003
        %v2070 = vadd.f32 %v1800, %v2008
        %v2071 = vadd.f32 %v1801, %v2013
        %v2072 = vadd.f32 %v1802, %v2018
        %v2073 = vadd.f32 %v1803, %v2023
        %v2074 = vadd.f32 %v1804, %v2028
        %v2075 = vadd.f32 %v1805, %v2033
        %v2076 = vadd.f32 %v1806, %v2038
        %v2077 = vadd.f32 %v1807, %v2043
        %v2078 = vrot.slane %v412, 2
        %v2079 = vrot.slane %v413, 2
        %v2080 = vsel %vm1137, %v2078, %v2079
        %v2081 = vrot.slane %v414, 2
        %v2082 = vsel %vm1137, %v2079, %v2081
        %v2083 = vrot.slane %v420, 4
        %v2084 = vsel %vm207, %v2080, 0
        %v2086 = vsel %vm207, %v2082, 0
        %v2088 = vsel %vm618, %v2083, 0
        %2090 = vmatprep.subr.mxu0 0.0
        %2091 = vmatpush1.msra.mxu0 %v2088
        %2092 = vmatprep.subr.mxu0 0.0
        %2093 = vmatpush1.msra.mxu0 0.0
        %2094 = vmatprep.subr.mxu0 0.0
        %2095 = vmatpush1.msra.mxu0 0.0
        %2096 = vmatprep.subr.mxu0 0.0
        %2097 = vmatpush1.msra.mxu0 0.0
        %2098 = vmatprep.subr.mxu0 0.0
        %2099 = vmatpush1.msra.mxu0 0.0
        %2100 = vmatprep.subr.mxu0 0.0
        %2101 = vmatpush1.msra.mxu0 0.0
        %2102 = vmatprep.subr.mxu0 0.0
        %2103 = vmatpush1.msra.mxu0 0.0
        %2104 = vmatprep.subr.mxu0 0.0
        %2105 = vmatpush1.msra.mxu0 0.0
        %2106 = vmatprep.subr.mxu0 0.0
        %2107 = vmatpush1.msra.mxu0 0.0
        %2108 = vmatprep.subr.mxu0 0.0
        %2109 = vmatpush1.msra.mxu0 0.0
        %2110 = vmatprep.subr.mxu0 0.0
        %2111 = vmatpush1.msra.mxu0 0.0
        %2112 = vmatprep.subr.mxu0 0.0
        %2113 = vmatpush1.msra.mxu0 0.0
        %2114 = vmatprep.subr.mxu0 0.0
        %2115 = vmatpush1.msra.mxu0 0.0
        %2116 = vmatprep.subr.mxu0 0.0
        %2117 = vmatpush1.msra.mxu0 0.0
        %2118 = vmatprep.subr.mxu0 0.0
        %2119 = vmatpush1.msra.mxu0 0.0
        %2120 = vmatprep.subr.mxu0 0.0
        %2121 = vmatpush1.msra.mxu0 0.0
        %2122 = vmatprep.subr.mxu0 0.0
        %2123 = vmatpush1.msra.mxu0 0.0
        %2124 = vmatprep.subr.mxu0 0.0
        %2125 = vmatpush1.msra.mxu0 0.0
        %2126 = vmatprep.subr.mxu0 0.0
        %2127 = vmatpush1.msra.mxu0 0.0
        %2128 = vmatprep.subr.mxu0 0.0
        %2129 = vmatpush1.msra.mxu0 0.0
        %2130 = vmatprep.subr.mxu0 0.0
        %2131 = vmatpush1.msra.mxu0 0.0
        %2132 = vmatprep.subr.mxu0 0.0
        %2133 = vmatpush1.msra.mxu0 0.0
        %2134 = vmatprep.subr.mxu0 0.0
        %2135 = vmatpush1.msra.mxu0 0.0
        %2136 = vmatprep.subr.mxu0 0.0
        %2137 = vmatpush1.msra.mxu0 0.0
        %2138 = vmatprep.subr.mxu0 0.0
        %2139 = vmatpush1.msra.mxu0 0.0
        %2140 = vmatprep.subr.mxu0 0.0
        %2141 = vmatpush1.msra.mxu0 0.0
        %2142 = vmatprep.subr.mxu0 0.0
        %2143 = vmatpush1.msra.mxu0 0.0
        %2144 = vmatprep.subr.mxu0 0.0
        %2145 = vmatpush1.msra.mxu0 0.0
        %2146 = vmatprep.subr.mxu0 0.0
        %2147 = vmatpush1.msra.mxu0 0.0
        %2148 = vmatprep.subr.mxu0 0.0
        %2149 = vmatpush1.msra.mxu0 0.0
        %2150 = vmatprep.subr.mxu0 0.0
        %2151 = vmatpush1.msra.mxu0 0.0
        %2152 = vmatprep.subr.mxu0 0.0
        %2153 = vmatpush1.msra.mxu0 0.0
        %2154 = vmatprep.mubr.f32.mxu0 0.0
        %2155 = vmatmul.mubr.f32.gmra.mrb[0].mxu0 %v1222
        %v2156 = vpop.f32.mrb[0].mxu0
        %v2157 = vadd.f32 0.0, %v2156
        %v2158 = vpop.f32.mrb[0].mxu0
        %2159 = vmatprep.mubr.f32.mxu0 0.0
        %2160 = vmatmul.mubr.f32.gmra.mrb[0].mxu0 %v1224
        %v2161 = vpop.f32.mrb[0].mxu0
        %v2162 = vadd.f32 0.0, %v2161
        %v2163 = vpop.f32.mrb[0].mxu0
        %2164 = vmatprep.mubr.f32.mxu0 0.0
        %2165 = vmatmul.mubr.f32.gmra.mrb[0].mxu0 %v1226
        %v2166 = vpop.f32.mrb[0].mxu0
        %v2167 = vadd.f32 0.0, %v2166
        %v2168 = vpop.f32.mrb[0].mxu0
        %2169 = vmatprep.mubr.f32.mxu0 0.0
        %2170 = vmatmul.mubr.f32.gmra.mrb[0].mxu0 %v1228
        %v2171 = vpop.f32.mrb[0].mxu0
        %v2172 = vadd.f32 0.0, %v2171
        %v2173 = vpop.f32.mrb[0].mxu0
        %2174 = vmatprep.mubr.f32.mxu0 0.0
        %2175 = vmatmul.mubr.f32.gmra.mrb[0].mxu0 %v1230
        %v2176 = vpop.f32.mrb[0].mxu0
        %v2177 = vadd.f32 0.0, %v2176
        %v2178 = vpop.f32.mrb[0].mxu0
        %2179 = vmatprep.mubr.f32.mxu0 0.0
        %2180 = vmatmul.mubr.f32.gmra.mrb[0].mxu0 %v1232
        %v2181 = vpop.f32.mrb[0].mxu0
        %v2182 = vadd.f32 0.0, %v2181
        %v2183 = vpop.f32.mrb[0].mxu0
        %2184 = vmatprep.mubr.f32.mxu0 0.0
        %2185 = vmatmul.mubr.f32.gmra.mrb[0].mxu0 %v1234
        %v2186 = vpop.f32.mrb[0].mxu0
        %v2187 = vadd.f32 0.0, %v2186
        %v2188 = vpop.f32.mrb[0].mxu0
        %2189 = vmatprep.mubr.f32.mxu0 0.0
        %2190 = vmatmul.mubr.f32.gmra.mrb[0].mxu0 %v1236
        %v2191 = vpop.f32.mrb[0].mxu0
        %v2192 = vadd.f32 0.0, %v2191
        %v2193 = vpop.f32.mrb[0].mxu0
        %2194 = vmatprep.mubr.f32.mxu0 0.0
        %2195 = vmatmul.mubr.f32.gmra.mrb[0].mxu0 %v1238
        %v2196 = vpop.f32.mrb[0].mxu0
        %v2197 = vadd.f32 0.0, %v2196
        %v2198 = vpop.f32.mrb[0].mxu0
        %2199 = vmatprep.mubr.f32.mxu0 0.0
        %2200 = vmatmul.mubr.f32.gmra.mrb[0].mxu0 %v1240
        %v2201 = vpop.f32.mrb[0].mxu0
        %v2202 = vadd.f32 0.0, %v2201
        %v2203 = vpop.f32.mrb[0].mxu0
        %2204 = vmatprep.mubr.f32.mxu0 0.0
        %2205 = vmatmul.mubr.f32.gmra.mrb[0].mxu0 %v1242
        %v2206 = vpop.f32.mrb[0].mxu0
        %v2207 = vadd.f32 0.0, %v2206
        %v2208 = vpop.f32.mrb[0].mxu0
        %2209 = vmatprep.mubr.f32.mxu0 0.0
        %2210 = vmatmul.mubr.f32.gmra.mrb[0].mxu0 %v1244
        %v2211 = vpop.f32.mrb[0].mxu0
        %v2212 = vadd.f32 0.0, %v2211
        %v2213 = vpop.f32.mrb[0].mxu0
        %2214 = vmatprep.mubr.f32.mxu0 0.0
        %2215 = vmatmul.mubr.f32.gmra.mrb[0].mxu0 %v1246
        %v2216 = vpop.f32.mrb[0].mxu0
        %v2217 = vadd.f32 0.0, %v2216
        %v2218 = vpop.f32.mrb[0].mxu0
        %2219 = vmatprep.mubr.f32.mxu0 0.0
        %2220 = vmatmul.mubr.f32.gmra.mrb[0].mxu0 %v1248
        %v2221 = vpop.f32.mrb[0].mxu0
        %v2222 = vadd.f32 0.0, %v2221
        %v2223 = vpop.f32.mrb[0].mxu0
        %2224 = vmatprep.mubr.f32.mxu0 0.0
        %2225 = vmatmul.mubr.f32.gmra.mrb[0].mxu0 %v1250
        %v2226 = vpop.f32.mrb[0].mxu0
        %v2227 = vadd.f32 0.0, %v2226
        %v2228 = vpop.f32.mrb[0].mxu0
        %2229 = vmatprep.mubr.f32.mxu0 0.0
        %2230 = vmatmul.mubr.f32.gmra.mrb[0].mxu0 %v1252
        %v2231 = vpop.f32.mrb[0].mxu0
        %v2232 = vadd.f32 0.0, %v2231
        %v2233 = vpop.f32.mrb[0].mxu0
        %2234 = vmatprep.mubr.f32.mxu0 0.0
        %2235 = vmatmul.mubr.f32.gmra.mrb[0].mxu0 %v1254
        %v2236 = vpop.f32.mrb[0].mxu0
        %v2237 = vadd.f32 0.0, %v2236
        %v2238 = vpop.f32.mrb[0].mxu0
        %2239 = vmatprep.mubr.f32.mxu0 0.0
        %2240 = vmatmul.mubr.f32.gmra.mrb[0].mxu0 %v1256
        %v2241 = vpop.f32.mrb[0].mxu0
        %v2242 = vadd.f32 0.0, %v2241
        %v2243 = vpop.f32.mrb[0].mxu0
        %2244 = vmatprep.mubr.f32.mxu0 0.0
        %2245 = vmatmul.mubr.f32.gmra.mrb[0].mxu0 %v1258
        %v2246 = vpop.f32.mrb[0].mxu0
        %v2247 = vadd.f32 0.0, %v2246
        %v2248 = vpop.f32.mrb[0].mxu0
        %2249 = vmatprep.mubr.f32.mxu0 0.0
        %2250 = vmatmul.mubr.f32.gmra.mrb[0].mxu0 %v1260
        %v2251 = vpop.f32.mrb[0].mxu0
        %v2252 = vadd.f32 0.0, %v2251
        %v2253 = vpop.f32.mrb[0].mxu0
        %2254 = vmatprep.mubr.f32.mxu0 0.0
        %2255 = vmatmul.mubr.f32.gmra.mrb[0].mxu0 %v1262
        %v2256 = vpop.f32.mrb[0].mxu0
        %v2257 = vadd.f32 0.0, %v2256
        %v2258 = vpop.f32.mrb[0].mxu0
        %2259 = vmatprep.mubr.f32.mxu0 0.0
        %2260 = vmatmul.mubr.f32.gmra.mrb[0].mxu0 %v1264
        %v2261 = vpop.f32.mrb[0].mxu0
        %v2262 = vadd.f32 0.0, %v2261
        %v2263 = vpop.f32.mrb[0].mxu0
        %2264 = vmatprep.mubr.f32.mxu0 0.0
        %2265 = vmatmul.mubr.f32.gmra.mrb[0].mxu0 %v1266
        %v2266 = vpop.f32.mrb[0].mxu0
        %v2267 = vadd.f32 0.0, %v2266
        %v2268 = vpop.f32.mrb[0].mxu0
        %2269 = vmatprep.mubr.f32.mxu0 0.0
        %2270 = vmatmul.mubr.f32.gmra.mrb[0].mxu0 %v1268
        %v2271 = vpop.f32.mrb[0].mxu0
        %v2272 = vadd.f32 0.0, %v2271
        %v2273 = vpop.f32.mrb[0].mxu0
        %2274 = vmatprep.mubr.f32.mxu0 0.0
        %2275 = vmatmul.mubr.f32.gmra.mrb[0].mxu0 %v1270
        %v2276 = vpop.f32.mrb[0].mxu0
        %v2277 = vadd.f32 0.0, %v2276
        %v2278 = vpop.f32.mrb[0].mxu0
        %2279 = vmatprep.mubr.f32.mxu0 0.0
        %2280 = vmatmul.mubr.f32.gmra.mrb[0].mxu0 %v1272
        %v2281 = vpop.f32.mrb[0].mxu0
        %v2282 = vadd.f32 0.0, %v2281
        %v2283 = vpop.f32.mrb[0].mxu0
        %2284 = vmatprep.mubr.f32.mxu0 0.0
        %2285 = vmatmul.mubr.f32.gmra.mrb[0].mxu0 %v1274
        %v2286 = vpop.f32.mrb[0].mxu0
        %v2287 = vadd.f32 0.0, %v2286
        %v2288 = vpop.f32.mrb[0].mxu0
        %2289 = vmatprep.mubr.f32.mxu0 0.0
        %2290 = vmatmul.mubr.f32.gmra.mrb[0].mxu0 %v1276
        %v2291 = vpop.f32.mrb[0].mxu0
        %v2292 = vadd.f32 0.0, %v2291
        %v2293 = vpop.f32.mrb[0].mxu0
        %2294 = vmatprep.mubr.f32.mxu0 0.0
        %2295 = vmatmul.mubr.f32.gmra.mrb[0].mxu0 %v1278
        %v2296 = vpop.f32.mrb[0].mxu0
        %v2297 = vadd.f32 0.0, %v2296
        %v2298 = vpop.f32.mrb[0].mxu0
        %2299 = vmatprep.mubr.f32.mxu0 0.0
        %2300 = vmatmul.mubr.f32.gmra.mrb[0].mxu0 %v1280
        %v2301 = vpop.f32.mrb[0].mxu0
        %v2302 = vadd.f32 0.0, %v2301
        %v2303 = vpop.f32.mrb[0].mxu0
        %2304 = vmatprep.mubr.f32.mxu0 0.0
        %2305 = vmatmul.mubr.f32.gmra.mrb[0].mxu0 %v2084
        %v2306 = vpop.f32.mrb[0].mxu0
        %v2307 = vadd.f32 0.0, %v2306
        %v2308 = vpop.f32.mrb[0].mxu0
        %2309 = vmatprep.mubr.f32.mxu0 0.0
        %2310 = vmatmul.mubr.f32.gmra.mrb[0].mxu0 %v2086
        %v2311 = vpop.f32.mrb[0].mxu0
        %v2312 = vadd.f32 0.0, %v2311
        %v2313 = vpop.f32.mrb[0].mxu0
        %2314 = vdwg.mxu0
        %v2315 = vadd.f32 %v2046, %v2157
        %v2316 = vadd.f32 %v2047, %v2162
        %v2317 = vadd.f32 %v2048, %v2167
        %v2318 = vadd.f32 %v2049, %v2172
        %v2319 = vadd.f32 %v2050, %v2177
        %v2320 = vadd.f32 %v2051, %v2182
        %v2321 = vadd.f32 %v2052, %v2187
        %v2322 = vadd.f32 %v2053, %v2192
        %v2323 = vadd.f32 %v2054, %v2197
        %v2324 = vadd.f32 %v2055, %v2202
        %v2325 = vadd.f32 %v2056, %v2207
        %v2326 = vadd.f32 %v2057, %v2212
        %v2327 = vadd.f32 %v2058, %v2217
        %v2328 = vadd.f32 %v2059, %v2222
        %v2329 = vadd.f32 %v2060, %v2227
        %v2330 = vadd.f32 %v2061, %v2232
        %v2331 = vadd.f32 %v2062, %v2237
        %v2332 = vadd.f32 %v2063, %v2242
        %v2333 = vadd.f32 %v2064, %v2247
        %v2334 = vadd.f32 %v2065, %v2252
        %v2335 = vadd.f32 %v2066, %v2257
        %v2336 = vadd.f32 %v2067, %v2262
        %v2337 = vadd.f32 %v2068, %v2267
        %v2338 = vadd.f32 %v2069, %v2272
        %v2339 = vadd.f32 %v2070, %v2277
        %v2340 = vadd.f32 %v2071, %v2282
        %v2341 = vadd.f32 %v2072, %v2287
        %v2342 = vadd.f32 %v2073, %v2292
        %v2343 = vadd.f32 %v2074, %v2297
        %v2344 = vadd.f32 %v2075, %v2302
        %v2345 = vadd.f32 %v2076, %v2307
        %v2346 = vadd.f32 %v2077, %v2312
        %v2348 = vsel %vm207, %v415, 0
        %v2351 = vsel %vm207, %v416, 0
        %v2354 = vsel %vm618, %v421, 0
        %2356 = vmatprep.subr.mxu0 0.0
        %2357 = vmatpush1.msra.mxu0 %v2354
        %2358 = vmatprep.subr.mxu0 0.0
        %2359 = vmatpush1.msra.mxu0 0.0
        %2360 = vmatprep.subr.mxu0 0.0
        %2361 = vmatpush1.msra.mxu0 0.0
        %2362 = vmatprep.subr.mxu0 0.0
        %2363 = vmatpush1.msra.mxu0 0.0
        %2364 = vmatprep.subr.mxu0 0.0
        %2365 = vmatpush1.msra.mxu0 0.0
        %2366 = vmatprep.subr.mxu0 0.0
        %2367 = vmatpush1.msra.mxu0 0.0
        %2368 = vmatprep.subr.mxu0 0.0
        %2369 = vmatpush1.msra.mxu0 0.0
        %2370 = vmatprep.subr.mxu0 0.0
        %2371 = vmatpush1.msra.mxu0 0.0
        %2372 = vmatprep.subr.mxu0 0.0
        %2373 = vmatpush1.msra.mxu0 0.0
        %2374 = vmatprep.subr.mxu0 0.0
        %2375 = vmatpush1.msra.mxu0 0.0
        %2376 = vmatprep.subr.mxu0 0.0
        %2377 = vmatpush1.msra.mxu0 0.0
        %2378 = vmatprep.subr.mxu0 0.0
        %2379 = vmatpush1.msra.mxu0 0.0
        %2380 = vmatprep.subr.mxu0 0.0
        %2381 = vmatpush1.msra.mxu0 0.0
        %2382 = vmatprep.subr.mxu0 0.0
        %2383 = vmatpush1.msra.mxu0 0.0
        %2384 = vmatprep.subr.mxu0 0.0
        %2385 = vmatpush1.msra.mxu0 0.0
        %2386 = vmatprep.subr.mxu0 0.0
        %2387 = vmatpush1.msra.mxu0 0.0
        %2388 = vmatprep.subr.mxu0 0.0
        %2389 = vmatpush1.msra.mxu0 0.0
        %2390 = vmatprep.subr.mxu0 0.0
        %2391 = vmatpush1.msra.mxu0 0.0
        %2392 = vmatprep.subr.mxu0 0.0
        %2393 = vmatpush1.msra.mxu0 0.0
        %2394 = vmatprep.subr.mxu0 0.0
        %2395 = vmatpush1.msra.mxu0 0.0
        %2396 = vmatprep.subr.mxu0 0.0
        %2397 = vmatpush1.msra.mxu0 0.0
        %2398 = vmatprep.subr.mxu0 0.0
        %2399 = vmatpush1.msra.mxu0 0.0
        %2400 = vmatprep.subr.mxu0 0.0
        %2401 = vmatpush1.msra.mxu0 0.0
        %2402 = vmatprep.subr.mxu0 0.0
        %2403 = vmatpush1.msra.mxu0 0.0
        %2404 = vmatprep.subr.mxu0 0.0
        %2405 = vmatpush1.msra.mxu0 0.0
        %2406 = vmatprep.subr.mxu0 0.0
        %2407 = vmatpush1.msra.mxu0 0.0
        %2408 = vmatprep.subr.mxu0 0.0
        %2409 = vmatpush1.msra.mxu0 0.0
        %2410 = vmatprep.subr.mxu0 0.0
        %2411 = vmatpush1.msra.mxu0 0.0
        %2412 = vmatprep.subr.mxu0 0.0
        %2413 = vmatpush1.msra.mxu0 0.0
        %2414 = vmatprep.subr.mxu0 0.0
        %2415 = vmatpush1.msra.mxu0 0.0
        %2416 = vmatprep.subr.mxu0 0.0
        %2417 = vmatpush1.msra.mxu0 0.0
        %2418 = vmatprep.subr.mxu0 0.0
        %2419 = vmatpush1.msra.mxu0 0.0
        %2420 = vmatprep.mubr.f32.mxu0 0.0
        %2421 = vmatmul.mubr.f32.gmra.mrb[0].mxu0 %v854
        %v2422 = vpop.f32.mrb[0].mxu0
        %v2423 = vadd.f32 0.0, %v2422
        %v2424 = vpop.f32.mrb[0].mxu0
        %2425 = vmatprep.mubr.f32.mxu0 0.0
        %2426 = vmatmul.mubr.f32.gmra.mrb[0].mxu0 %v856
        %v2427 = vpop.f32.mrb[0].mxu0
        %v2428 = vadd.f32 0.0, %v2427
        %v2429 = vpop.f32.mrb[0].mxu0
        %2430 = vmatprep.mubr.f32.mxu0 0.0
        %2431 = vmatmul.mubr.f32.gmra.mrb[0].mxu0 %v858
        %v2432 = vpop.f32.mrb[0].mxu0
        %v2433 = vadd.f32 0.0, %v2432
        %v2434 = vpop.f32.mrb[0].mxu0
        %2435 = vmatprep.mubr.f32.mxu0 0.0
        %2436 = vmatmul.mubr.f32.gmra.mrb[0].mxu0 %v860
        %v2437 = vpop.f32.mrb[0].mxu0
        %v2438 = vadd.f32 0.0, %v2437
        %v2439 = vpop.f32.mrb[0].mxu0
        %2440 = vmatprep.mubr.f32.mxu0 0.0
        %2441 = vmatmul.mubr.f32.gmra.mrb[0].mxu0 %v862
        %v2442 = vpop.f32.mrb[0].mxu0
        %v2443 = vadd.f32 0.0, %v2442
        %v2444 = vpop.f32.mrb[0].mxu0
        %2445 = vmatprep.mubr.f32.mxu0 0.0
        %2446 = vmatmul.mubr.f32.gmra.mrb[0].mxu0 %v864
        %v2447 = vpop.f32.mrb[0].mxu0
        %v2448 = vadd.f32 0.0, %v2447
        %v2449 = vpop.f32.mrb[0].mxu0
        %2450 = vmatprep.mubr.f32.mxu0 0.0
        %2451 = vmatmul.mubr.f32.gmra.mrb[0].mxu0 %v866
        %v2452 = vpop.f32.mrb[0].mxu0
        %v2453 = vadd.f32 0.0, %v2452
        %v2454 = vpop.f32.mrb[0].mxu0
        %2455 = vmatprep.mubr.f32.mxu0 0.0
        %2456 = vmatmul.mubr.f32.gmra.mrb[0].mxu0 %v868
        %v2457 = vpop.f32.mrb[0].mxu0
        %v2458 = vadd.f32 0.0, %v2457
        %v2459 = vpop.f32.mrb[0].mxu0
        %2460 = vmatprep.mubr.f32.mxu0 0.0
        %2461 = vmatmul.mubr.f32.gmra.mrb[0].mxu0 %v870
        %v2462 = vpop.f32.mrb[0].mxu0
        %v2463 = vadd.f32 0.0, %v2462
        %v2464 = vpop.f32.mrb[0].mxu0
        %2465 = vmatprep.mubr.f32.mxu0 0.0
        %2466 = vmatmul.mubr.f32.gmra.mrb[0].mxu0 %v872
        %v2467 = vpop.f32.mrb[0].mxu0
        %v2468 = vadd.f32 0.0, %v2467
        %v2469 = vpop.f32.mrb[0].mxu0
        %2470 = vmatprep.mubr.f32.mxu0 0.0
        %2471 = vmatmul.mubr.f32.gmra.mrb[0].mxu0 %v874
        %v2472 = vpop.f32.mrb[0].mxu0
        %v2473 = vadd.f32 0.0, %v2472
        %v2474 = vpop.f32.mrb[0].mxu0
        %2475 = vmatprep.mubr.f32.mxu0 0.0
        %2476 = vmatmul.mubr.f32.gmra.mrb[0].mxu0 %v876
        %v2477 = vpop.f32.mrb[0].mxu0
        %v2478 = vadd.f32 0.0, %v2477
        %v2479 = vpop.f32.mrb[0].mxu0
        %2480 = vmatprep.mubr.f32.mxu0 0.0
        %2481 = vmatmul.mubr.f32.gmra.mrb[0].mxu0 %v878
        %v2482 = vpop.f32.mrb[0].mxu0
        %v2483 = vadd.f32 0.0, %v2482
        %v2484 = vpop.f32.mrb[0].mxu0
        %2485 = vmatprep.mubr.f32.mxu0 0.0
        %2486 = vmatmul.mubr.f32.gmra.mrb[0].mxu0 %v880
        %v2487 = vpop.f32.mrb[0].mxu0
        %v2488 = vadd.f32 0.0, %v2487
        %v2489 = vpop.f32.mrb[0].mxu0
        %2490 = vmatprep.mubr.f32.mxu0 0.0
        %2491 = vmatmul.mubr.f32.gmra.mrb[0].mxu0 %v882
        %v2492 = vpop.f32.mrb[0].mxu0
        %v2493 = vadd.f32 0.0, %v2492
        %v2494 = vpop.f32.mrb[0].mxu0
        %2495 = vmatprep.mubr.f32.mxu0 0.0
        %2496 = vmatmul.mubr.f32.gmra.mrb[0].mxu0 %v884
        %v2497 = vpop.f32.mrb[0].mxu0
        %v2498 = vadd.f32 0.0, %v2497
        %v2499 = vpop.f32.mrb[0].mxu0
        %2500 = vmatprep.mubr.f32.mxu0 0.0
        %2501 = vmatmul.mubr.f32.gmra.mrb[0].mxu0 %v886
        %v2502 = vpop.f32.mrb[0].mxu0
        %v2503 = vadd.f32 0.0, %v2502
        %v2504 = vpop.f32.mrb[0].mxu0
        %2505 = vmatprep.mubr.f32.mxu0 0.0
        %2506 = vmatmul.mubr.f32.gmra.mrb[0].mxu0 %v888
        %v2507 = vpop.f32.mrb[0].mxu0
        %v2508 = vadd.f32 0.0, %v2507
        %v2509 = vpop.f32.mrb[0].mxu0
        %2510 = vmatprep.mubr.f32.mxu0 0.0
        %2511 = vmatmul.mubr.f32.gmra.mrb[0].mxu0 %v890
        %v2512 = vpop.f32.mrb[0].mxu0
        %v2513 = vadd.f32 0.0, %v2512
        %v2514 = vpop.f32.mrb[0].mxu0
        %2515 = vmatprep.mubr.f32.mxu0 0.0
        %2516 = vmatmul.mubr.f32.gmra.mrb[0].mxu0 %v892
        %v2517 = vpop.f32.mrb[0].mxu0
        %v2518 = vadd.f32 0.0, %v2517
        %v2519 = vpop.f32.mrb[0].mxu0
        %2520 = vmatprep.mubr.f32.mxu0 0.0
        %2521 = vmatmul.mubr.f32.gmra.mrb[0].mxu0 %v894
        %v2522 = vpop.f32.mrb[0].mxu0
        %v2523 = vadd.f32 0.0, %v2522
        %v2524 = vpop.f32.mrb[0].mxu0
        %2525 = vmatprep.mubr.f32.mxu0 0.0
        %2526 = vmatmul.mubr.f32.gmra.mrb[0].mxu0 %v896
        %v2527 = vpop.f32.mrb[0].mxu0
        %v2528 = vadd.f32 0.0, %v2527
        %v2529 = vpop.f32.mrb[0].mxu0
        %2530 = vmatprep.mubr.f32.mxu0 0.0
        %2531 = vmatmul.mubr.f32.gmra.mrb[0].mxu0 %v898
        %v2532 = vpop.f32.mrb[0].mxu0
        %v2533 = vadd.f32 0.0, %v2532
        %v2534 = vpop.f32.mrb[0].mxu0
        %2535 = vmatprep.mubr.f32.mxu0 0.0
        %2536 = vmatmul.mubr.f32.gmra.mrb[0].mxu0 %v900
        %v2537 = vpop.f32.mrb[0].mxu0
        %v2538 = vadd.f32 0.0, %v2537
        %v2539 = vpop.f32.mrb[0].mxu0
        %2540 = vmatprep.mubr.f32.mxu0 0.0
        %2541 = vmatmul.mubr.f32.gmra.mrb[0].mxu0 %v902
        %v2542 = vpop.f32.mrb[0].mxu0
        %v2543 = vadd.f32 0.0, %v2542
        %v2544 = vpop.f32.mrb[0].mxu0
        %2545 = vmatprep.mubr.f32.mxu0 0.0
        %2546 = vmatmul.mubr.f32.gmra.mrb[0].mxu0 %v904
        %v2547 = vpop.f32.mrb[0].mxu0
        %v2548 = vadd.f32 0.0, %v2547
        %v2549 = vpop.f32.mrb[0].mxu0
        %2550 = vmatprep.mubr.f32.mxu0 0.0
        %2551 = vmatmul.mubr.f32.gmra.mrb[0].mxu0 %v906
        %v2552 = vpop.f32.mrb[0].mxu0
        %v2553 = vadd.f32 0.0, %v2552
        %v2554 = vpop.f32.mrb[0].mxu0
        %2555 = vmatprep.mubr.f32.mxu0 0.0
        %2556 = vmatmul.mubr.f32.gmra.mrb[0].mxu0 %v908
        %v2557 = vpop.f32.mrb[0].mxu0
        %v2558 = vadd.f32 0.0, %v2557
        %v2559 = vpop.f32.mrb[0].mxu0
        %2560 = vmatprep.mubr.f32.mxu0 0.0
        %2561 = vmatmul.mubr.f32.gmra.mrb[0].mxu0 %v1544
        %v2562 = vpop.f32.mrb[0].mxu0
        %v2563 = vadd.f32 0.0, %v2562
        %v2564 = vpop.f32.mrb[0].mxu0
        %2565 = vmatprep.mubr.f32.mxu0 0.0
        %2566 = vmatmul.mubr.f32.gmra.mrb[0].mxu0 %v1547
        %v2567 = vpop.f32.mrb[0].mxu0
        %v2568 = vadd.f32 0.0, %v2567
        %v2569 = vpop.f32.mrb[0].mxu0
        %2570 = vmatprep.mubr.f32.mxu0 0.0
        %2571 = vmatmul.mubr.f32.gmra.mrb[0].mxu0 %v2348
        %v2572 = vpop.f32.mrb[0].mxu0
        %v2573 = vadd.f32 0.0, %v2572
        %v2574 = vpop.f32.mrb[0].mxu0
        %2575 = vmatprep.mubr.f32.mxu0 0.0
        %2576 = vmatmul.mubr.f32.gmra.mrb[0].mxu0 %v2351
        %v2577 = vpop.f32.mrb[0].mxu0
        %v2578 = vadd.f32 0.0, %v2577
        %v2579 = vpop.f32.mrb[0].mxu0
        %2580 = vdwg.mxu0
        %v2581 = vadd.f32 %v2315, %v2423
        %v2582 = vadd.f32 %v2316, %v2428
        %v2583 = vadd.f32 %v2317, %v2433
        %v2584 = vadd.f32 %v2318, %v2438
        %v2585 = vadd.f32 %v2319, %v2443
        %v2586 = vadd.f32 %v2320, %v2448
        %v2587 = vadd.f32 %v2321, %v2453
        %v2588 = vadd.f32 %v2322, %v2458
        %v2589 = vadd.f32 %v2323, %v2463
        %v2590 = vadd.f32 %v2324, %v2468
        %v2591 = vadd.f32 %v2325, %v2473
        %v2592 = vadd.f32 %v2326, %v2478
        %v2593 = vadd.f32 %v2327, %v2483
        %v2594 = vadd.f32 %v2328, %v2488
        %v2595 = vadd.f32 %v2329, %v2493
        %v2596 = vadd.f32 %v2330, %v2498
        %v2597 = vadd.f32 %v2331, %v2503
        %v2598 = vadd.f32 %v2332, %v2508
        %v2599 = vadd.f32 %v2333, %v2513
        %v2600 = vadd.f32 %v2334, %v2518
        %v2601 = vadd.f32 %v2335, %v2523
        %v2602 = vadd.f32 %v2336, %v2528
        %v2603 = vadd.f32 %v2337, %v2533
        %v2604 = vadd.f32 %v2338, %v2538
        %v2605 = vadd.f32 %v2339, %v2543
        %v2606 = vadd.f32 %v2340, %v2548
        %v2607 = vadd.f32 %v2341, %v2553
        %v2608 = vadd.f32 %v2342, %v2558
        %v2609 = vadd.f32 %v2343, %v2563
        %v2610 = vadd.f32 %v2344, %v2568
        %v2611 = vadd.f32 %v2345, %v2573
        %v2612 = vadd.f32 %v2346, %v2578
        %v2614 = vrot.slane %v415, 1
        %v2615 = vrot.slane %v416, 1
        %v2616 = vsel %vm471, %v2614, %v2615
        %v2617 = vrot.slane %v417, 1
        %v2618 = vsel %vm471, %v2615, %v2617
        %v2619 = vrot.slane %v421, 4
        %v2620 = vsel %vm207, %v2616, 0
        %v2622 = vsel %vm207, %v2618, 0
        %v2624 = vsel %vm618, %v2619, 0
        %2626 = vmatprep.subr.mxu0 0.0
        %2627 = vmatpush1.msra.mxu0 %v2624
        %2628 = vmatprep.subr.mxu0 0.0
        %2629 = vmatpush1.msra.mxu0 0.0
        %2630 = vmatprep.subr.mxu0 0.0
        %2631 = vmatpush1.msra.mxu0 0.0
        %2632 = vmatprep.subr.mxu0 0.0
        %2633 = vmatpush1.msra.mxu0 0.0
        %2634 = vmatprep.subr.mxu0 0.0
        %2635 = vmatpush1.msra.mxu0 0.0
        %2636 = vmatprep.subr.mxu0 0.0
        %2637 = vmatpush1.msra.mxu0 0.0
        %2638 = vmatprep.subr.mxu0 0.0
        %2639 = vmatpush1.msra.mxu0 0.0
        %2640 = vmatprep.subr.mxu0 0.0
        %2641 = vmatpush1.msra.mxu0 0.0
        %2642 = vmatprep.subr.mxu0 0.0
        %2643 = vmatpush1.msra.mxu0 0.0
        %2644 = vmatprep.subr.mxu0 0.0
        %2645 = vmatpush1.msra.mxu0 0.0
        %2646 = vmatprep.subr.mxu0 0.0
        %2647 = vmatpush1.msra.mxu0 0.0
        %2648 = vmatprep.subr.mxu0 0.0
        %2649 = vmatpush1.msra.mxu0 0.0
        %2650 = vmatprep.subr.mxu0 0.0
        %2651 = vmatpush1.msra.mxu0 0.0
        %2652 = vmatprep.subr.mxu0 0.0
        %2653 = vmatpush1.msra.mxu0 0.0
        %2654 = vmatprep.subr.mxu0 0.0
        %2655 = vmatpush1.msra.mxu0 0.0
        %2656 = vmatprep.subr.mxu0 0.0
        %2657 = vmatpush1.msra.mxu0 0.0
        %2658 = vmatprep.subr.mxu0 0.0
        %2659 = vmatpush1.msra.mxu0 0.0
        %2660 = vmatprep.subr.mxu0 0.0
        %2661 = vmatpush1.msra.mxu0 0.0
        %2662 = vmatprep.subr.mxu0 0.0
        %2663 = vmatpush1.msra.mxu0 0.0
        %2664 = vmatprep.subr.mxu0 0.0
        %2665 = vmatpush1.msra.mxu0 0.0
        %2666 = vmatprep.subr.mxu0 0.0
        %2667 = vmatpush1.msra.mxu0 0.0
        %2668 = vmatprep.subr.mxu0 0.0
        %2669 = vmatpush1.msra.mxu0 0.0
        %2670 = vmatprep.subr.mxu0 0.0
        %2671 = vmatpush1.msra.mxu0 0.0
        %2672 = vmatprep.subr.mxu0 0.0
        %2673 = vmatpush1.msra.mxu0 0.0
        %2674 = vmatprep.subr.mxu0 0.0
        %2675 = vmatpush1.msra.mxu0 0.0
        %2676 = vmatprep.subr.mxu0 0.0
        %2677 = vmatpush1.msra.mxu0 0.0
        %2678 = vmatprep.subr.mxu0 0.0
        %2679 = vmatpush1.msra.mxu0 0.0
        %2680 = vmatprep.subr.mxu0 0.0
        %2681 = vmatpush1.msra.mxu0 0.0
        %2682 = vmatprep.subr.mxu0 0.0
        %2683 = vmatpush1.msra.mxu0 0.0
        %2684 = vmatprep.subr.mxu0 0.0
        %2685 = vmatpush1.msra.mxu0 0.0
        %2686 = vmatprep.subr.mxu0 0.0
        %2687 = vmatpush1.msra.mxu0 0.0
        %2688 = vmatprep.subr.mxu0 0.0
        %2689 = vmatpush1.msra.mxu0 0.0
        %2690 = vmatprep.mubr.f32.mxu0 0.0
        %2691 = vmatmul.mubr.f32.gmra.mrb[0].mxu0 %v562
        %v2692 = vpop.f32.mrb[0].mxu0
        %v2693 = vadd.f32 0.0, %v2692
        %v2694 = vpop.f32.mrb[0].mxu0
        %2695 = vmatprep.mubr.f32.mxu0 0.0
        %2696 = vmatmul.mubr.f32.gmra.mrb[0].mxu0 %v564
        %v2697 = vpop.f32.mrb[0].mxu0
        %v2698 = vadd.f32 0.0, %v2697
        %v2699 = vpop.f32.mrb[0].mxu0
        %2700 = vmatprep.mubr.f32.mxu0 0.0
        %2701 = vmatmul.mubr.f32.gmra.mrb[0].mxu0 %v566
        %v2702 = vpop.f32.mrb[0].mxu0
        %v2703 = vadd.f32 0.0, %v2702
        %v2704 = vpop.f32.mrb[0].mxu0
        %2705 = vmatprep.mubr.f32.mxu0 0.0
        %2706 = vmatmul.mubr.f32.gmra.mrb[0].mxu0 %v568
        %v2707 = vpop.f32.mrb[0].mxu0
        %v2708 = vadd.f32 0.0, %v2707
        %v2709 = vpop.f32.mrb[0].mxu0
        %2710 = vmatprep.mubr.f32.mxu0 0.0
        %2711 = vmatmul.mubr.f32.gmra.mrb[0].mxu0 %v570
        %v2712 = vpop.f32.mrb[0].mxu0
        %v2713 = vadd.f32 0.0, %v2712
        %v2714 = vpop.f32.mrb[0].mxu0
        %2715 = vmatprep.mubr.f32.mxu0 0.0
        %2716 = vmatmul.mubr.f32.gmra.mrb[0].mxu0 %v572
        %v2717 = vpop.f32.mrb[0].mxu0
        %v2718 = vadd.f32 0.0, %v2717
        %v2719 = vpop.f32.mrb[0].mxu0
        %2720 = vmatprep.mubr.f32.mxu0 0.0
        %2721 = vmatmul.mubr.f32.gmra.mrb[0].mxu0 %v574
        %v2722 = vpop.f32.mrb[0].mxu0
        %v2723 = vadd.f32 0.0, %v2722
        %v2724 = vpop.f32.mrb[0].mxu0
        %2725 = vmatprep.mubr.f32.mxu0 0.0
        %2726 = vmatmul.mubr.f32.gmra.mrb[0].mxu0 %v576
        %v2727 = vpop.f32.mrb[0].mxu0
        %v2728 = vadd.f32 0.0, %v2727
        %v2729 = vpop.f32.mrb[0].mxu0
        %2730 = vmatprep.mubr.f32.mxu0 0.0
        %2731 = vmatmul.mubr.f32.gmra.mrb[0].mxu0 %v578
        %v2732 = vpop.f32.mrb[0].mxu0
        %v2733 = vadd.f32 0.0, %v2732
        %v2734 = vpop.f32.mrb[0].mxu0
        %2735 = vmatprep.mubr.f32.mxu0 0.0
        %2736 = vmatmul.mubr.f32.gmra.mrb[0].mxu0 %v580
        %v2737 = vpop.f32.mrb[0].mxu0
        %v2738 = vadd.f32 0.0, %v2737
        %v2739 = vpop.f32.mrb[0].mxu0
        %2740 = vmatprep.mubr.f32.mxu0 0.0
        %2741 = vmatmul.mubr.f32.gmra.mrb[0].mxu0 %v582
        %v2742 = vpop.f32.mrb[0].mxu0
        %v2743 = vadd.f32 0.0, %v2742
        %v2744 = vpop.f32.mrb[0].mxu0
        %2745 = vmatprep.mubr.f32.mxu0 0.0
        %2746 = vmatmul.mubr.f32.gmra.mrb[0].mxu0 %v584
        %v2747 = vpop.f32.mrb[0].mxu0
        %v2748 = vadd.f32 0.0, %v2747
        %v2749 = vpop.f32.mrb[0].mxu0
        %2750 = vmatprep.mubr.f32.mxu0 0.0
        %2751 = vmatmul.mubr.f32.gmra.mrb[0].mxu0 %v586
        %v2752 = vpop.f32.mrb[0].mxu0
        %v2753 = vadd.f32 0.0, %v2752
        %v2754 = vpop.f32.mrb[0].mxu0
        %2755 = vmatprep.mubr.f32.mxu0 0.0
        %2756 = vmatmul.mubr.f32.gmra.mrb[0].mxu0 %v588
        %v2757 = vpop.f32.mrb[0].mxu0
        %v2758 = vadd.f32 0.0, %v2757
        %v2759 = vpop.f32.mrb[0].mxu0
        %2760 = vmatprep.mubr.f32.mxu0 0.0
        %2761 = vmatmul.mubr.f32.gmra.mrb[0].mxu0 %v590
        %v2762 = vpop.f32.mrb[0].mxu0
        %v2763 = vadd.f32 0.0, %v2762
        %v2764 = vpop.f32.mrb[0].mxu0
        %2765 = vmatprep.mubr.f32.mxu0 0.0
        %2766 = vmatmul.mubr.f32.gmra.mrb[0].mxu0 %v592
        %v2767 = vpop.f32.mrb[0].mxu0
        %v2768 = vadd.f32 0.0, %v2767
        %v2769 = vpop.f32.mrb[0].mxu0
        %2770 = vmatprep.mubr.f32.mxu0 0.0
        %2771 = vmatmul.mubr.f32.gmra.mrb[0].mxu0 %v594
        %v2772 = vpop.f32.mrb[0].mxu0
        %v2773 = vadd.f32 0.0, %v2772
        %v2774 = vpop.f32.mrb[0].mxu0
        %2775 = vmatprep.mubr.f32.mxu0 0.0
        %2776 = vmatmul.mubr.f32.gmra.mrb[0].mxu0 %v596
        %v2777 = vpop.f32.mrb[0].mxu0
        %v2778 = vadd.f32 0.0, %v2777
        %v2779 = vpop.f32.mrb[0].mxu0
        %2780 = vmatprep.mubr.f32.mxu0 0.0
        %2781 = vmatmul.mubr.f32.gmra.mrb[0].mxu0 %v598
        %v2782 = vpop.f32.mrb[0].mxu0
        %v2783 = vadd.f32 0.0, %v2782
        %v2784 = vpop.f32.mrb[0].mxu0
        %2785 = vmatprep.mubr.f32.mxu0 0.0
        %2786 = vmatmul.mubr.f32.gmra.mrb[0].mxu0 %v600
        %v2787 = vpop.f32.mrb[0].mxu0
        %v2788 = vadd.f32 0.0, %v2787
        %v2789 = vpop.f32.mrb[0].mxu0
        %2790 = vmatprep.mubr.f32.mxu0 0.0
        %2791 = vmatmul.mubr.f32.gmra.mrb[0].mxu0 %v602
        %v2792 = vpop.f32.mrb[0].mxu0
        %v2793 = vadd.f32 0.0, %v2792
        %v2794 = vpop.f32.mrb[0].mxu0
        %2795 = vmatprep.mubr.f32.mxu0 0.0
        %2796 = vmatmul.mubr.f32.gmra.mrb[0].mxu0 %v604
        %v2797 = vpop.f32.mrb[0].mxu0
        %v2798 = vadd.f32 0.0, %v2797
        %v2799 = vpop.f32.mrb[0].mxu0
        %2800 = vmatprep.mubr.f32.mxu0 0.0
        %2801 = vmatmul.mubr.f32.gmra.mrb[0].mxu0 %v606
        %v2802 = vpop.f32.mrb[0].mxu0
        %v2803 = vadd.f32 0.0, %v2802
        %v2804 = vpop.f32.mrb[0].mxu0
        %2805 = vmatprep.mubr.f32.mxu0 0.0
        %2806 = vmatmul.mubr.f32.gmra.mrb[0].mxu0 %v608
        %v2807 = vpop.f32.mrb[0].mxu0
        %v2808 = vadd.f32 0.0, %v2807
        %v2809 = vpop.f32.mrb[0].mxu0
        %2810 = vmatprep.mubr.f32.mxu0 0.0
        %2811 = vmatmul.mubr.f32.gmra.mrb[0].mxu0 %v610
        %v2812 = vpop.f32.mrb[0].mxu0
        %v2813 = vadd.f32 0.0, %v2812
        %v2814 = vpop.f32.mrb[0].mxu0
        %2815 = vmatprep.mubr.f32.mxu0 0.0
        %2816 = vmatmul.mubr.f32.gmra.mrb[0].mxu0 %v612
        %v2817 = vpop.f32.mrb[0].mxu0
        %v2818 = vadd.f32 0.0, %v2817
        %v2819 = vpop.f32.mrb[0].mxu0
        %2820 = vmatprep.mubr.f32.mxu0 0.0
        %2821 = vmatmul.mubr.f32.gmra.mrb[0].mxu0 %v614
        %v2822 = vpop.f32.mrb[0].mxu0
        %v2823 = vadd.f32 0.0, %v2822
        %v2824 = vpop.f32.mrb[0].mxu0
        %2825 = vmatprep.mubr.f32.mxu0 0.0
        %2826 = vmatmul.mubr.f32.gmra.mrb[0].mxu0 %v616
        %v2827 = vpop.f32.mrb[0].mxu0
        %v2828 = vadd.f32 0.0, %v2827
        %v2829 = vpop.f32.mrb[0].mxu0
        %2830 = vmatprep.mubr.f32.mxu0 0.0
        %2831 = vmatmul.mubr.f32.gmra.mrb[0].mxu0 %v1814
        %v2832 = vpop.f32.mrb[0].mxu0
        %v2833 = vadd.f32 0.0, %v2832
        %v2834 = vpop.f32.mrb[0].mxu0
        %2835 = vmatprep.mubr.f32.mxu0 0.0
        %2836 = vmatmul.mubr.f32.gmra.mrb[0].mxu0 %v1816
        %v2837 = vpop.f32.mrb[0].mxu0
        %v2838 = vadd.f32 0.0, %v2837
        %v2839 = vpop.f32.mrb[0].mxu0
        %2840 = vmatprep.mubr.f32.mxu0 0.0
        %2841 = vmatmul.mubr.f32.gmra.mrb[0].mxu0 %v2620
        %v2842 = vpop.f32.mrb[0].mxu0
        %v2843 = vadd.f32 0.0, %v2842
        %v2844 = vpop.f32.mrb[0].mxu0
        %2845 = vmatprep.mubr.f32.mxu0 0.0
        %2846 = vmatmul.mubr.f32.gmra.mrb[0].mxu0 %v2622
        %v2847 = vpop.f32.mrb[0].mxu0
        %v2848 = vadd.f32 0.0, %v2847
        %v2849 = vpop.f32.mrb[0].mxu0
        %2850 = vdwg.mxu0
        %v2851 = vadd.f32 %v2581, %v2693
        %v2852 = vadd.f32 %v2582, %v2698
        %v2853 = vadd.f32 %v2583, %v2703
        %v2854 = vadd.f32 %v2584, %v2708
        %v2855 = vadd.f32 %v2585, %v2713
        %v2856 = vadd.f32 %v2586, %v2718
        %v2857 = vadd.f32 %v2587, %v2723
        %v2858 = vadd.f32 %v2588, %v2728
        %v2859 = vadd.f32 %v2589, %v2733
        %v2860 = vadd.f32 %v2590, %v2738
        %v2861 = vadd.f32 %v2591, %v2743
        %v2862 = vadd.f32 %v2592, %v2748
        %v2863 = vadd.f32 %v2593, %v2753
        %v2864 = vadd.f32 %v2594, %v2758
        %v2865 = vadd.f32 %v2595, %v2763
        %v2866 = vadd.f32 %v2596, %v2768
        %v2867 = vadd.f32 %v2597, %v2773
        %v2868 = vadd.f32 %v2598, %v2778
        %v2869 = vadd.f32 %v2599, %v2783
        %v2870 = vadd.f32 %v2600, %v2788
        %v2871 = vadd.f32 %v2601, %v2793
        %v2872 = vadd.f32 %v2602, %v2798
        %v2873 = vadd.f32 %v2603, %v2803
        %v2874 = vadd.f32 %v2604, %v2808
        %v2875 = vadd.f32 %v2605, %v2813
        %v2876 = vadd.f32 %v2606, %v2818
        %v2877 = vadd.f32 %v2607, %v2823
        %v2878 = vadd.f32 %v2608, %v2828
        %v2879 = vadd.f32 %v2609, %v2833
        %v2880 = vadd.f32 %v2610, %v2838
        %v2881 = vadd.f32 %v2611, %v2843
        %v2882 = vadd.f32 %v2612, %v2848
        %v2883 = vrot.slane %v415, 2
        %v2884 = vrot.slane %v416, 2
        %v2885 = vsel %vm1137, %v2883, %v2884
        %v2886 = vrot.slane %v417, 2
        %v2887 = vsel %vm1137, %v2884, %v2886
        %v2888 = vsel %vm207, %v2885, 0
        %v2890 = vsel %vm207, %v2887, 0
        %v2893 = vsel %vm618, %v422, 0
        %2895 = vmatprep.subr.mxu0 0.0
        %2896 = vmatpush1.msra.mxu0 %v2893
        %2897 = vmatprep.subr.mxu0 0.0
        %2898 = vmatpush1.msra.mxu0 0.0
        %2899 = vmatprep.subr.mxu0 0.0
        %2900 = vmatpush1.msra.mxu0 0.0
        %2901 = vmatprep.subr.mxu0 0.0
        %2902 = vmatpush1.msra.mxu0 0.0
        %2903 = vmatprep.subr.mxu0 0.0
        %2904 = vmatpush1.msra.mxu0 0.0
        %2905 = vmatprep.subr.mxu0 0.0
        %2906 = vmatpush1.msra.mxu0 0.0
        %2907 = vmatprep.subr.mxu0 0.0
        %2908 = vmatpush1.msra.mxu0 0.0
        %2909 = vmatprep.subr.mxu0 0.0
        %2910 = vmatpush1.msra.mxu0 0.0
        %2911 = vmatprep.subr.mxu0 0.0
        %2912 = vmatpush1.msra.mxu0 0.0
        %2913 = vmatprep.subr.mxu0 0.0
        %2914 = vmatpush1.msra.mxu0 0.0
        %2915 = vmatprep.subr.mxu0 0.0
        %2916 = vmatpush1.msra.mxu0 0.0
        %2917 = vmatprep.subr.mxu0 0.0
        %2918 = vmatpush1.msra.mxu0 0.0
        %2919 = vmatprep.subr.mxu0 0.0
        %2920 = vmatpush1.msra.mxu0 0.0
        %2921 = vmatprep.subr.mxu0 0.0
        %2922 = vmatpush1.msra.mxu0 0.0
        %2923 = vmatprep.subr.mxu0 0.0
        %2924 = vmatpush1.msra.mxu0 0.0
        %2925 = vmatprep.subr.mxu0 0.0
        %2926 = vmatpush1.msra.mxu0 0.0
        %2927 = vmatprep.subr.mxu0 0.0
        %2928 = vmatpush1.msra.mxu0 0.0
        %2929 = vmatprep.subr.mxu0 0.0
        %2930 = vmatpush1.msra.mxu0 0.0
        %2931 = vmatprep.subr.mxu0 0.0
        %2932 = vmatpush1.msra.mxu0 0.0
        %2933 = vmatprep.subr.mxu0 0.0
        %2934 = vmatpush1.msra.mxu0 0.0
        %2935 = vmatprep.subr.mxu0 0.0
        %2936 = vmatpush1.msra.mxu0 0.0
        %2937 = vmatprep.subr.mxu0 0.0
        %2938 = vmatpush1.msra.mxu0 0.0
        %2939 = vmatprep.subr.mxu0 0.0
        %2940 = vmatpush1.msra.mxu0 0.0
        %2941 = vmatprep.subr.mxu0 0.0
        %2942 = vmatpush1.msra.mxu0 0.0
        %2943 = vmatprep.subr.mxu0 0.0
        %2944 = vmatpush1.msra.mxu0 0.0
        %2945 = vmatprep.subr.mxu0 0.0
        %2946 = vmatpush1.msra.mxu0 0.0
        %2947 = vmatprep.subr.mxu0 0.0
        %2948 = vmatpush1.msra.mxu0 0.0
        %2949 = vmatprep.subr.mxu0 0.0
        %2950 = vmatpush1.msra.mxu0 0.0
        %2951 = vmatprep.subr.mxu0 0.0
        %2952 = vmatpush1.msra.mxu0 0.0
        %2953 = vmatprep.subr.mxu0 0.0
        %2954 = vmatpush1.msra.mxu0 0.0
        %2955 = vmatprep.subr.mxu0 0.0
        %2956 = vmatpush1.msra.mxu0 0.0
        %2957 = vmatprep.subr.mxu0 0.0
        %2958 = vmatpush1.msra.mxu0 0.0
        %2959 = vmatprep.mubr.f32.mxu0 0.0
        %2960 = vmatmul.mubr.f32.gmra.mrb[0].mxu0 %v1226
        %v2961 = vpop.f32.mrb[0].mxu0
        %v2962 = vadd.f32 0.0, %v2961
        %v2963 = vpop.f32.mrb[0].mxu0
        %2964 = vmatprep.mubr.f32.mxu0 0.0
        %2965 = vmatmul.mubr.f32.gmra.mrb[0].mxu0 %v1228
        %v2966 = vpop.f32.mrb[0].mxu0
        %v2967 = vadd.f32 0.0, %v2966
        %v2968 = vpop.f32.mrb[0].mxu0
        %2969 = vmatprep.mubr.f32.mxu0 0.0
        %2970 = vmatmul.mubr.f32.gmra.mrb[0].mxu0 %v1230
        %v2971 = vpop.f32.mrb[0].mxu0
        %v2972 = vadd.f32 0.0, %v2971
        %v2973 = vpop.f32.mrb[0].mxu0
        %2974 = vmatprep.mubr.f32.mxu0 0.0
        %2975 = vmatmul.mubr.f32.gmra.mrb[0].mxu0 %v1232
        %v2976 = vpop.f32.mrb[0].mxu0
        %v2977 = vadd.f32 0.0, %v2976
        %v2978 = vpop.f32.mrb[0].mxu0
        %2979 = vmatprep.mubr.f32.mxu0 0.0
        %2980 = vmatmul.mubr.f32.gmra.mrb[0].mxu0 %v1234
        %v2981 = vpop.f32.mrb[0].mxu0
        %v2982 = vadd.f32 0.0, %v2981
        %v2983 = vpop.f32.mrb[0].mxu0
        %2984 = vmatprep.mubr.f32.mxu0 0.0
        %2985 = vmatmul.mubr.f32.gmra.mrb[0].mxu0 %v1236
        %v2986 = vpop.f32.mrb[0].mxu0
        %v2987 = vadd.f32 0.0, %v2986
        %v2988 = vpop.f32.mrb[0].mxu0
        %2989 = vmatprep.mubr.f32.mxu0 0.0
        %2990 = vmatmul.mubr.f32.gmra.mrb[0].mxu0 %v1238
        %v2991 = vpop.f32.mrb[0].mxu0
        %v2992 = vadd.f32 0.0, %v2991
        %v2993 = vpop.f32.mrb[0].mxu0
        %2994 = vmatprep.mubr.f32.mxu0 0.0
        %2995 = vmatmul.mubr.f32.gmra.mrb[0].mxu0 %v1240
        %v2996 = vpop.f32.mrb[0].mxu0
        %v2997 = vadd.f32 0.0, %v2996
        %v2998 = vpop.f32.mrb[0].mxu0
        %2999 = vmatprep.mubr.f32.mxu0 0.0
        %3000 = vmatmul.mubr.f32.gmra.mrb[0].mxu0 %v1242
        %v3001 = vpop.f32.mrb[0].mxu0
        %v3002 = vadd.f32 0.0, %v3001
        %v3003 = vpop.f32.mrb[0].mxu0
        %3004 = vmatprep.mubr.f32.mxu0 0.0
        %3005 = vmatmul.mubr.f32.gmra.mrb[0].mxu0 %v1244
        %v3006 = vpop.f32.mrb[0].mxu0
        %v3007 = vadd.f32 0.0, %v3006
        %v3008 = vpop.f32.mrb[0].mxu0
        %3009 = vmatprep.mubr.f32.mxu0 0.0
        %3010 = vmatmul.mubr.f32.gmra.mrb[0].mxu0 %v1246
        %v3011 = vpop.f32.mrb[0].mxu0
        %v3012 = vadd.f32 0.0, %v3011
        %v3013 = vpop.f32.mrb[0].mxu0
        %3014 = vmatprep.mubr.f32.mxu0 0.0
        %3015 = vmatmul.mubr.f32.gmra.mrb[0].mxu0 %v1248
        %v3016 = vpop.f32.mrb[0].mxu0
        %v3017 = vadd.f32 0.0, %v3016
        %v3018 = vpop.f32.mrb[0].mxu0
        %3019 = vmatprep.mubr.f32.mxu0 0.0
        %3020 = vmatmul.mubr.f32.gmra.mrb[0].mxu0 %v1250
        %v3021 = vpop.f32.mrb[0].mxu0
        %v3022 = vadd.f32 0.0, %v3021
        %v3023 = vpop.f32.mrb[0].mxu0
        %3024 = vmatprep.mubr.f32.mxu0 0.0
        %3025 = vmatmul.mubr.f32.gmra.mrb[0].mxu0 %v1252
        %v3026 = vpop.f32.mrb[0].mxu0
        %v3027 = vadd.f32 0.0, %v3026
        %v3028 = vpop.f32.mrb[0].mxu0
        %3029 = vmatprep.mubr.f32.mxu0 0.0
        %3030 = vmatmul.mubr.f32.gmra.mrb[0].mxu0 %v1254
        %v3031 = vpop.f32.mrb[0].mxu0
        %v3032 = vadd.f32 0.0, %v3031
        %v3033 = vpop.f32.mrb[0].mxu0
        %3034 = vmatprep.mubr.f32.mxu0 0.0
        %3035 = vmatmul.mubr.f32.gmra.mrb[0].mxu0 %v1256
        %v3036 = vpop.f32.mrb[0].mxu0
        %v3037 = vadd.f32 0.0, %v3036
        %v3038 = vpop.f32.mrb[0].mxu0
        %3039 = vmatprep.mubr.f32.mxu0 0.0
        %3040 = vmatmul.mubr.f32.gmra.mrb[0].mxu0 %v1258
        %v3041 = vpop.f32.mrb[0].mxu0
        %v3042 = vadd.f32 0.0, %v3041
        %v3043 = vpop.f32.mrb[0].mxu0
        %3044 = vmatprep.mubr.f32.mxu0 0.0
        %3045 = vmatmul.mubr.f32.gmra.mrb[0].mxu0 %v1260
        %v3046 = vpop.f32.mrb[0].mxu0
        %v3047 = vadd.f32 0.0, %v3046
        %v3048 = vpop.f32.mrb[0].mxu0
        %3049 = vmatprep.mubr.f32.mxu0 0.0
        %3050 = vmatmul.mubr.f32.gmra.mrb[0].mxu0 %v1262
        %v3051 = vpop.f32.mrb[0].mxu0
        %v3052 = vadd.f32 0.0, %v3051
        %v3053 = vpop.f32.mrb[0].mxu0
        %3054 = vmatprep.mubr.f32.mxu0 0.0
        %3055 = vmatmul.mubr.f32.gmra.mrb[0].mxu0 %v1264
        %v3056 = vpop.f32.mrb[0].mxu0
        %v3057 = vadd.f32 0.0, %v3056
        %v3058 = vpop.f32.mrb[0].mxu0
        %3059 = vmatprep.mubr.f32.mxu0 0.0
        %3060 = vmatmul.mubr.f32.gmra.mrb[0].mxu0 %v1266
        %v3061 = vpop.f32.mrb[0].mxu0
        %v3062 = vadd.f32 0.0, %v3061
        %v3063 = vpop.f32.mrb[0].mxu0
        %3064 = vmatprep.mubr.f32.mxu0 0.0
        %3065 = vmatmul.mubr.f32.gmra.mrb[0].mxu0 %v1268
        %v3066 = vpop.f32.mrb[0].mxu0
        %v3067 = vadd.f32 0.0, %v3066
        %v3068 = vpop.f32.mrb[0].mxu0
        %3069 = vmatprep.mubr.f32.mxu0 0.0
        %3070 = vmatmul.mubr.f32.gmra.mrb[0].mxu0 %v1270
        %v3071 = vpop.f32.mrb[0].mxu0
        %v3072 = vadd.f32 0.0, %v3071
        %v3073 = vpop.f32.mrb[0].mxu0
        %3074 = vmatprep.mubr.f32.mxu0 0.0
        %3075 = vmatmul.mubr.f32.gmra.mrb[0].mxu0 %v1272
        %v3076 = vpop.f32.mrb[0].mxu0
        %v3077 = vadd.f32 0.0, %v3076
        %v3078 = vpop.f32.mrb[0].mxu0
        %3079 = vmatprep.mubr.f32.mxu0 0.0
        %3080 = vmatmul.mubr.f32.gmra.mrb[0].mxu0 %v1274
        %v3081 = vpop.f32.mrb[0].mxu0
        %v3082 = vadd.f32 0.0, %v3081
        %v3083 = vpop.f32.mrb[0].mxu0
        %3084 = vmatprep.mubr.f32.mxu0 0.0
        %3085 = vmatmul.mubr.f32.gmra.mrb[0].mxu0 %v1276
        %v3086 = vpop.f32.mrb[0].mxu0
        %v3087 = vadd.f32 0.0, %v3086
        %v3088 = vpop.f32.mrb[0].mxu0
        %3089 = vmatprep.mubr.f32.mxu0 0.0
        %3090 = vmatmul.mubr.f32.gmra.mrb[0].mxu0 %v1278
        %v3091 = vpop.f32.mrb[0].mxu0
        %v3092 = vadd.f32 0.0, %v3091
        %v3093 = vpop.f32.mrb[0].mxu0
        %3094 = vmatprep.mubr.f32.mxu0 0.0
        %3095 = vmatmul.mubr.f32.gmra.mrb[0].mxu0 %v1280
        %v3096 = vpop.f32.mrb[0].mxu0
        %v3097 = vadd.f32 0.0, %v3096
        %v3098 = vpop.f32.mrb[0].mxu0
        %3099 = vmatprep.mubr.f32.mxu0 0.0
        %3100 = vmatmul.mubr.f32.gmra.mrb[0].mxu0 %v2084
        %v3101 = vpop.f32.mrb[0].mxu0
        %v3102 = vadd.f32 0.0, %v3101
        %v3103 = vpop.f32.mrb[0].mxu0
        %3104 = vmatprep.mubr.f32.mxu0 0.0
        %3105 = vmatmul.mubr.f32.gmra.mrb[0].mxu0 %v2086
        %v3106 = vpop.f32.mrb[0].mxu0
        %v3107 = vadd.f32 0.0, %v3106
        %v3108 = vpop.f32.mrb[0].mxu0
        %3109 = vmatprep.mubr.f32.mxu0 0.0
        %3110 = vmatmul.mubr.f32.gmra.mrb[0].mxu0 %v2888
        %v3111 = vpop.f32.mrb[0].mxu0
        %v3112 = vadd.f32 0.0, %v3111
        %v3113 = vpop.f32.mrb[0].mxu0
        %3114 = vmatprep.mubr.f32.mxu0 0.0
        %3115 = vmatmul.mubr.f32.gmra.mrb[0].mxu0 %v2890
        %v3116 = vpop.f32.mrb[0].mxu0
        %v3117 = vadd.f32 0.0, %v3116
        %v3118 = vpop.f32.mrb[0].mxu0
        %3119 = vdwg.mxu0
        %v3120 = vadd.f32 %v2851, %v2962
        %v3121 = vadd.f32 %v2852, %v2967
        %v3122 = vadd.f32 %v2853, %v2972
        %v3123 = vadd.f32 %v2854, %v2977
        %v3124 = vadd.f32 %v2855, %v2982
        %v3125 = vadd.f32 %v2856, %v2987
        %v3126 = vadd.f32 %v2857, %v2992
        %v3127 = vadd.f32 %v2858, %v2997
        %v3128 = vadd.f32 %v2859, %v3002
        %v3129 = vadd.f32 %v2860, %v3007
        %v3130 = vadd.f32 %v2861, %v3012
        %v3131 = vadd.f32 %v2862, %v3017
        %v3132 = vadd.f32 %v2863, %v3022
        %v3133 = vadd.f32 %v2864, %v3027
        %v3134 = vadd.f32 %v2865, %v3032
        %v3135 = vadd.f32 %v2866, %v3037
        %v3136 = vadd.f32 %v2867, %v3042
        %v3137 = vadd.f32 %v2868, %v3047
        %v3138 = vadd.f32 %v2869, %v3052
        %v3139 = vadd.f32 %v2870, %v3057
        %v3140 = vadd.f32 %v2871, %v3062
        %v3141 = vadd.f32 %v2872, %v3067
        %v3142 = vadd.f32 %v2873, %v3072
        %v3143 = vadd.f32 %v2874, %v3077
        %v3144 = vadd.f32 %v2875, %v3082
        %v3145 = vadd.f32 %v2876, %v3087
        %v3146 = vadd.f32 %v2877, %v3092
        %v3147 = vadd.f32 %v2878, %v3097
        %v3148 = vadd.f32 %v2879, %v3102
        %v3149 = vadd.f32 %v2880, %v3107
        %v3150 = vadd.f32 %v2881, %v3112
        %v3151 = vadd.f32 %v2882, %v3117
        %v3152 = vsel %vm253, %v3120, 0.0
        %v3153 = vsel %vm253, %v3121, 0.0
        %v3154 = vadd.f32 %v3152, %v3153
        %v3155 = vsel %vm253, %v3122, 0.0
        %v3156 = vadd.f32 %v3154, %v3155
        %v3157 = vsel %vm253, %v3123, 0.0
        %v3158 = vadd.f32 %v3156, %v3157
        %v3159 = vsel %vm253, %v3124, 0.0
        %v3160 = vadd.f32 %v3158, %v3159
        %v3161 = vsel %vm253, %v3125, 0.0
        %v3162 = vadd.f32 %v3160, %v3161
        %v3163 = vsel %vm253, %v3126, 0.0
        %v3164 = vadd.f32 %v3162, %v3163
        %v3165 = vsel %vm253, %v3127, 0.0
        %v3166 = vadd.f32 %v3164, %v3165
        %v3167 = vsel %vm253, %v3128, 0.0
        %v3168 = vadd.f32 %v3166, %v3167
        %v3169 = vsel %vm253, %v3129, 0.0
        %v3170 = vadd.f32 %v3168, %v3169
        %v3171 = vsel %vm253, %v3130, 0.0
        %v3172 = vadd.f32 %v3170, %v3171
        %v3173 = vsel %vm253, %v3131, 0.0
        %v3174 = vadd.f32 %v3172, %v3173
        %v3175 = vsel %vm253, %v3132, 0.0
        %v3176 = vadd.f32 %v3174, %v3175
        %v3177 = vsel %vm253, %v3133, 0.0
        %v3178 = vadd.f32 %v3176, %v3177
        %v3179 = vsel %vm253, %v3134, 0.0
        %v3180 = vadd.f32 %v3178, %v3179
        %v3181 = vsel %vm253, %v3135, 0.0
        %v3182 = vadd.f32 %v3180, %v3181
        %v3183 = vsel %vm253, %v3136, 0.0
        %v3184 = vadd.f32 %v3182, %v3183
        %v3185 = vsel %vm253, %v3137, 0.0
        %v3186 = vadd.f32 %v3184, %v3185
        %v3187 = vsel %vm253, %v3138, 0.0
        %v3188 = vadd.f32 %v3186, %v3187
        %v3189 = vsel %vm253, %v3139, 0.0
        %v3190 = vadd.f32 %v3188, %v3189
        %v3191 = vsel %vm253, %v3140, 0.0
        %v3192 = vadd.f32 %v3190, %v3191
        %v3193 = vsel %vm253, %v3141, 0.0
        %v3194 = vadd.f32 %v3192, %v3193
        %v3195 = vsel %vm253, %v3142, 0.0
        %v3196 = vadd.f32 %v3194, %v3195
        %v3197 = vsel %vm253, %v3143, 0.0
        %v3198 = vadd.f32 %v3196, %v3197
        %v3199 = vsel %vm253, %v3144, 0.0
        %v3200 = vadd.f32 %v3198, %v3199
        %v3201 = vsel %vm253, %v3145, 0.0
        %v3202 = vadd.f32 %v3200, %v3201
        %v3203 = vsel %vm253, %v3146, 0.0
        %v3204 = vadd.f32 %v3202, %v3203
        %v3205 = vsel %vm253, %v3147, 0.0
        %v3206 = vadd.f32 %v3204, %v3205
        %v3207 = vsel %vm253, %v3148, 0.0
        %v3208 = vadd.f32 %v3206, %v3207
        %v3209 = vsel %vm253, %v3149, 0.0
        %v3210 = vadd.f32 %v3208, %v3209
        %v3211 = vsel %vm253, %v3150, 0.0
        %v3212 = vadd.f32 %v3210, %v3211
        %v3213 = vsel %vm253, %v3151, 0.0
        %v3214 = vadd.f32 %v3212, %v3213
        %v3215 = vrot.slane %v3214, 4
        %v3216 = vadd.f32 %v3214, %v3215
        %v3217 = vrot.slane %v3216, 2
        %v3218 = vadd.f32 %v3216, %v3217
        %v3219 = vrot.slane %v3218, 1
        %v3220 = vadd.f32 %v3218, %v3219
        %v3221 = vmul.f32 %v3220, 0.00390625
        %v3222 = vmul.f32 %v3120, %v3120
        %v3223 = vmul.f32 %v3121, %v3121
        %v3224 = vmul.f32 %v3122, %v3122
        %v3225 = vmul.f32 %v3123, %v3123
        %v3226 = vmul.f32 %v3124, %v3124
        %v3227 = vmul.f32 %v3125, %v3125
        %v3228 = vmul.f32 %v3126, %v3126
        %v3229 = vmul.f32 %v3127, %v3127
        %v3230 = vmul.f32 %v3128, %v3128
        %v3231 = vmul.f32 %v3129, %v3129
        %v3232 = vmul.f32 %v3130, %v3130
        %v3233 = vmul.f32 %v3131, %v3131
        %v3234 = vmul.f32 %v3132, %v3132
        %v3235 = vmul.f32 %v3133, %v3133
        %v3236 = vmul.f32 %v3134, %v3134
        %v3237 = vmul.f32 %v3135, %v3135
        %v3238 = vmul.f32 %v3136, %v3136
        %v3239 = vmul.f32 %v3137, %v3137
        %v3240 = vmul.f32 %v3138, %v3138
        %v3241 = vmul.f32 %v3139, %v3139
        %v3242 = vmul.f32 %v3140, %v3140
        %v3243 = vmul.f32 %v3141, %v3141
        %v3244 = vmul.f32 %v3142, %v3142
        %v3245 = vmul.f32 %v3143, %v3143
        %v3246 = vmul.f32 %v3144, %v3144
        %v3247 = vmul.f32 %v3145, %v3145
        %v3248 = vmul.f32 %v3146, %v3146
        %v3249 = vmul.f32 %v3147, %v3147
        %v3250 = vmul.f32 %v3148, %v3148
        %v3251 = vmul.f32 %v3149, %v3149
        %v3252 = vmul.f32 %v3150, %v3150
        %v3253 = vmul.f32 %v3151, %v3151
        %v3254 = vsel %vm253, %v3222, 0.0
        %v3255 = vsel %vm253, %v3223, 0.0
        %v3256 = vadd.f32 %v3254, %v3255
        %v3257 = vsel %vm253, %v3224, 0.0
        %v3258 = vadd.f32 %v3256, %v3257
        %v3259 = vsel %vm253, %v3225, 0.0
        %v3260 = vadd.f32 %v3258, %v3259
        %v3261 = vsel %vm253, %v3226, 0.0
        %v3262 = vadd.f32 %v3260, %v3261
        %v3263 = vsel %vm253, %v3227, 0.0
        %v3264 = vadd.f32 %v3262, %v3263
        %v3265 = vsel %vm253, %v3228, 0.0
        %v3266 = vadd.f32 %v3264, %v3265
        %v3267 = vsel %vm253, %v3229, 0.0
        %v3268 = vadd.f32 %v3266, %v3267
        %v3269 = vsel %vm253, %v3230, 0.0
        %v3270 = vadd.f32 %v3268, %v3269
        %v3271 = vsel %vm253, %v3231, 0.0
        %v3272 = vadd.f32 %v3270, %v3271
        %v3273 = vsel %vm253, %v3232, 0.0
        %v3274 = vadd.f32 %v3272, %v3273
        %v3275 = vsel %vm253, %v3233, 0.0
        %v3276 = vadd.f32 %v3274, %v3275
        %v3277 = vsel %vm253, %v3234, 0.0
        %v3278 = vadd.f32 %v3276, %v3277
        %v3279 = vsel %vm253, %v3235, 0.0
        %v3280 = vadd.f32 %v3278, %v3279
        %v3281 = vsel %vm253, %v3236, 0.0
        %v3282 = vadd.f32 %v3280, %v3281
        %v3283 = vsel %vm253, %v3237, 0.0
        %v3284 = vadd.f32 %v3282, %v3283
        %v3285 = vsel %vm253, %v3238, 0.0
        %v3286 = vadd.f32 %v3284, %v3285
        %v3287 = vsel %vm253, %v3239, 0.0
        %v3288 = vadd.f32 %v3286, %v3287
        %v3289 = vsel %vm253, %v3240, 0.0
        %v3290 = vadd.f32 %v3288, %v3289
        %v3291 = vsel %vm253, %v3241, 0.0
        %v3292 = vadd.f32 %v3290, %v3291
        %v3293 = vsel %vm253, %v3242, 0.0
        %v3294 = vadd.f32 %v3292, %v3293
        %v3295 = vsel %vm253, %v3243, 0.0
        %v3296 = vadd.f32 %v3294, %v3295
        %v3297 = vsel %vm253, %v3244, 0.0
        %v3298 = vadd.f32 %v3296, %v3297
        %v3299 = vsel %vm253, %v3245, 0.0
        %v3300 = vadd.f32 %v3298, %v3299
        %v3301 = vsel %vm253, %v3246, 0.0
        %v3302 = vadd.f32 %v3300, %v3301
        %v3303 = vsel %vm253, %v3247, 0.0
        %v3304 = vadd.f32 %v3302, %v3303
        %v3305 = vsel %vm253, %v3248, 0.0
        %v3306 = vadd.f32 %v3304, %v3305
        %v3307 = vsel %vm253, %v3249, 0.0
        %v3308 = vadd.f32 %v3306, %v3307
        %v3309 = vsel %vm253, %v3250, 0.0
        %v3310 = vadd.f32 %v3308, %v3309
        %v3311 = vsel %vm253, %v3251, 0.0
        %v3312 = vadd.f32 %v3310, %v3311
        %v3313 = vsel %vm253, %v3252, 0.0
        %v3314 = vadd.f32 %v3312, %v3313
        %v3315 = vsel %vm253, %v3253, 0.0
        %v3316 = vadd.f32 %v3314, %v3315
        %v3317 = vrot.slane %v3316, 4
        %v3318 = vadd.f32 %v3316, %v3317
        %v3319 = vrot.slane %v3318, 2
        %v3320 = vadd.f32 %v3318, %v3319
        %v3321 = vrot.slane %v3320, 1
        %v3322 = vadd.f32 %v3320, %v3321
        %v3323 = vmul.f32 %v3322, 0.00390625
        %v3324 = vmul.f32 %v3221, %v3221
        %v3325 = vsub.f32 %v3323, %v3324
        %v3326 = vmax.f32 %v3325, 0.0
        %v3327 = vsub.f32 %v3120, %v3221
        %v3328 = vsub.f32 %v3121, %v3221
        %v3329 = vsub.f32 %v3122, %v3221
        %v3330 = vsub.f32 %v3123, %v3221
        %v3331 = vsub.f32 %v3124, %v3221
        %v3332 = vsub.f32 %v3125, %v3221
        %v3333 = vsub.f32 %v3126, %v3221
        %v3334 = vsub.f32 %v3127, %v3221
        %v3335 = vsub.f32 %v3128, %v3221
        %v3336 = vsub.f32 %v3129, %v3221
        %v3337 = vsub.f32 %v3130, %v3221
        %v3338 = vsub.f32 %v3131, %v3221
        %v3339 = vsub.f32 %v3132, %v3221
        %v3340 = vsub.f32 %v3133, %v3221
        %v3341 = vsub.f32 %v3134, %v3221
        %v3342 = vsub.f32 %v3135, %v3221
        %v3343 = vsub.f32 %v3136, %v3221
        %v3344 = vsub.f32 %v3137, %v3221
        %v3345 = vsub.f32 %v3138, %v3221
        %v3346 = vsub.f32 %v3139, %v3221
        %v3347 = vsub.f32 %v3140, %v3221
        %v3348 = vsub.f32 %v3141, %v3221
        %v3349 = vsub.f32 %v3142, %v3221
        %v3350 = vsub.f32 %v3143, %v3221
        %v3351 = vsub.f32 %v3144, %v3221
        %v3352 = vsub.f32 %v3145, %v3221
        %v3353 = vsub.f32 %v3146, %v3221
        %v3354 = vsub.f32 %v3147, %v3221
        %v3355 = vsub.f32 %v3148, %v3221
        %v3356 = vsub.f32 %v3149, %v3221
        %v3357 = vsub.f32 %v3150, %v3221
        %v3358 = vsub.f32 %v3151, %v3221
        %v3359 = vadd.f32 %v3326, 1e-05
        %v3360 = vrsqrt.pop %v3359
        %v3361 = vmul.f32 %v3327, %v3360
        %v3362 = vmul.f32 %v3328, %v3360
        %v3363 = vmul.f32 %v3329, %v3360
        %v3364 = vmul.f32 %v3330, %v3360
        %v3365 = vmul.f32 %v3331, %v3360
        %v3366 = vmul.f32 %v3332, %v3360
        %v3367 = vmul.f32 %v3333, %v3360
        %v3368 = vmul.f32 %v3334, %v3360
        %v3369 = vmul.f32 %v3335, %v3360
        %v3370 = vmul.f32 %v3336, %v3360
        %v3371 = vmul.f32 %v3337, %v3360
        %v3372 = vmul.f32 %v3338, %v3360
        %v3373 = vmul.f32 %v3339, %v3360
        %v3374 = vmul.f32 %v3340, %v3360
        %v3375 = vmul.f32 %v3341, %v3360
        %v3376 = vmul.f32 %v3342, %v3360
        %v3377 = vmul.f32 %v3343, %v3360
        %v3378 = vmul.f32 %v3344, %v3360
        %v3379 = vmul.f32 %v3345, %v3360
        %v3380 = vmul.f32 %v3346, %v3360
        %v3381 = vmul.f32 %v3347, %v3360
        %v3382 = vmul.f32 %v3348, %v3360
        %v3383 = vmul.f32 %v3349, %v3360
        %v3384 = vmul.f32 %v3350, %v3360
        %v3385 = vmul.f32 %v3351, %v3360
        %v3386 = vmul.f32 %v3352, %v3360
        %v3387 = vmul.f32 %v3353, %v3360
        %v3388 = vmul.f32 %v3354, %v3360
        %v3389 = vmul.f32 %v3355, %v3360
        %v3390 = vmul.f32 %v3356, %v3360
        %v3391 = vmul.f32 %v3357, %v3360
        %v3392 = vmul.f32 %v3358, %v3360
        %v3393 = vmax.f32 %v3361, 0.0
        %v3394 = vmax.f32 %v3362, 0.0
        %v3395 = vmax.f32 %v3363, 0.0
        %v3396 = vmax.f32 %v3364, 0.0
        %v3397 = vmax.f32 %v3365, 0.0
        %v3398 = vmax.f32 %v3366, 0.0
        %v3399 = vmax.f32 %v3367, 0.0
        %v3400 = vmax.f32 %v3368, 0.0
        %v3401 = vmax.f32 %v3369, 0.0
        %v3402 = vmax.f32 %v3370, 0.0
        %v3403 = vmax.f32 %v3371, 0.0
        %v3404 = vmax.f32 %v3372, 0.0
        %v3405 = vmax.f32 %v3373, 0.0
        %v3406 = vmax.f32 %v3374, 0.0
        %v3407 = vmax.f32 %v3375, 0.0
        %v3408 = vmax.f32 %v3376, 0.0
        %v3409 = vmax.f32 %v3377, 0.0
        %v3410 = vmax.f32 %v3378, 0.0
        %v3411 = vmax.f32 %v3379, 0.0
        %v3412 = vmax.f32 %v3380, 0.0
        %v3413 = vmax.f32 %v3381, 0.0
        %v3414 = vmax.f32 %v3382, 0.0
        %v3415 = vmax.f32 %v3383, 0.0
        %v3416 = vmax.f32 %v3384, 0.0
        %v3417 = vmax.f32 %v3385, 0.0
        %v3418 = vmax.f32 %v3386, 0.0
        %v3419 = vmax.f32 %v3387, 0.0
        %v3420 = vmax.f32 %v3388, 0.0
        %v3421 = vmax.f32 %v3389, 0.0
        %v3422 = vmax.f32 %v3390, 0.0
        %v3423 = vmax.f32 %v3391, 0.0
        %v3424 = vmax.f32 %v3392, 0.0
        %s3425 = scalar_lea.vmem [#allocation3], 24
        %3426 = vst.msk [vmem:[%s3425 + $0x1] sm:$0xff] %vm253, %v3393
        %3427 = vst.msk [vmem:[%s3425 + $0x9] sm:$0xff] %vm253, %v3394
        %3428 = vst.msk [vmem:[%s3425 + $0x19] sm:$0xff] %vm253, %v3395
        %3429 = vst.msk [vmem:[%s3425 + $0x21] sm:$0xff] %vm253, %v3396
        %3430 = vst.msk [vmem:[%s3425 + $0x31] sm:$0xff] %vm253, %v3397
        %3431 = vst.msk [vmem:[%s3425 + $0x39] sm:$0xff] %vm253, %v3398
        %3432 = vst.msk [vmem:[%s3425 + $0x49] sm:$0xff] %vm253, %v3399
        %3433 = vst.msk [vmem:[%s3425 + $0x51] sm:$0xff] %vm253, %v3400
        %3434 = vst.msk [vmem:[%s3425 + $0x61] sm:$0xff] %vm253, %v3401
        %3435 = vst.msk [vmem:[%s3425 + $0x69] sm:$0xff] %vm253, %v3402
        %3436 = vst.msk [vmem:[%s3425 + $0x79] sm:$0xff] %vm253, %v3403
        %3437 = vst.msk [vmem:[%s3425 + $0x81] sm:$0xff] %vm253, %v3404
        %3438 = vst.msk [vmem:[%s3425 + $0x91] sm:$0xff] %vm253, %v3405
        %3439 = vst.msk [vmem:[%s3425 + $0x99] sm:$0xff] %vm253, %v3406
        %3440 = vst.msk [vmem:[%s3425 + $0xa9] sm:$0xff] %vm253, %v3407
        %3441 = vst.msk [vmem:[%s3425 + $0xb1] sm:$0xff] %vm253, %v3408
        %3442 = vst.msk [vmem:[%s3425 + $0xc1] sm:$0xff] %vm253, %v3409
        %3443 = vst.msk [vmem:[%s3425 + $0xc9] sm:$0xff] %vm253, %v3410
        %3444 = vst.msk [vmem:[%s3425 + $0xd9] sm:$0xff] %vm253, %v3411
        %3445 = vst.msk [vmem:[%s3425 + $0xe1] sm:$0xff] %vm253, %v3412
        %3446 = vst.msk [vmem:[%s3425 + $0xf1] sm:$0xff] %vm253, %v3413
        %3447 = vst.msk [vmem:[%s3425 + $0xf9] sm:$0xff] %vm253, %v3414
        %3448 = vst.msk [vmem:[%s3425 + $0x109] sm:$0xff] %vm253, %v3415
        %3449 = vst.msk [vmem:[%s3425 + $0x111] sm:$0xff] %vm253, %v3416
        %3450 = vst.msk [vmem:[%s3425 + $0x121] sm:$0xff] %vm253, %v3417
        %3451 = vst.msk [vmem:[%s3425 + $0x129] sm:$0xff] %vm253, %v3418
        %3452 = vst.msk [vmem:[%s3425 + $0x139] sm:$0xff] %vm253, %v3419
        %3453 = vst.msk [vmem:[%s3425 + $0x141] sm:$0xff] %vm253, %v3420
        %3454 = vst.msk [vmem:[%s3425 + $0x151] sm:$0xff] %vm253, %v3421
        %3455 = vst.msk [vmem:[%s3425 + $0x159] sm:$0xff] %vm253, %v3422
        %3456 = vst.msk [vmem:[%s3425 + $0x169] sm:$0xff] %vm253, %v3423
        %3457 = vst.msk [vmem:[%s3425 + $0x171] sm:$0xff] %vm253, %v3424
        %v3458 = vld [vmem:[#allocation3] sm:$0xff]
        %v3459 = vld [vmem:[#allocation3 + $0x8] sm:$0xff]
        %v3460 = vld [vmem:[#allocation3 + $0x10] sm:$0x3]
        %v3461 = vld [vmem:[#allocation3 + $0x18] sm:$0xff]
        %v3462 = vld [vmem:[#allocation3 + $0x20] sm:$0xff]
        %v3463 = vld [vmem:[#allocation3 + $0x28] sm:$0x3]
        %v3464 = vld [vmem:[#allocation3 + $0x30] sm:$0xff]
        %v3465 = vld [vmem:[#allocation3 + $0x38] sm:$0xff]
        %v3466 = vld [vmem:[#allocation3 + $0x40] sm:$0x3]
        %v3467 = vld [vmem:[#allocation3 + $0x48] sm:$0xff]
        %v3468 = vld [vmem:[#allocation3 + $0x50] sm:$0xff]
        %v3469 = vld [vmem:[#allocation3 + $0x58] sm:$0x3]
        %v3470 = vld [vmem:[#allocation3 + $0x60] sm:$0xff]
        %v3471 = vld [vmem:[#allocation3 + $0x68] sm:$0xff]
        %v3472 = vld [vmem:[#allocation3 + $0x70] sm:$0x3]
        %v3473 = vld [vmem:[#allocation3 + $0x78] sm:$0xff]
        %v3474 = vld [vmem:[#allocation3 + $0x80] sm:$0xff]
        %v3475 = vld [vmem:[#allocation3 + $0x88] sm:$0x3]
        %v3476 = vld [vmem:[#allocation3 + $0x90] sm:$0xff]
        %v3477 = vld [vmem:[#allocation3 + $0x98] sm:$0xff]
        %v3478 = vld [vmem:[#allocation3 + $0xa0] sm:$0x3]
        %v3479 = vld [vmem:[#allocation3 + $0xa8] sm:$0xff]
        %v3480 = vld [vmem:[#allocation3 + $0xb0] sm:$0xff]
        %v3481 = vld [vmem:[#allocation3 + $0xb8] sm:$0x3]
        %v3482 = vld [vmem:[#allocation3 + $0xc0] sm:$0xff]
        %v3483 = vld [vmem:[#allocation3 + $0xc8] sm:$0xff]
        %v3484 = vld [vmem:[#allocation3 + $0xd0] sm:$0x3]
        %v3485 = vld [vmem:[#allocation3 + $0xd8] sm:$0xff]
        %v3486 = vld [vmem:[#allocation3 + $0xe0] sm:$0xff]
        %v3487 = vld [vmem:[#allocation3 + $0xe8] sm:$0x3]
        %v3488 = vld [vmem:[#allocation3 + $0xf0] sm:$0xff]
        %v3489 = vld [vmem:[#allocation3 + $0xf8] sm:$0xff]
        %v3490 = vld [vmem:[#allocation3 + $0x100] sm:$0x3]
        %v3491 = vld [vmem:[#allocation3 + $0x108] sm:$0xff]
        %v3492 = vld [vmem:[#allocation3 + $0x110] sm:$0xff]
        %v3493 = vld [vmem:[#allocation3 + $0x118] sm:$0x3]
        %v3494 = vld [vmem:[#allocation3 + $0x120] sm:$0xff]
        %v3495 = vld [vmem:[#allocation3 + $0x128] sm:$0xff]
        %v3496 = vld [vmem:[#allocation3 + $0x130] sm:$0x3]
        %v3497 = vld [vmem:[#allocation3 + $0x138] sm:$0xff]
        %v3498 = vld [vmem:[#allocation3 + $0x140] sm:$0xff]
        %v3499 = vld [vmem:[#allocation3 + $0x148] sm:$0x3]
        %v3500 = vld [vmem:[#allocation3 + $0x150] sm:$0xff]
        %v3501 = vld [vmem:[#allocation3 + $0x158] sm:$0xff]
        %v3502 = vld [vmem:[#allocation3 + $0x160] sm:$0x3]
        %v3503 = vld [vmem:[#allocation3 + $0x168] sm:$0xff]
        %v3504 = vld [vmem:[#allocation3 + $0x170] sm:$0xff]
        %v3505 = vld [vmem:[#allocation3 + $0x178] sm:$0x3]
        %v3506 = vld [vmem:[#allocation3 + $0x180] sm:$0xff]
        %v3507 = vld [vmem:[#allocation3 + $0x188] sm:$0xff]
        %v3508 = vld [vmem:[#allocation3 + $0x190] sm:$0x3]
        %v3509 = vld [vmem:[#allocation3 + $0x198] sm:$0xff]
        %v3510 = vld [vmem:[#allocation3 + $0x1a0] sm:$0xff]
        %v3511 = vld [vmem:[#allocation3 + $0x1a8] sm:$0x3]
        %v3512 = vld [vmem:[%s2] sm:$0xff]
        %v3513 = vld [vmem:[%s2 + $0x8] sm:$0xff]
        %v3514 = vld [vmem:[%s2 + $0x10] sm:$0xff]
        %v3515 = vld [vmem:[%s2 + $0x18] sm:$0xff]
        %v3516 = vld [vmem:[%s2 + $0x20] sm:$0xff]
        %v3517 = vld [vmem:[%s2 + $0x28] sm:$0xff]
        %v3518 = vld [vmem:[%s2 + $0x30] sm:$0xff]
        %v3519 = vld [vmem:[%s2 + $0x38] sm:$0xff]
        %v3520 = vld [vmem:[%s2 + $0x40] sm:$0xff]
        %v3569 = vrot.slane %v3458, 1
        %v3570 = vrot.slane %v3459, 1
        %v3571 = vsel %vm471, %v3569, %v3570
        %v3572 = vrot.slane %v3460, 1
        %v3573 = vsel %vm471, %v3570, %v3572
        %v3574 = vrot.slane %v3461, 1
        %v3575 = vrot.slane %v3462, 1
        %v3576 = vsel %vm471, %v3574, %v3575
        %v3577 = vrot.slane %v3463, 1
        %v3578 = vsel %vm471, %v3575, %v3577
        %v3579 = vrot.slane %v3464, 1
        %v3580 = vrot.slane %v3465, 1
        %v3581 = vsel %vm471, %v3579, %v3580
        %v3582 = vrot.slane %v3466, 1
        %v3583 = vsel %vm471, %v3580, %v3582
        %v3584 = vrot.slane %v3467, 1
        %v3585 = vrot.slane %v3468, 1
        %v3586 = vsel %vm471, %v3584, %v3585
        %v3587 = vrot.slane %v3469, 1
        %v3588 = vsel %vm471, %v3585, %v3587
        %v3589 = vrot.slane %v3470, 1
        %v3590 = vrot.slane %v3471, 1
        %v3591 = vsel %vm471, %v3589, %v3590
        %v3592 = vrot.slane %v3472, 1
        %v3593 = vsel %vm471, %v3590, %v3592
        %v3594 = vrot.slane %v3473, 1
        %v3595 = vrot.slane %v3474, 1
        %v3596 = vsel %vm471, %v3594, %v3595
        %v3597 = vrot.slane %v3475, 1
        %v3598 = vsel %vm471, %v3595, %v3597
        %v3599 = vrot.slane %v3476, 1
        %v3600 = vrot.slane %v3477, 1
        %v3601 = vsel %vm471, %v3599, %v3600
        %v3602 = vrot.slane %v3478, 1
        %v3603 = vsel %vm471, %v3600, %v3602
        %v3604 = vrot.slane %v3479, 1
        %v3605 = vrot.slane %v3480, 1
        %v3606 = vsel %vm471, %v3604, %v3605
        %v3607 = vrot.slane %v3481, 1
        %v3608 = vsel %vm471, %v3605, %v3607
        %v3609 = vrot.slane %v3482, 1
        %v3610 = vrot.slane %v3483, 1
        %v3611 = vsel %vm471, %v3609, %v3610
        %v3612 = vrot.slane %v3484, 1
        %v3613 = vsel %vm471, %v3610, %v3612
        %v3614 = vrot.slane %v3485, 1
        %v3615 = vrot.slane %v3486, 1
        %v3616 = vsel %vm471, %v3614, %v3615
        %v3617 = vrot.slane %v3487, 1
        %v3618 = vsel %vm471, %v3615, %v3617
        %v3619 = vrot.slane %v3488, 1
        %v3620 = vrot.slane %v3489, 1
        %v3621 = vsel %vm471, %v3619, %v3620
        %v3622 = vrot.slane %v3490, 1
        %v3623 = vsel %vm471, %v3620, %v3622
        %v3624 = vrot.slane %v3491, 1
        %v3625 = vrot.slane %v3492, 1
        %v3626 = vsel %vm471, %v3624, %v3625
        %v3627 = vrot.slane %v3493, 1
        %v3628 = vsel %vm471, %v3625, %v3627
        %v3629 = vrot.slane %v3494, 1
        %v3630 = vrot.slane %v3495, 1
        %v3631 = vsel %vm471, %v3629, %v3630
        %v3632 = vrot.slane %v3496, 1
        %v3633 = vsel %vm471, %v3630, %v3632
        %v3634 = vrot.slane %v3497, 1
        %v3635 = vrot.slane %v3498, 1
        %v3636 = vsel %vm471, %v3634, %v3635
        %v3637 = vrot.slane %v3499, 1
        %v3638 = vsel %vm471, %v3635, %v3637
        %v3639 = vrot.slane %v3500, 1
        %v3640 = vrot.slane %v3501, 1
        %v3641 = vsel %vm471, %v3639, %v3640
        %v3642 = vrot.slane %v3502, 1
        %v3643 = vsel %vm471, %v3640, %v3642
        %v3644 = vrot.slane %v3503, 1
        %v3645 = vrot.slane %v3504, 1
        %v3646 = vsel %vm471, %v3644, %v3645
        %v3647 = vrot.slane %v3505, 1
        %v3648 = vsel %vm471, %v3645, %v3647
        %v3649 = vsel %vm253, %v3571, 0
        %v3651 = vsel %vm253, %v3573, 0
        %v3653 = vsel %vm253, %v3576, 0
        %v3655 = vsel %vm253, %v3578, 0
        %v3657 = vsel %vm253, %v3581, 0
        %v3659 = vsel %vm253, %v3583, 0
        %v3661 = vsel %vm253, %v3586, 0
        %v3663 = vsel %vm253, %v3588, 0
        %v3665 = vsel %vm253, %v3591, 0
        %v3667 = vsel %vm253, %v3593, 0
        %v3669 = vsel %vm253, %v3596, 0
        %v3671 = vsel %vm253, %v3598, 0
        %v3673 = vsel %vm253, %v3601, 0
        %v3675 = vsel %vm253, %v3603, 0
        %v3677 = vsel %vm253, %v3606, 0
        %v3679 = vsel %vm253, %v3608, 0
        %v3681 = vsel %vm253, %v3611, 0
        %v3683 = vsel %vm253, %v3613, 0
        %v3685 = vsel %vm253, %v3616, 0
        %v3687 = vsel %vm253, %v3618, 0
        %v3689 = vsel %vm253, %v3621, 0
        %v3691 = vsel %vm253, %v3623, 0
        %v3693 = vsel %vm253, %v3626, 0
        %v3695 = vsel %vm253, %v3628, 0
        %v3697 = vsel %vm253, %v3631, 0
        %v3699 = vsel %vm253, %v3633, 0
        %v3701 = vsel %vm253, %v3636, 0
        %v3703 = vsel %vm253, %v3638, 0
        %v3705 = vsel %vm253, %v3641, 0
        %v3707 = vsel %vm253, %v3643, 0
        %v3709 = vsel %vm253, %v3646, 0
        %v3711 = vsel %vm253, %v3648, 0
        %3713 = vmatprep.subr.mxu0 0.0
        %3714 = vmatpush1.msra.mxu0 %v3513
        %3715 = vmatprep.subr.mxu0 0.0
        %3716 = vmatpush1.msra.mxu0 0.0
        %3717 = vmatprep.subr.mxu0 0.0
        %3718 = vmatpush1.msra.mxu0 0.0
        %3719 = vmatprep.subr.mxu0 0.0
        %3720 = vmatpush1.msra.mxu0 0.0
        %3721 = vmatprep.subr.mxu0 0.0
        %3722 = vmatpush1.msra.mxu0 0.0
        %3723 = vmatprep.subr.mxu0 0.0
        %3724 = vmatpush1.msra.mxu0 0.0
        %3725 = vmatprep.subr.mxu0 0.0
        %3726 = vmatpush1.msra.mxu0 0.0
        %3727 = vmatprep.subr.mxu0 0.0
        %3728 = vmatpush1.msra.mxu0 0.0
        %3729 = vmatprep.subr.mxu0 0.0
        %3730 = vmatpush1.msra.mxu0 0.0
        %3731 = vmatprep.subr.mxu0 0.0
        %3732 = vmatpush1.msra.mxu0 0.0
        %3733 = vmatprep.subr.mxu0 0.0
        %3734 = vmatpush1.msra.mxu0 0.0
        %3735 = vmatprep.subr.mxu0 0.0
        %3736 = vmatpush1.msra.mxu0 0.0
        %3737 = vmatprep.subr.mxu0 0.0
        %3738 = vmatpush1.msra.mxu0 0.0
        %3739 = vmatprep.subr.mxu0 0.0
        %3740 = vmatpush1.msra.mxu0 0.0
        %3741 = vmatprep.subr.mxu0 0.0
        %3742 = vmatpush1.msra.mxu0 0.0
        %3743 = vmatprep.subr.mxu0 0.0
        %3744 = vmatpush1.msra.mxu0 0.0
        %3745 = vmatprep.subr.mxu0 0.0
        %3746 = vmatpush1.msra.mxu0 0.0
        %3747 = vmatprep.subr.mxu0 0.0
        %3748 = vmatpush1.msra.mxu0 0.0
        %3749 = vmatprep.subr.mxu0 0.0
        %3750 = vmatpush1.msra.mxu0 0.0
        %3751 = vmatprep.subr.mxu0 0.0
        %3752 = vmatpush1.msra.mxu0 0.0
        %3753 = vmatprep.subr.mxu0 0.0
        %3754 = vmatpush1.msra.mxu0 0.0
        %3755 = vmatprep.subr.mxu0 0.0
        %3756 = vmatpush1.msra.mxu0 0.0
        %3757 = vmatprep.subr.mxu0 0.0
        %3758 = vmatpush1.msra.mxu0 0.0
        %3759 = vmatprep.subr.mxu0 0.0
        %3760 = vmatpush1.msra.mxu0 0.0
        %3761 = vmatprep.subr.mxu0 0.0
        %3762 = vmatpush1.msra.mxu0 0.0
        %3763 = vmatprep.subr.mxu0 0.0
        %3764 = vmatpush1.msra.mxu0 0.0
        %3765 = vmatprep.subr.mxu0 0.0
        %3766 = vmatpush1.msra.mxu0 0.0
        %3767 = vmatprep.subr.mxu0 0.0
        %3768 = vmatpush1.msra.mxu0 0.0
        %3769 = vmatprep.subr.mxu0 0.0
        %3770 = vmatpush1.msra.mxu0 0.0
        %3771 = vmatprep.subr.mxu0 0.0
        %3772 = vmatpush1.msra.mxu0 0.0
        %3773 = vmatprep.subr.mxu0 0.0
        %3774 = vmatpush1.msra.mxu0 0.0
        %3775 = vmatprep.subr.mxu0 0.0
        %3776 = vmatpush1.msra.mxu0 0.0
        %3777 = vmatprep.mubr.f32.mxu0 0.0
        %3778 = vmatmul.mubr.f32.gmra.mrb[0].mxu0 %v3649
        %v3779 = vpop.f32.mrb[0].mxu0
        %v3780 = vadd.f32 0.0, %v3779
        %v3781 = vpop.f32.mrb[0].mxu0
        %3782 = vmatprep.mubr.f32.mxu0 0.0
        %3783 = vmatmul.mubr.f32.gmra.mrb[0].mxu0 %v3651
        %v3784 = vpop.f32.mrb[0].mxu0
        %v3785 = vadd.f32 0.0, %v3784
        %v3786 = vpop.f32.mrb[0].mxu0
        %3787 = vmatprep.mubr.f32.mxu0 0.0
        %3788 = vmatmul.mubr.f32.gmra.mrb[0].mxu0 %v3653
        %v3789 = vpop.f32.mrb[0].mxu0
        %v3790 = vadd.f32 0.0, %v3789
        %v3791 = vpop.f32.mrb[0].mxu0
        %3792 = vmatprep.mubr.f32.mxu0 0.0
        %3793 = vmatmul.mubr.f32.gmra.mrb[0].mxu0 %v3655
        %v3794 = vpop.f32.mrb[0].mxu0
        %v3795 = vadd.f32 0.0, %v3794
        %v3796 = vpop.f32.mrb[0].mxu0
        %3797 = vmatprep.mubr.f32.mxu0 0.0
        %3798 = vmatmul.mubr.f32.gmra.mrb[0].mxu0 %v3657
        %v3799 = vpop.f32.mrb[0].mxu0
        %v3800 = vadd.f32 0.0, %v3799
        %v3801 = vpop.f32.mrb[0].mxu0
        %3802 = vmatprep.mubr.f32.mxu0 0.0
        %3803 = vmatmul.mubr.f32.gmra.mrb[0].mxu0 %v3659
        %v3804 = vpop.f32.mrb[0].mxu0
        %v3805 = vadd.f32 0.0, %v3804
        %v3806 = vpop.f32.mrb[0].mxu0
        %3807 = vmatprep.mubr.f32.mxu0 0.0
        %3808 = vmatmul.mubr.f32.gmra.mrb[0].mxu0 %v3661
        %v3809 = vpop.f32.mrb[0].mxu0
        %v3810 = vadd.f32 0.0, %v3809
        %v3811 = vpop.f32.mrb[0].mxu0
        %3812 = vmatprep.mubr.f32.mxu0 0.0
        %3813 = vmatmul.mubr.f32.gmra.mrb[0].mxu0 %v3663
        %v3814 = vpop.f32.mrb[0].mxu0
        %v3815 = vadd.f32 0.0, %v3814
        %v3816 = vpop.f32.mrb[0].mxu0
        %3817 = vmatprep.mubr.f32.mxu0 0.0
        %3818 = vmatmul.mubr.f32.gmra.mrb[0].mxu0 %v3665
        %v3819 = vpop.f32.mrb[0].mxu0
        %v3820 = vadd.f32 0.0, %v3819
        %v3821 = vpop.f32.mrb[0].mxu0
        %3822 = vmatprep.mubr.f32.mxu0 0.0
        %3823 = vmatmul.mubr.f32.gmra.mrb[0].mxu0 %v3667
        %v3824 = vpop.f32.mrb[0].mxu0
        %v3825 = vadd.f32 0.0, %v3824
        %v3826 = vpop.f32.mrb[0].mxu0
        %3827 = vmatprep.mubr.f32.mxu0 0.0
        %3828 = vmatmul.mubr.f32.gmra.mrb[0].mxu0 %v3669
        %v3829 = vpop.f32.mrb[0].mxu0
        %v3830 = vadd.f32 0.0, %v3829
        %v3831 = vpop.f32.mrb[0].mxu0
        %3832 = vmatprep.mubr.f32.mxu0 0.0
        %3833 = vmatmul.mubr.f32.gmra.mrb[0].mxu0 %v3671
        %v3834 = vpop.f32.mrb[0].mxu0
        %v3835 = vadd.f32 0.0, %v3834
        %v3836 = vpop.f32.mrb[0].mxu0
        %3837 = vmatprep.mubr.f32.mxu0 0.0
        %3838 = vmatmul.mubr.f32.gmra.mrb[0].mxu0 %v3673
        %v3839 = vpop.f32.mrb[0].mxu0
        %v3840 = vadd.f32 0.0, %v3839
        %v3841 = vpop.f32.mrb[0].mxu0
        %3842 = vmatprep.mubr.f32.mxu0 0.0
        %3843 = vmatmul.mubr.f32.gmra.mrb[0].mxu0 %v3675
        %v3844 = vpop.f32.mrb[0].mxu0
        %v3845 = vadd.f32 0.0, %v3844
        %v3846 = vpop.f32.mrb[0].mxu0
        %3847 = vmatprep.mubr.f32.mxu0 0.0
        %3848 = vmatmul.mubr.f32.gmra.mrb[0].mxu0 %v3677
        %v3849 = vpop.f32.mrb[0].mxu0
        %v3850 = vadd.f32 0.0, %v3849
        %v3851 = vpop.f32.mrb[0].mxu0
        %3852 = vmatprep.mubr.f32.mxu0 0.0
        %3853 = vmatmul.mubr.f32.gmra.mrb[0].mxu0 %v3679
        %v3854 = vpop.f32.mrb[0].mxu0
        %v3855 = vadd.f32 0.0, %v3854
        %v3856 = vpop.f32.mrb[0].mxu0
        %3857 = vmatprep.mubr.f32.mxu0 0.0
        %3858 = vmatmul.mubr.f32.gmra.mrb[0].mxu0 %v3681
        %v3859 = vpop.f32.mrb[0].mxu0
        %v3860 = vadd.f32 0.0, %v3859
        %v3861 = vpop.f32.mrb[0].mxu0
        %3862 = vmatprep.mubr.f32.mxu0 0.0
        %3863 = vmatmul.mubr.f32.gmra.mrb[0].mxu0 %v3683
        %v3864 = vpop.f32.mrb[0].mxu0
        %v3865 = vadd.f32 0.0, %v3864
        %v3866 = vpop.f32.mrb[0].mxu0
        %3867 = vmatprep.mubr.f32.mxu0 0.0
        %3868 = vmatmul.mubr.f32.gmra.mrb[0].mxu0 %v3685
        %v3869 = vpop.f32.mrb[0].mxu0
        %v3870 = vadd.f32 0.0, %v3869
        %v3871 = vpop.f32.mrb[0].mxu0
        %3872 = vmatprep.mubr.f32.mxu0 0.0
        %3873 = vmatmul.mubr.f32.gmra.mrb[0].mxu0 %v3687
        %v3874 = vpop.f32.mrb[0].mxu0
        %v3875 = vadd.f32 0.0, %v3874
        %v3876 = vpop.f32.mrb[0].mxu0
        %3877 = vmatprep.mubr.f32.mxu0 0.0
        %3878 = vmatmul.mubr.f32.gmra.mrb[0].mxu0 %v3689
        %v3879 = vpop.f32.mrb[0].mxu0
        %v3880 = vadd.f32 0.0, %v3879
        %v3881 = vpop.f32.mrb[0].mxu0
        %3882 = vmatprep.mubr.f32.mxu0 0.0
        %3883 = vmatmul.mubr.f32.gmra.mrb[0].mxu0 %v3691
        %v3884 = vpop.f32.mrb[0].mxu0
        %v3885 = vadd.f32 0.0, %v3884
        %v3886 = vpop.f32.mrb[0].mxu0
        %3887 = vmatprep.mubr.f32.mxu0 0.0
        %3888 = vmatmul.mubr.f32.gmra.mrb[0].mxu0 %v3693
        %v3889 = vpop.f32.mrb[0].mxu0
        %v3890 = vadd.f32 0.0, %v3889
        %v3891 = vpop.f32.mrb[0].mxu0
        %3892 = vmatprep.mubr.f32.mxu0 0.0
        %3893 = vmatmul.mubr.f32.gmra.mrb[0].mxu0 %v3695
        %v3894 = vpop.f32.mrb[0].mxu0
        %v3895 = vadd.f32 0.0, %v3894
        %v3896 = vpop.f32.mrb[0].mxu0
        %3897 = vmatprep.mubr.f32.mxu0 0.0
        %3898 = vmatmul.mubr.f32.gmra.mrb[0].mxu0 %v3697
        %v3899 = vpop.f32.mrb[0].mxu0
        %v3900 = vadd.f32 0.0, %v3899
        %v3901 = vpop.f32.mrb[0].mxu0
        %3902 = vmatprep.mubr.f32.mxu0 0.0
        %3903 = vmatmul.mubr.f32.gmra.mrb[0].mxu0 %v3699
        %v3904 = vpop.f32.mrb[0].mxu0
        %v3905 = vadd.f32 0.0, %v3904
        %v3906 = vpop.f32.mrb[0].mxu0
        %3907 = vmatprep.mubr.f32.mxu0 0.0
        %3908 = vmatmul.mubr.f32.gmra.mrb[0].mxu0 %v3701
        %v3909 = vpop.f32.mrb[0].mxu0
        %v3910 = vadd.f32 0.0, %v3909
        %v3911 = vpop.f32.mrb[0].mxu0
        %3912 = vmatprep.mubr.f32.mxu0 0.0
        %3913 = vmatmul.mubr.f32.gmra.mrb[0].mxu0 %v3703
        %v3914 = vpop.f32.mrb[0].mxu0
        %v3915 = vadd.f32 0.0, %v3914
        %v3916 = vpop.f32.mrb[0].mxu0
        %3917 = vmatprep.mubr.f32.mxu0 0.0
        %3918 = vmatmul.mubr.f32.gmra.mrb[0].mxu0 %v3705
        %v3919 = vpop.f32.mrb[0].mxu0
        %v3920 = vadd.f32 0.0, %v3919
        %v3921 = vpop.f32.mrb[0].mxu0
        %3922 = vmatprep.mubr.f32.mxu0 0.0
        %3923 = vmatmul.mubr.f32.gmra.mrb[0].mxu0 %v3707
        %v3924 = vpop.f32.mrb[0].mxu0
        %v3925 = vadd.f32 0.0, %v3924
        %v3926 = vpop.f32.mrb[0].mxu0
        %3927 = vmatprep.mubr.f32.mxu0 0.0
        %3928 = vmatmul.mubr.f32.gmra.mrb[0].mxu0 %v3709
        %v3929 = vpop.f32.mrb[0].mxu0
        %v3930 = vadd.f32 0.0, %v3929
        %v3931 = vpop.f32.mrb[0].mxu0
        %3932 = vmatprep.mubr.f32.mxu0 0.0
        %3933 = vmatmul.mubr.f32.gmra.mrb[0].mxu0 %v3711
        %v3934 = vpop.f32.mrb[0].mxu0
        %v3935 = vadd.f32 0.0, %v3934
        %v3936 = vpop.f32.mrb[0].mxu0
        %3937 = vdwg.mxu0
        %v3938 = vsel %vm253, %v3458, 0
        %v3940 = vsel %vm253, %v3459, 0
        %v3942 = vsel %vm253, %v3461, 0
        %v3944 = vsel %vm253, %v3462, 0
        %v3946 = vsel %vm253, %v3464, 0
        %v3948 = vsel %vm253, %v3465, 0
        %v3950 = vsel %vm253, %v3467, 0
        %v3952 = vsel %vm253, %v3468, 0
        %v3954 = vsel %vm253, %v3470, 0
        %v3956 = vsel %vm253, %v3471, 0
        %v3958 = vsel %vm253, %v3473, 0
        %v3960 = vsel %vm253, %v3474, 0
        %v3962 = vsel %vm253, %v3476, 0
        %v3964 = vsel %vm253, %v3477, 0
        %v3966 = vsel %vm253, %v3479, 0
        %v3968 = vsel %vm253, %v3480, 0
        %v3970 = vsel %vm253, %v3482, 0
        %v3972 = vsel %vm253, %v3483, 0
        %v3974 = vsel %vm253, %v3485, 0
        %v3976 = vsel %vm253, %v3486, 0
        %v3978 = vsel %vm253, %v3488, 0
        %v3980 = vsel %vm253, %v3489, 0
        %v3982 = vsel %vm253, %v3491, 0
        %v3984 = vsel %vm253, %v3492, 0
        %v3986 = vsel %vm253, %v3494, 0
        %v3988 = vsel %vm253, %v3495, 0
        %v3990 = vsel %vm253, %v3497, 0
        %v3992 = vsel %vm253, %v3498, 0
        %v3994 = vsel %vm253, %v3500, 0
        %v3996 = vsel %vm253, %v3501, 0
        %v3998 = vsel %vm253, %v3503, 0
        %v4000 = vsel %vm253, %v3504, 0
        %4002 = vmatprep.subr.mxu0 0.0
        %4003 = vmatpush1.msra.mxu0 %v3512
        %4004 = vmatprep.subr.mxu0 0.0
        %4005 = vmatpush1.msra.mxu0 0.0
        %4006 = vmatprep.subr.mxu0 0.0
        %4007 = vmatpush1.msra.mxu0 0.0
        %4008 = vmatprep.subr.mxu0 0.0
        %4009 = vmatpush1.msra.mxu0 0.0
        %4010 = vmatprep.subr.mxu0 0.0
        %4011 = vmatpush1.msra.mxu0 0.0
        %4012 = vmatprep.subr.mxu0 0.0
        %4013 = vmatpush1.msra.mxu0 0.0
        %4014 = vmatprep.subr.mxu0 0.0
        %4015 = vmatpush1.msra.mxu0 0.0
        %4016 = vmatprep.subr.mxu0 0.0
        %4017 = vmatpush1.msra.mxu0 0.0
        %4018 = vmatprep.subr.mxu0 0.0
        %4019 = vmatpush1.msra.mxu0 0.0
        %4020 = vmatprep.subr.mxu0 0.0
        %4021 = vmatpush1.msra.mxu0 0.0
        %4022 = vmatprep.subr.mxu0 0.0
        %4023 = vmatpush1.msra.mxu0 0.0
        %4024 = vmatprep.subr.mxu0 0.0
        %4025 = vmatpush1.msra.mxu0 0.0
        %4026 = vmatprep.subr.mxu0 0.0
        %4027 = vmatpush1.msra.mxu0 0.0
        %4028 = vmatprep.subr.mxu0 0.0
        %4029 = vmatpush1.msra.mxu0 0.0
        %4030 = vmatprep.subr.mxu0 0.0
        %4031 = vmatpush1.msra.mxu0 0.0
        %4032 = vmatprep.subr.mxu0 0.0
        %4033 = vmatpush1.msra.mxu0 0.0
        %4034 = vmatprep.subr.mxu0 0.0
        %4035 = vmatpush1.msra.mxu0 0.0
        %4036 = vmatprep.subr.mxu0 0.0
        %4037 = vmatpush1.msra.mxu0 0.0
        %4038 = vmatprep.subr.mxu0 0.0
        %4039 = vmatpush1.msra.mxu0 0.0
        %4040 = vmatprep.subr.mxu0 0.0
        %4041 = vmatpush1.msra.mxu0 0.0
        %4042 = vmatprep.subr.mxu0 0.0
        %4043 = vmatpush1.msra.mxu0 0.0
        %4044 = vmatprep.subr.mxu0 0.0
        %4045 = vmatpush1.msra.mxu0 0.0
        %4046 = vmatprep.subr.mxu0 0.0
        %4047 = vmatpush1.msra.mxu0 0.0
        %4048 = vmatprep.subr.mxu0 0.0
        %4049 = vmatpush1.msra.mxu0 0.0
        %4050 = vmatprep.subr.mxu0 0.0
        %4051 = vmatpush1.msra.mxu0 0.0
        %4052 = vmatprep.subr.mxu0 0.0
        %4053 = vmatpush1.msra.mxu0 0.0
        %4054 = vmatprep.subr.mxu0 0.0
        %4055 = vmatpush1.msra.mxu0 0.0
        %4056 = vmatprep.subr.mxu0 0.0
        %4057 = vmatpush1.msra.mxu0 0.0
        %4058 = vmatprep.subr.mxu0 0.0
        %4059 = vmatpush1.msra.mxu0 0.0
        %4060 = vmatprep.subr.mxu0 0.0
        %4061 = vmatpush1.msra.mxu0 0.0
        %4062 = vmatprep.subr.mxu0 0.0
        %4063 = vmatpush1.msra.mxu0 0.0
        %4064 = vmatprep.subr.mxu0 0.0
        %4065 = vmatpush1.msra.mxu0 0.0
        %4066 = vmatprep.mubr.f32.mxu0 0.0
        %4067 = vmatmul.mubr.f32.gmra.mrb[0].mxu0 %v3938
        %v4068 = vpop.f32.mrb[0].mxu0
        %v4069 = vadd.f32 %v3780, %v4068
        %v4070 = vpop.f32.mrb[0].mxu0
        %4071 = vmatprep.mubr.f32.mxu0 0.0
        %4072 = vmatmul.mubr.f32.gmra.mrb[0].mxu0 %v3940
        %v4073 = vpop.f32.mrb[0].mxu0
        %v4074 = vadd.f32 %v3785, %v4073
        %v4075 = vpop.f32.mrb[0].mxu0
        %4076 = vmatprep.mubr.f32.mxu0 0.0
        %4077 = vmatmul.mubr.f32.gmra.mrb[0].mxu0 %v3942
        %v4078 = vpop.f32.mrb[0].mxu0
        %v4079 = vadd.f32 %v3790, %v4078
        %v4080 = vpop.f32.mrb[0].mxu0
        %4081 = vmatprep.mubr.f32.mxu0 0.0
        %4082 = vmatmul.mubr.f32.gmra.mrb[0].mxu0 %v3944
        %v4083 = vpop.f32.mrb[0].mxu0
        %v4084 = vadd.f32 %v3795, %v4083
        %v4085 = vpop.f32.mrb[0].mxu0
        %4086 = vmatprep.mubr.f32.mxu0 0.0
        %4087 = vmatmul.mubr.f32.gmra.mrb[0].mxu0 %v3946
        %v4088 = vpop.f32.mrb[0].mxu0
        %v4089 = vadd.f32 %v3800, %v4088
        %v4090 = vpop.f32.mrb[0].mxu0
        %4091 = vmatprep.mubr.f32.mxu0 0.0
        %4092 = vmatmul.mubr.f32.gmra.mrb[0].mxu0 %v3948
        %v4093 = vpop.f32.mrb[0].mxu0
        %v4094 = vadd.f32 %v3805, %v4093
        %v4095 = vpop.f32.mrb[0].mxu0
        %4096 = vmatprep.mubr.f32.mxu0 0.0
        %4097 = vmatmul.mubr.f32.gmra.mrb[0].mxu0 %v3950
        %v4098 = vpop.f32.mrb[0].mxu0
        %v4099 = vadd.f32 %v3810, %v4098
        %v4100 = vpop.f32.mrb[0].mxu0
        %4101 = vmatprep.mubr.f32.mxu0 0.0
        %4102 = vmatmul.mubr.f32.gmra.mrb[0].mxu0 %v3952
        %v4103 = vpop.f32.mrb[0].mxu0
        %v4104 = vadd.f32 %v3815, %v4103
        %v4105 = vpop.f32.mrb[0].mxu0
        %4106 = vmatprep.mubr.f32.mxu0 0.0
        %4107 = vmatmul.mubr.f32.gmra.mrb[0].mxu0 %v3954
        %v4108 = vpop.f32.mrb[0].mxu0
        %v4109 = vadd.f32 %v3820, %v4108
        %v4110 = vpop.f32.mrb[0].mxu0
        %4111 = vmatprep.mubr.f32.mxu0 0.0
        %4112 = vmatmul.mubr.f32.gmra.mrb[0].mxu0 %v3956
        %v4113 = vpop.f32.mrb[0].mxu0
        %v4114 = vadd.f32 %v3825, %v4113
        %v4115 = vpop.f32.mrb[0].mxu0
        %4116 = vmatprep.mubr.f32.mxu0 0.0
        %4117 = vmatmul.mubr.f32.gmra.mrb[0].mxu0 %v3958
        %v4118 = vpop.f32.mrb[0].mxu0
        %v4119 = vadd.f32 %v3830, %v4118
        %v4120 = vpop.f32.mrb[0].mxu0
        %4121 = vmatprep.mubr.f32.mxu0 0.0
        %4122 = vmatmul.mubr.f32.gmra.mrb[0].mxu0 %v3960
        %v4123 = vpop.f32.mrb[0].mxu0
        %v4124 = vadd.f32 %v3835, %v4123
        %v4125 = vpop.f32.mrb[0].mxu0
        %4126 = vmatprep.mubr.f32.mxu0 0.0
        %4127 = vmatmul.mubr.f32.gmra.mrb[0].mxu0 %v3962
        %v4128 = vpop.f32.mrb[0].mxu0
        %v4129 = vadd.f32 %v3840, %v4128
        %v4130 = vpop.f32.mrb[0].mxu0
        %4131 = vmatprep.mubr.f32.mxu0 0.0
        %4132 = vmatmul.mubr.f32.gmra.mrb[0].mxu0 %v3964
        %v4133 = vpop.f32.mrb[0].mxu0
        %v4134 = vadd.f32 %v3845, %v4133
        %v4135 = vpop.f32.mrb[0].mxu0
        %4136 = vmatprep.mubr.f32.mxu0 0.0
        %4137 = vmatmul.mubr.f32.gmra.mrb[0].mxu0 %v3966
        %v4138 = vpop.f32.mrb[0].mxu0
        %v4139 = vadd.f32 %v3850, %v4138
        %v4140 = vpop.f32.mrb[0].mxu0
        %4141 = vmatprep.mubr.f32.mxu0 0.0
        %4142 = vmatmul.mubr.f32.gmra.mrb[0].mxu0 %v3968
        %v4143 = vpop.f32.mrb[0].mxu0
        %v4144 = vadd.f32 %v3855, %v4143
        %v4145 = vpop.f32.mrb[0].mxu0
        %4146 = vmatprep.mubr.f32.mxu0 0.0
        %4147 = vmatmul.mubr.f32.gmra.mrb[0].mxu0 %v3970
        %v4148 = vpop.f32.mrb[0].mxu0
        %v4149 = vadd.f32 %v3860, %v4148
        %v4150 = vpop.f32.mrb[0].mxu0
        %4151 = vmatprep.mubr.f32.mxu0 0.0
        %4152 = vmatmul.mubr.f32.gmra.mrb[0].mxu0 %v3972
        %v4153 = vpop.f32.mrb[0].mxu0
        %v4154 = vadd.f32 %v3865, %v4153
        %v4155 = vpop.f32.mrb[0].mxu0
        %4156 = vmatprep.mubr.f32.mxu0 0.0
        %4157 = vmatmul.mubr.f32.gmra.mrb[0].mxu0 %v3974
        %v4158 = vpop.f32.mrb[0].mxu0
        %v4159 = vadd.f32 %v3870, %v4158
        %v4160 = vpop.f32.mrb[0].mxu0
        %4161 = vmatprep.mubr.f32.mxu0 0.0
        %4162 = vmatmul.mubr.f32.gmra.mrb[0].mxu0 %v3976
        %v4163 = vpop.f32.mrb[0].mxu0
        %v4164 = vadd.f32 %v3875, %v4163
        %v4165 = vpop.f32.mrb[0].mxu0
        %4166 = vmatprep.mubr.f32.mxu0 0.0
        %4167 = vmatmul.mubr.f32.gmra.mrb[0].mxu0 %v3978
        %v4168 = vpop.f32.mrb[0].mxu0
        %v4169 = vadd.f32 %v3880, %v4168
        %v4170 = vpop.f32.mrb[0].mxu0
        %4171 = vmatprep.mubr.f32.mxu0 0.0
        %4172 = vmatmul.mubr.f32.gmra.mrb[0].mxu0 %v3980
        %v4173 = vpop.f32.mrb[0].mxu0
        %v4174 = vadd.f32 %v3885, %v4173
        %v4175 = vpop.f32.mrb[0].mxu0
        %4176 = vmatprep.mubr.f32.mxu0 0.0
        %4177 = vmatmul.mubr.f32.gmra.mrb[0].mxu0 %v3982
        %v4178 = vpop.f32.mrb[0].mxu0
        %v4179 = vadd.f32 %v3890, %v4178
        %v4180 = vpop.f32.mrb[0].mxu0
        %4181 = vmatprep.mubr.f32.mxu0 0.0
        %4182 = vmatmul.mubr.f32.gmra.mrb[0].mxu0 %v3984
        %v4183 = vpop.f32.mrb[0].mxu0
        %v4184 = vadd.f32 %v3895, %v4183
        %v4185 = vpop.f32.mrb[0].mxu0
        %4186 = vmatprep.mubr.f32.mxu0 0.0
        %4187 = vmatmul.mubr.f32.gmra.mrb[0].mxu0 %v3986
        %v4188 = vpop.f32.mrb[0].mxu0
        %v4189 = vadd.f32 %v3900, %v4188
        %v4190 = vpop.f32.mrb[0].mxu0
        %4191 = vmatprep.mubr.f32.mxu0 0.0
        %4192 = vmatmul.mubr.f32.gmra.mrb[0].mxu0 %v3988
        %v4193 = vpop.f32.mrb[0].mxu0
        %v4194 = vadd.f32 %v3905, %v4193
        %v4195 = vpop.f32.mrb[0].mxu0
        %4196 = vmatprep.mubr.f32.mxu0 0.0
        %4197 = vmatmul.mubr.f32.gmra.mrb[0].mxu0 %v3990
        %v4198 = vpop.f32.mrb[0].mxu0
        %v4199 = vadd.f32 %v3910, %v4198
        %v4200 = vpop.f32.mrb[0].mxu0
        %4201 = vmatprep.mubr.f32.mxu0 0.0
        %4202 = vmatmul.mubr.f32.gmra.mrb[0].mxu0 %v3992
        %v4203 = vpop.f32.mrb[0].mxu0
        %v4204 = vadd.f32 %v3915, %v4203
        %v4205 = vpop.f32.mrb[0].mxu0
        %4206 = vmatprep.mubr.f32.mxu0 0.0
        %4207 = vmatmul.mubr.f32.gmra.mrb[0].mxu0 %v3994
        %v4208 = vpop.f32.mrb[0].mxu0
        %v4209 = vadd.f32 %v3920, %v4208
        %v4210 = vpop.f32.mrb[0].mxu0
        %4211 = vmatprep.mubr.f32.mxu0 0.0
        %4212 = vmatmul.mubr.f32.gmra.mrb[0].mxu0 %v3996
        %v4213 = vpop.f32.mrb[0].mxu0
        %v4214 = vadd.f32 %v3925, %v4213
        %v4215 = vpop.f32.mrb[0].mxu0
        %4216 = vmatprep.mubr.f32.mxu0 0.0
        %4217 = vmatmul.mubr.f32.gmra.mrb[0].mxu0 %v3998
        %v4218 = vpop.f32.mrb[0].mxu0
        %v4219 = vadd.f32 %v3930, %v4218
        %v4220 = vpop.f32.mrb[0].mxu0
        %4221 = vmatprep.mubr.f32.mxu0 0.0
        %4222 = vmatmul.mubr.f32.gmra.mrb[0].mxu0 %v4000
        %v4223 = vpop.f32.mrb[0].mxu0
        %v4224 = vadd.f32 %v3935, %v4223
        %v4225 = vpop.f32.mrb[0].mxu0
        %4226 = vdwg.mxu0
        %v4227 = vrot.slane %v3458, 2
        %v4228 = vrot.slane %v3459, 2
        %v4229 = vsel %vm1137, %v4227, %v4228
        %v4230 = vrot.slane %v3460, 2
        %v4231 = vsel %vm1137, %v4228, %v4230
        %v4232 = vrot.slane %v3461, 2
        %v4233 = vrot.slane %v3462, 2
        %v4234 = vsel %vm1137, %v4232, %v4233
        %v4235 = vrot.slane %v3463, 2
        %v4236 = vsel %vm1137, %v4233, %v4235
        %v4237 = vrot.slane %v3464, 2
        %v4238 = vrot.slane %v3465, 2
        %v4239 = vsel %vm1137, %v4237, %v4238
        %v4240 = vrot.slane %v3466, 2
        %v4241 = vsel %vm1137, %v4238, %v4240
        %v4242 = vrot.slane %v3467, 2
        %v4243 = vrot.slane %v3468, 2
        %v4244 = vsel %vm1137, %v4242, %v4243
        %v4245 = vrot.slane %v3469, 2
        %v4246 = vsel %vm1137, %v4243, %v4245
        %v4247 = vrot.slane %v3470, 2
        %v4248 = vrot.slane %v3471, 2
        %v4249 = vsel %vm1137, %v4247, %v4248
        %v4250 = vrot.slane %v3472, 2
        %v4251 = vsel %vm1137, %v4248, %v4250
        %v4252 = vrot.slane %v3473, 2
        %v4253 = vrot.slane %v3474, 2
        %v4254 = vsel %vm1137, %v4252, %v4253
        %v4255 = vrot.slane %v3475, 2
        %v4256 = vsel %vm1137, %v4253, %v4255
        %v4257 = vrot.slane %v3476, 2
        %v4258 = vrot.slane %v3477, 2
        %v4259 = vsel %vm1137, %v4257, %v4258
        %v4260 = vrot.slane %v3478, 2
        %v4261 = vsel %vm1137, %v4258, %v4260
        %v4262 = vrot.slane %v3479, 2
        %v4263 = vrot.slane %v3480, 2
        %v4264 = vsel %vm1137, %v4262, %v4263
        %v4265 = vrot.slane %v3481, 2
        %v4266 = vsel %vm1137, %v4263, %v4265
        %v4267 = vrot.slane %v3482, 2
        %v4268 = vrot.slane %v3483, 2
        %v4269 = vsel %vm1137, %v4267, %v4268
        %v4270 = vrot.slane %v3484, 2
        %v4271 = vsel %vm1137, %v4268, %v4270
        %v4272 = vrot.slane %v3485, 2
        %v4273 = vrot.slane %v3486, 2
        %v4274 = vsel %vm1137, %v4272, %v4273
        %v4275 = vrot.slane %v3487, 2
        %v4276 = vsel %vm1137, %v4273, %v4275
        %v4277 = vrot.slane %v3488, 2
        %v4278 = vrot.slane %v3489, 2
        %v4279 = vsel %vm1137, %v4277, %v4278
        %v4280 = vrot.slane %v3490, 2
        %v4281 = vsel %vm1137, %v4278, %v4280
        %v4282 = vrot.slane %v3491, 2
        %v4283 = vrot.slane %v3492, 2
        %v4284 = vsel %vm1137, %v4282, %v4283
        %v4285 = vrot.slane %v3493, 2
        %v4286 = vsel %vm1137, %v4283, %v4285
        %v4287 = vrot.slane %v3494, 2
        %v4288 = vrot.slane %v3495, 2
        %v4289 = vsel %vm1137, %v4287, %v4288
        %v4290 = vrot.slane %v3496, 2
        %v4291 = vsel %vm1137, %v4288, %v4290
        %v4292 = vrot.slane %v3497, 2
        %v4293 = vrot.slane %v3498, 2
        %v4294 = vsel %vm1137, %v4292, %v4293
        %v4295 = vrot.slane %v3499, 2
        %v4296 = vsel %vm1137, %v4293, %v4295
        %v4297 = vrot.slane %v3500, 2
        %v4298 = vrot.slane %v3501, 2
        %v4299 = vsel %vm1137, %v4297, %v4298
        %v4300 = vrot.slane %v3502, 2
        %v4301 = vsel %vm1137, %v4298, %v4300
        %v4302 = vrot.slane %v3503, 2
        %v4303 = vrot.slane %v3504, 2
        %v4304 = vsel %vm1137, %v4302, %v4303
        %v4305 = vrot.slane %v3505, 2
        %v4306 = vsel %vm1137, %v4303, %v4305
        %v4307 = vsel %vm253, %v4229, 0
        %v4309 = vsel %vm253, %v4231, 0
        %v4311 = vsel %vm253, %v4234, 0
        %v4313 = vsel %vm253, %v4236, 0
        %v4315 = vsel %vm253, %v4239, 0
        %v4317 = vsel %vm253, %v4241, 0
        %v4319 = vsel %vm253, %v4244, 0
        %v4321 = vsel %vm253, %v4246, 0
        %v4323 = vsel %vm253, %v4249, 0
        %v4325 = vsel %vm253, %v4251, 0
        %v4327 = vsel %vm253, %v4254, 0
        %v4329 = vsel %vm253, %v4256, 0
        %v4331 = vsel %vm253, %v4259, 0
        %v4333 = vsel %vm253, %v4261, 0
        %v4335 = vsel %vm253, %v4264, 0
        %v4337 = vsel %vm253, %v4266, 0
        %v4339 = vsel %vm253, %v4269, 0
        %v4341 = vsel %vm253, %v4271, 0
        %v4343 = vsel %vm253, %v4274, 0
        %v4345 = vsel %vm253, %v4276, 0
        %v4347 = vsel %vm253, %v4279, 0
        %v4349 = vsel %vm253, %v4281, 0
        %v4351 = vsel %vm253, %v4284, 0
        %v4353 = vsel %vm253, %v4286, 0
        %v4355 = vsel %vm253, %v4289, 0
        %v4357 = vsel %vm253, %v4291, 0
        %v4359 = vsel %vm253, %v4294, 0
        %v4361 = vsel %vm253, %v4296, 0
        %v4363 = vsel %vm253, %v4299, 0
        %v4365 = vsel %vm253, %v4301, 0
        %v4367 = vsel %vm253, %v4304, 0
        %v4369 = vsel %vm253, %v4306, 0
        %4371 = vmatprep.subr.mxu0 0.0
        %4372 = vmatpush1.msra.mxu0 %v3514
        %4373 = vmatprep.subr.mxu0 0.0
        %4374 = vmatpush1.msra.mxu0 0.0
        %4375 = vmatprep.subr.mxu0 0.0
        %4376 = vmatpush1.msra.mxu0 0.0
        %4377 = vmatprep.subr.mxu0 0.0
        %4378 = vmatpush1.msra.mxu0 0.0
        %4379 = vmatprep.subr.mxu0 0.0
        %4380 = vmatpush1.msra.mxu0 0.0
        %4381 = vmatprep.subr.mxu0 0.0
        %4382 = vmatpush1.msra.mxu0 0.0
        %4383 = vmatprep.subr.mxu0 0.0
        %4384 = vmatpush1.msra.mxu0 0.0
        %4385 = vmatprep.subr.mxu0 0.0
        %4386 = vmatpush1.msra.mxu0 0.0
        %4387 = vmatprep.subr.mxu0 0.0
        %4388 = vmatpush1.msra.mxu0 0.0
        %4389 = vmatprep.subr.mxu0 0.0
        %4390 = vmatpush1.msra.mxu0 0.0
        %4391 = vmatprep.subr.mxu0 0.0
        %4392 = vmatpush1.msra.mxu0 0.0
        %4393 = vmatprep.subr.mxu0 0.0
        %4394 = vmatpush1.msra.mxu0 0.0
        %4395 = vmatprep.subr.mxu0 0.0
        %4396 = vmatpush1.msra.mxu0 0.0
        %4397 = vmatprep.subr.mxu0 0.0
        %4398 = vmatpush1.msra.mxu0 0.0
        %4399 = vmatprep.subr.mxu0 0.0
        %4400 = vmatpush1.msra.mxu0 0.0
        %4401 = vmatprep.subr.mxu0 0.0
        %4402 = vmatpush1.msra.mxu0 0.0
        %4403 = vmatprep.subr.mxu0 0.0
        %4404 = vmatpush1.msra.mxu0 0.0
        %4405 = vmatprep.subr.mxu0 0.0
        %4406 = vmatpush1.msra.mxu0 0.0
        %4407 = vmatprep.subr.mxu0 0.0
        %4408 = vmatpush1.msra.mxu0 0.0
        %4409 = vmatprep.subr.mxu0 0.0
        %4410 = vmatpush1.msra.mxu0 0.0
        %4411 = vmatprep.subr.mxu0 0.0
        %4412 = vmatpush1.msra.mxu0 0.0
        %4413 = vmatprep.subr.mxu0 0.0
        %4414 = vmatpush1.msra.mxu0 0.0
        %4415 = vmatprep.subr.mxu0 0.0
        %4416 = vmatpush1.msra.mxu0 0.0
        %4417 = vmatprep.subr.mxu0 0.0
        %4418 = vmatpush1.msra.mxu0 0.0
        %4419 = vmatprep.subr.mxu0 0.0
        %4420 = vmatpush1.msra.mxu0 0.0
        %4421 = vmatprep.subr.mxu0 0.0
        %4422 = vmatpush1.msra.mxu0 0.0
        %4423 = vmatprep.subr.mxu0 0.0
        %4424 = vmatpush1.msra.mxu0 0.0
        %4425 = vmatprep.subr.mxu0 0.0
        %4426 = vmatpush1.msra.mxu0 0.0
        %4427 = vmatprep.subr.mxu0 0.0
        %4428 = vmatpush1.msra.mxu0 0.0
        %4429 = vmatprep.subr.mxu0 0.0
        %4430 = vmatpush1.msra.mxu0 0.0
        %4431 = vmatprep.subr.mxu0 0.0
        %4432 = vmatpush1.msra.mxu0 0.0
        %4433 = vmatprep.subr.mxu0 0.0
        %4434 = vmatpush1.msra.mxu0 0.0
        %4435 = vmatprep.mubr.f32.mxu0 0.0
        %4436 = vmatmul.mubr.f32.gmra.mrb[0].mxu0 %v4307
        %v4437 = vpop.f32.mrb[0].mxu0
        %v4438 = vadd.f32 0.0, %v4437
        %v4439 = vpop.f32.mrb[0].mxu0
        %4440 = vmatprep.mubr.f32.mxu0 0.0
        %4441 = vmatmul.mubr.f32.gmra.mrb[0].mxu0 %v4309
        %v4442 = vpop.f32.mrb[0].mxu0
        %v4443 = vadd.f32 0.0, %v4442
        %v4444 = vpop.f32.mrb[0].mxu0
        %4445 = vmatprep.mubr.f32.mxu0 0.0
        %4446 = vmatmul.mubr.f32.gmra.mrb[0].mxu0 %v4311
        %v4447 = vpop.f32.mrb[0].mxu0
        %v4448 = vadd.f32 0.0, %v4447
        %v4449 = vpop.f32.mrb[0].mxu0
        %4450 = vmatprep.mubr.f32.mxu0 0.0
        %4451 = vmatmul.mubr.f32.gmra.mrb[0].mxu0 %v4313
        %v4452 = vpop.f32.mrb[0].mxu0
        %v4453 = vadd.f32 0.0, %v4452
        %v4454 = vpop.f32.mrb[0].mxu0
        %4455 = vmatprep.mubr.f32.mxu0 0.0
        %4456 = vmatmul.mubr.f32.gmra.mrb[0].mxu0 %v4315
        %v4457 = vpop.f32.mrb[0].mxu0
        %v4458 = vadd.f32 0.0, %v4457
        %v4459 = vpop.f32.mrb[0].mxu0
        %4460 = vmatprep.mubr.f32.mxu0 0.0
        %4461 = vmatmul.mubr.f32.gmra.mrb[0].mxu0 %v4317
        %v4462 = vpop.f32.mrb[0].mxu0
        %v4463 = vadd.f32 0.0, %v4462
        %v4464 = vpop.f32.mrb[0].mxu0
        %4465 = vmatprep.mubr.f32.mxu0 0.0
        %4466 = vmatmul.mubr.f32.gmra.mrb[0].mxu0 %v4319
        %v4467 = vpop.f32.mrb[0].mxu0
        %v4468 = vadd.f32 0.0, %v4467
        %v4469 = vpop.f32.mrb[0].mxu0
        %4470 = vmatprep.mubr.f32.mxu0 0.0
        %4471 = vmatmul.mubr.f32.gmra.mrb[0].mxu0 %v4321
        %v4472 = vpop.f32.mrb[0].mxu0
        %v4473 = vadd.f32 0.0, %v4472
        %v4474 = vpop.f32.mrb[0].mxu0
        %4475 = vmatprep.mubr.f32.mxu0 0.0
        %4476 = vmatmul.mubr.f32.gmra.mrb[0].mxu0 %v4323
        %v4477 = vpop.f32.mrb[0].mxu0
        %v4478 = vadd.f32 0.0, %v4477
        %v4479 = vpop.f32.mrb[0].mxu0
        %4480 = vmatprep.mubr.f32.mxu0 0.0
        %4481 = vmatmul.mubr.f32.gmra.mrb[0].mxu0 %v4325
        %v4482 = vpop.f32.mrb[0].mxu0
        %v4483 = vadd.f32 0.0, %v4482
        %v4484 = vpop.f32.mrb[0].mxu0
        %4485 = vmatprep.mubr.f32.mxu0 0.0
        %4486 = vmatmul.mubr.f32.gmra.mrb[0].mxu0 %v4327
        %v4487 = vpop.f32.mrb[0].mxu0
        %v4488 = vadd.f32 0.0, %v4487
        %v4489 = vpop.f32.mrb[0].mxu0
        %4490 = vmatprep.mubr.f32.mxu0 0.0
        %4491 = vmatmul.mubr.f32.gmra.mrb[0].mxu0 %v4329
        %v4492 = vpop.f32.mrb[0].mxu0
        %v4493 = vadd.f32 0.0, %v4492
        %v4494 = vpop.f32.mrb[0].mxu0
        %4495 = vmatprep.mubr.f32.mxu0 0.0
        %4496 = vmatmul.mubr.f32.gmra.mrb[0].mxu0 %v4331
        %v4497 = vpop.f32.mrb[0].mxu0
        %v4498 = vadd.f32 0.0, %v4497
        %v4499 = vpop.f32.mrb[0].mxu0
        %4500 = vmatprep.mubr.f32.mxu0 0.0
        %4501 = vmatmul.mubr.f32.gmra.mrb[0].mxu0 %v4333
        %v4502 = vpop.f32.mrb[0].mxu0
        %v4503 = vadd.f32 0.0, %v4502
        %v4504 = vpop.f32.mrb[0].mxu0
        %4505 = vmatprep.mubr.f32.mxu0 0.0
        %4506 = vmatmul.mubr.f32.gmra.mrb[0].mxu0 %v4335
        %v4507 = vpop.f32.mrb[0].mxu0
        %v4508 = vadd.f32 0.0, %v4507
        %v4509 = vpop.f32.mrb[0].mxu0
        %4510 = vmatprep.mubr.f32.mxu0 0.0
        %4511 = vmatmul.mubr.f32.gmra.mrb[0].mxu0 %v4337
        %v4512 = vpop.f32.mrb[0].mxu0
        %v4513 = vadd.f32 0.0, %v4512
        %v4514 = vpop.f32.mrb[0].mxu0
        %4515 = vmatprep.mubr.f32.mxu0 0.0
        %4516 = vmatmul.mubr.f32.gmra.mrb[0].mxu0 %v4339
        %v4517 = vpop.f32.mrb[0].mxu0
        %v4518 = vadd.f32 0.0, %v4517
        %v4519 = vpop.f32.mrb[0].mxu0
        %4520 = vmatprep.mubr.f32.mxu0 0.0
        %4521 = vmatmul.mubr.f32.gmra.mrb[0].mxu0 %v4341
        %v4522 = vpop.f32.mrb[0].mxu0
        %v4523 = vadd.f32 0.0, %v4522
        %v4524 = vpop.f32.mrb[0].mxu0
        %4525 = vmatprep.mubr.f32.mxu0 0.0
        %4526 = vmatmul.mubr.f32.gmra.mrb[0].mxu0 %v4343
        %v4527 = vpop.f32.mrb[0].mxu0
        %v4528 = vadd.f32 0.0, %v4527
        %v4529 = vpop.f32.mrb[0].mxu0
        %4530 = vmatprep.mubr.f32.mxu0 0.0
        %4531 = vmatmul.mubr.f32.gmra.mrb[0].mxu0 %v4345
        %v4532 = vpop.f32.mrb[0].mxu0
        %v4533 = vadd.f32 0.0, %v4532
        %v4534 = vpop.f32.mrb[0].mxu0
        %4535 = vmatprep.mubr.f32.mxu0 0.0
        %4536 = vmatmul.mubr.f32.gmra.mrb[0].mxu0 %v4347
        %v4537 = vpop.f32.mrb[0].mxu0
        %v4538 = vadd.f32 0.0, %v4537
        %v4539 = vpop.f32.mrb[0].mxu0
        %4540 = vmatprep.mubr.f32.mxu0 0.0
        %4541 = vmatmul.mubr.f32.gmra.mrb[0].mxu0 %v4349
        %v4542 = vpop.f32.mrb[0].mxu0
        %v4543 = vadd.f32 0.0, %v4542
        %v4544 = vpop.f32.mrb[0].mxu0
        %4545 = vmatprep.mubr.f32.mxu0 0.0
        %4546 = vmatmul.mubr.f32.gmra.mrb[0].mxu0 %v4351
        %v4547 = vpop.f32.mrb[0].mxu0
        %v4548 = vadd.f32 0.0, %v4547
        %v4549 = vpop.f32.mrb[0].mxu0
        %4550 = vmatprep.mubr.f32.mxu0 0.0
        %4551 = vmatmul.mubr.f32.gmra.mrb[0].mxu0 %v4353
        %v4552 = vpop.f32.mrb[0].mxu0
        %v4553 = vadd.f32 0.0, %v4552
        %v4554 = vpop.f32.mrb[0].mxu0
        %4555 = vmatprep.mubr.f32.mxu0 0.0
        %4556 = vmatmul.mubr.f32.gmra.mrb[0].mxu0 %v4355
        %v4557 = vpop.f32.mrb[0].mxu0
        %v4558 = vadd.f32 0.0, %v4557
        %v4559 = vpop.f32.mrb[0].mxu0
        %4560 = vmatprep.mubr.f32.mxu0 0.0
        %4561 = vmatmul.mubr.f32.gmra.mrb[0].mxu0 %v4357
        %v4562 = vpop.f32.mrb[0].mxu0
        %v4563 = vadd.f32 0.0, %v4562
        %v4564 = vpop.f32.mrb[0].mxu0
        %4565 = vmatprep.mubr.f32.mxu0 0.0
        %4566 = vmatmul.mubr.f32.gmra.mrb[0].mxu0 %v4359
        %v4567 = vpop.f32.mrb[0].mxu0
        %v4568 = vadd.f32 0.0, %v4567
        %v4569 = vpop.f32.mrb[0].mxu0
        %4570 = vmatprep.mubr.f32.mxu0 0.0
        %4571 = vmatmul.mubr.f32.gmra.mrb[0].mxu0 %v4361
        %v4572 = vpop.f32.mrb[0].mxu0
        %v4573 = vadd.f32 0.0, %v4572
        %v4574 = vpop.f32.mrb[0].mxu0
        %4575 = vmatprep.mubr.f32.mxu0 0.0
        %4576 = vmatmul.mubr.f32.gmra.mrb[0].mxu0 %v4363
        %v4577 = vpop.f32.mrb[0].mxu0
        %v4578 = vadd.f32 0.0, %v4577
        %v4579 = vpop.f32.mrb[0].mxu0
        %4580 = vmatprep.mubr.f32.mxu0 0.0
        %4581 = vmatmul.mubr.f32.gmra.mrb[0].mxu0 %v4365
        %v4582 = vpop.f32.mrb[0].mxu0
        %v4583 = vadd.f32 0.0, %v4582
        %v4584 = vpop.f32.mrb[0].mxu0
        %4585 = vmatprep.mubr.f32.mxu0 0.0
        %4586 = vmatmul.mubr.f32.gmra.mrb[0].mxu0 %v4367
        %v4587 = vpop.f32.mrb[0].mxu0
        %v4588 = vadd.f32 0.0, %v4587
        %v4589 = vpop.f32.mrb[0].mxu0
        %4590 = vmatprep.mubr.f32.mxu0 0.0
        %4591 = vmatmul.mubr.f32.gmra.mrb[0].mxu0 %v4369
        %v4592 = vpop.f32.mrb[0].mxu0
        %v4593 = vadd.f32 0.0, %v4592
        %v4594 = vpop.f32.mrb[0].mxu0
        %4595 = vdwg.mxu0
        %v4596 = vadd.f32 %v4069, %v4438
        %v4597 = vadd.f32 %v4074, %v4443
        %v4598 = vadd.f32 %v4079, %v4448
        %v4599 = vadd.f32 %v4084, %v4453
        %v4600 = vadd.f32 %v4089, %v4458
        %v4601 = vadd.f32 %v4094, %v4463
        %v4602 = vadd.f32 %v4099, %v4468
        %v4603 = vadd.f32 %v4104, %v4473
        %v4604 = vadd.f32 %v4109, %v4478
        %v4605 = vadd.f32 %v4114, %v4483
        %v4606 = vadd.f32 %v4119, %v4488
        %v4607 = vadd.f32 %v4124, %v4493
        %v4608 = vadd.f32 %v4129, %v4498
        %v4609 = vadd.f32 %v4134, %v4503
        %v4610 = vadd.f32 %v4139, %v4508
        %v4611 = vadd.f32 %v4144, %v4513
        %v4612 = vadd.f32 %v4149, %v4518
        %v4613 = vadd.f32 %v4154, %v4523
        %v4614 = vadd.f32 %v4159, %v4528
        %v4615 = vadd.f32 %v4164, %v4533
        %v4616 = vadd.f32 %v4169, %v4538
        %v4617 = vadd.f32 %v4174, %v4543
        %v4618 = vadd.f32 %v4179, %v4548
        %v4619 = vadd.f32 %v4184, %v4553
        %v4620 = vadd.f32 %v4189, %v4558
        %v4621 = vadd.f32 %v4194, %v4563
        %v4622 = vadd.f32 %v4199, %v4568
        %v4623 = vadd.f32 %v4204, %v4573
        %v4624 = vadd.f32 %v4209, %v4578
        %v4625 = vadd.f32 %v4214, %v4583
        %v4626 = vadd.f32 %v4219, %v4588
        %v4627 = vadd.f32 %v4224, %v4593
        %v4629 = vsel %vm253, %v3506, 0
        %v4632 = vsel %vm253, %v3507, 0
        %4634 = vmatprep.subr.mxu0 0.0
        %4635 = vmatpush1.msra.mxu0 %v3515
        %4636 = vmatprep.subr.mxu0 0.0
        %4637 = vmatpush1.msra.mxu0 0.0
        %4638 = vmatprep.subr.mxu0 0.0
        %4639 = vmatpush1.msra.mxu0 0.0
        %4640 = vmatprep.subr.mxu0 0.0
        %4641 = vmatpush1.msra.mxu0 0.0
        %4642 = vmatprep.subr.mxu0 0.0
        %4643 = vmatpush1.msra.mxu0 0.0
        %4644 = vmatprep.subr.mxu0 0.0
        %4645 = vmatpush1.msra.mxu0 0.0
        %4646 = vmatprep.subr.mxu0 0.0
        %4647 = vmatpush1.msra.mxu0 0.0
        %4648 = vmatprep.subr.mxu0 0.0
        %4649 = vmatpush1.msra.mxu0 0.0
        %4650 = vmatprep.subr.mxu0 0.0
        %4651 = vmatpush1.msra.mxu0 0.0
        %4652 = vmatprep.subr.mxu0 0.0
        %4653 = vmatpush1.msra.mxu0 0.0
        %4654 = vmatprep.subr.mxu0 0.0
        %4655 = vmatpush1.msra.mxu0 0.0
        %4656 = vmatprep.subr.mxu0 0.0
        %4657 = vmatpush1.msra.mxu0 0.0
        %4658 = vmatprep.subr.mxu0 0.0
        %4659 = vmatpush1.msra.mxu0 0.0
        %4660 = vmatprep.subr.mxu0 0.0
        %4661 = vmatpush1.msra.mxu0 0.0
        %4662 = vmatprep.subr.mxu0 0.0
        %4663 = vmatpush1.msra.mxu0 0.0
        %4664 = vmatprep.subr.mxu0 0.0
        %4665 = vmatpush1.msra.mxu0 0.0
        %4666 = vmatprep.subr.mxu0 0.0
        %4667 = vmatpush1.msra.mxu0 0.0
        %4668 = vmatprep.subr.mxu0 0.0
        %4669 = vmatpush1.msra.mxu0 0.0
        %4670 = vmatprep.subr.mxu0 0.0
        %4671 = vmatpush1.msra.mxu0 0.0
        %4672 = vmatprep.subr.mxu0 0.0
        %4673 = vmatpush1.msra.mxu0 0.0
        %4674 = vmatprep.subr.mxu0 0.0
        %4675 = vmatpush1.msra.mxu0 0.0
        %4676 = vmatprep.subr.mxu0 0.0
        %4677 = vmatpush1.msra.mxu0 0.0
        %4678 = vmatprep.subr.mxu0 0.0
        %4679 = vmatpush1.msra.mxu0 0.0
        %4680 = vmatprep.subr.mxu0 0.0
        %4681 = vmatpush1.msra.mxu0 0.0
        %4682 = vmatprep.subr.mxu0 0.0
        %4683 = vmatpush1.msra.mxu0 0.0
        %4684 = vmatprep.subr.mxu0 0.0
        %4685 = vmatpush1.msra.mxu0 0.0
        %4686 = vmatprep.subr.mxu0 0.0
        %4687 = vmatpush1.msra.mxu0 0.0
        %4688 = vmatprep.subr.mxu0 0.0
        %4689 = vmatpush1.msra.mxu0 0.0
        %4690 = vmatprep.subr.mxu0 0.0
        %4691 = vmatpush1.msra.mxu0 0.0
        %4692 = vmatprep.subr.mxu0 0.0
        %4693 = vmatpush1.msra.mxu0 0.0
        %4694 = vmatprep.subr.mxu0 0.0
        %4695 = vmatpush1.msra.mxu0 0.0
        %4696 = vmatprep.subr.mxu0 0.0
        %4697 = vmatpush1.msra.mxu0 0.0
        %4698 = vmatprep.mubr.f32.mxu0 0.0
        %4699 = vmatmul.mubr.f32.gmra.mrb[0].mxu0 %v3942
        %v4700 = vpop.f32.mrb[0].mxu0
        %v4701 = vadd.f32 0.0, %v4700
        %v4702 = vpop.f32.mrb[0].mxu0
        %4703 = vmatprep.mubr.f32.mxu0 0.0
        %4704 = vmatmul.mubr.f32.gmra.mrb[0].mxu0 %v3944
        %v4705 = vpop.f32.mrb[0].mxu0
        %v4706 = vadd.f32 0.0, %v4705
        %v4707 = vpop.f32.mrb[0].mxu0
        %4708 = vmatprep.mubr.f32.mxu0 0.0
        %4709 = vmatmul.mubr.f32.gmra.mrb[0].mxu0 %v3946
        %v4710 = vpop.f32.mrb[0].mxu0
        %v4711 = vadd.f32 0.0, %v4710
        %v4712 = vpop.f32.mrb[0].mxu0
        %4713 = vmatprep.mubr.f32.mxu0 0.0
        %4714 = vmatmul.mubr.f32.gmra.mrb[0].mxu0 %v3948
        %v4715 = vpop.f32.mrb[0].mxu0
        %v4716 = vadd.f32 0.0, %v4715
        %v4717 = vpop.f32.mrb[0].mxu0
        %4718 = vmatprep.mubr.f32.mxu0 0.0
        %4719 = vmatmul.mubr.f32.gmra.mrb[0].mxu0 %v3950
        %v4720 = vpop.f32.mrb[0].mxu0
        %v4721 = vadd.f32 0.0, %v4720
        %v4722 = vpop.f32.mrb[0].mxu0
        %4723 = vmatprep.mubr.f32.mxu0 0.0
        %4724 = vmatmul.mubr.f32.gmra.mrb[0].mxu0 %v3952
        %v4725 = vpop.f32.mrb[0].mxu0
        %v4726 = vadd.f32 0.0, %v4725
        %v4727 = vpop.f32.mrb[0].mxu0
        %4728 = vmatprep.mubr.f32.mxu0 0.0
        %4729 = vmatmul.mubr.f32.gmra.mrb[0].mxu0 %v3954
        %v4730 = vpop.f32.mrb[0].mxu0
        %v4731 = vadd.f32 0.0, %v4730
        %v4732 = vpop.f32.mrb[0].mxu0
        %4733 = vmatprep.mubr.f32.mxu0 0.0
        %4734 = vmatmul.mubr.f32.gmra.mrb[0].mxu0 %v3956
        %v4735 = vpop.f32.mrb[0].mxu0
        %v4736 = vadd.f32 0.0, %v4735
        %v4737 = vpop.f32.mrb[0].mxu0
        %4738 = vmatprep.mubr.f32.mxu0 0.0
        %4739 = vmatmul.mubr.f32.gmra.mrb[0].mxu0 %v3958
        %v4740 = vpop.f32.mrb[0].mxu0
        %v4741 = vadd.f32 0.0, %v4740
        %v4742 = vpop.f32.mrb[0].mxu0
        %4743 = vmatprep.mubr.f32.mxu0 0.0
        %4744 = vmatmul.mubr.f32.gmra.mrb[0].mxu0 %v3960
        %v4745 = vpop.f32.mrb[0].mxu0
        %v4746 = vadd.f32 0.0, %v4745
        %v4747 = vpop.f32.mrb[0].mxu0
        %4748 = vmatprep.mubr.f32.mxu0 0.0
        %4749 = vmatmul.mubr.f32.gmra.mrb[0].mxu0 %v3962
        %v4750 = vpop.f32.mrb[0].mxu0
        %v4751 = vadd.f32 0.0, %v4750
        %v4752 = vpop.f32.mrb[0].mxu0
        %4753 = vmatprep.mubr.f32.mxu0 0.0
        %4754 = vmatmul.mubr.f32.gmra.mrb[0].mxu0 %v3964
        %v4755 = vpop.f32.mrb[0].mxu0
        %v4756 = vadd.f32 0.0, %v4755
        %v4757 = vpop.f32.mrb[0].mxu0
        %4758 = vmatprep.mubr.f32.mxu0 0.0
        %4759 = vmatmul.mubr.f32.gmra.mrb[0].mxu0 %v3966
        %v4760 = vpop.f32.mrb[0].mxu0
        %v4761 = vadd.f32 0.0, %v4760
        %v4762 = vpop.f32.mrb[0].mxu0
        %4763 = vmatprep.mubr.f32.mxu0 0.0
        %4764 = vmatmul.mubr.f32.gmra.mrb[0].mxu0 %v3968
        %v4765 = vpop.f32.mrb[0].mxu0
        %v4766 = vadd.f32 0.0, %v4765
        %v4767 = vpop.f32.mrb[0].mxu0
        %4768 = vmatprep.mubr.f32.mxu0 0.0
        %4769 = vmatmul.mubr.f32.gmra.mrb[0].mxu0 %v3970
        %v4770 = vpop.f32.mrb[0].mxu0
        %v4771 = vadd.f32 0.0, %v4770
        %v4772 = vpop.f32.mrb[0].mxu0
        %4773 = vmatprep.mubr.f32.mxu0 0.0
        %4774 = vmatmul.mubr.f32.gmra.mrb[0].mxu0 %v3972
        %v4775 = vpop.f32.mrb[0].mxu0
        %v4776 = vadd.f32 0.0, %v4775
        %v4777 = vpop.f32.mrb[0].mxu0
        %4778 = vmatprep.mubr.f32.mxu0 0.0
        %4779 = vmatmul.mubr.f32.gmra.mrb[0].mxu0 %v3974
        %v4780 = vpop.f32.mrb[0].mxu0
        %v4781 = vadd.f32 0.0, %v4780
        %v4782 = vpop.f32.mrb[0].mxu0
        %4783 = vmatprep.mubr.f32.mxu0 0.0
        %4784 = vmatmul.mubr.f32.gmra.mrb[0].mxu0 %v3976
        %v4785 = vpop.f32.mrb[0].mxu0
        %v4786 = vadd.f32 0.0, %v4785
        %v4787 = vpop.f32.mrb[0].mxu0
        %4788 = vmatprep.mubr.f32.mxu0 0.0
        %4789 = vmatmul.mubr.f32.gmra.mrb[0].mxu0 %v3978
        %v4790 = vpop.f32.mrb[0].mxu0
        %v4791 = vadd.f32 0.0, %v4790
        %v4792 = vpop.f32.mrb[0].mxu0
        %4793 = vmatprep.mubr.f32.mxu0 0.0
        %4794 = vmatmul.mubr.f32.gmra.mrb[0].mxu0 %v3980
        %v4795 = vpop.f32.mrb[0].mxu0
        %v4796 = vadd.f32 0.0, %v4795
        %v4797 = vpop.f32.mrb[0].mxu0
        %4798 = vmatprep.mubr.f32.mxu0 0.0
        %4799 = vmatmul.mubr.f32.gmra.mrb[0].mxu0 %v3982
        %v4800 = vpop.f32.mrb[0].mxu0
        %v4801 = vadd.f32 0.0, %v4800
        %v4802 = vpop.f32.mrb[0].mxu0
        %4803 = vmatprep.mubr.f32.mxu0 0.0
        %4804 = vmatmul.mubr.f32.gmra.mrb[0].mxu0 %v3984
        %v4805 = vpop.f32.mrb[0].mxu0
        %v4806 = vadd.f32 0.0, %v4805
        %v4807 = vpop.f32.mrb[0].mxu0
        %4808 = vmatprep.mubr.f32.mxu0 0.0
        %4809 = vmatmul.mubr.f32.gmra.mrb[0].mxu0 %v3986
        %v4810 = vpop.f32.mrb[0].mxu0
        %v4811 = vadd.f32 0.0, %v4810
        %v4812 = vpop.f32.mrb[0].mxu0
        %4813 = vmatprep.mubr.f32.mxu0 0.0
        %4814 = vmatmul.mubr.f32.gmra.mrb[0].mxu0 %v3988
        %v4815 = vpop.f32.mrb[0].mxu0
        %v4816 = vadd.f32 0.0, %v4815
        %v4817 = vpop.f32.mrb[0].mxu0
        %4818 = vmatprep.mubr.f32.mxu0 0.0
        %4819 = vmatmul.mubr.f32.gmra.mrb[0].mxu0 %v3990
        %v4820 = vpop.f32.mrb[0].mxu0
        %v4821 = vadd.f32 0.0, %v4820
        %v4822 = vpop.f32.mrb[0].mxu0
        %4823 = vmatprep.mubr.f32.mxu0 0.0
        %4824 = vmatmul.mubr.f32.gmra.mrb[0].mxu0 %v3992
        %v4825 = vpop.f32.mrb[0].mxu0
        %v4826 = vadd.f32 0.0, %v4825
        %v4827 = vpop.f32.mrb[0].mxu0
        %4828 = vmatprep.mubr.f32.mxu0 0.0
        %4829 = vmatmul.mubr.f32.gmra.mrb[0].mxu0 %v3994
        %v4830 = vpop.f32.mrb[0].mxu0
        %v4831 = vadd.f32 0.0, %v4830
        %v4832 = vpop.f32.mrb[0].mxu0
        %4833 = vmatprep.mubr.f32.mxu0 0.0
        %4834 = vmatmul.mubr.f32.gmra.mrb[0].mxu0 %v3996
        %v4835 = vpop.f32.mrb[0].mxu0
        %v4836 = vadd.f32 0.0, %v4835
        %v4837 = vpop.f32.mrb[0].mxu0
        %4838 = vmatprep.mubr.f32.mxu0 0.0
        %4839 = vmatmul.mubr.f32.gmra.mrb[0].mxu0 %v3998
        %v4840 = vpop.f32.mrb[0].mxu0
        %v4841 = vadd.f32 0.0, %v4840
        %v4842 = vpop.f32.mrb[0].mxu0
        %4843 = vmatprep.mubr.f32.mxu0 0.0
        %4844 = vmatmul.mubr.f32.gmra.mrb[0].mxu0 %v4000
        %v4845 = vpop.f32.mrb[0].mxu0
        %v4846 = vadd.f32 0.0, %v4845
        %v4847 = vpop.f32.mrb[0].mxu0
        %4848 = vmatprep.mubr.f32.mxu0 0.0
        %4849 = vmatmul.mubr.f32.gmra.mrb[0].mxu0 %v4629
        %v4850 = vpop.f32.mrb[0].mxu0
        %v4851 = vadd.f32 0.0, %v4850
        %v4852 = vpop.f32.mrb[0].mxu0
        %4853 = vmatprep.mubr.f32.mxu0 0.0
        %4854 = vmatmul.mubr.f32.gmra.mrb[0].mxu0 %v4632
        %v4855 = vpop.f32.mrb[0].mxu0
        %v4856 = vadd.f32 0.0, %v4855
        %v4857 = vpop.f32.mrb[0].mxu0
        %4858 = vdwg.mxu0
        %v4859 = vadd.f32 %v4596, %v4701
        %v4860 = vadd.f32 %v4597, %v4706
        %v4861 = vadd.f32 %v4598, %v4711
        %v4862 = vadd.f32 %v4599, %v4716
        %v4863 = vadd.f32 %v4600, %v4721
        %v4864 = vadd.f32 %v4601, %v4726
        %v4865 = vadd.f32 %v4602, %v4731
        %v4866 = vadd.f32 %v4603, %v4736
        %v4867 = vadd.f32 %v4604, %v4741
        %v4868 = vadd.f32 %v4605, %v4746
        %v4869 = vadd.f32 %v4606, %v4751
        %v4870 = vadd.f32 %v4607, %v4756
        %v4871 = vadd.f32 %v4608, %v4761
        %v4872 = vadd.f32 %v4609, %v4766
        %v4873 = vadd.f32 %v4610, %v4771
        %v4874 = vadd.f32 %v4611, %v4776
        %v4875 = vadd.f32 %v4612, %v4781
        %v4876 = vadd.f32 %v4613, %v4786
        %v4877 = vadd.f32 %v4614, %v4791
        %v4878 = vadd.f32 %v4615, %v4796
        %v4879 = vadd.f32 %v4616, %v4801
        %v4880 = vadd.f32 %v4617, %v4806
        %v4881 = vadd.f32 %v4618, %v4811
        %v4882 = vadd.f32 %v4619, %v4816
        %v4883 = vadd.f32 %v4620, %v4821
        %v4884 = vadd.f32 %v4621, %v4826
        %v4885 = vadd.f32 %v4622, %v4831
        %v4886 = vadd.f32 %v4623, %v4836
        %v4887 = vadd.f32 %v4624, %v4841
        %v4888 = vadd.f32 %v4625, %v4846
        %v4889 = vadd.f32 %v4626, %v4851
        %v4890 = vadd.f32 %v4627, %v4856
        %v4892 = vrot.slane %v3506, 1
        %v4893 = vrot.slane %v3507, 1
        %v4894 = vsel %vm471, %v4892, %v4893
        %v4895 = vrot.slane %v3508, 1
        %v4896 = vsel %vm471, %v4893, %v4895
        %v4897 = vsel %vm253, %v4894, 0
        %v4899 = vsel %vm253, %v4896, 0
        %4901 = vmatprep.subr.mxu0 0.0
        %4902 = vmatpush1.msra.mxu0 %v3516
        %4903 = vmatprep.subr.mxu0 0.0
        %4904 = vmatpush1.msra.mxu0 0.0
        %4905 = vmatprep.subr.mxu0 0.0
        %4906 = vmatpush1.msra.mxu0 0.0
        %4907 = vmatprep.subr.mxu0 0.0
        %4908 = vmatpush1.msra.mxu0 0.0
        %4909 = vmatprep.subr.mxu0 0.0
        %4910 = vmatpush1.msra.mxu0 0.0
        %4911 = vmatprep.subr.mxu0 0.0
        %4912 = vmatpush1.msra.mxu0 0.0
        %4913 = vmatprep.subr.mxu0 0.0
        %4914 = vmatpush1.msra.mxu0 0.0
        %4915 = vmatprep.subr.mxu0 0.0
        %4916 = vmatpush1.msra.mxu0 0.0
        %4917 = vmatprep.subr.mxu0 0.0
        %4918 = vmatpush1.msra.mxu0 0.0
        %4919 = vmatprep.subr.mxu0 0.0
        %4920 = vmatpush1.msra.mxu0 0.0
        %4921 = vmatprep.subr.mxu0 0.0
        %4922 = vmatpush1.msra.mxu0 0.0
        %4923 = vmatprep.subr.mxu0 0.0
        %4924 = vmatpush1.msra.mxu0 0.0
        %4925 = vmatprep.subr.mxu0 0.0
        %4926 = vmatpush1.msra.mxu0 0.0
        %4927 = vmatprep.subr.mxu0 0.0
        %4928 = vmatpush1.msra.mxu0 0.0
        %4929 = vmatprep.subr.mxu0 0.0
        %4930 = vmatpush1.msra.mxu0 0.0
        %4931 = vmatprep.subr.mxu0 0.0
        %4932 = vmatpush1.msra.mxu0 0.0
        %4933 = vmatprep.subr.mxu0 0.0
        %4934 = vmatpush1.msra.mxu0 0.0
        %4935 = vmatprep.subr.mxu0 0.0
        %4936 = vmatpush1.msra.mxu0 0.0
        %4937 = vmatprep.subr.mxu0 0.0
        %4938 = vmatpush1.msra.mxu0 0.0
        %4939 = vmatprep.subr.mxu0 0.0
        %4940 = vmatpush1.msra.mxu0 0.0
        %4941 = vmatprep.subr.mxu0 0.0
        %4942 = vmatpush1.msra.mxu0 0.0
        %4943 = vmatprep.subr.mxu0 0.0
        %4944 = vmatpush1.msra.mxu0 0.0
        %4945 = vmatprep.subr.mxu0 0.0
        %4946 = vmatpush1.msra.mxu0 0.0
        %4947 = vmatprep.subr.mxu0 0.0
        %4948 = vmatpush1.msra.mxu0 0.0
        %4949 = vmatprep.subr.mxu0 0.0
        %4950 = vmatpush1.msra.mxu0 0.0
        %4951 = vmatprep.subr.mxu0 0.0
        %4952 = vmatpush1.msra.mxu0 0.0
        %4953 = vmatprep.subr.mxu0 0.0
        %4954 = vmatpush1.msra.mxu0 0.0
        %4955 = vmatprep.subr.mxu0 0.0
        %4956 = vmatpush1.msra.mxu0 0.0
        %4957 = vmatprep.subr.mxu0 0.0
        %4958 = vmatpush1.msra.mxu0 0.0
        %4959 = vmatprep.subr.mxu0 0.0
        %4960 = vmatpush1.msra.mxu0 0.0
        %4961 = vmatprep.subr.mxu0 0.0
        %4962 = vmatpush1.msra.mxu0 0.0
        %4963 = vmatprep.subr.mxu0 0.0
        %4964 = vmatpush1.msra.mxu0 0.0
        %4965 = vmatprep.mubr.f32.mxu0 0.0
        %4966 = vmatmul.mubr.f32.gmra.mrb[0].mxu0 %v3653
        %v4967 = vpop.f32.mrb[0].mxu0
        %v4968 = vadd.f32 0.0, %v4967
        %v4969 = vpop.f32.mrb[0].mxu0
        %4970 = vmatprep.mubr.f32.mxu0 0.0
        %4971 = vmatmul.mubr.f32.gmra.mrb[0].mxu0 %v3655
        %v4972 = vpop.f32.mrb[0].mxu0
        %v4973 = vadd.f32 0.0, %v4972
        %v4974 = vpop.f32.mrb[0].mxu0
        %4975 = vmatprep.mubr.f32.mxu0 0.0
        %4976 = vmatmul.mubr.f32.gmra.mrb[0].mxu0 %v3657
        %v4977 = vpop.f32.mrb[0].mxu0
        %v4978 = vadd.f32 0.0, %v4977
        %v4979 = vpop.f32.mrb[0].mxu0
        %4980 = vmatprep.mubr.f32.mxu0 0.0
        %4981 = vmatmul.mubr.f32.gmra.mrb[0].mxu0 %v3659
        %v4982 = vpop.f32.mrb[0].mxu0
        %v4983 = vadd.f32 0.0, %v4982
        %v4984 = vpop.f32.mrb[0].mxu0
        %4985 = vmatprep.mubr.f32.mxu0 0.0
        %4986 = vmatmul.mubr.f32.gmra.mrb[0].mxu0 %v3661
        %v4987 = vpop.f32.mrb[0].mxu0
        %v4988 = vadd.f32 0.0, %v4987
        %v4989 = vpop.f32.mrb[0].mxu0
        %4990 = vmatprep.mubr.f32.mxu0 0.0
        %4991 = vmatmul.mubr.f32.gmra.mrb[0].mxu0 %v3663
        %v4992 = vpop.f32.mrb[0].mxu0
        %v4993 = vadd.f32 0.0, %v4992
        %v4994 = vpop.f32.mrb[0].mxu0
        %4995 = vmatprep.mubr.f32.mxu0 0.0
        %4996 = vmatmul.mubr.f32.gmra.mrb[0].mxu0 %v3665
        %v4997 = vpop.f32.mrb[0].mxu0
        %v4998 = vadd.f32 0.0, %v4997
        %v4999 = vpop.f32.mrb[0].mxu0
        %5000 = vmatprep.mubr.f32.mxu0 0.0
        %5001 = vmatmul.mubr.f32.gmra.mrb[0].mxu0 %v3667
        %v5002 = vpop.f32.mrb[0].mxu0
        %v5003 = vadd.f32 0.0, %v5002
        %v5004 = vpop.f32.mrb[0].mxu0
        %5005 = vmatprep.mubr.f32.mxu0 0.0
        %5006 = vmatmul.mubr.f32.gmra.mrb[0].mxu0 %v3669
        %v5007 = vpop.f32.mrb[0].mxu0
        %v5008 = vadd.f32 0.0, %v5007
        %v5009 = vpop.f32.mrb[0].mxu0
        %5010 = vmatprep.mubr.f32.mxu0 0.0
        %5011 = vmatmul.mubr.f32.gmra.mrb[0].mxu0 %v3671
        %v5012 = vpop.f32.mrb[0].mxu0
        %v5013 = vadd.f32 0.0, %v5012
        %v5014 = vpop.f32.mrb[0].mxu0
        %5015 = vmatprep.mubr.f32.mxu0 0.0
        %5016 = vmatmul.mubr.f32.gmra.mrb[0].mxu0 %v3673
        %v5017 = vpop.f32.mrb[0].mxu0
        %v5018 = vadd.f32 0.0, %v5017
        %v5019 = vpop.f32.mrb[0].mxu0
        %5020 = vmatprep.mubr.f32.mxu0 0.0
        %5021 = vmatmul.mubr.f32.gmra.mrb[0].mxu0 %v3675
        %v5022 = vpop.f32.mrb[0].mxu0
        %v5023 = vadd.f32 0.0, %v5022
        %v5024 = vpop.f32.mrb[0].mxu0
        %5025 = vmatprep.mubr.f32.mxu0 0.0
        %5026 = vmatmul.mubr.f32.gmra.mrb[0].mxu0 %v3677
        %v5027 = vpop.f32.mrb[0].mxu0
        %v5028 = vadd.f32 0.0, %v5027
        %v5029 = vpop.f32.mrb[0].mxu0
        %5030 = vmatprep.mubr.f32.mxu0 0.0
        %5031 = vmatmul.mubr.f32.gmra.mrb[0].mxu0 %v3679
        %v5032 = vpop.f32.mrb[0].mxu0
        %v5033 = vadd.f32 0.0, %v5032
        %v5034 = vpop.f32.mrb[0].mxu0
        %5035 = vmatprep.mubr.f32.mxu0 0.0
        %5036 = vmatmul.mubr.f32.gmra.mrb[0].mxu0 %v3681
        %v5037 = vpop.f32.mrb[0].mxu0
        %v5038 = vadd.f32 0.0, %v5037
        %v5039 = vpop.f32.mrb[0].mxu0
        %5040 = vmatprep.mubr.f32.mxu0 0.0
        %5041 = vmatmul.mubr.f32.gmra.mrb[0].mxu0 %v3683
        %v5042 = vpop.f32.mrb[0].mxu0
        %v5043 = vadd.f32 0.0, %v5042
        %v5044 = vpop.f32.mrb[0].mxu0
        %5045 = vmatprep.mubr.f32.mxu0 0.0
        %5046 = vmatmul.mubr.f32.gmra.mrb[0].mxu0 %v3685
        %v5047 = vpop.f32.mrb[0].mxu0
        %v5048 = vadd.f32 0.0, %v5047
        %v5049 = vpop.f32.mrb[0].mxu0
        %5050 = vmatprep.mubr.f32.mxu0 0.0
        %5051 = vmatmul.mubr.f32.gmra.mrb[0].mxu0 %v3687
        %v5052 = vpop.f32.mrb[0].mxu0
        %v5053 = vadd.f32 0.0, %v5052
        %v5054 = vpop.f32.mrb[0].mxu0
        %5055 = vmatprep.mubr.f32.mxu0 0.0
        %5056 = vmatmul.mubr.f32.gmra.mrb[0].mxu0 %v3689
        %v5057 = vpop.f32.mrb[0].mxu0
        %v5058 = vadd.f32 0.0, %v5057
        %v5059 = vpop.f32.mrb[0].mxu0
        %5060 = vmatprep.mubr.f32.mxu0 0.0
        %5061 = vmatmul.mubr.f32.gmra.mrb[0].mxu0 %v3691
        %v5062 = vpop.f32.mrb[0].mxu0
        %v5063 = vadd.f32 0.0, %v5062
        %v5064 = vpop.f32.mrb[0].mxu0
        %5065 = vmatprep.mubr.f32.mxu0 0.0
        %5066 = vmatmul.mubr.f32.gmra.mrb[0].mxu0 %v3693
        %v5067 = vpop.f32.mrb[0].mxu0
        %v5068 = vadd.f32 0.0, %v5067
        %v5069 = vpop.f32.mrb[0].mxu0
        %5070 = vmatprep.mubr.f32.mxu0 0.0
        %5071 = vmatmul.mubr.f32.gmra.mrb[0].mxu0 %v3695
        %v5072 = vpop.f32.mrb[0].mxu0
        %v5073 = vadd.f32 0.0, %v5072
        %v5074 = vpop.f32.mrb[0].mxu0
        %5075 = vmatprep.mubr.f32.mxu0 0.0
        %5076 = vmatmul.mubr.f32.gmra.mrb[0].mxu0 %v3697
        %v5077 = vpop.f32.mrb[0].mxu0
        %v5078 = vadd.f32 0.0, %v5077
        %v5079 = vpop.f32.mrb[0].mxu0
        %5080 = vmatprep.mubr.f32.mxu0 0.0
        %5081 = vmatmul.mubr.f32.gmra.mrb[0].mxu0 %v3699
        %v5082 = vpop.f32.mrb[0].mxu0
        %v5083 = vadd.f32 0.0, %v5082
        %v5084 = vpop.f32.mrb[0].mxu0
        %5085 = vmatprep.mubr.f32.mxu0 0.0
        %5086 = vmatmul.mubr.f32.gmra.mrb[0].mxu0 %v3701
        %v5087 = vpop.f32.mrb[0].mxu0
        %v5088 = vadd.f32 0.0, %v5087
        %v5089 = vpop.f32.mrb[0].mxu0
        %5090 = vmatprep.mubr.f32.mxu0 0.0
        %5091 = vmatmul.mubr.f32.gmra.mrb[0].mxu0 %v3703
        %v5092 = vpop.f32.mrb[0].mxu0
        %v5093 = vadd.f32 0.0, %v5092
        %v5094 = vpop.f32.mrb[0].mxu0
        %5095 = vmatprep.mubr.f32.mxu0 0.0
        %5096 = vmatmul.mubr.f32.gmra.mrb[0].mxu0 %v3705
        %v5097 = vpop.f32.mrb[0].mxu0
        %v5098 = vadd.f32 0.0, %v5097
        %v5099 = vpop.f32.mrb[0].mxu0
        %5100 = vmatprep.mubr.f32.mxu0 0.0
        %5101 = vmatmul.mubr.f32.gmra.mrb[0].mxu0 %v3707
        %v5102 = vpop.f32.mrb[0].mxu0
        %v5103 = vadd.f32 0.0, %v5102
        %v5104 = vpop.f32.mrb[0].mxu0
        %5105 = vmatprep.mubr.f32.mxu0 0.0
        %5106 = vmatmul.mubr.f32.gmra.mrb[0].mxu0 %v3709
        %v5107 = vpop.f32.mrb[0].mxu0
        %v5108 = vadd.f32 0.0, %v5107
        %v5109 = vpop.f32.mrb[0].mxu0
        %5110 = vmatprep.mubr.f32.mxu0 0.0
        %5111 = vmatmul.mubr.f32.gmra.mrb[0].mxu0 %v3711
        %v5112 = vpop.f32.mrb[0].mxu0
        %v5113 = vadd.f32 0.0, %v5112
        %v5114 = vpop.f32.mrb[0].mxu0
        %5115 = vmatprep.mubr.f32.mxu0 0.0
        %5116 = vmatmul.mubr.f32.gmra.mrb[0].mxu0 %v4897
        %v5117 = vpop.f32.mrb[0].mxu0
        %v5118 = vadd.f32 0.0, %v5117
        %v5119 = vpop.f32.mrb[0].mxu0
        %5120 = vmatprep.mubr.f32.mxu0 0.0
        %5121 = vmatmul.mubr.f32.gmra.mrb[0].mxu0 %v4899
        %v5122 = vpop.f32.mrb[0].mxu0
        %v5123 = vadd.f32 0.0, %v5122
        %v5124 = vpop.f32.mrb[0].mxu0
        %5125 = vdwg.mxu0
        %v5126 = vadd.f32 %v4859, %v4968
        %v5127 = vadd.f32 %v4860, %v4973
        %v5128 = vadd.f32 %v4861, %v4978
        %v5129 = vadd.f32 %v4862, %v4983
        %v5130 = vadd.f32 %v4863, %v4988
        %v5131 = vadd.f32 %v4864, %v4993
        %v5132 = vadd.f32 %v4865, %v4998
        %v5133 = vadd.f32 %v4866, %v5003
        %v5134 = vadd.f32 %v4867, %v5008
        %v5135 = vadd.f32 %v4868, %v5013
        %v5136 = vadd.f32 %v4869, %v5018
        %v5137 = vadd.f32 %v4870, %v5023
        %v5138 = vadd.f32 %v4871, %v5028
        %v5139 = vadd.f32 %v4872, %v5033
        %v5140 = vadd.f32 %v4873, %v5038
        %v5141 = vadd.f32 %v4874, %v5043
        %v5142 = vadd.f32 %v4875, %v5048
        %v5143 = vadd.f32 %v4876, %v5053
        %v5144 = vadd.f32 %v4877, %v5058
        %v5145 = vadd.f32 %v4878, %v5063
        %v5146 = vadd.f32 %v4879, %v5068
        %v5147 = vadd.f32 %v4880, %v5073
        %v5148 = vadd.f32 %v4881, %v5078
        %v5149 = vadd.f32 %v4882, %v5083
        %v5150 = vadd.f32 %v4883, %v5088
        %v5151 = vadd.f32 %v4884, %v5093
        %v5152 = vadd.f32 %v4885, %v5098
        %v5153 = vadd.f32 %v4886, %v5103
        %v5154 = vadd.f32 %v4887, %v5108
        %v5155 = vadd.f32 %v4888, %v5113
        %v5156 = vadd.f32 %v4889, %v5118
        %v5157 = vadd.f32 %v4890, %v5123
        %v5158 = vrot.slane %v3506, 2
        %v5159 = vrot.slane %v3507, 2
        %v5160 = vsel %vm1137, %v5158, %v5159
        %v5161 = vrot.slane %v3508, 2
        %v5162 = vsel %vm1137, %v5159, %v5161
        %v5163 = vsel %vm253, %v5160, 0
        %v5165 = vsel %vm253, %v5162, 0
        %5167 = vmatprep.subr.mxu0 0.0
        %5168 = vmatpush1.msra.mxu0 %v3517
        %5169 = vmatprep.subr.mxu0 0.0
        %5170 = vmatpush1.msra.mxu0 0.0
        %5171 = vmatprep.subr.mxu0 0.0
        %5172 = vmatpush1.msra.mxu0 0.0
        %5173 = vmatprep.subr.mxu0 0.0
        %5174 = vmatpush1.msra.mxu0 0.0
        %5175 = vmatprep.subr.mxu0 0.0
        %5176 = vmatpush1.msra.mxu0 0.0
        %5177 = vmatprep.subr.mxu0 0.0
        %5178 = vmatpush1.msra.mxu0 0.0
        %5179 = vmatprep.subr.mxu0 0.0
        %5180 = vmatpush1.msra.mxu0 0.0
        %5181 = vmatprep.subr.mxu0 0.0
        %5182 = vmatpush1.msra.mxu0 0.0
        %5183 = vmatprep.subr.mxu0 0.0
        %5184 = vmatpush1.msra.mxu0 0.0
        %5185 = vmatprep.subr.mxu0 0.0
        %5186 = vmatpush1.msra.mxu0 0.0
        %5187 = vmatprep.subr.mxu0 0.0
        %5188 = vmatpush1.msra.mxu0 0.0
        %5189 = vmatprep.subr.mxu0 0.0
        %5190 = vmatpush1.msra.mxu0 0.0
        %5191 = vmatprep.subr.mxu0 0.0
        %5192 = vmatpush1.msra.mxu0 0.0
        %5193 = vmatprep.subr.mxu0 0.0
        %5194 = vmatpush1.msra.mxu0 0.0
        %5195 = vmatprep.subr.mxu0 0.0
        %5196 = vmatpush1.msra.mxu0 0.0
        %5197 = vmatprep.subr.mxu0 0.0
        %5198 = vmatpush1.msra.mxu0 0.0
        %5199 = vmatprep.subr.mxu0 0.0
        %5200 = vmatpush1.msra.mxu0 0.0
        %5201 = vmatprep.subr.mxu0 0.0
        %5202 = vmatpush1.msra.mxu0 0.0
        %5203 = vmatprep.subr.mxu0 0.0
        %5204 = vmatpush1.msra.mxu0 0.0
        %5205 = vmatprep.subr.mxu0 0.0
        %5206 = vmatpush1.msra.mxu0 0.0
        %5207 = vmatprep.subr.mxu0 0.0
        %5208 = vmatpush1.msra.mxu0 0.0
        %5209 = vmatprep.subr.mxu0 0.0
        %5210 = vmatpush1.msra.mxu0 0.0
        %5211 = vmatprep.subr.mxu0 0.0
        %5212 = vmatpush1.msra.mxu0 0.0
        %5213 = vmatprep.subr.mxu0 0.0
        %5214 = vmatpush1.msra.mxu0 0.0
        %5215 = vmatprep.subr.mxu0 0.0
        %5216 = vmatpush1.msra.mxu0 0.0
        %5217 = vmatprep.subr.mxu0 0.0
        %5218 = vmatpush1.msra.mxu0 0.0
        %5219 = vmatprep.subr.mxu0 0.0
        %5220 = vmatpush1.msra.mxu0 0.0
        %5221 = vmatprep.subr.mxu0 0.0
        %5222 = vmatpush1.msra.mxu0 0.0
        %5223 = vmatprep.subr.mxu0 0.0
        %5224 = vmatpush1.msra.mxu0 0.0
        %5225 = vmatprep.subr.mxu0 0.0
        %5226 = vmatpush1.msra.mxu0 0.0
        %5227 = vmatprep.subr.mxu0 0.0
        %5228 = vmatpush1.msra.mxu0 0.0
        %5229 = vmatprep.subr.mxu0 0.0
        %5230 = vmatpush1.msra.mxu0 0.0
        %5231 = vmatprep.mubr.f32.mxu0 0.0
        %5232 = vmatmul.mubr.f32.gmra.mrb[0].mxu0 %v4311
        %v5233 = vpop.f32.mrb[0].mxu0
        %v5234 = vadd.f32 0.0, %v5233
        %v5235 = vpop.f32.mrb[0].mxu0
        %5236 = vmatprep.mubr.f32.mxu0 0.0
        %5237 = vmatmul.mubr.f32.gmra.mrb[0].mxu0 %v4313
        %v5238 = vpop.f32.mrb[0].mxu0
        %v5239 = vadd.f32 0.0, %v5238
        %v5240 = vpop.f32.mrb[0].mxu0
        %5241 = vmatprep.mubr.f32.mxu0 0.0
        %5242 = vmatmul.mubr.f32.gmra.mrb[0].mxu0 %v4315
        %v5243 = vpop.f32.mrb[0].mxu0
        %v5244 = vadd.f32 0.0, %v5243
        %v5245 = vpop.f32.mrb[0].mxu0
        %5246 = vmatprep.mubr.f32.mxu0 0.0
        %5247 = vmatmul.mubr.f32.gmra.mrb[0].mxu0 %v4317
        %v5248 = vpop.f32.mrb[0].mxu0
        %v5249 = vadd.f32 0.0, %v5248
        %v5250 = vpop.f32.mrb[0].mxu0
        %5251 = vmatprep.mubr.f32.mxu0 0.0
        %5252 = vmatmul.mubr.f32.gmra.mrb[0].mxu0 %v4319
        %v5253 = vpop.f32.mrb[0].mxu0
        %v5254 = vadd.f32 0.0, %v5253
        %v5255 = vpop.f32.mrb[0].mxu0
        %5256 = vmatprep.mubr.f32.mxu0 0.0
        %5257 = vmatmul.mubr.f32.gmra.mrb[0].mxu0 %v4321
        %v5258 = vpop.f32.mrb[0].mxu0
        %v5259 = vadd.f32 0.0, %v5258
        %v5260 = vpop.f32.mrb[0].mxu0
        %5261 = vmatprep.mubr.f32.mxu0 0.0
        %5262 = vmatmul.mubr.f32.gmra.mrb[0].mxu0 %v4323
        %v5263 = vpop.f32.mrb[0].mxu0
        %v5264 = vadd.f32 0.0, %v5263
        %v5265 = vpop.f32.mrb[0].mxu0
        %5266 = vmatprep.mubr.f32.mxu0 0.0
        %5267 = vmatmul.mubr.f32.gmra.mrb[0].mxu0 %v4325
        %v5268 = vpop.f32.mrb[0].mxu0
        %v5269 = vadd.f32 0.0, %v5268
        %v5270 = vpop.f32.mrb[0].mxu0
        %5271 = vmatprep.mubr.f32.mxu0 0.0
        %5272 = vmatmul.mubr.f32.gmra.mrb[0].mxu0 %v4327
        %v5273 = vpop.f32.mrb[0].mxu0
        %v5274 = vadd.f32 0.0, %v5273
        %v5275 = vpop.f32.mrb[0].mxu0
        %5276 = vmatprep.mubr.f32.mxu0 0.0
        %5277 = vmatmul.mubr.f32.gmra.mrb[0].mxu0 %v4329
        %v5278 = vpop.f32.mrb[0].mxu0
        %v5279 = vadd.f32 0.0, %v5278
        %v5280 = vpop.f32.mrb[0].mxu0
        %5281 = vmatprep.mubr.f32.mxu0 0.0
        %5282 = vmatmul.mubr.f32.gmra.mrb[0].mxu0 %v4331
        %v5283 = vpop.f32.mrb[0].mxu0
        %v5284 = vadd.f32 0.0, %v5283
        %v5285 = vpop.f32.mrb[0].mxu0
        %5286 = vmatprep.mubr.f32.mxu0 0.0
        %5287 = vmatmul.mubr.f32.gmra.mrb[0].mxu0 %v4333
        %v5288 = vpop.f32.mrb[0].mxu0
        %v5289 = vadd.f32 0.0, %v5288
        %v5290 = vpop.f32.mrb[0].mxu0
        %5291 = vmatprep.mubr.f32.mxu0 0.0
        %5292 = vmatmul.mubr.f32.gmra.mrb[0].mxu0 %v4335
        %v5293 = vpop.f32.mrb[0].mxu0
        %v5294 = vadd.f32 0.0, %v5293
        %v5295 = vpop.f32.mrb[0].mxu0
        %5296 = vmatprep.mubr.f32.mxu0 0.0
        %5297 = vmatmul.mubr.f32.gmra.mrb[0].mxu0 %v4337
        %v5298 = vpop.f32.mrb[0].mxu0
        %v5299 = vadd.f32 0.0, %v5298
        %v5300 = vpop.f32.mrb[0].mxu0
        %5301 = vmatprep.mubr.f32.mxu0 0.0
        %5302 = vmatmul.mubr.f32.gmra.mrb[0].mxu0 %v4339
        %v5303 = vpop.f32.mrb[0].mxu0
        %v5304 = vadd.f32 0.0, %v5303
        %v5305 = vpop.f32.mrb[0].mxu0
        %5306 = vmatprep.mubr.f32.mxu0 0.0
        %5307 = vmatmul.mubr.f32.gmra.mrb[0].mxu0 %v4341
        %v5308 = vpop.f32.mrb[0].mxu0
        %v5309 = vadd.f32 0.0, %v5308
        %v5310 = vpop.f32.mrb[0].mxu0
        %5311 = vmatprep.mubr.f32.mxu0 0.0
        %5312 = vmatmul.mubr.f32.gmra.mrb[0].mxu0 %v4343
        %v5313 = vpop.f32.mrb[0].mxu0
        %v5314 = vadd.f32 0.0, %v5313
        %v5315 = vpop.f32.mrb[0].mxu0
        %5316 = vmatprep.mubr.f32.mxu0 0.0
        %5317 = vmatmul.mubr.f32.gmra.mrb[0].mxu0 %v4345
        %v5318 = vpop.f32.mrb[0].mxu0
        %v5319 = vadd.f32 0.0, %v5318
        %v5320 = vpop.f32.mrb[0].mxu0
        %5321 = vmatprep.mubr.f32.mxu0 0.0
        %5322 = vmatmul.mubr.f32.gmra.mrb[0].mxu0 %v4347
        %v5323 = vpop.f32.mrb[0].mxu0
        %v5324 = vadd.f32 0.0, %v5323
        %v5325 = vpop.f32.mrb[0].mxu0
        %5326 = vmatprep.mubr.f32.mxu0 0.0
        %5327 = vmatmul.mubr.f32.gmra.mrb[0].mxu0 %v4349
        %v5328 = vpop.f32.mrb[0].mxu0
        %v5329 = vadd.f32 0.0, %v5328
        %v5330 = vpop.f32.mrb[0].mxu0
        %5331 = vmatprep.mubr.f32.mxu0 0.0
        %5332 = vmatmul.mubr.f32.gmra.mrb[0].mxu0 %v4351
        %v5333 = vpop.f32.mrb[0].mxu0
        %v5334 = vadd.f32 0.0, %v5333
        %v5335 = vpop.f32.mrb[0].mxu0
        %5336 = vmatprep.mubr.f32.mxu0 0.0
        %5337 = vmatmul.mubr.f32.gmra.mrb[0].mxu0 %v4353
        %v5338 = vpop.f32.mrb[0].mxu0
        %v5339 = vadd.f32 0.0, %v5338
        %v5340 = vpop.f32.mrb[0].mxu0
        %5341 = vmatprep.mubr.f32.mxu0 0.0
        %5342 = vmatmul.mubr.f32.gmra.mrb[0].mxu0 %v4355
        %v5343 = vpop.f32.mrb[0].mxu0
        %v5344 = vadd.f32 0.0, %v5343
        %v5345 = vpop.f32.mrb[0].mxu0
        %5346 = vmatprep.mubr.f32.mxu0 0.0
        %5347 = vmatmul.mubr.f32.gmra.mrb[0].mxu0 %v4357
        %v5348 = vpop.f32.mrb[0].mxu0
        %v5349 = vadd.f32 0.0, %v5348
        %v5350 = vpop.f32.mrb[0].mxu0
        %5351 = vmatprep.mubr.f32.mxu0 0.0
        %5352 = vmatmul.mubr.f32.gmra.mrb[0].mxu0 %v4359
        %v5353 = vpop.f32.mrb[0].mxu0
        %v5354 = vadd.f32 0.0, %v5353
        %v5355 = vpop.f32.mrb[0].mxu0
        %5356 = vmatprep.mubr.f32.mxu0 0.0
        %5357 = vmatmul.mubr.f32.gmra.mrb[0].mxu0 %v4361
        %v5358 = vpop.f32.mrb[0].mxu0
        %v5359 = vadd.f32 0.0, %v5358
        %v5360 = vpop.f32.mrb[0].mxu0
        %5361 = vmatprep.mubr.f32.mxu0 0.0
        %5362 = vmatmul.mubr.f32.gmra.mrb[0].mxu0 %v4363
        %v5363 = vpop.f32.mrb[0].mxu0
        %v5364 = vadd.f32 0.0, %v5363
        %v5365 = vpop.f32.mrb[0].mxu0
        %5366 = vmatprep.mubr.f32.mxu0 0.0
        %5367 = vmatmul.mubr.f32.gmra.mrb[0].mxu0 %v4365
        %v5368 = vpop.f32.mrb[0].mxu0
        %v5369 = vadd.f32 0.0, %v5368
        %v5370 = vpop.f32.mrb[0].mxu0
        %5371 = vmatprep.mubr.f32.mxu0 0.0
        %5372 = vmatmul.mubr.f32.gmra.mrb[0].mxu0 %v4367
        %v5373 = vpop.f32.mrb[0].mxu0
        %v5374 = vadd.f32 0.0, %v5373
        %v5375 = vpop.f32.mrb[0].mxu0
        %5376 = vmatprep.mubr.f32.mxu0 0.0
        %5377 = vmatmul.mubr.f32.gmra.mrb[0].mxu0 %v4369
        %v5378 = vpop.f32.mrb[0].mxu0
        %v5379 = vadd.f32 0.0, %v5378
        %v5380 = vpop.f32.mrb[0].mxu0
        %5381 = vmatprep.mubr.f32.mxu0 0.0
        %5382 = vmatmul.mubr.f32.gmra.mrb[0].mxu0 %v5163
        %v5383 = vpop.f32.mrb[0].mxu0
        %v5384 = vadd.f32 0.0, %v5383
        %v5385 = vpop.f32.mrb[0].mxu0
        %5386 = vmatprep.mubr.f32.mxu0 0.0
        %5387 = vmatmul.mubr.f32.gmra.mrb[0].mxu0 %v5165
        %v5388 = vpop.f32.mrb[0].mxu0
        %v5389 = vadd.f32 0.0, %v5388
        %v5390 = vpop.f32.mrb[0].mxu0
        %5391 = vdwg.mxu0
        %v5392 = vadd.f32 %v5126, %v5234
        %v5393 = vadd.f32 %v5127, %v5239
        %v5394 = vadd.f32 %v5128, %v5244
        %v5395 = vadd.f32 %v5129, %v5249
        %v5396 = vadd.f32 %v5130, %v5254
        %v5397 = vadd.f32 %v5131, %v5259
        %v5398 = vadd.f32 %v5132, %v5264
        %v5399 = vadd.f32 %v5133, %v5269
        %v5400 = vadd.f32 %v5134, %v5274
        %v5401 = vadd.f32 %v5135, %v5279
        %v5402 = vadd.f32 %v5136, %v5284
        %v5403 = vadd.f32 %v5137, %v5289
        %v5404 = vadd.f32 %v5138, %v5294
        %v5405 = vadd.f32 %v5139, %v5299
        %v5406 = vadd.f32 %v5140, %v5304
        %v5407 = vadd.f32 %v5141, %v5309
        %v5408 = vadd.f32 %v5142, %v5314
        %v5409 = vadd.f32 %v5143, %v5319
        %v5410 = vadd.f32 %v5144, %v5324
        %v5411 = vadd.f32 %v5145, %v5329
        %v5412 = vadd.f32 %v5146, %v5334
        %v5413 = vadd.f32 %v5147, %v5339
        %v5414 = vadd.f32 %v5148, %v5344
        %v5415 = vadd.f32 %v5149, %v5349
        %v5416 = vadd.f32 %v5150, %v5354
        %v5417 = vadd.f32 %v5151, %v5359
        %v5418 = vadd.f32 %v5152, %v5364
        %v5419 = vadd.f32 %v5153, %v5369
        %v5420 = vadd.f32 %v5154, %v5374
        %v5421 = vadd.f32 %v5155, %v5379
        %v5422 = vadd.f32 %v5156, %v5384
        %v5423 = vadd.f32 %v5157, %v5389
        %v5425 = vsel %vm253, %v3509, 0
        %v5428 = vsel %vm253, %v3510, 0
        %5430 = vmatprep.subr.mxu0 0.0
        %5431 = vmatpush1.msra.mxu0 %v3518
        %5432 = vmatprep.subr.mxu0 0.0
        %5433 = vmatpush1.msra.mxu0 0.0
        %5434 = vmatprep.subr.mxu0 0.0
        %5435 = vmatpush1.msra.mxu0 0.0
        %5436 = vmatprep.subr.mxu0 0.0
        %5437 = vmatpush1.msra.mxu0 0.0
        %5438 = vmatprep.subr.mxu0 0.0
        %5439 = vmatpush1.msra.mxu0 0.0
        %5440 = vmatprep.subr.mxu0 0.0
        %5441 = vmatpush1.msra.mxu0 0.0
        %5442 = vmatprep.subr.mxu0 0.0
        %5443 = vmatpush1.msra.mxu0 0.0
        %5444 = vmatprep.subr.mxu0 0.0
        %5445 = vmatpush1.msra.mxu0 0.0
        %5446 = vmatprep.subr.mxu0 0.0
        %5447 = vmatpush1.msra.mxu0 0.0
        %5448 = vmatprep.subr.mxu0 0.0
        %5449 = vmatpush1.msra.mxu0 0.0
        %5450 = vmatprep.subr.mxu0 0.0
        %5451 = vmatpush1.msra.mxu0 0.0
        %5452 = vmatprep.subr.mxu0 0.0
        %5453 = vmatpush1.msra.mxu0 0.0
        %5454 = vmatprep.subr.mxu0 0.0
        %5455 = vmatpush1.msra.mxu0 0.0
        %5456 = vmatprep.subr.mxu0 0.0
        %5457 = vmatpush1.msra.mxu0 0.0
        %5458 = vmatprep.subr.mxu0 0.0
        %5459 = vmatpush1.msra.mxu0 0.0
        %5460 = vmatprep.subr.mxu0 0.0
        %5461 = vmatpush1.msra.mxu0 0.0
        %5462 = vmatprep.subr.mxu0 0.0
        %5463 = vmatpush1.msra.mxu0 0.0
        %5464 = vmatprep.subr.mxu0 0.0
        %5465 = vmatpush1.msra.mxu0 0.0
        %5466 = vmatprep.subr.mxu0 0.0
        %5467 = vmatpush1.msra.mxu0 0.0
        %5468 = vmatprep.subr.mxu0 0.0
        %5469 = vmatpush1.msra.mxu0 0.0
        %5470 = vmatprep.subr.mxu0 0.0
        %5471 = vmatpush1.msra.mxu0 0.0
        %5472 = vmatprep.subr.mxu0 0.0
        %5473 = vmatpush1.msra.mxu0 0.0
        %5474 = vmatprep.subr.mxu0 0.0
        %5475 = vmatpush1.msra.mxu0 0.0
        %5476 = vmatprep.subr.mxu0 0.0
        %5477 = vmatpush1.msra.mxu0 0.0
        %5478 = vmatprep.subr.mxu0 0.0
        %5479 = vmatpush1.msra.mxu0 0.0
        %5480 = vmatprep.subr.mxu0 0.0
        %5481 = vmatpush1.msra.mxu0 0.0
        %5482 = vmatprep.subr.mxu0 0.0
        %5483 = vmatpush1.msra.mxu0 0.0
        %5484 = vmatprep.subr.mxu0 0.0
        %5485 = vmatpush1.msra.mxu0 0.0
        %5486 = vmatprep.subr.mxu0 0.0
        %5487 = vmatpush1.msra.mxu0 0.0
        %5488 = vmatprep.subr.mxu0 0.0
        %5489 = vmatpush1.msra.mxu0 0.0
        %5490 = vmatprep.subr.mxu0 0.0
        %5491 = vmatpush1.msra.mxu0 0.0
        %5492 = vmatprep.subr.mxu0 0.0
        %5493 = vmatpush1.msra.mxu0 0.0
        %5494 = vmatprep.mubr.f32.mxu0 0.0
        %5495 = vmatmul.mubr.f32.gmra.mrb[0].mxu0 %v3946
        %v5496 = vpop.f32.mrb[0].mxu0
        %v5497 = vadd.f32 0.0, %v5496
        %v5498 = vpop.f32.mrb[0].mxu0
        %5499 = vmatprep.mubr.f32.mxu0 0.0
        %5500 = vmatmul.mubr.f32.gmra.mrb[0].mxu0 %v3948
        %v5501 = vpop.f32.mrb[0].mxu0
        %v5502 = vadd.f32 0.0, %v5501
        %v5503 = vpop.f32.mrb[0].mxu0
        %5504 = vmatprep.mubr.f32.mxu0 0.0
        %5505 = vmatmul.mubr.f32.gmra.mrb[0].mxu0 %v3950
        %v5506 = vpop.f32.mrb[0].mxu0
        %v5507 = vadd.f32 0.0, %v5506
        %v5508 = vpop.f32.mrb[0].mxu0
        %5509 = vmatprep.mubr.f32.mxu0 0.0
        %5510 = vmatmul.mubr.f32.gmra.mrb[0].mxu0 %v3952
        %v5511 = vpop.f32.mrb[0].mxu0
        %v5512 = vadd.f32 0.0, %v5511
        %v5513 = vpop.f32.mrb[0].mxu0
        %5514 = vmatprep.mubr.f32.mxu0 0.0
        %5515 = vmatmul.mubr.f32.gmra.mrb[0].mxu0 %v3954
        %v5516 = vpop.f32.mrb[0].mxu0
        %v5517 = vadd.f32 0.0, %v5516
        %v5518 = vpop.f32.mrb[0].mxu0
        %5519 = vmatprep.mubr.f32.mxu0 0.0
        %5520 = vmatmul.mubr.f32.gmra.mrb[0].mxu0 %v3956
        %v5521 = vpop.f32.mrb[0].mxu0
        %v5522 = vadd.f32 0.0, %v5521
        %v5523 = vpop.f32.mrb[0].mxu0
        %5524 = vmatprep.mubr.f32.mxu0 0.0
        %5525 = vmatmul.mubr.f32.gmra.mrb[0].mxu0 %v3958
        %v5526 = vpop.f32.mrb[0].mxu0
        %v5527 = vadd.f32 0.0, %v5526
        %v5528 = vpop.f32.mrb[0].mxu0
        %5529 = vmatprep.mubr.f32.mxu0 0.0
        %5530 = vmatmul.mubr.f32.gmra.mrb[0].mxu0 %v3960
        %v5531 = vpop.f32.mrb[0].mxu0
        %v5532 = vadd.f32 0.0, %v5531
        %v5533 = vpop.f32.mrb[0].mxu0
        %5534 = vmatprep.mubr.f32.mxu0 0.0
        %5535 = vmatmul.mubr.f32.gmra.mrb[0].mxu0 %v3962
        %v5536 = vpop.f32.mrb[0].mxu0
        %v5537 = vadd.f32 0.0, %v5536
        %v5538 = vpop.f32.mrb[0].mxu0
        %5539 = vmatprep.mubr.f32.mxu0 0.0
        %5540 = vmatmul.mubr.f32.gmra.mrb[0].mxu0 %v3964
        %v5541 = vpop.f32.mrb[0].mxu0
        %v5542 = vadd.f32 0.0, %v5541
        %v5543 = vpop.f32.mrb[0].mxu0
        %5544 = vmatprep.mubr.f32.mxu0 0.0
        %5545 = vmatmul.mubr.f32.gmra.mrb[0].mxu0 %v3966
        %v5546 = vpop.f32.mrb[0].mxu0
        %v5547 = vadd.f32 0.0, %v5546
        %v5548 = vpop.f32.mrb[0].mxu0
        %5549 = vmatprep.mubr.f32.mxu0 0.0
        %5550 = vmatmul.mubr.f32.gmra.mrb[0].mxu0 %v3968
        %v5551 = vpop.f32.mrb[0].mxu0
        %v5552 = vadd.f32 0.0, %v5551
        %v5553 = vpop.f32.mrb[0].mxu0
        %5554 = vmatprep.mubr.f32.mxu0 0.0
        %5555 = vmatmul.mubr.f32.gmra.mrb[0].mxu0 %v3970
        %v5556 = vpop.f32.mrb[0].mxu0
        %v5557 = vadd.f32 0.0, %v5556
        %v5558 = vpop.f32.mrb[0].mxu0
        %5559 = vmatprep.mubr.f32.mxu0 0.0
        %5560 = vmatmul.mubr.f32.gmra.mrb[0].mxu0 %v3972
        %v5561 = vpop.f32.mrb[0].mxu0
        %v5562 = vadd.f32 0.0, %v5561
        %v5563 = vpop.f32.mrb[0].mxu0
        %5564 = vmatprep.mubr.f32.mxu0 0.0
        %5565 = vmatmul.mubr.f32.gmra.mrb[0].mxu0 %v3974
        %v5566 = vpop.f32.mrb[0].mxu0
        %v5567 = vadd.f32 0.0, %v5566
        %v5568 = vpop.f32.mrb[0].mxu0
        %5569 = vmatprep.mubr.f32.mxu0 0.0
        %5570 = vmatmul.mubr.f32.gmra.mrb[0].mxu0 %v3976
        %v5571 = vpop.f32.mrb[0].mxu0
        %v5572 = vadd.f32 0.0, %v5571
        %v5573 = vpop.f32.mrb[0].mxu0
        %5574 = vmatprep.mubr.f32.mxu0 0.0
        %5575 = vmatmul.mubr.f32.gmra.mrb[0].mxu0 %v3978
        %v5576 = vpop.f32.mrb[0].mxu0
        %v5577 = vadd.f32 0.0, %v5576
        %v5578 = vpop.f32.mrb[0].mxu0
        %5579 = vmatprep.mubr.f32.mxu0 0.0
        %5580 = vmatmul.mubr.f32.gmra.mrb[0].mxu0 %v3980
        %v5581 = vpop.f32.mrb[0].mxu0
        %v5582 = vadd.f32 0.0, %v5581
        %v5583 = vpop.f32.mrb[0].mxu0
        %5584 = vmatprep.mubr.f32.mxu0 0.0
        %5585 = vmatmul.mubr.f32.gmra.mrb[0].mxu0 %v3982
        %v5586 = vpop.f32.mrb[0].mxu0
        %v5587 = vadd.f32 0.0, %v5586
        %v5588 = vpop.f32.mrb[0].mxu0
        %5589 = vmatprep.mubr.f32.mxu0 0.0
        %5590 = vmatmul.mubr.f32.gmra.mrb[0].mxu0 %v3984
        %v5591 = vpop.f32.mrb[0].mxu0
        %v5592 = vadd.f32 0.0, %v5591
        %v5593 = vpop.f32.mrb[0].mxu0
        %5594 = vmatprep.mubr.f32.mxu0 0.0
        %5595 = vmatmul.mubr.f32.gmra.mrb[0].mxu0 %v3986
        %v5596 = vpop.f32.mrb[0].mxu0
        %v5597 = vadd.f32 0.0, %v5596
        %v5598 = vpop.f32.mrb[0].mxu0
        %5599 = vmatprep.mubr.f32.mxu0 0.0
        %5600 = vmatmul.mubr.f32.gmra.mrb[0].mxu0 %v3988
        %v5601 = vpop.f32.mrb[0].mxu0
        %v5602 = vadd.f32 0.0, %v5601
        %v5603 = vpop.f32.mrb[0].mxu0
        %5604 = vmatprep.mubr.f32.mxu0 0.0
        %5605 = vmatmul.mubr.f32.gmra.mrb[0].mxu0 %v3990
        %v5606 = vpop.f32.mrb[0].mxu0
        %v5607 = vadd.f32 0.0, %v5606
        %v5608 = vpop.f32.mrb[0].mxu0
        %5609 = vmatprep.mubr.f32.mxu0 0.0
        %5610 = vmatmul.mubr.f32.gmra.mrb[0].mxu0 %v3992
        %v5611 = vpop.f32.mrb[0].mxu0
        %v5612 = vadd.f32 0.0, %v5611
        %v5613 = vpop.f32.mrb[0].mxu0
        %5614 = vmatprep.mubr.f32.mxu0 0.0
        %5615 = vmatmul.mubr.f32.gmra.mrb[0].mxu0 %v3994
        %v5616 = vpop.f32.mrb[0].mxu0
        %v5617 = vadd.f32 0.0, %v5616
        %v5618 = vpop.f32.mrb[0].mxu0
        %5619 = vmatprep.mubr.f32.mxu0 0.0
        %5620 = vmatmul.mubr.f32.gmra.mrb[0].mxu0 %v3996
        %v5621 = vpop.f32.mrb[0].mxu0
        %v5622 = vadd.f32 0.0, %v5621
        %v5623 = vpop.f32.mrb[0].mxu0
        %5624 = vmatprep.mubr.f32.mxu0 0.0
        %5625 = vmatmul.mubr.f32.gmra.mrb[0].mxu0 %v3998
        %v5626 = vpop.f32.mrb[0].mxu0
        %v5627 = vadd.f32 0.0, %v5626
        %v5628 = vpop.f32.mrb[0].mxu0
        %5629 = vmatprep.mubr.f32.mxu0 0.0
        %5630 = vmatmul.mubr.f32.gmra.mrb[0].mxu0 %v4000
        %v5631 = vpop.f32.mrb[0].mxu0
        %v5632 = vadd.f32 0.0, %v5631
        %v5633 = vpop.f32.mrb[0].mxu0
        %5634 = vmatprep.mubr.f32.mxu0 0.0
        %5635 = vmatmul.mubr.f32.gmra.mrb[0].mxu0 %v4629
        %v5636 = vpop.f32.mrb[0].mxu0
        %v5637 = vadd.f32 0.0, %v5636
        %v5638 = vpop.f32.mrb[0].mxu0
        %5639 = vmatprep.mubr.f32.mxu0 0.0
        %5640 = vmatmul.mubr.f32.gmra.mrb[0].mxu0 %v4632
        %v5641 = vpop.f32.mrb[0].mxu0
        %v5642 = vadd.f32 0.0, %v5641
        %v5643 = vpop.f32.mrb[0].mxu0
        %5644 = vmatprep.mubr.f32.mxu0 0.0
        %5645 = vmatmul.mubr.f32.gmra.mrb[0].mxu0 %v5425
        %v5646 = vpop.f32.mrb[0].mxu0
        %v5647 = vadd.f32 0.0, %v5646
        %v5648 = vpop.f32.mrb[0].mxu0
        %5649 = vmatprep.mubr.f32.mxu0 0.0
        %5650 = vmatmul.mubr.f32.gmra.mrb[0].mxu0 %v5428
        %v5651 = vpop.f32.mrb[0].mxu0
        %v5652 = vadd.f32 0.0, %v5651
        %v5653 = vpop.f32.mrb[0].mxu0
        %5654 = vdwg.mxu0
        %v5655 = vadd.f32 %v5392, %v5497
        %v5656 = vadd.f32 %v5393, %v5502
        %v5657 = vadd.f32 %v5394, %v5507
        %v5658 = vadd.f32 %v5395, %v5512
        %v5659 = vadd.f32 %v5396, %v5517
        %v5660 = vadd.f32 %v5397, %v5522
        %v5661 = vadd.f32 %v5398, %v5527
        %v5662 = vadd.f32 %v5399, %v5532
        %v5663 = vadd.f32 %v5400, %v5537
        %v5664 = vadd.f32 %v5401, %v5542
        %v5665 = vadd.f32 %v5402, %v5547
        %v5666 = vadd.f32 %v5403, %v5552
        %v5667 = vadd.f32 %v5404, %v5557
        %v5668 = vadd.f32 %v5405, %v5562
        %v5669 = vadd.f32 %v5406, %v5567
        %v5670 = vadd.f32 %v5407, %v5572
        %v5671 = vadd.f32 %v5408, %v5577
        %v5672 = vadd.f32 %v5409, %v5582
        %v5673 = vadd.f32 %v5410, %v5587
        %v5674 = vadd.f32 %v5411, %v5592
        %v5675 = vadd.f32 %v5412, %v5597
        %v5676 = vadd.f32 %v5413, %v5602
        %v5677 = vadd.f32 %v5414, %v5607
        %v5678 = vadd.f32 %v5415, %v5612
        %v5679 = vadd.f32 %v5416, %v5617
        %v5680 = vadd.f32 %v5417, %v5622
        %v5681 = vadd.f32 %v5418, %v5627
        %v5682 = vadd.f32 %v5419, %v5632
        %v5683 = vadd.f32 %v5420, %v5637
        %v5684 = vadd.f32 %v5421, %v5642
        %v5685 = vadd.f32 %v5422, %v5647
        %v5686 = vadd.f32 %v5423, %v5652
        %v5688 = vrot.slane %v3509, 1
        %v5689 = vrot.slane %v3510, 1
        %v5690 = vsel %vm471, %v5688, %v5689
        %v5691 = vrot.slane %v3511, 1
        %v5692 = vsel %vm471, %v5689, %v5691
        %v5693 = vsel %vm253, %v5690, 0
        %v5695 = vsel %vm253, %v5692, 0
        %5697 = vmatprep.subr.mxu0 0.0
        %5698 = vmatpush1.msra.mxu0 %v3519
        %5699 = vmatprep.subr.mxu0 0.0
        %5700 = vmatpush1.msra.mxu0 0.0
        %5701 = vmatprep.subr.mxu0 0.0
        %5702 = vmatpush1.msra.mxu0 0.0
        %5703 = vmatprep.subr.mxu0 0.0
        %5704 = vmatpush1.msra.mxu0 0.0
        %5705 = vmatprep.subr.mxu0 0.0
        %5706 = vmatpush1.msra.mxu0 0.0
        %5707 = vmatprep.subr.mxu0 0.0
        %5708 = vmatpush1.msra.mxu0 0.0
        %5709 = vmatprep.subr.mxu0 0.0
        %5710 = vmatpush1.msra.mxu0 0.0
        %5711 = vmatprep.subr.mxu0 0.0
        %5712 = vmatpush1.msra.mxu0 0.0
        %5713 = vmatprep.subr.mxu0 0.0
        %5714 = vmatpush1.msra.mxu0 0.0
        %5715 = vmatprep.subr.mxu0 0.0
        %5716 = vmatpush1.msra.mxu0 0.0
        %5717 = vmatprep.subr.mxu0 0.0
        %5718 = vmatpush1.msra.mxu0 0.0
        %5719 = vmatprep.subr.mxu0 0.0
        %5720 = vmatpush1.msra.mxu0 0.0
        %5721 = vmatprep.subr.mxu0 0.0
        %5722 = vmatpush1.msra.mxu0 0.0
        %5723 = vmatprep.subr.mxu0 0.0
        %5724 = vmatpush1.msra.mxu0 0.0
        %5725 = vmatprep.subr.mxu0 0.0
        %5726 = vmatpush1.msra.mxu0 0.0
        %5727 = vmatprep.subr.mxu0 0.0
        %5728 = vmatpush1.msra.mxu0 0.0
        %5729 = vmatprep.subr.mxu0 0.0
        %5730 = vmatpush1.msra.mxu0 0.0
        %5731 = vmatprep.subr.mxu0 0.0
        %5732 = vmatpush1.msra.mxu0 0.0
        %5733 = vmatprep.subr.mxu0 0.0
        %5734 = vmatpush1.msra.mxu0 0.0
        %5735 = vmatprep.subr.mxu0 0.0
        %5736 = vmatpush1.msra.mxu0 0.0
        %5737 = vmatprep.subr.mxu0 0.0
        %5738 = vmatpush1.msra.mxu0 0.0
        %5739 = vmatprep.subr.mxu0 0.0
        %5740 = vmatpush1.msra.mxu0 0.0
        %5741 = vmatprep.subr.mxu0 0.0
        %5742 = vmatpush1.msra.mxu0 0.0
        %5743 = vmatprep.subr.mxu0 0.0
        %5744 = vmatpush1.msra.mxu0 0.0
        %5745 = vmatprep.subr.mxu0 0.0
        %5746 = vmatpush1.msra.mxu0 0.0
        %5747 = vmatprep.subr.mxu0 0.0
        %5748 = vmatpush1.msra.mxu0 0.0
        %5749 = vmatprep.subr.mxu0 0.0
        %5750 = vmatpush1.msra.mxu0 0.0
        %5751 = vmatprep.subr.mxu0 0.0
        %5752 = vmatpush1.msra.mxu0 0.0
        %5753 = vmatprep.subr.mxu0 0.0
        %5754 = vmatpush1.msra.mxu0 0.0
        %5755 = vmatprep.subr.mxu0 0.0
        %5756 = vmatpush1.msra.mxu0 0.0
        %5757 = vmatprep.subr.mxu0 0.0
        %5758 = vmatpush1.msra.mxu0 0.0
        %5759 = vmatprep.subr.mxu0 0.0
        %5760 = vmatpush1.msra.mxu0 0.0
        %5761 = vmatprep.mubr.f32.mxu0 0.0
        %5762 = vmatmul.mubr.f32.gmra.mrb[0].mxu0 %v3657
        %v5763 = vpop.f32.mrb[0].mxu0
        %v5764 = vadd.f32 0.0, %v5763
        %v5765 = vpop.f32.mrb[0].mxu0
        %5766 = vmatprep.mubr.f32.mxu0 0.0
        %5767 = vmatmul.mubr.f32.gmra.mrb[0].mxu0 %v3659
        %v5768 = vpop.f32.mrb[0].mxu0
        %v5769 = vadd.f32 0.0, %v5768
        %v5770 = vpop.f32.mrb[0].mxu0
        %5771 = vmatprep.mubr.f32.mxu0 0.0
        %5772 = vmatmul.mubr.f32.gmra.mrb[0].mxu0 %v3661
        %v5773 = vpop.f32.mrb[0].mxu0
        %v5774 = vadd.f32 0.0, %v5773
        %v5775 = vpop.f32.mrb[0].mxu0
        %5776 = vmatprep.mubr.f32.mxu0 0.0
        %5777 = vmatmul.mubr.f32.gmra.mrb[0].mxu0 %v3663
        %v5778 = vpop.f32.mrb[0].mxu0
        %v5779 = vadd.f32 0.0, %v5778
        %v5780 = vpop.f32.mrb[0].mxu0
        %5781 = vmatprep.mubr.f32.mxu0 0.0
        %5782 = vmatmul.mubr.f32.gmra.mrb[0].mxu0 %v3665
        %v5783 = vpop.f32.mrb[0].mxu0
        %v5784 = vadd.f32 0.0, %v5783
        %v5785 = vpop.f32.mrb[0].mxu0
        %5786 = vmatprep.mubr.f32.mxu0 0.0
        %5787 = vmatmul.mubr.f32.gmra.mrb[0].mxu0 %v3667
        %v5788 = vpop.f32.mrb[0].mxu0
        %v5789 = vadd.f32 0.0, %v5788
        %v5790 = vpop.f32.mrb[0].mxu0
        %5791 = vmatprep.mubr.f32.mxu0 0.0
        %5792 = vmatmul.mubr.f32.gmra.mrb[0].mxu0 %v3669
        %v5793 = vpop.f32.mrb[0].mxu0
        %v5794 = vadd.f32 0.0, %v5793
        %v5795 = vpop.f32.mrb[0].mxu0
        %5796 = vmatprep.mubr.f32.mxu0 0.0
        %5797 = vmatmul.mubr.f32.gmra.mrb[0].mxu0 %v3671
        %v5798 = vpop.f32.mrb[0].mxu0
        %v5799 = vadd.f32 0.0, %v5798
        %v5800 = vpop.f32.mrb[0].mxu0
        %5801 = vmatprep.mubr.f32.mxu0 0.0
        %5802 = vmatmul.mubr.f32.gmra.mrb[0].mxu0 %v3673
        %v5803 = vpop.f32.mrb[0].mxu0
        %v5804 = vadd.f32 0.0, %v5803
        %v5805 = vpop.f32.mrb[0].mxu0
        %5806 = vmatprep.mubr.f32.mxu0 0.0
        %5807 = vmatmul.mubr.f32.gmra.mrb[0].mxu0 %v3675
        %v5808 = vpop.f32.mrb[0].mxu0
        %v5809 = vadd.f32 0.0, %v5808
        %v5810 = vpop.f32.mrb[0].mxu0
        %5811 = vmatprep.mubr.f32.mxu0 0.0
        %5812 = vmatmul.mubr.f32.gmra.mrb[0].mxu0 %v3677
        %v5813 = vpop.f32.mrb[0].mxu0
        %v5814 = vadd.f32 0.0, %v5813
        %v5815 = vpop.f32.mrb[0].mxu0
        %5816 = vmatprep.mubr.f32.mxu0 0.0
        %5817 = vmatmul.mubr.f32.gmra.mrb[0].mxu0 %v3679
        %v5818 = vpop.f32.mrb[0].mxu0
        %v5819 = vadd.f32 0.0, %v5818
        %v5820 = vpop.f32.mrb[0].mxu0
        %5821 = vmatprep.mubr.f32.mxu0 0.0
        %5822 = vmatmul.mubr.f32.gmra.mrb[0].mxu0 %v3681
        %v5823 = vpop.f32.mrb[0].mxu0
        %v5824 = vadd.f32 0.0, %v5823
        %v5825 = vpop.f32.mrb[0].mxu0
        %5826 = vmatprep.mubr.f32.mxu0 0.0
        %5827 = vmatmul.mubr.f32.gmra.mrb[0].mxu0 %v3683
        %v5828 = vpop.f32.mrb[0].mxu0
        %v5829 = vadd.f32 0.0, %v5828
        %v5830 = vpop.f32.mrb[0].mxu0
        %5831 = vmatprep.mubr.f32.mxu0 0.0
        %5832 = vmatmul.mubr.f32.gmra.mrb[0].mxu0 %v3685
        %v5833 = vpop.f32.mrb[0].mxu0
        %v5834 = vadd.f32 0.0, %v5833
        %v5835 = vpop.f32.mrb[0].mxu0
        %5836 = vmatprep.mubr.f32.mxu0 0.0
        %5837 = vmatmul.mubr.f32.gmra.mrb[0].mxu0 %v3687
        %v5838 = vpop.f32.mrb[0].mxu0
        %v5839 = vadd.f32 0.0, %v5838
        %v5840 = vpop.f32.mrb[0].mxu0
        %5841 = vmatprep.mubr.f32.mxu0 0.0
        %5842 = vmatmul.mubr.f32.gmra.mrb[0].mxu0 %v3689
        %v5843 = vpop.f32.mrb[0].mxu0
        %v5844 = vadd.f32 0.0, %v5843
        %v5845 = vpop.f32.mrb[0].mxu0
        %5846 = vmatprep.mubr.f32.mxu0 0.0
        %5847 = vmatmul.mubr.f32.gmra.mrb[0].mxu0 %v3691
        %v5848 = vpop.f32.mrb[0].mxu0
        %v5849 = vadd.f32 0.0, %v5848
        %v5850 = vpop.f32.mrb[0].mxu0
        %5851 = vmatprep.mubr.f32.mxu0 0.0
        %5852 = vmatmul.mubr.f32.gmra.mrb[0].mxu0 %v3693
        %v5853 = vpop.f32.mrb[0].mxu0
        %v5854 = vadd.f32 0.0, %v5853
        %v5855 = vpop.f32.mrb[0].mxu0
        %5856 = vmatprep.mubr.f32.mxu0 0.0
        %5857 = vmatmul.mubr.f32.gmra.mrb[0].mxu0 %v3695
        %v5858 = vpop.f32.mrb[0].mxu0
        %v5859 = vadd.f32 0.0, %v5858
        %v5860 = vpop.f32.mrb[0].mxu0
        %5861 = vmatprep.mubr.f32.mxu0 0.0
        %5862 = vmatmul.mubr.f32.gmra.mrb[0].mxu0 %v3697
        %v5863 = vpop.f32.mrb[0].mxu0
        %v5864 = vadd.f32 0.0, %v5863
        %v5865 = vpop.f32.mrb[0].mxu0
        %5866 = vmatprep.mubr.f32.mxu0 0.0
        %5867 = vmatmul.mubr.f32.gmra.mrb[0].mxu0 %v3699
        %v5868 = vpop.f32.mrb[0].mxu0
        %v5869 = vadd.f32 0.0, %v5868
        %v5870 = vpop.f32.mrb[0].mxu0
        %5871 = vmatprep.mubr.f32.mxu0 0.0
        %5872 = vmatmul.mubr.f32.gmra.mrb[0].mxu0 %v3701
        %v5873 = vpop.f32.mrb[0].mxu0
        %v5874 = vadd.f32 0.0, %v5873
        %v5875 = vpop.f32.mrb[0].mxu0
        %5876 = vmatprep.mubr.f32.mxu0 0.0
        %5877 = vmatmul.mubr.f32.gmra.mrb[0].mxu0 %v3703
        %v5878 = vpop.f32.mrb[0].mxu0
        %v5879 = vadd.f32 0.0, %v5878
        %v5880 = vpop.f32.mrb[0].mxu0
        %5881 = vmatprep.mubr.f32.mxu0 0.0
        %5882 = vmatmul.mubr.f32.gmra.mrb[0].mxu0 %v3705
        %v5883 = vpop.f32.mrb[0].mxu0
        %v5884 = vadd.f32 0.0, %v5883
        %v5885 = vpop.f32.mrb[0].mxu0
        %5886 = vmatprep.mubr.f32.mxu0 0.0
        %5887 = vmatmul.mubr.f32.gmra.mrb[0].mxu0 %v3707
        %v5888 = vpop.f32.mrb[0].mxu0
        %v5889 = vadd.f32 0.0, %v5888
        %v5890 = vpop.f32.mrb[0].mxu0
        %5891 = vmatprep.mubr.f32.mxu0 0.0
        %5892 = vmatmul.mubr.f32.gmra.mrb[0].mxu0 %v3709
        %v5893 = vpop.f32.mrb[0].mxu0
        %v5894 = vadd.f32 0.0, %v5893
        %v5895 = vpop.f32.mrb[0].mxu0
        %5896 = vmatprep.mubr.f32.mxu0 0.0
        %5897 = vmatmul.mubr.f32.gmra.mrb[0].mxu0 %v3711
        %v5898 = vpop.f32.mrb[0].mxu0
        %v5899 = vadd.f32 0.0, %v5898
        %v5900 = vpop.f32.mrb[0].mxu0
        %5901 = vmatprep.mubr.f32.mxu0 0.0
        %5902 = vmatmul.mubr.f32.gmra.mrb[0].mxu0 %v4897
        %v5903 = vpop.f32.mrb[0].mxu0
        %v5904 = vadd.f32 0.0, %v5903
        %v5905 = vpop.f32.mrb[0].mxu0
        %5906 = vmatprep.mubr.f32.mxu0 0.0
        %5907 = vmatmul.mubr.f32.gmra.mrb[0].mxu0 %v4899
        %v5908 = vpop.f32.mrb[0].mxu0
        %v5909 = vadd.f32 0.0, %v5908
        %v5910 = vpop.f32.mrb[0].mxu0
        %5911 = vmatprep.mubr.f32.mxu0 0.0
        %5912 = vmatmul.mubr.f32.gmra.mrb[0].mxu0 %v5693
        %v5913 = vpop.f32.mrb[0].mxu0
        %v5914 = vadd.f32 0.0, %v5913
        %v5915 = vpop.f32.mrb[0].mxu0
        %5916 = vmatprep.mubr.f32.mxu0 0.0
        %5917 = vmatmul.mubr.f32.gmra.mrb[0].mxu0 %v5695
        %v5918 = vpop.f32.mrb[0].mxu0
        %v5919 = vadd.f32 0.0, %v5918
        %v5920 = vpop.f32.mrb[0].mxu0
        %5921 = vdwg.mxu0
        %v5922 = vadd.f32 %v5655, %v5764
        %v5923 = vadd.f32 %v5656, %v5769
        %v5924 = vadd.f32 %v5657, %v5774
        %v5925 = vadd.f32 %v5658, %v5779
        %v5926 = vadd.f32 %v5659, %v5784
        %v5927 = vadd.f32 %v5660, %v5789
        %v5928 = vadd.f32 %v5661, %v5794
        %v5929 = vadd.f32 %v5662, %v5799
        %v5930 = vadd.f32 %v5663, %v5804
        %v5931 = vadd.f32 %v5664, %v5809
        %v5932 = vadd.f32 %v5665, %v5814
        %v5933 = vadd.f32 %v5666, %v5819
        %v5934 = vadd.f32 %v5667, %v5824
        %v5935 = vadd.f32 %v5668, %v5829
        %v5936 = vadd.f32 %v5669, %v5834
        %v5937 = vadd.f32 %v5670, %v5839
        %v5938 = vadd.f32 %v5671, %v5844
        %v5939 = vadd.f32 %v5672, %v5849
        %v5940 = vadd.f32 %v5673, %v5854
        %v5941 = vadd.f32 %v5674, %v5859
        %v5942 = vadd.f32 %v5675, %v5864
        %v5943 = vadd.f32 %v5676, %v5869
        %v5944 = vadd.f32 %v5677, %v5874
        %v5945 = vadd.f32 %v5678, %v5879
        %v5946 = vadd.f32 %v5679, %v5884
        %v5947 = vadd.f32 %v5680, %v5889
        %v5948 = vadd.f32 %v5681, %v5894
        %v5949 = vadd.f32 %v5682, %v5899
        %v5950 = vadd.f32 %v5683, %v5904
        %v5951 = vadd.f32 %v5684, %v5909
        %v5952 = vadd.f32 %v5685, %v5914
        %v5953 = vadd.f32 %v5686, %v5919
        %v5954 = vrot.slane %v3509, 2
        %v5955 = vrot.slane %v3510, 2
        %v5956 = vsel %vm1137, %v5954, %v5955
        %v5957 = vrot.slane %v3511, 2
        %v5958 = vsel %vm1137, %v5955, %v5957
        %v5959 = vsel %vm253, %v5956, 0
        %v5961 = vsel %vm253, %v5958, 0
        %5963 = vmatprep.subr.mxu0 0.0
        %5964 = vmatpush1.msra.mxu0 %v3520
        %5965 = vmatprep.subr.mxu0 0.0
        %5966 = vmatpush1.msra.mxu0 0.0
        %5967 = vmatprep.subr.mxu0 0.0
        %5968 = vmatpush1.msra.mxu0 0.0
        %5969 = vmatprep.subr.mxu0 0.0
        %5970 = vmatpush1.msra.mxu0 0.0
        %5971 = vmatprep.subr.mxu0 0.0
        %5972 = vmatpush1.msra.mxu0 0.0
        %5973 = vmatprep.subr.mxu0 0.0
        %5974 = vmatpush1.msra.mxu0 0.0
        %5975 = vmatprep.subr.mxu0 0.0
        %5976 = vmatpush1.msra.mxu0 0.0
        %5977 = vmatprep.subr.mxu0 0.0
        %5978 = vmatpush1.msra.mxu0 0.0
        %5979 = vmatprep.subr.mxu0 0.0
        %5980 = vmatpush1.msra.mxu0 0.0
        %5981 = vmatprep.subr.mxu0 0.0
        %5982 = vmatpush1.msra.mxu0 0.0
        %5983 = vmatprep.subr.mxu0 0.0
        %5984 = vmatpush1.msra.mxu0 0.0
        %5985 = vmatprep.subr.mxu0 0.0
        %5986 = vmatpush1.msra.mxu0 0.0
        %5987 = vmatprep.subr.mxu0 0.0
        %5988 = vmatpush1.msra.mxu0 0.0
        %5989 = vmatprep.subr.mxu0 0.0
        %5990 = vmatpush1.msra.mxu0 0.0
        %5991 = vmatprep.subr.mxu0 0.0
        %5992 = vmatpush1.msra.mxu0 0.0
        %5993 = vmatprep.subr.mxu0 0.0
        %5994 = vmatpush1.msra.mxu0 0.0
        %5995 = vmatprep.subr.mxu0 0.0
        %5996 = vmatpush1.msra.mxu0 0.0
        %5997 = vmatprep.subr.mxu0 0.0
        %5998 = vmatpush1.msra.mxu0 0.0
        %5999 = vmatprep.subr.mxu0 0.0
        %6000 = vmatpush1.msra.mxu0 0.0
        %6001 = vmatprep.subr.mxu0 0.0
        %6002 = vmatpush1.msra.mxu0 0.0
        %6003 = vmatprep.subr.mxu0 0.0
        %6004 = vmatpush1.msra.mxu0 0.0
        %6005 = vmatprep.subr.mxu0 0.0
        %6006 = vmatpush1.msra.mxu0 0.0
        %6007 = vmatprep.subr.mxu0 0.0
        %6008 = vmatpush1.msra.mxu0 0.0
        %6009 = vmatprep.subr.mxu0 0.0
        %6010 = vmatpush1.msra.mxu0 0.0
        %6011 = vmatprep.subr.mxu0 0.0
        %6012 = vmatpush1.msra.mxu0 0.0
        %6013 = vmatprep.subr.mxu0 0.0
        %6014 = vmatpush1.msra.mxu0 0.0
        %6015 = vmatprep.subr.mxu0 0.0
        %6016 = vmatpush1.msra.mxu0 0.0
        %6017 = vmatprep.subr.mxu0 0.0
        %6018 = vmatpush1.msra.mxu0 0.0
        %6019 = vmatprep.subr.mxu0 0.0
        %6020 = vmatpush1.msra.mxu0 0.0
        %6021 = vmatprep.subr.mxu0 0.0
        %6022 = vmatpush1.msra.mxu0 0.0
        %6023 = vmatprep.subr.mxu0 0.0
        %6024 = vmatpush1.msra.mxu0 0.0
        %6025 = vmatprep.subr.mxu0 0.0
        %6026 = vmatpush1.msra.mxu0 0.0
        %6027 = vmatprep.mubr.f32.mxu0 0.0
        %6028 = vmatmul.mubr.f32.gmra.mrb[0].mxu0 %v4315
        %v6029 = vpop.f32.mrb[0].mxu0
        %v6030 = vadd.f32 0.0, %v6029
        %v6031 = vpop.f32.mrb[0].mxu0
        %6032 = vmatprep.mubr.f32.mxu0 0.0
        %6033 = vmatmul.mubr.f32.gmra.mrb[0].mxu0 %v4317
        %v6034 = vpop.f32.mrb[0].mxu0
        %v6035 = vadd.f32 0.0, %v6034
        %v6036 = vpop.f32.mrb[0].mxu0
        %6037 = vmatprep.mubr.f32.mxu0 0.0
        %6038 = vmatmul.mubr.f32.gmra.mrb[0].mxu0 %v4319
        %v6039 = vpop.f32.mrb[0].mxu0
        %v6040 = vadd.f32 0.0, %v6039
        %v6041 = vpop.f32.mrb[0].mxu0
        %6042 = vmatprep.mubr.f32.mxu0 0.0
        %6043 = vmatmul.mubr.f32.gmra.mrb[0].mxu0 %v4321
        %v6044 = vpop.f32.mrb[0].mxu0
        %v6045 = vadd.f32 0.0, %v6044
        %v6046 = vpop.f32.mrb[0].mxu0
        %6047 = vmatprep.mubr.f32.mxu0 0.0
        %6048 = vmatmul.mubr.f32.gmra.mrb[0].mxu0 %v4323
        %v6049 = vpop.f32.mrb[0].mxu0
        %v6050 = vadd.f32 0.0, %v6049
        %v6051 = vpop.f32.mrb[0].mxu0
        %6052 = vmatprep.mubr.f32.mxu0 0.0
        %6053 = vmatmul.mubr.f32.gmra.mrb[0].mxu0 %v4325
        %v6054 = vpop.f32.mrb[0].mxu0
        %v6055 = vadd.f32 0.0, %v6054
        %v6056 = vpop.f32.mrb[0].mxu0
        %6057 = vmatprep.mubr.f32.mxu0 0.0
        %6058 = vmatmul.mubr.f32.gmra.mrb[0].mxu0 %v4327
        %v6059 = vpop.f32.mrb[0].mxu0
        %v6060 = vadd.f32 0.0, %v6059
        %v6061 = vpop.f32.mrb[0].mxu0
        %6062 = vmatprep.mubr.f32.mxu0 0.0
        %6063 = vmatmul.mubr.f32.gmra.mrb[0].mxu0 %v4329
        %v6064 = vpop.f32.mrb[0].mxu0
        %v6065 = vadd.f32 0.0, %v6064
        %v6066 = vpop.f32.mrb[0].mxu0
        %6067 = vmatprep.mubr.f32.mxu0 0.0
        %6068 = vmatmul.mubr.f32.gmra.mrb[0].mxu0 %v4331
        %v6069 = vpop.f32.mrb[0].mxu0
        %v6070 = vadd.f32 0.0, %v6069
        %v6071 = vpop.f32.mrb[0].mxu0
        %6072 = vmatprep.mubr.f32.mxu0 0.0
        %6073 = vmatmul.mubr.f32.gmra.mrb[0].mxu0 %v4333
        %v6074 = vpop.f32.mrb[0].mxu0
        %v6075 = vadd.f32 0.0, %v6074
        %v6076 = vpop.f32.mrb[0].mxu0
        %6077 = vmatprep.mubr.f32.mxu0 0.0
        %6078 = vmatmul.mubr.f32.gmra.mrb[0].mxu0 %v4335
        %v6079 = vpop.f32.mrb[0].mxu0
        %v6080 = vadd.f32 0.0, %v6079
        %v6081 = vpop.f32.mrb[0].mxu0
        %6082 = vmatprep.mubr.f32.mxu0 0.0
        %6083 = vmatmul.mubr.f32.gmra.mrb[0].mxu0 %v4337
        %v6084 = vpop.f32.mrb[0].mxu0
        %v6085 = vadd.f32 0.0, %v6084
        %v6086 = vpop.f32.mrb[0].mxu0
        %6087 = vmatprep.mubr.f32.mxu0 0.0
        %6088 = vmatmul.mubr.f32.gmra.mrb[0].mxu0 %v4339
        %v6089 = vpop.f32.mrb[0].mxu0
        %v6090 = vadd.f32 0.0, %v6089
        %v6091 = vpop.f32.mrb[0].mxu0
        %6092 = vmatprep.mubr.f32.mxu0 0.0
        %6093 = vmatmul.mubr.f32.gmra.mrb[0].mxu0 %v4341
        %v6094 = vpop.f32.mrb[0].mxu0
        %v6095 = vadd.f32 0.0, %v6094
        %v6096 = vpop.f32.mrb[0].mxu0
        %6097 = vmatprep.mubr.f32.mxu0 0.0
        %6098 = vmatmul.mubr.f32.gmra.mrb[0].mxu0 %v4343
        %v6099 = vpop.f32.mrb[0].mxu0
        %v6100 = vadd.f32 0.0, %v6099
        %v6101 = vpop.f32.mrb[0].mxu0
        %6102 = vmatprep.mubr.f32.mxu0 0.0
        %6103 = vmatmul.mubr.f32.gmra.mrb[0].mxu0 %v4345
        %v6104 = vpop.f32.mrb[0].mxu0
        %v6105 = vadd.f32 0.0, %v6104
        %v6106 = vpop.f32.mrb[0].mxu0
        %6107 = vmatprep.mubr.f32.mxu0 0.0
        %6108 = vmatmul.mubr.f32.gmra.mrb[0].mxu0 %v4347
        %v6109 = vpop.f32.mrb[0].mxu0
        %v6110 = vadd.f32 0.0, %v6109
        %v6111 = vpop.f32.mrb[0].mxu0
        %6112 = vmatprep.mubr.f32.mxu0 0.0
        %6113 = vmatmul.mubr.f32.gmra.mrb[0].mxu0 %v4349
        %v6114 = vpop.f32.mrb[0].mxu0
        %v6115 = vadd.f32 0.0, %v6114
        %v6116 = vpop.f32.mrb[0].mxu0
        %6117 = vmatprep.mubr.f32.mxu0 0.0
        %6118 = vmatmul.mubr.f32.gmra.mrb[0].mxu0 %v4351
        %v6119 = vpop.f32.mrb[0].mxu0
        %v6120 = vadd.f32 0.0, %v6119
        %v6121 = vpop.f32.mrb[0].mxu0
        %6122 = vmatprep.mubr.f32.mxu0 0.0
        %6123 = vmatmul.mubr.f32.gmra.mrb[0].mxu0 %v4353
        %v6124 = vpop.f32.mrb[0].mxu0
        %v6125 = vadd.f32 0.0, %v6124
        %v6126 = vpop.f32.mrb[0].mxu0
        %6127 = vmatprep.mubr.f32.mxu0 0.0
        %6128 = vmatmul.mubr.f32.gmra.mrb[0].mxu0 %v4355
        %v6129 = vpop.f32.mrb[0].mxu0
        %v6130 = vadd.f32 0.0, %v6129
        %v6131 = vpop.f32.mrb[0].mxu0
        %6132 = vmatprep.mubr.f32.mxu0 0.0
        %6133 = vmatmul.mubr.f32.gmra.mrb[0].mxu0 %v4357
        %v6134 = vpop.f32.mrb[0].mxu0
        %v6135 = vadd.f32 0.0, %v6134
        %v6136 = vpop.f32.mrb[0].mxu0
        %6137 = vmatprep.mubr.f32.mxu0 0.0
        %6138 = vmatmul.mubr.f32.gmra.mrb[0].mxu0 %v4359
        %v6139 = vpop.f32.mrb[0].mxu0
        %v6140 = vadd.f32 0.0, %v6139
        %v6141 = vpop.f32.mrb[0].mxu0
        %6142 = vmatprep.mubr.f32.mxu0 0.0
        %6143 = vmatmul.mubr.f32.gmra.mrb[0].mxu0 %v4361
        %v6144 = vpop.f32.mrb[0].mxu0
        %v6145 = vadd.f32 0.0, %v6144
        %v6146 = vpop.f32.mrb[0].mxu0
        %6147 = vmatprep.mubr.f32.mxu0 0.0
        %6148 = vmatmul.mubr.f32.gmra.mrb[0].mxu0 %v4363
        %v6149 = vpop.f32.mrb[0].mxu0
        %v6150 = vadd.f32 0.0, %v6149
        %v6151 = vpop.f32.mrb[0].mxu0
        %6152 = vmatprep.mubr.f32.mxu0 0.0
        %6153 = vmatmul.mubr.f32.gmra.mrb[0].mxu0 %v4365
        %v6154 = vpop.f32.mrb[0].mxu0
        %v6155 = vadd.f32 0.0, %v6154
        %v6156 = vpop.f32.mrb[0].mxu0
        %6157 = vmatprep.mubr.f32.mxu0 0.0
        %6158 = vmatmul.mubr.f32.gmra.mrb[0].mxu0 %v4367
        %v6159 = vpop.f32.mrb[0].mxu0
        %v6160 = vadd.f32 0.0, %v6159
        %v6161 = vpop.f32.mrb[0].mxu0
        %6162 = vmatprep.mubr.f32.mxu0 0.0
        %6163 = vmatmul.mubr.f32.gmra.mrb[0].mxu0 %v4369
        %v6164 = vpop.f32.mrb[0].mxu0
        %v6165 = vadd.f32 0.0, %v6164
        %v6166 = vpop.f32.mrb[0].mxu0
        %6167 = vmatprep.mubr.f32.mxu0 0.0
        %6168 = vmatmul.mubr.f32.gmra.mrb[0].mxu0 %v5163
        %v6169 = vpop.f32.mrb[0].mxu0
        %v6170 = vadd.f32 0.0, %v6169
        %v6171 = vpop.f32.mrb[0].mxu0
        %6172 = vmatprep.mubr.f32.mxu0 0.0
        %6173 = vmatmul.mubr.f32.gmra.mrb[0].mxu0 %v5165
        %v6174 = vpop.f32.mrb[0].mxu0
        %v6175 = vadd.f32 0.0, %v6174
        %v6176 = vpop.f32.mrb[0].mxu0
        %6177 = vmatprep.mubr.f32.mxu0 0.0
        %6178 = vmatmul.mubr.f32.gmra.mrb[0].mxu0 %v5959
        %v6179 = vpop.f32.mrb[0].mxu0
        %v6180 = vadd.f32 0.0, %v6179
        %v6181 = vpop.f32.mrb[0].mxu0
        %6182 = vmatprep.mubr.f32.mxu0 0.0
        %6183 = vmatmul.mubr.f32.gmra.mrb[0].mxu0 %v5961
        %v6184 = vpop.f32.mrb[0].mxu0
        %v6185 = vadd.f32 0.0, %v6184
        %v6186 = vpop.f32.mrb[0].mxu0
        %6187 = vdwg.mxu0
        %v6188 = vadd.f32 %v5922, %v6030
        %v6189 = vadd.f32 %v5923, %v6035
        %v6190 = vadd.f32 %v5924, %v6040
        %v6191 = vadd.f32 %v5925, %v6045
        %v6192 = vadd.f32 %v5926, %v6050
        %v6193 = vadd.f32 %v5927, %v6055
        %v6194 = vadd.f32 %v5928, %v6060
        %v6195 = vadd.f32 %v5929, %v6065
        %v6196 = vadd.f32 %v5930, %v6070
        %v6197 = vadd.f32 %v5931, %v6075
        %v6198 = vadd.f32 %v5932, %v6080
        %v6199 = vadd.f32 %v5933, %v6085
        %v6200 = vadd.f32 %v5934, %v6090
        %v6201 = vadd.f32 %v5935, %v6095
        %v6202 = vadd.f32 %v5936, %v6100
        %v6203 = vadd.f32 %v5937, %v6105
        %v6204 = vadd.f32 %v5938, %v6110
        %v6205 = vadd.f32 %v5939, %v6115
        %v6206 = vadd.f32 %v5940, %v6120
        %v6207 = vadd.f32 %v5941, %v6125
        %v6208 = vadd.f32 %v5942, %v6130
        %v6209 = vadd.f32 %v5943, %v6135
        %v6210 = vadd.f32 %v5944, %v6140
        %v6211 = vadd.f32 %v5945, %v6145
        %v6212 = vadd.f32 %v5946, %v6150
        %v6213 = vadd.f32 %v5947, %v6155
        %v6214 = vadd.f32 %v5948, %v6160
        %v6215 = vadd.f32 %v5949, %v6165
        %v6216 = vadd.f32 %v5950, %v6170
        %v6217 = vadd.f32 %v5951, %v6175
        %v6218 = vadd.f32 %v5952, %v6180
        %v6219 = vadd.f32 %v5953, %v6185
        %v6220 = vsel %vm253, %v6188, 0.0
        %v6221 = vsel %vm253, %v6189, 0.0
        %v6222 = vadd.f32 %v6220, %v6221
        %v6223 = vsel %vm253, %v6190, 0.0
        %v6224 = vadd.f32 %v6222, %v6223
        %v6225 = vsel %vm253, %v6191, 0.0
        %v6226 = vadd.f32 %v6224, %v6225
        %v6227 = vsel %vm253, %v6192, 0.0
        %v6228 = vadd.f32 %v6226, %v6227
        %v6229 = vsel %vm253, %v6193, 0.0
        %v6230 = vadd.f32 %v6228, %v6229
        %v6231 = vsel %vm253, %v6194, 0.0
        %v6232 = vadd.f32 %v6230, %v6231
        %v6233 = vsel %vm253, %v6195, 0.0
        %v6234 = vadd.f32 %v6232, %v6233
        %v6235 = vsel %vm253, %v6196, 0.0
        %v6236 = vadd.f32 %v6234, %v6235
        %v6237 = vsel %vm253, %v6197, 0.0
        %v6238 = vadd.f32 %v6236, %v6237
        %v6239 = vsel %vm253, %v6198, 0.0
        %v6240 = vadd.f32 %v6238, %v6239
        %v6241 = vsel %vm253, %v6199, 0.0
        %v6242 = vadd.f32 %v6240, %v6241
        %v6243 = vsel %vm253, %v6200, 0.0
        %v6244 = vadd.f32 %v6242, %v6243
        %v6245 = vsel %vm253, %v6201, 0.0
        %v6246 = vadd.f32 %v6244, %v6245
        %v6247 = vsel %vm253, %v6202, 0.0
        %v6248 = vadd.f32 %v6246, %v6247
        %v6249 = vsel %vm253, %v6203, 0.0
        %v6250 = vadd.f32 %v6248, %v6249
        %v6251 = vsel %vm253, %v6204, 0.0
        %v6252 = vadd.f32 %v6250, %v6251
        %v6253 = vsel %vm253, %v6205, 0.0
        %v6254 = vadd.f32 %v6252, %v6253
        %v6255 = vsel %vm253, %v6206, 0.0
        %v6256 = vadd.f32 %v6254, %v6255
        %v6257 = vsel %vm253, %v6207, 0.0
        %v6258 = vadd.f32 %v6256, %v6257
        %v6259 = vsel %vm253, %v6208, 0.0
        %v6260 = vadd.f32 %v6258, %v6259
        %v6261 = vsel %vm253, %v6209, 0.0
        %v6262 = vadd.f32 %v6260, %v6261
        %v6263 = vsel %vm253, %v6210, 0.0
        %v6264 = vadd.f32 %v6262, %v6263
        %v6265 = vsel %vm253, %v6211, 0.0
        %v6266 = vadd.f32 %v6264, %v6265
        %v6267 = vsel %vm253, %v6212, 0.0
        %v6268 = vadd.f32 %v6266, %v6267
        %v6269 = vsel %vm253, %v6213, 0.0
        %v6270 = vadd.f32 %v6268, %v6269
        %v6271 = vsel %vm253, %v6214, 0.0
        %v6272 = vadd.f32 %v6270, %v6271
        %v6273 = vsel %vm253, %v6215, 0.0
        %v6274 = vadd.f32 %v6272, %v6273
        %v6275 = vsel %vm253, %v6216, 0.0
        %v6276 = vadd.f32 %v6274, %v6275
        %v6277 = vsel %vm253, %v6217, 0.0
        %v6278 = vadd.f32 %v6276, %v6277
        %v6279 = vsel %vm253, %v6218, 0.0
        %v6280 = vadd.f32 %v6278, %v6279
        %v6281 = vsel %vm253, %v6219, 0.0
        %v6282 = vadd.f32 %v6280, %v6281
        %v6283 = vrot.slane %v6282, 4
        %v6284 = vadd.f32 %v6282, %v6283
        %v6285 = vrot.slane %v6284, 2
        %v6286 = vadd.f32 %v6284, %v6285
        %v6287 = vrot.slane %v6286, 1
        %v6288 = vadd.f32 %v6286, %v6287
        %v6289 = vmul.f32 %v6288, 0.00390625
        %v6290 = vmul.f32 %v6188, %v6188
        %v6291 = vmul.f32 %v6189, %v6189
        %v6292 = vmul.f32 %v6190, %v6190
        %v6293 = vmul.f32 %v6191, %v6191
        %v6294 = vmul.f32 %v6192, %v6192
        %v6295 = vmul.f32 %v6193, %v6193
        %v6296 = vmul.f32 %v6194, %v6194
        %v6297 = vmul.f32 %v6195, %v6195
        %v6298 = vmul.f32 %v6196, %v6196
        %v6299 = vmul.f32 %v6197, %v6197
        %v6300 = vmul.f32 %v6198, %v6198
        %v6301 = vmul.f32 %v6199, %v6199
        %v6302 = vmul.f32 %v6200, %v6200
        %v6303 = vmul.f32 %v6201, %v6201
        %v6304 = vmul.f32 %v6202, %v6202
        %v6305 = vmul.f32 %v6203, %v6203
        %v6306 = vmul.f32 %v6204, %v6204
        %v6307 = vmul.f32 %v6205, %v6205
        %v6308 = vmul.f32 %v6206, %v6206
        %v6309 = vmul.f32 %v6207, %v6207
        %v6310 = vmul.f32 %v6208, %v6208
        %v6311 = vmul.f32 %v6209, %v6209
        %v6312 = vmul.f32 %v6210, %v6210
        %v6313 = vmul.f32 %v6211, %v6211
        %v6314 = vmul.f32 %v6212, %v6212
        %v6315 = vmul.f32 %v6213, %v6213
        %v6316 = vmul.f32 %v6214, %v6214
        %v6317 = vmul.f32 %v6215, %v6215
        %v6318 = vmul.f32 %v6216, %v6216
        %v6319 = vmul.f32 %v6217, %v6217
        %v6320 = vmul.f32 %v6218, %v6218
        %v6321 = vmul.f32 %v6219, %v6219
        %v6322 = vsel %vm253, %v6290, 0.0
        %v6323 = vsel %vm253, %v6291, 0.0
        %v6324 = vadd.f32 %v6322, %v6323
        %v6325 = vsel %vm253, %v6292, 0.0
        %v6326 = vadd.f32 %v6324, %v6325
        %v6327 = vsel %vm253, %v6293, 0.0
        %v6328 = vadd.f32 %v6326, %v6327
        %v6329 = vsel %vm253, %v6294, 0.0
        %v6330 = vadd.f32 %v6328, %v6329
        %v6331 = vsel %vm253, %v6295, 0.0
        %v6332 = vadd.f32 %v6330, %v6331
        %v6333 = vsel %vm253, %v6296, 0.0
        %v6334 = vadd.f32 %v6332, %v6333
        %v6335 = vsel %vm253, %v6297, 0.0
        %v6336 = vadd.f32 %v6334, %v6335
        %v6337 = vsel %vm253, %v6298, 0.0
        %v6338 = vadd.f32 %v6336, %v6337
        %v6339 = vsel %vm253, %v6299, 0.0
        %v6340 = vadd.f32 %v6338, %v6339
        %v6341 = vsel %vm253, %v6300, 0.0
        %v6342 = vadd.f32 %v6340, %v6341
        %v6343 = vsel %vm253, %v6301, 0.0
        %v6344 = vadd.f32 %v6342, %v6343
        %v6345 = vsel %vm253, %v6302, 0.0
        %v6346 = vadd.f32 %v6344, %v6345
        %v6347 = vsel %vm253, %v6303, 0.0
        %v6348 = vadd.f32 %v6346, %v6347
        %v6349 = vsel %vm253, %v6304, 0.0
        %v6350 = vadd.f32 %v6348, %v6349
        %v6351 = vsel %vm253, %v6305, 0.0
        %v6352 = vadd.f32 %v6350, %v6351
        %v6353 = vsel %vm253, %v6306, 0.0
        %v6354 = vadd.f32 %v6352, %v6353
        %v6355 = vsel %vm253, %v6307, 0.0
        %v6356 = vadd.f32 %v6354, %v6355
        %v6357 = vsel %vm253, %v6308, 0.0
        %v6358 = vadd.f32 %v6356, %v6357
        %v6359 = vsel %vm253, %v6309, 0.0
        %v6360 = vadd.f32 %v6358, %v6359
        %v6361 = vsel %vm253, %v6310, 0.0
        %v6362 = vadd.f32 %v6360, %v6361
        %v6363 = vsel %vm253, %v6311, 0.0
        %v6364 = vadd.f32 %v6362, %v6363
        %v6365 = vsel %vm253, %v6312, 0.0
        %v6366 = vadd.f32 %v6364, %v6365
        %v6367 = vsel %vm253, %v6313, 0.0
        %v6368 = vadd.f32 %v6366, %v6367
        %v6369 = vsel %vm253, %v6314, 0.0
        %v6370 = vadd.f32 %v6368, %v6369
        %v6371 = vsel %vm253, %v6315, 0.0
        %v6372 = vadd.f32 %v6370, %v6371
        %v6373 = vsel %vm253, %v6316, 0.0
        %v6374 = vadd.f32 %v6372, %v6373
        %v6375 = vsel %vm253, %v6317, 0.0
        %v6376 = vadd.f32 %v6374, %v6375
        %v6377 = vsel %vm253, %v6318, 0.0
        %v6378 = vadd.f32 %v6376, %v6377
        %v6379 = vsel %vm253, %v6319, 0.0
        %v6380 = vadd.f32 %v6378, %v6379
        %v6381 = vsel %vm253, %v6320, 0.0
        %v6382 = vadd.f32 %v6380, %v6381
        %v6383 = vsel %vm253, %v6321, 0.0
        %v6384 = vadd.f32 %v6382, %v6383
        %v6385 = vrot.slane %v6384, 4
        %v6386 = vadd.f32 %v6384, %v6385
        %v6387 = vrot.slane %v6386, 2
        %v6388 = vadd.f32 %v6386, %v6387
        %v6389 = vrot.slane %v6388, 1
        %v6390 = vadd.f32 %v6388, %v6389
        %v6391 = vmul.f32 %v6390, 0.00390625
        %v6392 = vmul.f32 %v6289, %v6289
        %v6393 = vsub.f32 %v6391, %v6392
        %v6394 = vmax.f32 %v6393, 0.0
        %v6395 = vsub.f32 %v6188, %v6289
        %v6396 = vsub.f32 %v6189, %v6289
        %v6397 = vsub.f32 %v6190, %v6289
        %v6398 = vsub.f32 %v6191, %v6289
        %v6399 = vsub.f32 %v6192, %v6289
        %v6400 = vsub.f32 %v6193, %v6289
        %v6401 = vsub.f32 %v6194, %v6289
        %v6402 = vsub.f32 %v6195, %v6289
        %v6403 = vsub.f32 %v6196, %v6289
        %v6404 = vsub.f32 %v6197, %v6289
        %v6405 = vsub.f32 %v6198, %v6289
        %v6406 = vsub.f32 %v6199, %v6289
        %v6407 = vsub.f32 %v6200, %v6289
        %v6408 = vsub.f32 %v6201, %v6289
        %v6409 = vsub.f32 %v6202, %v6289
        %v6410 = vsub.f32 %v6203, %v6289
        %v6411 = vsub.f32 %v6204, %v6289
        %v6412 = vsub.f32 %v6205, %v6289
        %v6413 = vsub.f32 %v6206, %v6289
        %v6414 = vsub.f32 %v6207, %v6289
        %v6415 = vsub.f32 %v6208, %v6289
        %v6416 = vsub.f32 %v6209, %v6289
        %v6417 = vsub.f32 %v6210, %v6289
        %v6418 = vsub.f32 %v6211, %v6289
        %v6419 = vsub.f32 %v6212, %v6289
        %v6420 = vsub.f32 %v6213, %v6289
        %v6421 = vsub.f32 %v6214, %v6289
        %v6422 = vsub.f32 %v6215, %v6289
        %v6423 = vsub.f32 %v6216, %v6289
        %v6424 = vsub.f32 %v6217, %v6289
        %v6425 = vsub.f32 %v6218, %v6289
        %v6426 = vsub.f32 %v6219, %v6289
        %v6427 = vadd.f32 %v6394, 1e-05
        %v6428 = vrsqrt.pop %v6427
        %v6429 = vmul.f32 %v6395, %v6428
        %v6430 = vmul.f32 %v6396, %v6428
        %v6431 = vmul.f32 %v6397, %v6428
        %v6432 = vmul.f32 %v6398, %v6428
        %v6433 = vmul.f32 %v6399, %v6428
        %v6434 = vmul.f32 %v6400, %v6428
        %v6435 = vmul.f32 %v6401, %v6428
        %v6436 = vmul.f32 %v6402, %v6428
        %v6437 = vmul.f32 %v6403, %v6428
        %v6438 = vmul.f32 %v6404, %v6428
        %v6439 = vmul.f32 %v6405, %v6428
        %v6440 = vmul.f32 %v6406, %v6428
        %v6441 = vmul.f32 %v6407, %v6428
        %v6442 = vmul.f32 %v6408, %v6428
        %v6443 = vmul.f32 %v6409, %v6428
        %v6444 = vmul.f32 %v6410, %v6428
        %v6445 = vmul.f32 %v6411, %v6428
        %v6446 = vmul.f32 %v6412, %v6428
        %v6447 = vmul.f32 %v6413, %v6428
        %v6448 = vmul.f32 %v6414, %v6428
        %v6449 = vmul.f32 %v6415, %v6428
        %v6450 = vmul.f32 %v6416, %v6428
        %v6451 = vmul.f32 %v6417, %v6428
        %v6452 = vmul.f32 %v6418, %v6428
        %v6453 = vmul.f32 %v6419, %v6428
        %v6454 = vmul.f32 %v6420, %v6428
        %v6455 = vmul.f32 %v6421, %v6428
        %v6456 = vmul.f32 %v6422, %v6428
        %v6457 = vmul.f32 %v6423, %v6428
        %v6458 = vmul.f32 %v6424, %v6428
        %v6459 = vmul.f32 %v6425, %v6428
        %v6460 = vmul.f32 %v6426, %v6428
        %v6461 = vmax.f32 %v6429, 0.0
        %v6462 = vmax.f32 %v6430, 0.0
        %v6463 = vmax.f32 %v6431, 0.0
        %v6464 = vmax.f32 %v6432, 0.0
        %v6465 = vmax.f32 %v6433, 0.0
        %v6466 = vmax.f32 %v6434, 0.0
        %v6467 = vmax.f32 %v6435, 0.0
        %v6468 = vmax.f32 %v6436, 0.0
        %v6469 = vmax.f32 %v6437, 0.0
        %v6470 = vmax.f32 %v6438, 0.0
        %v6471 = vmax.f32 %v6439, 0.0
        %v6472 = vmax.f32 %v6440, 0.0
        %v6473 = vmax.f32 %v6441, 0.0
        %v6474 = vmax.f32 %v6442, 0.0
        %v6475 = vmax.f32 %v6443, 0.0
        %v6476 = vmax.f32 %v6444, 0.0
        %v6477 = vmax.f32 %v6445, 0.0
        %v6478 = vmax.f32 %v6446, 0.0
        %v6479 = vmax.f32 %v6447, 0.0
        %v6480 = vmax.f32 %v6448, 0.0
        %v6481 = vmax.f32 %v6449, 0.0
        %v6482 = vmax.f32 %v6450, 0.0
        %v6483 = vmax.f32 %v6451, 0.0
        %v6484 = vmax.f32 %v6452, 0.0
        %v6485 = vmax.f32 %v6453, 0.0
        %v6486 = vmax.f32 %v6454, 0.0
        %v6487 = vmax.f32 %v6455, 0.0
        %v6488 = vmax.f32 %v6456, 0.0
        %v6489 = vmax.f32 %v6457, 0.0
        %v6490 = vmax.f32 %v6458, 0.0
        %v6491 = vmax.f32 %v6459, 0.0
        %v6492 = vmax.f32 %v6460, 0.0
        %6493 = vxpose.xlu0.b32.start [1/16] %v6461, 128
        %6494 = vxpose.xlu0.b32.cont [2/16] %v6462, 128
        %6495 = vxpose.xlu0.b32.cont [3/16] %v6463, 128
        %6496 = vxpose.xlu0.b32.cont [4/16] %v6464, 128
        %6497 = vxpose.xlu0.b32.cont [5/16] %v6465, 128
        %6498 = vxpose.xlu0.b32.cont [6/16] %v6466, 128
        %6499 = vxpose.xlu0.b32.cont [7/16] %v6467, 128
        %6500 = vxpose.xlu0.b32.cont [8/16] %v6468, 128
        %6501 = vxpose.xlu0.b32.cont [9/16] %v6469, 128
        %6502 = vxpose.xlu0.b32.cont [10/16] %v6470, 128
        %6503 = vxpose.xlu0.b32.cont [11/16] %v6471, 128
        %6504 = vxpose.xlu0.b32.cont [12/16] %v6472, 128
        %6505 = vxpose.xlu0.b32.cont [13/16] %v6473, 128
        %6506 = vxpose.xlu0.b32.cont [14/16] %v6474, 128
        %6507 = vxpose.xlu0.b32.cont [15/16] %v6475, 128
        %6508 = vxpose.xlu0.b32.end [16/16] %v6476, 128
        %v6509 = vpop.trf.xlu0
        %v6510 = vpop.trf.xlu0
        %v6511 = vpop.trf.xlu0
        %v6512 = vpop.trf.xlu0
        %v6513 = vpop.trf.xlu0
        %v6514 = vpop.trf.xlu0
        %v6515 = vpop.trf.xlu0
        %v6516 = vpop.trf.xlu0
        %v6517 = vpop.trf.xlu0
        %v6518 = vpop.trf.xlu0
        %v6519 = vpop.trf.xlu0
        %v6520 = vpop.trf.xlu0
        %v6521 = vpop.trf.xlu0
        %v6522 = vpop.trf.xlu0
        %v6523 = vpop.trf.xlu0
        %v6524 = vpop.trf.xlu0
        %6525 = vxpose.xlu0.b32.start [1/16] %v6477, 128
        %6526 = vxpose.xlu0.b32.cont [2/16] %v6478, 128
        %6527 = vxpose.xlu0.b32.cont [3/16] %v6479, 128
        %6528 = vxpose.xlu0.b32.cont [4/16] %v6480, 128
        %6529 = vxpose.xlu0.b32.cont [5/16] %v6481, 128
        %6530 = vxpose.xlu0.b32.cont [6/16] %v6482, 128
        %6531 = vxpose.xlu0.b32.cont [7/16] %v6483, 128
        %6532 = vxpose.xlu0.b32.cont [8/16] %v6484, 128
        %6533 = vxpose.xlu0.b32.cont [9/16] %v6485, 128
        %6534 = vxpose.xlu0.b32.cont [10/16] %v6486, 128
        %6535 = vxpose.xlu0.b32.cont [11/16] %v6487, 128
        %6536 = vxpose.xlu0.b32.cont [12/16] %v6488, 128
        %6537 = vxpose.xlu0.b32.cont [13/16] %v6489, 128
        %6538 = vxpose.xlu0.b32.cont [14/16] %v6490, 128
        %6539 = vxpose.xlu0.b32.cont [15/16] %v6491, 128
        %6540 = vxpose.xlu0.b32.end [16/16] %v6492, 128
        %v6541 = vpop.trf.xlu0
        %v6542 = vpop.trf.xlu0
        %v6543 = vpop.trf.xlu0
        %v6544 = vpop.trf.xlu0
        %v6545 = vpop.trf.xlu0
        %v6546 = vpop.trf.xlu0
        %v6547 = vpop.trf.xlu0
        %v6548 = vpop.trf.xlu0
        %v6549 = vpop.trf.xlu0
        %v6550 = vpop.trf.xlu0
        %v6551 = vpop.trf.xlu0
        %v6552 = vpop.trf.xlu0
        %v6553 = vpop.trf.xlu0
        %v6554 = vpop.trf.xlu0
        %v6555 = vpop.trf.xlu0
        %v6556 = vpop.trf.xlu0
        %6557 = vst [vmem:[%s201] sm:$0xff] %v6509
        %6558 = vst [vmem:[%s201 + $0x8] sm:$0xff] %v6541
        %v6591 = vcombine.high %v6461, %v6461
        %v6593 = vunpack.c.l.s4 1983009808
        %v6594 = vunpack.c.0.s8 %v6593
        %v6595 = vlaneseq
        %v6596 = vshrl.u32 %v6595, 7
        %v6597 = vsub.s32 %v6594, %v6596
        %v6598 = vrot.slane %v6461, %v6597
        %v6600 = vunpack.c.l.s4 1983009808
        %v6601 = vunpack.c.0.s8 %v6600
        %v6602 = vlaneseq
        %v6603 = vshrl.u32 %v6602, 7
        %v6604 = vsub.s32 %v6601, %v6603
        %v6605 = vrot.slane %v6591, %v6604
        %v6606 = vcombine.high %v6598, %v6598
        %v6607 = vcombine.high %v6605, %v6605
        %v6608 = vcombine.high %v6462, %v6462
        %v6610 = vunpack.c.l.s4 1983009808
        %v6611 = vunpack.c.0.s8 %v6610
        %v6612 = vlaneseq
        %v6613 = vshrl.u32 %v6612, 7
        %v6614 = vsub.s32 %v6611, %v6613
        %v6615 = vrot.slane %v6462, %v6614
        %v6617 = vunpack.c.l.s4 1983009808
        %v6618 = vunpack.c.0.s8 %v6617
        %v6619 = vlaneseq
        %v6620 = vshrl.u32 %v6619, 7
        %v6621 = vsub.s32 %v6618, %v6620
        %v6622 = vrot.slane %v6608, %v6621
        %v6623 = vcombine.high %v6615, %v6615
        %v6624 = vcombine.high %v6622, %v6622
        %v6625 = vcombine.high %v6463, %v6463
        %v6627 = vunpack.c.l.s4 1983009808
        %v6628 = vunpack.c.0.s8 %v6627
        %v6629 = vlaneseq
        %v6630 = vshrl.u32 %v6629, 7
        %v6631 = vsub.s32 %v6628, %v6630
        %v6632 = vrot.slane %v6463, %v6631
        %v6634 = vunpack.c.l.s4 1983009808
        %v6635 = vunpack.c.0.s8 %v6634
        %v6636 = vlaneseq
        %v6637 = vshrl.u32 %v6636, 7
        %v6638 = vsub.s32 %v6635, %v6637
        %v6639 = vrot.slane %v6625, %v6638
        %v6640 = vcombine.high %v6632, %v6632
        %v6641 = vcombine.high %v6639, %v6639
        %v6642 = vcombine.high %v6464, %v6464
        %v6644 = vunpack.c.l.s4 1983009808
        %v6645 = vunpack.c.0.s8 %v6644
        %v6646 = vlaneseq
        %v6647 = vshrl.u32 %v6646, 7
        %v6648 = vsub.s32 %v6645, %v6647
        %v6649 = vrot.slane %v6464, %v6648
        %v6651 = vunpack.c.l.s4 1983009808
        %v6652 = vunpack.c.0.s8 %v6651
        %v6653 = vlaneseq
        %v6654 = vshrl.u32 %v6653, 7
        %v6655 = vsub.s32 %v6652, %v6654
        %v6656 = vrot.slane %v6642, %v6655
        %v6657 = vcombine.high %v6649, %v6649
        %v6658 = vcombine.high %v6656, %v6656
        %v6659 = vcombine.high %v6465, %v6465
        %v6661 = vunpack.c.l.s4 1983009808
        %v6662 = vunpack.c.0.s8 %v6661
        %v6663 = vlaneseq
        %v6664 = vshrl.u32 %v6663, 7
        %v6665 = vsub.s32 %v6662, %v6664
        %v6666 = vrot.slane %v6465, %v6665
        %v6668 = vunpack.c.l.s4 1983009808
        %v6669 = vunpack.c.0.s8 %v6668
        %v6670 = vlaneseq
        %v6671 = vshrl.u32 %v6670, 7
        %v6672 = vsub.s32 %v6669, %v6671
        %v6673 = vrot.slane %v6659, %v6672
        %v6674 = vcombine.high %v6666, %v6666
        %v6675 = vcombine.high %v6673, %v6673
        %v6676 = vcombine.high %v6466, %v6466
        %v6678 = vunpack.c.l.s4 1983009808
        %v6679 = vunpack.c.0.s8 %v6678
        %v6680 = vlaneseq
        %v6681 = vshrl.u32 %v6680, 7
        %v6682 = vsub.s32 %v6679, %v6681
        %v6683 = vrot.slane %v6466, %v6682
        %v6685 = vunpack.c.l.s4 1983009808
        %v6686 = vunpack.c.0.s8 %v6685
        %v6687 = vlaneseq
        %v6688 = vshrl.u32 %v6687, 7
        %v6689 = vsub.s32 %v6686, %v6688
        %v6690 = vrot.slane %v6676, %v6689
        %v6691 = vcombine.high %v6683, %v6683
        %v6692 = vcombine.high %v6690, %v6690
        %v6693 = vcombine.high %v6467, %v6467
        %v6695 = vunpack.c.l.s4 1983009808
        %v6696 = vunpack.c.0.s8 %v6695
        %v6697 = vlaneseq
        %v6698 = vshrl.u32 %v6697, 7
        %v6699 = vsub.s32 %v6696, %v6698
        %v6700 = vrot.slane %v6467, %v6699
        %v6702 = vunpack.c.l.s4 1983009808
        %v6703 = vunpack.c.0.s8 %v6702
        %v6704 = vlaneseq
        %v6705 = vshrl.u32 %v6704, 7
        %v6706 = vsub.s32 %v6703, %v6705
        %v6707 = vrot.slane %v6693, %v6706
        %v6708 = vcombine.high %v6700, %v6700
        %v6709 = vcombine.high %v6707, %v6707
        %v6710 = vcombine.high %v6468, %v6468
        %v6712 = vunpack.c.l.s4 1983009808
        %v6713 = vunpack.c.0.s8 %v6712
        %v6714 = vlaneseq
        %v6715 = vshrl.u32 %v6714, 7
        %v6716 = vsub.s32 %v6713, %v6715
        %v6717 = vrot.slane %v6468, %v6716
        %v6719 = vunpack.c.l.s4 1983009808
        %v6720 = vunpack.c.0.s8 %v6719
        %v6721 = vlaneseq
        %v6722 = vshrl.u32 %v6721, 7
        %v6723 = vsub.s32 %v6720, %v6722
        %v6724 = vrot.slane %v6710, %v6723
        %v6725 = vcombine.high %v6717, %v6717
        %v6726 = vcombine.high %v6724, %v6724
        %v6727 = vcombine.high %v6469, %v6469
        %v6729 = vunpack.c.l.s4 1983009808
        %v6730 = vunpack.c.0.s8 %v6729
        %v6731 = vlaneseq
        %v6732 = vshrl.u32 %v6731, 7
        %v6733 = vsub.s32 %v6730, %v6732
        %v6734 = vrot.slane %v6469, %v6733
        %v6736 = vunpack.c.l.s4 1983009808
        %v6737 = vunpack.c.0.s8 %v6736
        %v6738 = vlaneseq
        %v6739 = vshrl.u32 %v6738, 7
        %v6740 = vsub.s32 %v6737, %v6739
        %v6741 = vrot.slane %v6727, %v6740
        %v6742 = vcombine.high %v6734, %v6734
        %v6743 = vcombine.high %v6741, %v6741
        %v6744 = vcombine.high %v6470, %v6470
        %v6746 = vunpack.c.l.s4 1983009808
        %v6747 = vunpack.c.0.s8 %v6746
        %v6748 = vlaneseq
        %v6749 = vshrl.u32 %v6748, 7
        %v6750 = vsub.s32 %v6747, %v6749
        %v6751 = vrot.slane %v6470, %v6750
        %v6753 = vunpack.c.l.s4 1983009808
        %v6754 = vunpack.c.0.s8 %v6753
        %v6755 = vlaneseq
        %v6756 = vshrl.u32 %v6755, 7
        %v6757 = vsub.s32 %v6754, %v6756
        %v6758 = vrot.slane %v6744, %v6757
        %v6759 = vcombine.high %v6751, %v6751
        %v6760 = vcombine.high %v6758, %v6758
        %v6761 = vcombine.high %v6471, %v6471
        %v6763 = vunpack.c.l.s4 1983009808
        %v6764 = vunpack.c.0.s8 %v6763
        %v6765 = vlaneseq
        %v6766 = vshrl.u32 %v6765, 7
        %v6767 = vsub.s32 %v6764, %v6766
        %v6768 = vrot.slane %v6471, %v6767
        %v6770 = vunpack.c.l.s4 1983009808
        %v6771 = vunpack.c.0.s8 %v6770
        %v6772 = vlaneseq
        %v6773 = vshrl.u32 %v6772, 7
        %v6774 = vsub.s32 %v6771, %v6773
        %v6775 = vrot.slane %v6761, %v6774
        %v6776 = vcombine.high %v6768, %v6768
        %v6777 = vcombine.high %v6775, %v6775
        %v6778 = vcombine.high %v6472, %v6472
        %v6780 = vunpack.c.l.s4 1983009808
        %v6781 = vunpack.c.0.s8 %v6780
        %v6782 = vlaneseq
        %v6783 = vshrl.u32 %v6782, 7
        %v6784 = vsub.s32 %v6781, %v6783
        %v6785 = vrot.slane %v6472, %v6784
        %v6787 = vunpack.c.l.s4 1983009808
        %v6788 = vunpack.c.0.s8 %v6787
        %v6789 = vlaneseq
        %v6790 = vshrl.u32 %v6789, 7
        %v6791 = vsub.s32 %v6788, %v6790
        %v6792 = vrot.slane %v6778, %v6791
        %v6793 = vcombine.high %v6785, %v6785
        %v6794 = vcombine.high %v6792, %v6792
        %v6795 = vcombine.high %v6473, %v6473
        %v6797 = vunpack.c.l.s4 1983009808
        %v6798 = vunpack.c.0.s8 %v6797
        %v6799 = vlaneseq
        %v6800 = vshrl.u32 %v6799, 7
        %v6801 = vsub.s32 %v6798, %v6800
        %v6802 = vrot.slane %v6473, %v6801
        %v6804 = vunpack.c.l.s4 1983009808
        %v6805 = vunpack.c.0.s8 %v6804
        %v6806 = vlaneseq
        %v6807 = vshrl.u32 %v6806, 7
        %v6808 = vsub.s32 %v6805, %v6807
        %v6809 = vrot.slane %v6795, %v6808
        %v6810 = vcombine.high %v6802, %v6802
        %v6811 = vcombine.high %v6809, %v6809
        %v6812 = vcombine.high %v6474, %v6474
        %v6814 = vunpack.c.l.s4 1983009808
        %v6815 = vunpack.c.0.s8 %v6814
        %v6816 = vlaneseq
        %v6817 = vshrl.u32 %v6816, 7
        %v6818 = vsub.s32 %v6815, %v6817
        %v6819 = vrot.slane %v6474, %v6818
        %v6821 = vunpack.c.l.s4 1983009808
        %v6822 = vunpack.c.0.s8 %v6821
        %v6823 = vlaneseq
        %v6824 = vshrl.u32 %v6823, 7
        %v6825 = vsub.s32 %v6822, %v6824
        %v6826 = vrot.slane %v6812, %v6825
        %v6827 = vcombine.high %v6819, %v6819
        %v6828 = vcombine.high %v6826, %v6826
        %v6829 = vcombine.high %v6475, %v6475
        %v6831 = vunpack.c.l.s4 1983009808
        %v6832 = vunpack.c.0.s8 %v6831
        %v6833 = vlaneseq
        %v6834 = vshrl.u32 %v6833, 7
        %v6835 = vsub.s32 %v6832, %v6834
        %v6836 = vrot.slane %v6475, %v6835
        %v6838 = vunpack.c.l.s4 1983009808
        %v6839 = vunpack.c.0.s8 %v6838
        %v6840 = vlaneseq
        %v6841 = vshrl.u32 %v6840, 7
        %v6842 = vsub.s32 %v6839, %v6841
        %v6843 = vrot.slane %v6829, %v6842
        %v6844 = vcombine.high %v6836, %v6836
        %v6845 = vcombine.high %v6843, %v6843
        %v6846 = vcombine.high %v6476, %v6476
        %v6848 = vunpack.c.l.s4 1983009808
        %v6849 = vunpack.c.0.s8 %v6848
        %v6850 = vlaneseq
        %v6851 = vshrl.u32 %v6850, 7
        %v6852 = vsub.s32 %v6849, %v6851
        %v6853 = vrot.slane %v6476, %v6852
        %v6855 = vunpack.c.l.s4 1983009808
        %v6856 = vunpack.c.0.s8 %v6855
        %v6857 = vlaneseq
        %v6858 = vshrl.u32 %v6857, 7
        %v6859 = vsub.s32 %v6856, %v6858
        %v6860 = vrot.slane %v6846, %v6859
        %v6861 = vcombine.high %v6853, %v6853
        %v6862 = vcombine.high %v6860, %v6860
        %v6863 = vcombine.high %v6477, %v6477
        %v6865 = vunpack.c.l.s4 1983009808
        %v6866 = vunpack.c.0.s8 %v6865
        %v6867 = vlaneseq
        %v6868 = vshrl.u32 %v6867, 7
        %v6869 = vsub.s32 %v6866, %v6868
        %v6870 = vrot.slane %v6477, %v6869
        %v6872 = vunpack.c.l.s4 1983009808
        %v6873 = vunpack.c.0.s8 %v6872
        %v6874 = vlaneseq
        %v6875 = vshrl.u32 %v6874, 7
        %v6876 = vsub.s32 %v6873, %v6875
        %v6877 = vrot.slane %v6863, %v6876
        %v6878 = vcombine.high %v6870, %v6870
        %v6879 = vcombine.high %v6877, %v6877
        %v6880 = vcombine.high %v6478, %v6478
        %v6882 = vunpack.c.l.s4 1983009808
        %v6883 = vunpack.c.0.s8 %v6882
        %v6884 = vlaneseq
        %v6885 = vshrl.u32 %v6884, 7
        %v6886 = vsub.s32 %v6883, %v6885
        %v6887 = vrot.slane %v6478, %v6886
        %v6889 = vunpack.c.l.s4 1983009808
        %v6890 = vunpack.c.0.s8 %v6889
        %v6891 = vlaneseq
        %v6892 = vshrl.u32 %v6891, 7
        %v6893 = vsub.s32 %v6890, %v6892
        %v6894 = vrot.slane %v6880, %v6893
        %v6895 = vcombine.high %v6887, %v6887
        %v6896 = vcombine.high %v6894, %v6894
        %v6897 = vcombine.high %v6479, %v6479
        %v6899 = vunpack.c.l.s4 1983009808
        %v6900 = vunpack.c.0.s8 %v6899
        %v6901 = vlaneseq
        %v6902 = vshrl.u32 %v6901, 7
        %v6903 = vsub.s32 %v6900, %v6902
        %v6904 = vrot.slane %v6479, %v6903
        %v6906 = vunpack.c.l.s4 1983009808
        %v6907 = vunpack.c.0.s8 %v6906
        %v6908 = vlaneseq
        %v6909 = vshrl.u32 %v6908, 7
        %v6910 = vsub.s32 %v6907, %v6909
        %v6911 = vrot.slane %v6897, %v6910
        %v6912 = vcombine.high %v6904, %v6904
        %v6913 = vcombine.high %v6911, %v6911
        %v6914 = vcombine.high %v6480, %v6480
        %v6916 = vunpack.c.l.s4 1983009808
        %v6917 = vunpack.c.0.s8 %v6916
        %v6918 = vlaneseq
        %v6919 = vshrl.u32 %v6918, 7
        %v6920 = vsub.s32 %v6917, %v6919
        %v6921 = vrot.slane %v6480, %v6920
        %v6923 = vunpack.c.l.s4 1983009808
        %v6924 = vunpack.c.0.s8 %v6923
        %v6925 = vlaneseq
        %v6926 = vshrl.u32 %v6925, 7
        %v6927 = vsub.s32 %v6924, %v6926
        %v6928 = vrot.slane %v6914, %v6927
        %v6929 = vcombine.high %v6921, %v6921
        %v6930 = vcombine.high %v6928, %v6928
        %v6931 = vcombine.high %v6481, %v6481
        %v6933 = vunpack.c.l.s4 1983009808
        %v6934 = vunpack.c.0.s8 %v6933
        %v6935 = vlaneseq
        %v6936 = vshrl.u32 %v6935, 7
        %v6937 = vsub.s32 %v6934, %v6936
        %v6938 = vrot.slane %v6481, %v6937
        %v6940 = vunpack.c.l.s4 1983009808
        %v6941 = vunpack.c.0.s8 %v6940
        %v6942 = vlaneseq
        %v6943 = vshrl.u32 %v6942, 7
        %v6944 = vsub.s32 %v6941, %v6943
        %v6945 = vrot.slane %v6931, %v6944
        %v6946 = vcombine.high %v6938, %v6938
        %v6947 = vcombine.high %v6945, %v6945
        %v6948 = vcombine.high %v6482, %v6482
        %v6950 = vunpack.c.l.s4 1983009808
        %v6951 = vunpack.c.0.s8 %v6950
        %v6952 = vlaneseq
        %v6953 = vshrl.u32 %v6952, 7
        %v6954 = vsub.s32 %v6951, %v6953
        %v6955 = vrot.slane %v6482, %v6954
        %v6957 = vunpack.c.l.s4 1983009808
        %v6958 = vunpack.c.0.s8 %v6957
        %v6959 = vlaneseq
        %v6960 = vshrl.u32 %v6959, 7
        %v6961 = vsub.s32 %v6958, %v6960
        %v6962 = vrot.slane %v6948, %v6961
        %v6963 = vcombine.high %v6955, %v6955
        %v6964 = vcombine.high %v6962, %v6962
        %v6965 = vcombine.high %v6483, %v6483
        %v6967 = vunpack.c.l.s4 1983009808
        %v6968 = vunpack.c.0.s8 %v6967
        %v6969 = vlaneseq
        %v6970 = vshrl.u32 %v6969, 7
        %v6971 = vsub.s32 %v6968, %v6970
        %v6972 = vrot.slane %v6483, %v6971
        %v6974 = vunpack.c.l.s4 1983009808
        %v6975 = vunpack.c.0.s8 %v6974
        %v6976 = vlaneseq
        %v6977 = vshrl.u32 %v6976, 7
        %v6978 = vsub.s32 %v6975, %v6977
        %v6979 = vrot.slane %v6965, %v6978
        %v6980 = vcombine.high %v6972, %v6972
        %v6981 = vcombine.high %v6979, %v6979
        %v6982 = vcombine.high %v6484, %v6484
        %v6984 = vunpack.c.l.s4 1983009808
        %v6985 = vunpack.c.0.s8 %v6984
        %v6986 = vlaneseq
        %v6987 = vshrl.u32 %v6986, 7
        %v6988 = vsub.s32 %v6985, %v6987
        %v6989 = vrot.slane %v6484, %v6988
        %v6991 = vunpack.c.l.s4 1983009808
        %v6992 = vunpack.c.0.s8 %v6991
        %v6993 = vlaneseq
        %v6994 = vshrl.u32 %v6993, 7
        %v6995 = vsub.s32 %v6992, %v6994
        %v6996 = vrot.slane %v6982, %v6995
        %v6997 = vcombine.high %v6989, %v6989
        %v6998 = vcombine.high %v6996, %v6996
        %v6999 = vcombine.high %v6485, %v6485
        %v7001 = vunpack.c.l.s4 1983009808
        %v7002 = vunpack.c.0.s8 %v7001
        %v7003 = vlaneseq
        %v7004 = vshrl.u32 %v7003, 7
        %v7005 = vsub.s32 %v7002, %v7004
        %v7006 = vrot.slane %v6485, %v7005
        %v7008 = vunpack.c.l.s4 1983009808
        %v7009 = vunpack.c.0.s8 %v7008
        %v7010 = vlaneseq
        %v7011 = vshrl.u32 %v7010, 7
        %v7012 = vsub.s32 %v7009, %v7011
        %v7013 = vrot.slane %v6999, %v7012
        %v7014 = vcombine.high %v7006, %v7006
        %v7015 = vcombine.high %v7013, %v7013
        %v7016 = vcombine.high %v6486, %v6486
        %v7018 = vunpack.c.l.s4 1983009808
        %v7019 = vunpack.c.0.s8 %v7018
        %v7020 = vlaneseq
        %v7021 = vshrl.u32 %v7020, 7
        %v7022 = vsub.s32 %v7019, %v7021
        %v7023 = vrot.slane %v6486, %v7022
        %v7025 = vunpack.c.l.s4 1983009808
        %v7026 = vunpack.c.0.s8 %v7025
        %v7027 = vlaneseq
        %v7028 = vshrl.u32 %v7027, 7
        %v7029 = vsub.s32 %v7026, %v7028
        %v7030 = vrot.slane %v7016, %v7029
        %v7031 = vcombine.high %v7023, %v7023
        %v7032 = vcombine.high %v7030, %v7030
        %v7033 = vcombine.high %v6487, %v6487
        %v7035 = vunpack.c.l.s4 1983009808
        %v7036 = vunpack.c.0.s8 %v7035
        %v7037 = vlaneseq
        %v7038 = vshrl.u32 %v7037, 7
        %v7039 = vsub.s32 %v7036, %v7038
        %v7040 = vrot.slane %v6487, %v7039
        %v7042 = vunpack.c.l.s4 1983009808
        %v7043 = vunpack.c.0.s8 %v7042
        %v7044 = vlaneseq
        %v7045 = vshrl.u32 %v7044, 7
        %v7046 = vsub.s32 %v7043, %v7045
        %v7047 = vrot.slane %v7033, %v7046
        %v7048 = vcombine.high %v7040, %v7040
        %v7049 = vcombine.high %v7047, %v7047
        %v7050 = vcombine.high %v6488, %v6488
        %v7052 = vunpack.c.l.s4 1983009808
        %v7053 = vunpack.c.0.s8 %v7052
        %v7054 = vlaneseq
        %v7055 = vshrl.u32 %v7054, 7
        %v7056 = vsub.s32 %v7053, %v7055
        %v7057 = vrot.slane %v6488, %v7056
        %v7059 = vunpack.c.l.s4 1983009808
        %v7060 = vunpack.c.0.s8 %v7059
        %v7061 = vlaneseq
        %v7062 = vshrl.u32 %v7061, 7
        %v7063 = vsub.s32 %v7060, %v7062
        %v7064 = vrot.slane %v7050, %v7063
        %v7065 = vcombine.high %v7057, %v7057
        %v7066 = vcombine.high %v7064, %v7064
        %v7067 = vcombine.high %v6489, %v6489
        %v7069 = vunpack.c.l.s4 1983009808
        %v7070 = vunpack.c.0.s8 %v7069
        %v7071 = vlaneseq
        %v7072 = vshrl.u32 %v7071, 7
        %v7073 = vsub.s32 %v7070, %v7072
        %v7074 = vrot.slane %v6489, %v7073
        %v7076 = vunpack.c.l.s4 1983009808
        %v7077 = vunpack.c.0.s8 %v7076
        %v7078 = vlaneseq
        %v7079 = vshrl.u32 %v7078, 7
        %v7080 = vsub.s32 %v7077, %v7079
        %v7081 = vrot.slane %v7067, %v7080
        %v7082 = vcombine.high %v7074, %v7074
        %v7083 = vcombine.high %v7081, %v7081
        %v7084 = vcombine.high %v6490, %v6490
        %v7086 = vunpack.c.l.s4 1983009808
        %v7087 = vunpack.c.0.s8 %v7086
        %v7088 = vlaneseq
        %v7089 = vshrl.u32 %v7088, 7
        %v7090 = vsub.s32 %v7087, %v7089
        %v7091 = vrot.slane %v6490, %v7090
        %v7093 = vunpack.c.l.s4 1983009808
        %v7094 = vunpack.c.0.s8 %v7093
        %v7095 = vlaneseq
        %v7096 = vshrl.u32 %v7095, 7
        %v7097 = vsub.s32 %v7094, %v7096
        %v7098 = vrot.slane %v7084, %v7097
        %v7099 = vcombine.high %v7091, %v7091
        %v7100 = vcombine.high %v7098, %v7098
        %v7101 = vcombine.high %v6491, %v6491
        %v7103 = vunpack.c.l.s4 1983009808
        %v7104 = vunpack.c.0.s8 %v7103
        %v7105 = vlaneseq
        %v7106 = vshrl.u32 %v7105, 7
        %v7107 = vsub.s32 %v7104, %v7106
        %v7108 = vrot.slane %v6491, %v7107
        %v7110 = vunpack.c.l.s4 1983009808
        %v7111 = vunpack.c.0.s8 %v7110
        %v7112 = vlaneseq
        %v7113 = vshrl.u32 %v7112, 7
        %v7114 = vsub.s32 %v7111, %v7113
        %v7115 = vrot.slane %v7101, %v7114
        %v7116 = vcombine.high %v7108, %v7108
        %v7117 = vcombine.high %v7115, %v7115
        %v7118 = vcombine.high %v6492, %v6492
        %v7120 = vunpack.c.l.s4 1983009808
        %v7121 = vunpack.c.0.s8 %v7120
        %v7122 = vlaneseq
        %v7123 = vshrl.u32 %v7122, 7
        %v7124 = vsub.s32 %v7121, %v7123
        %v7125 = vrot.slane %v6492, %v7124
        %v7127 = vunpack.c.l.s4 1983009808
        %v7128 = vunpack.c.0.s8 %v7127
        %v7129 = vlaneseq
        %v7130 = vshrl.u32 %v7129, 7
        %v7131 = vsub.s32 %v7128, %v7130
        %v7132 = vrot.slane %v7118, %v7131
        %v7133 = vcombine.high %v7125, %v7125
        %v7134 = vcombine.high %v7132, %v7132
        %v7263 = vsel %vm256, %v6598, -inf
        %v7264 = vsel %vm256, %v6632, -inf
        %v7265 = vmax.f32 %v7263, %v7264
        %v7266 = vrot.slane %v7265, 4
        %v7267 = vmax.f32 %v7265, %v7266
        %v7268 = vrot.slane %v7267, 2
        %v7269 = vmax.f32 %v7267, %v7268
        %v7270 = vrot.slane %v7269, 1
        %v7271 = vmax.f32 %v7269, %v7270
        %v7272 = vsel %vm256, %v6606, -inf
        %v7273 = vsel %vm256, %v6640, -inf
        %v7274 = vmax.f32 %v7272, %v7273
        %v7275 = vrot.slane %v7274, 4
        %v7276 = vmax.f32 %v7274, %v7275
        %v7277 = vrot.slane %v7276, 2
        %v7278 = vmax.f32 %v7276, %v7277
        %v7279 = vrot.slane %v7278, 1
        %v7280 = vmax.f32 %v7278, %v7279
        %v7281 = vsel %vm256, %v6605, -inf
        %v7282 = vsel %vm256, %v6639, -inf
        %v7283 = vmax.f32 %v7281, %v7282
        %v7284 = vrot.slane %v7283, 4
        %v7285 = vmax.f32 %v7283, %v7284
        %v7286 = vrot.slane %v7285, 2
        %v7287 = vmax.f32 %v7285, %v7286
        %v7288 = vrot.slane %v7287, 1
        %v7289 = vmax.f32 %v7287, %v7288
        %v7290 = vsel %vm256, %v6607, -inf
        %v7291 = vsel %vm256, %v6641, -inf
        %v7292 = vmax.f32 %v7290, %v7291
        %v7293 = vrot.slane %v7292, 4
        %v7294 = vmax.f32 %v7292, %v7293
        %v7295 = vrot.slane %v7294, 2
        %v7296 = vmax.f32 %v7294, %v7295
        %v7297 = vrot.slane %v7296, 1
        %v7298 = vmax.f32 %v7296, %v7297
        %v7299 = vsel %vm256, %v6615, -inf
        %v7300 = vsel %vm256, %v6649, -inf
        %v7301 = vmax.f32 %v7299, %v7300
        %v7302 = vrot.slane %v7301, 4
        %v7303 = vmax.f32 %v7301, %v7302
        %v7304 = vrot.slane %v7303, 2
        %v7305 = vmax.f32 %v7303, %v7304
        %v7306 = vrot.slane %v7305, 1
        %v7307 = vmax.f32 %v7305, %v7306
        %v7308 = vsel %vm256, %v6623, -inf
        %v7309 = vsel %vm256, %v6657, -inf
        %v7310 = vmax.f32 %v7308, %v7309
        %v7311 = vrot.slane %v7310, 4
        %v7312 = vmax.f32 %v7310, %v7311
        %v7313 = vrot.slane %v7312, 2
        %v7314 = vmax.f32 %v7312, %v7313
        %v7315 = vrot.slane %v7314, 1
        %v7316 = vmax.f32 %v7314, %v7315
        %v7317 = vsel %vm256, %v6622, -inf
        %v7318 = vsel %vm256, %v6656, -inf
        %v7319 = vmax.f32 %v7317, %v7318
        %v7320 = vrot.slane %v7319, 4
        %v7321 = vmax.f32 %v7319, %v7320
        %v7322 = vrot.slane %v7321, 2
        %v7323 = vmax.f32 %v7321, %v7322
        %v7324 = vrot.slane %v7323, 1
        %v7325 = vmax.f32 %v7323, %v7324
        %v7326 = vsel %vm256, %v6624, -inf
        %v7327 = vsel %vm256, %v6658, -inf
        %v7328 = vmax.f32 %v7326, %v7327
        %v7329 = vrot.slane %v7328, 4
        %v7330 = vmax.f32 %v7328, %v7329
        %v7331 = vrot.slane %v7330, 2
        %v7332 = vmax.f32 %v7330, %v7331
        %v7333 = vrot.slane %v7332, 1
        %v7334 = vmax.f32 %v7332, %v7333
        %v7335 = vsel %vm256, %v6666, -inf
        %v7336 = vsel %vm256, %v6700, -inf
        %v7337 = vmax.f32 %v7335, %v7336
        %v7338 = vrot.slane %v7337, 4
        %v7339 = vmax.f32 %v7337, %v7338
        %v7340 = vrot.slane %v7339, 2
        %v7341 = vmax.f32 %v7339, %v7340
        %v7342 = vrot.slane %v7341, 1
        %v7343 = vmax.f32 %v7341, %v7342
        %v7344 = vsel %vm256, %v6674, -inf
        %v7345 = vsel %vm256, %v6708, -inf
        %v7346 = vmax.f32 %v7344, %v7345
        %v7347 = vrot.slane %v7346, 4
        %v7348 = vmax.f32 %v7346, %v7347
        %v7349 = vrot.slane %v7348, 2
        %v7350 = vmax.f32 %v7348, %v7349
        %v7351 = vrot.slane %v7350, 1
        %v7352 = vmax.f32 %v7350, %v7351
        %v7353 = vsel %vm256, %v6673, -inf
        %v7354 = vsel %vm256, %v6707, -inf
        %v7355 = vmax.f32 %v7353, %v7354
        %v7356 = vrot.slane %v7355, 4
        %v7357 = vmax.f32 %v7355, %v7356
        %v7358 = vrot.slane %v7357, 2
        %v7359 = vmax.f32 %v7357, %v7358
        %v7360 = vrot.slane %v7359, 1
        %v7361 = vmax.f32 %v7359, %v7360
        %v7362 = vsel %vm256, %v6675, -inf
        %v7363 = vsel %vm256, %v6709, -inf
        %v7364 = vmax.f32 %v7362, %v7363
        %v7365 = vrot.slane %v7364, 4
        %v7366 = vmax.f32 %v7364, %v7365
        %v7367 = vrot.slane %v7366, 2
        %v7368 = vmax.f32 %v7366, %v7367
        %v7369 = vrot.slane %v7368, 1
        %v7370 = vmax.f32 %v7368, %v7369
        %v7371 = vsel %vm256, %v6683, -inf
        %v7372 = vsel %vm256, %v6717, -inf
        %v7373 = vmax.f32 %v7371, %v7372
        %v7374 = vrot.slane %v7373, 4
        %v7375 = vmax.f32 %v7373, %v7374
        %v7376 = vrot.slane %v7375, 2
        %v7377 = vmax.f32 %v7375, %v7376
        %v7378 = vrot.slane %v7377, 1
        %v7379 = vmax.f32 %v7377, %v7378
        %v7380 = vsel %vm256, %v6691, -inf
        %v7381 = vsel %vm256, %v6725, -inf
        %v7382 = vmax.f32 %v7380, %v7381
        %v7383 = vrot.slane %v7382, 4
        %v7384 = vmax.f32 %v7382, %v7383
        %v7385 = vrot.slane %v7384, 2
        %v7386 = vmax.f32 %v7384, %v7385
        %v7387 = vrot.slane %v7386, 1
        %v7388 = vmax.f32 %v7386, %v7387
        %v7389 = vsel %vm256, %v6690, -inf
        %v7390 = vsel %vm256, %v6724, -inf
        %v7391 = vmax.f32 %v7389, %v7390
        %v7392 = vrot.slane %v7391, 4
        %v7393 = vmax.f32 %v7391, %v7392
        %v7394 = vrot.slane %v7393, 2
        %v7395 = vmax.f32 %v7393, %v7394
        %v7396 = vrot.slane %v7395, 1
        %v7397 = vmax.f32 %v7395, %v7396
        %v7398 = vsel %vm256, %v6692, -inf
        %v7399 = vsel %vm256, %v6726, -inf
        %v7400 = vmax.f32 %v7398, %v7399
        %v7401 = vrot.slane %v7400, 4
        %v7402 = vmax.f32 %v7400, %v7401
        %v7403 = vrot.slane %v7402, 2
        %v7404 = vmax.f32 %v7402, %v7403
        %v7405 = vrot.slane %v7404, 1
        %v7406 = vmax.f32 %v7404, %v7405
        %v7407 = vsel %vm256, %v6734, -inf
        %v7408 = vsel %vm256, %v6768, -inf
        %v7409 = vmax.f32 %v7407, %v7408
        %v7410 = vrot.slane %v7409, 4
        %v7411 = vmax.f32 %v7409, %v7410
        %v7412 = vrot.slane %v7411, 2
        %v7413 = vmax.f32 %v7411, %v7412
        %v7414 = vrot.slane %v7413, 1
        %v7415 = vmax.f32 %v7413, %v7414
        %v7416 = vsel %vm256, %v6742, -inf
        %v7417 = vsel %vm256, %v6776, -inf
        %v7418 = vmax.f32 %v7416, %v7417
        %v7419 = vrot.slane %v7418, 4
        %v7420 = vmax.f32 %v7418, %v7419
        %v7421 = vrot.slane %v7420, 2
        %v7422 = vmax.f32 %v7420, %v7421
        %v7423 = vrot.slane %v7422, 1
        %v7424 = vmax.f32 %v7422, %v7423
        %v7425 = vsel %vm256, %v6741, -inf
        %v7426 = vsel %vm256, %v6775, -inf
        %v7427 = vmax.f32 %v7425, %v7426
        %v7428 = vrot.slane %v7427, 4
        %v7429 = vmax.f32 %v7427, %v7428
        %v7430 = vrot.slane %v7429, 2
        %v7431 = vmax.f32 %v7429, %v7430
        %v7432 = vrot.slane %v7431, 1
        %v7433 = vmax.f32 %v7431, %v7432
        %v7434 = vsel %vm256, %v6743, -inf
        %v7435 = vsel %vm256, %v6777, -inf
        %v7436 = vmax.f32 %v7434, %v7435
        %v7437 = vrot.slane %v7436, 4
        %v7438 = vmax.f32 %v7436, %v7437
        %v7439 = vrot.slane %v7438, 2
        %v7440 = vmax.f32 %v7438, %v7439
        %v7441 = vrot.slane %v7440, 1
        %v7442 = vmax.f32 %v7440, %v7441
        %v7443 = vsel %vm256, %v6751, -inf
        %v7444 = vsel %vm256, %v6785, -inf
        %v7445 = vmax.f32 %v7443, %v7444
        %v7446 = vrot.slane %v7445, 4
        %v7447 = vmax.f32 %v7445, %v7446
        %v7448 = vrot.slane %v7447, 2
        %v7449 = vmax.f32 %v7447, %v7448
        %v7450 = vrot.slane %v7449, 1
        %v7451 = vmax.f32 %v7449, %v7450
        %v7452 = vsel %vm256, %v6759, -inf
        %v7453 = vsel %vm256, %v6793, -inf
        %v7454 = vmax.f32 %v7452, %v7453
        %v7455 = vrot.slane %v7454, 4
        %v7456 = vmax.f32 %v7454, %v7455
        %v7457 = vrot.slane %v7456, 2
        %v7458 = vmax.f32 %v7456, %v7457
        %v7459 = vrot.slane %v7458, 1
        %v7460 = vmax.f32 %v7458, %v7459
        %v7461 = vsel %vm256, %v6758, -inf
        %v7462 = vsel %vm256, %v6792, -inf
        %v7463 = vmax.f32 %v7461, %v7462
        %v7464 = vrot.slane %v7463, 4
        %v7465 = vmax.f32 %v7463, %v7464
        %v7466 = vrot.slane %v7465, 2
        %v7467 = vmax.f32 %v7465, %v7466
        %v7468 = vrot.slane %v7467, 1
        %v7469 = vmax.f32 %v7467, %v7468
        %v7470 = vsel %vm256, %v6760, -inf
        %v7471 = vsel %vm256, %v6794, -inf
        %v7472 = vmax.f32 %v7470, %v7471
        %v7473 = vrot.slane %v7472, 4
        %v7474 = vmax.f32 %v7472, %v7473
        %v7475 = vrot.slane %v7474, 2
        %v7476 = vmax.f32 %v7474, %v7475
        %v7477 = vrot.slane %v7476, 1
        %v7478 = vmax.f32 %v7476, %v7477
        %v7479 = vsel %vm256, %v6802, -inf
        %v7480 = vsel %vm256, %v6836, -inf
        %v7481 = vmax.f32 %v7479, %v7480
        %v7482 = vrot.slane %v7481, 4
        %v7483 = vmax.f32 %v7481, %v7482
        %v7484 = vrot.slane %v7483, 2
        %v7485 = vmax.f32 %v7483, %v7484
        %v7486 = vrot.slane %v7485, 1
        %v7487 = vmax.f32 %v7485, %v7486
        %v7488 = vsel %vm256, %v6810, -inf
        %v7489 = vsel %vm256, %v6844, -inf
        %v7490 = vmax.f32 %v7488, %v7489
        %v7491 = vrot.slane %v7490, 4
        %v7492 = vmax.f32 %v7490, %v7491
        %v7493 = vrot.slane %v7492, 2
        %v7494 = vmax.f32 %v7492, %v7493
        %v7495 = vrot.slane %v7494, 1
        %v7496 = vmax.f32 %v7494, %v7495
        %v7497 = vsel %vm256, %v6809, -inf
        %v7498 = vsel %vm256, %v6843, -inf
        %v7499 = vmax.f32 %v7497, %v7498
        %v7500 = vrot.slane %v7499, 4
        %v7501 = vmax.f32 %v7499, %v7500
        %v7502 = vrot.slane %v7501, 2
        %v7503 = vmax.f32 %v7501, %v7502
        %v7504 = vrot.slane %v7503, 1
        %v7505 = vmax.f32 %v7503, %v7504
        %v7506 = vsel %vm256, %v6811, -inf
        %v7507 = vsel %vm256, %v6845, -inf
        %v7508 = vmax.f32 %v7506, %v7507
        %v7509 = vrot.slane %v7508, 4
        %v7510 = vmax.f32 %v7508, %v7509
        %v7511 = vrot.slane %v7510, 2
        %v7512 = vmax.f32 %v7510, %v7511
        %v7513 = vrot.slane %v7512, 1
        %v7514 = vmax.f32 %v7512, %v7513
        %v7515 = vsel %vm256, %v6819, -inf
        %v7516 = vsel %vm256, %v6853, -inf
        %v7517 = vmax.f32 %v7515, %v7516
        %v7518 = vrot.slane %v7517, 4
        %v7519 = vmax.f32 %v7517, %v7518
        %v7520 = vrot.slane %v7519, 2
        %v7521 = vmax.f32 %v7519, %v7520
        %v7522 = vrot.slane %v7521, 1
        %v7523 = vmax.f32 %v7521, %v7522
        %v7524 = vsel %vm256, %v6827, -inf
        %v7525 = vsel %vm256, %v6861, -inf
        %v7526 = vmax.f32 %v7524, %v7525
        %v7527 = vrot.slane %v7526, 4
        %v7528 = vmax.f32 %v7526, %v7527
        %v7529 = vrot.slane %v7528, 2
        %v7530 = vmax.f32 %v7528, %v7529
        %v7531 = vrot.slane %v7530, 1
        %v7532 = vmax.f32 %v7530, %v7531
        %v7533 = vsel %vm256, %v6826, -inf
        %v7534 = vsel %vm256, %v6860, -inf
        %v7535 = vmax.f32 %v7533, %v7534
        %v7536 = vrot.slane %v7535, 4
        %v7537 = vmax.f32 %v7535, %v7536
        %v7538 = vrot.slane %v7537, 2
        %v7539 = vmax.f32 %v7537, %v7538
        %v7540 = vrot.slane %v7539, 1
        %v7541 = vmax.f32 %v7539, %v7540
        %v7542 = vsel %vm256, %v6828, -inf
        %v7543 = vsel %vm256, %v6862, -inf
        %v7544 = vmax.f32 %v7542, %v7543
        %v7545 = vrot.slane %v7544, 4
        %v7546 = vmax.f32 %v7544, %v7545
        %v7547 = vrot.slane %v7546, 2
        %v7548 = vmax.f32 %v7546, %v7547
        %v7549 = vrot.slane %v7548, 1
        %v7550 = vmax.f32 %v7548, %v7549
        %v7551 = vsel %vm256, %v6870, -inf
        %v7552 = vsel %vm256, %v6904, -inf
        %v7553 = vmax.f32 %v7551, %v7552
        %v7554 = vrot.slane %v7553, 4
        %v7555 = vmax.f32 %v7553, %v7554
        %v7556 = vrot.slane %v7555, 2
        %v7557 = vmax.f32 %v7555, %v7556
        %v7558 = vrot.slane %v7557, 1
        %v7559 = vmax.f32 %v7557, %v7558
        %v7560 = vsel %vm256, %v6878, -inf
        %v7561 = vsel %vm256, %v6912, -inf
        %v7562 = vmax.f32 %v7560, %v7561
        %v7563 = vrot.slane %v7562, 4
        %v7564 = vmax.f32 %v7562, %v7563
        %v7565 = vrot.slane %v7564, 2
        %v7566 = vmax.f32 %v7564, %v7565
        %v7567 = vrot.slane %v7566, 1
        %v7568 = vmax.f32 %v7566, %v7567
        %v7569 = vsel %vm256, %v6877, -inf
        %v7570 = vsel %vm256, %v6911, -inf
        %v7571 = vmax.f32 %v7569, %v7570
        %v7572 = vrot.slane %v7571, 4
        %v7573 = vmax.f32 %v7571, %v7572
        %v7574 = vrot.slane %v7573, 2
        %v7575 = vmax.f32 %v7573, %v7574
        %v7576 = vrot.slane %v7575, 1
        %v7577 = vmax.f32 %v7575, %v7576
        %v7578 = vsel %vm256, %v6879, -inf
        %v7579 = vsel %vm256, %v6913, -inf
        %v7580 = vmax.f32 %v7578, %v7579
        %v7581 = vrot.slane %v7580, 4
        %v7582 = vmax.f32 %v7580, %v7581
        %v7583 = vrot.slane %v7582, 2
        %v7584 = vmax.f32 %v7582, %v7583
        %v7585 = vrot.slane %v7584, 1
        %v7586 = vmax.f32 %v7584, %v7585
        %v7587 = vsel %vm256, %v6887, -inf
        %v7588 = vsel %vm256, %v6921, -inf
        %v7589 = vmax.f32 %v7587, %v7588
        %v7590 = vrot.slane %v7589, 4
        %v7591 = vmax.f32 %v7589, %v7590
        %v7592 = vrot.slane %v7591, 2
        %v7593 = vmax.f32 %v7591, %v7592
        %v7594 = vrot.slane %v7593, 1
        %v7595 = vmax.f32 %v7593, %v7594
        %v7596 = vsel %vm256, %v6895, -inf
        %v7597 = vsel %vm256, %v6929, -inf
        %v7598 = vmax.f32 %v7596, %v7597
        %v7599 = vrot.slane %v7598, 4
        %v7600 = vmax.f32 %v7598, %v7599
        %v7601 = vrot.slane %v7600, 2
        %v7602 = vmax.f32 %v7600, %v7601
        %v7603 = vrot.slane %v7602, 1
        %v7604 = vmax.f32 %v7602, %v7603
        %v7605 = vsel %vm256, %v6894, -inf
        %v7606 = vsel %vm256, %v6928, -inf
        %v7607 = vmax.f32 %v7605, %v7606
        %v7608 = vrot.slane %v7607, 4
        %v7609 = vmax.f32 %v7607, %v7608
        %v7610 = vrot.slane %v7609, 2
        %v7611 = vmax.f32 %v7609, %v7610
        %v7612 = vrot.slane %v7611, 1
        %v7613 = vmax.f32 %v7611, %v7612
        %v7614 = vsel %vm256, %v6896, -inf
        %v7615 = vsel %vm256, %v6930, -inf
        %v7616 = vmax.f32 %v7614, %v7615
        %v7617 = vrot.slane %v7616, 4
        %v7618 = vmax.f32 %v7616, %v7617
        %v7619 = vrot.slane %v7618, 2
        %v7620 = vmax.f32 %v7618, %v7619
        %v7621 = vrot.slane %v7620, 1
        %v7622 = vmax.f32 %v7620, %v7621
        %v7623 = vsel %vm256, %v6938, -inf
        %v7624 = vsel %vm256, %v6972, -inf
        %v7625 = vmax.f32 %v7623, %v7624
        %v7626 = vrot.slane %v7625, 4
        %v7627 = vmax.f32 %v7625, %v7626
        %v7628 = vrot.slane %v7627, 2
        %v7629 = vmax.f32 %v7627, %v7628
        %v7630 = vrot.slane %v7629, 1
        %v7631 = vmax.f32 %v7629, %v7630
        %v7632 = vsel %vm256, %v6946, -inf
        %v7633 = vsel %vm256, %v6980, -inf
        %v7634 = vmax.f32 %v7632, %v7633
        %v7635 = vrot.slane %v7634, 4
        %v7636 = vmax.f32 %v7634, %v7635
        %v7637 = vrot.slane %v7636, 2
        %v7638 = vmax.f32 %v7636, %v7637
        %v7639 = vrot.slane %v7638, 1
        %v7640 = vmax.f32 %v7638, %v7639
        %v7641 = vsel %vm256, %v6945, -inf
        %v7642 = vsel %vm256, %v6979, -inf
        %v7643 = vmax.f32 %v7641, %v7642
        %v7644 = vrot.slane %v7643, 4
        %v7645 = vmax.f32 %v7643, %v7644
        %v7646 = vrot.slane %v7645, 2
        %v7647 = vmax.f32 %v7645, %v7646
        %v7648 = vrot.slane %v7647, 1
        %v7649 = vmax.f32 %v7647, %v7648
        %v7650 = vsel %vm256, %v6947, -inf
        %v7651 = vsel %vm256, %v6981, -inf
        %v7652 = vmax.f32 %v7650, %v7651
        %v7653 = vrot.slane %v7652, 4
        %v7654 = vmax.f32 %v7652, %v7653
        %v7655 = vrot.slane %v7654, 2
        %v7656 = vmax.f32 %v7654, %v7655
        %v7657 = vrot.slane %v7656, 1
        %v7658 = vmax.f32 %v7656, %v7657
        %v7659 = vsel %vm256, %v6955, -inf
        %v7660 = vsel %vm256, %v6989, -inf
        %v7661 = vmax.f32 %v7659, %v7660
        %v7662 = vrot.slane %v7661, 4
        %v7663 = vmax.f32 %v7661, %v7662
        %v7664 = vrot.slane %v7663, 2
        %v7665 = vmax.f32 %v7663, %v7664
        %v7666 = vrot.slane %v7665, 1
        %v7667 = vmax.f32 %v7665, %v7666
        %v7668 = vsel %vm256, %v6963, -inf
        %v7669 = vsel %vm256, %v6997, -inf
        %v7670 = vmax.f32 %v7668, %v7669
        %v7671 = vrot.slane %v7670, 4
        %v7672 = vmax.f32 %v7670, %v7671
        %v7673 = vrot.slane %v7672, 2
        %v7674 = vmax.f32 %v7672, %v7673
        %v7675 = vrot.slane %v7674, 1
        %v7676 = vmax.f32 %v7674, %v7675
        %v7677 = vsel %vm256, %v6962, -inf
        %v7678 = vsel %vm256, %v6996, -inf
        %v7679 = vmax.f32 %v7677, %v7678
        %v7680 = vrot.slane %v7679, 4
        %v7681 = vmax.f32 %v7679, %v7680
        %v7682 = vrot.slane %v7681, 2
        %v7683 = vmax.f32 %v7681, %v7682
        %v7684 = vrot.slane %v7683, 1
        %v7685 = vmax.f32 %v7683, %v7684
        %v7686 = vsel %vm256, %v6964, -inf
        %v7687 = vsel %vm256, %v6998, -inf
        %v7688 = vmax.f32 %v7686, %v7687
        %v7689 = vrot.slane %v7688, 4
        %v7690 = vmax.f32 %v7688, %v7689
        %v7691 = vrot.slane %v7690, 2
        %v7692 = vmax.f32 %v7690, %v7691
        %v7693 = vrot.slane %v7692, 1
        %v7694 = vmax.f32 %v7692, %v7693
        %v7695 = vsel %vm256, %v7006, -inf
        %v7696 = vsel %vm256, %v7040, -inf
        %v7697 = vmax.f32 %v7695, %v7696
        %v7698 = vrot.slane %v7697, 4
        %v7699 = vmax.f32 %v7697, %v7698
        %v7700 = vrot.slane %v7699, 2
        %v7701 = vmax.f32 %v7699, %v7700
        %v7702 = vrot.slane %v7701, 1
        %v7703 = vmax.f32 %v7701, %v7702
        %v7704 = vsel %vm256, %v7014, -inf
        %v7705 = vsel %vm256, %v7048, -inf
        %v7706 = vmax.f32 %v7704, %v7705
        %v7707 = vrot.slane %v7706, 4
        %v7708 = vmax.f32 %v7706, %v7707
        %v7709 = vrot.slane %v7708, 2
        %v7710 = vmax.f32 %v7708, %v7709
        %v7711 = vrot.slane %v7710, 1
        %v7712 = vmax.f32 %v7710, %v7711
        %v7713 = vsel %vm256, %v7013, -inf
        %v7714 = vsel %vm256, %v7047, -inf
        %v7715 = vmax.f32 %v7713, %v7714
        %v7716 = vrot.slane %v7715, 4
        %v7717 = vmax.f32 %v7715, %v7716
        %v7718 = vrot.slane %v7717, 2
        %v7719 = vmax.f32 %v7717, %v7718
        %v7720 = vrot.slane %v7719, 1
        %v7721 = vmax.f32 %v7719, %v7720
        %v7722 = vsel %vm256, %v7015, -inf
        %v7723 = vsel %vm256, %v7049, -inf
        %v7724 = vmax.f32 %v7722, %v7723
        %v7725 = vrot.slane %v7724, 4
        %v7726 = vmax.f32 %v7724, %v7725
        %v7727 = vrot.slane %v7726, 2
        %v7728 = vmax.f32 %v7726, %v7727
        %v7729 = vrot.slane %v7728, 1
        %v7730 = vmax.f32 %v7728, %v7729
        %v7731 = vsel %vm256, %v7023, -inf
        %v7732 = vsel %vm256, %v7057, -inf
        %v7733 = vmax.f32 %v7731, %v7732
        %v7734 = vrot.slane %v7733, 4
        %v7735 = vmax.f32 %v7733, %v7734
        %v7736 = vrot.slane %v7735, 2
        %v7737 = vmax.f32 %v7735, %v7736
        %v7738 = vrot.slane %v7737, 1
        %v7739 = vmax.f32 %v7737, %v7738
        %v7740 = vsel %vm256, %v7031, -inf
        %v7741 = vsel %vm256, %v7065, -inf
        %v7742 = vmax.f32 %v7740, %v7741
        %v7743 = vrot.slane %v7742, 4
        %v7744 = vmax.f32 %v7742, %v7743
        %v7745 = vrot.slane %v7744, 2
        %v7746 = vmax.f32 %v7744, %v7745
        %v7747 = vrot.slane %v7746, 1
        %v7748 = vmax.f32 %v7746, %v7747
        %v7749 = vsel %vm256, %v7030, -inf
        %v7750 = vsel %vm256, %v7064, -inf
        %v7751 = vmax.f32 %v7749, %v7750
        %v7752 = vrot.slane %v7751, 4
        %v7753 = vmax.f32 %v7751, %v7752
        %v7754 = vrot.slane %v7753, 2
        %v7755 = vmax.f32 %v7753, %v7754
        %v7756 = vrot.slane %v7755, 1
        %v7757 = vmax.f32 %v7755, %v7756
        %v7758 = vsel %vm256, %v7032, -inf
        %v7759 = vsel %vm256, %v7066, -inf
        %v7760 = vmax.f32 %v7758, %v7759
        %v7761 = vrot.slane %v7760, 4
        %v7762 = vmax.f32 %v7760, %v7761
        %v7763 = vrot.slane %v7762, 2
        %v7764 = vmax.f32 %v7762, %v7763
        %v7765 = vrot.slane %v7764, 1
        %v7766 = vmax.f32 %v7764, %v7765
        %v7767 = vsel %vm256, %v7074, -inf
        %v7768 = vsel %vm256, %v7108, -inf
        %v7769 = vmax.f32 %v7767, %v7768
        %v7770 = vrot.slane %v7769, 4
        %v7771 = vmax.f32 %v7769, %v7770
        %v7772 = vrot.slane %v7771, 2
        %v7773 = vmax.f32 %v7771, %v7772
        %v7774 = vrot.slane %v7773, 1
        %v7775 = vmax.f32 %v7773, %v7774
        %v7776 = vsel %vm256, %v7082, -inf
        %v7777 = vsel %vm256, %v7116, -inf
        %v7778 = vmax.f32 %v7776, %v7777
        %v7779 = vrot.slane %v7778, 4
        %v7780 = vmax.f32 %v7778, %v7779
        %v7781 = vrot.slane %v7780, 2
        %v7782 = vmax.f32 %v7780, %v7781
        %v7783 = vrot.slane %v7782, 1
        %v7784 = vmax.f32 %v7782, %v7783
        %v7785 = vsel %vm256, %v7081, -inf
        %v7786 = vsel %vm256, %v7115, -inf
        %v7787 = vmax.f32 %v7785, %v7786
        %v7788 = vrot.slane %v7787, 4
        %v7789 = vmax.f32 %v7787, %v7788
        %v7790 = vrot.slane %v7789, 2
        %v7791 = vmax.f32 %v7789, %v7790
        %v7792 = vrot.slane %v7791, 1
        %v7793 = vmax.f32 %v7791, %v7792
        %v7794 = vsel %vm256, %v7083, -inf
        %v7795 = vsel %vm256, %v7117, -inf
        %v7796 = vmax.f32 %v7794, %v7795
        %v7797 = vrot.slane %v7796, 4
        %v7798 = vmax.f32 %v7796, %v7797
        %v7799 = vrot.slane %v7798, 2
        %v7800 = vmax.f32 %v7798, %v7799
        %v7801 = vrot.slane %v7800, 1
        %v7802 = vmax.f32 %v7800, %v7801
        %v7803 = vsel %vm256, %v7091, -inf
        %v7804 = vsel %vm256, %v7125, -inf
        %v7805 = vmax.f32 %v7803, %v7804
        %v7806 = vrot.slane %v7805, 4
        %v7807 = vmax.f32 %v7805, %v7806
        %v7808 = vrot.slane %v7807, 2
        %v7809 = vmax.f32 %v7807, %v7808
        %v7810 = vrot.slane %v7809, 1
        %v7811 = vmax.f32 %v7809, %v7810
        %v7812 = vsel %vm256, %v7099, -inf
        %v7813 = vsel %vm256, %v7133, -inf
        %v7814 = vmax.f32 %v7812, %v7813
        %v7815 = vrot.slane %v7814, 4
        %v7816 = vmax.f32 %v7814, %v7815
        %v7817 = vrot.slane %v7816, 2
        %v7818 = vmax.f32 %v7816, %v7817
        %v7819 = vrot.slane %v7818, 1
        %v7820 = vmax.f32 %v7818, %v7819
        %v7821 = vsel %vm256, %v7098, -inf
        %v7822 = vsel %vm256, %v7132, -inf
        %v7823 = vmax.f32 %v7821, %v7822
        %v7824 = vrot.slane %v7823, 4
        %v7825 = vmax.f32 %v7823, %v7824
        %v7826 = vrot.slane %v7825, 2
        %v7827 = vmax.f32 %v7825, %v7826
        %v7828 = vrot.slane %v7827, 1
        %v7829 = vmax.f32 %v7827, %v7828
        %v7830 = vsel %vm256, %v7100, -inf
        %v7831 = vsel %vm256, %v7134, -inf
        %v7832 = vmax.f32 %v7830, %v7831
        %v7833 = vrot.slane %v7832, 4
        %v7834 = vmax.f32 %v7832, %v7833
        %v7835 = vrot.slane %v7834, 2
        %v7836 = vmax.f32 %v7834, %v7835
        %v7837 = vrot.slane %v7836, 1
        %v7838 = vmax.f32 %v7836, %v7837
        %vm7903 = vcmask 1041409
        %v7904 = vsel %vm7903, %v7280, %v7271
        %vm7905 = vcmask 1042434
        %v7906 = vsel %vm7905, %v7289, %v7904
        %vm7907 = vcmask 1043459
        %v7908 = vsel %vm7907, %v7298, %v7906
        %vm7909 = vcmask 1044484
        %v7910 = vsel %vm7909, %v7307, %v7908
        %vm7911 = vcmask 1045509
        %v7912 = vsel %vm7911, %v7316, %v7910
        %vm7913 = vcmask 1046534
        %v7914 = vsel %vm7913, %v7325, %v7912
        %vm7915 = vcmask 1047559
        %v7916 = vsel %vm7915, %v7334, %v7914
        %v7917 = vsel %vm7903, %v7352, %v7343
        %v7918 = vsel %vm7905, %v7361, %v7917
        %v7919 = vsel %vm7907, %v7370, %v7918
        %v7920 = vsel %vm7909, %v7379, %v7919
        %v7921 = vsel %vm7911, %v7388, %v7920
        %v7922 = vsel %vm7913, %v7397, %v7921
        %v7923 = vsel %vm7915, %v7406, %v7922
        %v7924 = vsel %vm7903, %v7424, %v7415
        %v7925 = vsel %vm7905, %v7433, %v7924
        %v7926 = vsel %vm7907, %v7442, %v7925
        %v7927 = vsel %vm7909, %v7451, %v7926
        %v7928 = vsel %vm7911, %v7460, %v7927
        %v7929 = vsel %vm7913, %v7469, %v7928
        %v7930 = vsel %vm7915, %v7478, %v7929
        %v7931 = vsel %vm7903, %v7496, %v7487
        %v7932 = vsel %vm7905, %v7505, %v7931
        %v7933 = vsel %vm7907, %v7514, %v7932
        %v7934 = vsel %vm7909, %v7523, %v7933
        %v7935 = vsel %vm7911, %v7532, %v7934
        %v7936 = vsel %vm7913, %v7541, %v7935
        %v7937 = vsel %vm7915, %v7550, %v7936
        %v7938 = vsel %vm7903, %v7568, %v7559
        %v7939 = vsel %vm7905, %v7577, %v7938
        %v7940 = vsel %vm7907, %v7586, %v7939
        %v7941 = vsel %vm7909, %v7595, %v7940
        %v7942 = vsel %vm7911, %v7604, %v7941
        %v7943 = vsel %vm7913, %v7613, %v7942
        %v7944 = vsel %vm7915, %v7622, %v7943
        %v7945 = vsel %vm7903, %v7640, %v7631
        %v7946 = vsel %vm7905, %v7649, %v7945
        %v7947 = vsel %vm7907, %v7658, %v7946
        %v7948 = vsel %vm7909, %v7667, %v7947
        %v7949 = vsel %vm7911, %v7676, %v7948
        %v7950 = vsel %vm7913, %v7685, %v7949
        %v7951 = vsel %vm7915, %v7694, %v7950
        %v7952 = vsel %vm7903, %v7712, %v7703
        %v7953 = vsel %vm7905, %v7721, %v7952
        %v7954 = vsel %vm7907, %v7730, %v7953
        %v7955 = vsel %vm7909, %v7739, %v7954
        %v7956 = vsel %vm7911, %v7748, %v7955
        %v7957 = vsel %vm7913, %v7757, %v7956
        %v7958 = vsel %vm7915, %v7766, %v7957
        %v7959 = vsel %vm7903, %v7784, %v7775
        %v7960 = vsel %vm7905, %v7793, %v7959
        %v7961 = vsel %vm7907, %v7802, %v7960
        %v7962 = vsel %vm7909, %v7811, %v7961
        %v7963 = vsel %vm7911, %v7820, %v7962
        %v7964 = vsel %vm7913, %v7829, %v7963
        %v7965 = vsel %vm7915, %v7838, %v7964
        %7974 = vxpose.xlu0.b32.start [1/16] %v7916, 128
        %7975 = vxpose.xlu0.b32.cont [2/16] %v7923, 128
        %7976 = vxpose.xlu0.b32.cont [3/16] %v7930, 128
        %7977 = vxpose.xlu0.b32.cont [4/16] %v7937, 128
        %7978 = vxpose.xlu0.b32.cont [5/16] %v7944, 128
        %7979 = vxpose.xlu0.b32.cont [6/16] %v7951, 128
        %7980 = vxpose.xlu0.b32.cont [7/16] %v7958, 128
        %7981 = vxpose.xlu0.b32.cont [8/16] %v7965, 128
        %7982 = vxpose.xlu0.b32.cont [9/16] 0.0, 128
        %7983 = vxpose.xlu0.b32.cont [10/16] 0.0, 128
        %7984 = vxpose.xlu0.b32.cont [11/16] 0.0, 128
        %7985 = vxpose.xlu0.b32.cont [12/16] 0.0, 128
        %7986 = vxpose.xlu0.b32.cont [13/16] 0.0, 128
        %7987 = vxpose.xlu0.b32.cont [14/16] 0.0, 128
        %7988 = vxpose.xlu0.b32.cont [15/16] 0.0, 128
        %7989 = vxpose.xlu0.b32.end [16/16] 0.0, 128
        %v7990 = vpop.trf.xlu0
        %v7991 = vpop.trf.xlu0
        %v7992 = vpop.trf.xlu0
        %v7993 = vpop.trf.xlu0
        %v7994 = vpop.trf.xlu0
        %v7995 = vpop.trf.xlu0
        %v7996 = vpop.trf.xlu0
        %v7997 = vpop.trf.xlu0
        %v7998 = vpop.trf.xlu0
        %v7999 = vpop.trf.xlu0
        %v8000 = vpop.trf.xlu0
        %v8001 = vpop.trf.xlu0
        %v8002 = vpop.trf.xlu0
        %v8003 = vpop.trf.xlu0
        %v8004 = vpop.trf.xlu0
        %v8005 = vpop.trf.xlu0
        %vm8006 = vcmask 523264
        %8007 = vst.msk [vmem:[%s194] sm:$0xff] %vm8006, %v7990
        %s8008 = sand.u32 %s98, 1
        %s8009 = scalar_lea.sflag [#allocation5], %s8008
        %s8010 = sand.u32 %s98, 1
        %s8011 = smul.addr %s8010, 8
        %s8012 = scalar_lea.vmem [#allocation4], %s8011
        %s8013 = sand.u32 %s124, 1
        %s8014 = scalar_lea.sflag [#allocation7], %s8013
        %s8015 = sand.u32 %s124, 1
        %s8016 = smul.addr %s8015, 16
        %s8017 = scalar_lea.vmem [#allocation6], %s8016
        // Predicated region
        $region33: #{tpu_custom_call.1} parent=31 // pred_check
          %p8018 = pneg %p108
        $region34: #{tpu_custom_call.1} parent=31 // pred_check_branch
          %8020 = sbr.rel (%p8018) target = $region36
        $region35: #{tpu_custom_call.1} parent=31 // pred_region
          %s8022 = ssub.s32 128, 128
          %8023 = vsyncadd %s8009, %s8022
          %s8024 = smul.addr %s22, 128
          %s8025 = scalar_lea.hbm %s3, %s8024
          %s8027 = sshll.u32 %s8012, 4
          %s8028 = int_to_ptr.vmem [resolvable:$true] %s8027
          %8030 = dma.vmem_to_hbm [thread:$0]  %s8028, 128, %s8025, %s8009
        $region36: #{tpu_custom_call.1} parent=31 // pred_fallthru
          _
        // Predicated region
        $region37: #{tpu_custom_call.1} parent=31 // pred_check
          %p8031 = pneg %p134
        $region38: #{tpu_custom_call.1} parent=31 // pred_check_branch
          %8033 = sbr.rel (%p8031) target = $region40
        $region39: #{tpu_custom_call.1} parent=31 // pred_region
          %s8035 = ssub.s32 256, 256
          %8036 = vsyncadd %s8014, %s8035
          %s8037 = smul.addr %s22, 2
          %s8038 = smul.addr %s8037, 128
          %s8039 = scalar_lea.hbm %s4, %s8038
          %s8041 = sshll.u32 %s8017, 4
          %s8042 = int_to_ptr.vmem [resolvable:$true] %s8041
          %8044 = dma.vmem_to_hbm [thread:$0]  %s8042, 256, %s8039, %s8014
        $region40: #{tpu_custom_call.1} parent=31 // pred_fallthru
          _
      $region32: #{tpu_custom_call.1} parent=5 // pred_fallthru
        _
      %p8045 = scmp.le.s32.totalorder 2, %s17
      // Predicated region
      $region41: #{tpu_custom_call.1} parent=5 // pred_check
        %p8046 = pneg %p8045
      $region42: #{tpu_custom_call.1} parent=5 // pred_check_branch
        %8048 = sbr.rel (%p8046) target = $region44
      $region43: #{tpu_custom_call.1} parent=5 // pred_region
        %s8049 = ssub.s32 %s17, 2
        // Predicated region
        $region45: #{tpu_custom_call.1} parent=43 // pred_check
          %p8050 = pneg %p114
        $region46: #{tpu_custom_call.1} parent=43 // pred_check_branch
          %8052 = sbr.rel (%p8050) target = $region48
        $region47: #{tpu_custom_call.1} parent=43 // pred_region
          %s8053 = sand.u32 %s99, 1
          %s8054 = scalar_lea.sflag [#allocation5], %s8053
          %s8055 = sand.u32 %s99, 1
          %s8056 = smul.addr %s8055, 8
          %s8057 = scalar_lea.vmem [#allocation4], %s8056
          %8058 = dma.done %s8054, 128
        $region48: #{tpu_custom_call.1} parent=43 // pred_fallthru
          _
        // Predicated region
        $region49: #{tpu_custom_call.1} parent=43 // pred_check
          %p8059 = pneg %p140
        $region50: #{tpu_custom_call.1} parent=43 // pred_check_branch
          %8061 = sbr.rel (%p8059) target = $region52
        $region51: #{tpu_custom_call.1} parent=43 // pred_region
          %s8062 = sand.u32 %s125, 1
          %s8063 = scalar_lea.sflag [#allocation7], %s8062
          %s8064 = sand.u32 %s125, 1
          %s8065 = smul.addr %s8064, 16
          %s8066 = scalar_lea.vmem [#allocation6], %s8065
          %8067 = dma.done %s8063, 256
        $region52: #{tpu_custom_call.1} parent=43 // pred_fallthru
          _
      $region44: #{tpu_custom_call.1} parent=5 // pred_fallthru
        _
    $region6: #{tpu_custom_call.1} parent=1 // loop_footer
      %s21 = sadd.s32 1, %s17
    $region7: #{tpu_custom_call.1} parent=1 // loop_footer_branch
      %16 = sbr.rel target = $region3
    $region8: #{tpu_custom_call.1} parent=1 // loop_exit
      _
    %8068 = vsyncpa [#allocation5], 1
    %s8069 = scalar_lea.sflag [#allocation5], 1
    %8070 = vsyncpa %s8069, 1
    %8071 = vsyncpa [#allocation7], 1
    %s8072 = scalar_lea.sflag [#allocation7], 1
    %8073 = vsyncpa %s8072, 1

</llo_original>
